<compile_context>
chip_gen: v7x
topology: tpu7x:2x2x1
jax: 0.10.0
libtpu: 0.0.40
codegen_flags: <defaults>
</compile_context>

<pallas_src>
import functools

import numpy as np

import jax
import jax.numpy as jnp
from jax.experimental import pallas as pl
from jax.experimental.pallas import tpu as pltpu

# ----------------------------- model configuration ---------------------------
INPUT_SIZE = 8
CHANNELS = [16, 16, 16, 16, 48]          # channels[-1] == 3 * channels[1..3]
KERNEL_SIZES = [5, 3, 3, 3, 1]
DILATIONS = [1, 2, 3, 4, 1]
ATTENTION_CHANNELS = 16
RES2NET_SCALE = 4
SE_CHANNELS = 8
LIN_NEURONS = 12
BN_EPS = 1e-5
ASP_EPS = 1e-12

NB = len(CHANNELS) - 2                   # number of SERes2Net blocks (3)
C1 = CHANNELS[1]                         # 16
C4 = CHANNELS[-1]                        # 48
HID = C1 // RES2NET_SCALE                # 4

# MXU operand dtype.  Set to jnp.bfloat16 on v6e/v7x once scaled to production
# shapes (f32 accumulation is kept via preferred_element_type); stays f32 here
# (toy sizes, and v5e has no bf16 VPU/EUP for the elementwise epilogue).
MM_DTYPE = jnp.float32

WBANK_LANES = 128                        # lane-padded weight bank width
VBANK_ROWS = C4                          # max channel count of any vector (48)


def _align8(n):
    return (n + 7) // 8 * 8


def _make_layouts():
    """Static row/column layout of the packed weight / vector banks."""
    w_slots, v_slots = {}, {}
    woff = 0
    voff = 0

    def add_w(name, nr, nc):
        nonlocal woff
        assert nc <= WBANK_LANES
        w_slots[name] = (woff, nr, nc)
        woff = _align8(woff + nr)        # keep every slot sublane-tile aligned

    def add_v(name, ncols, nch):
        nonlocal voff
        assert nch <= VBANK_ROWS
        v_slots[name] = (voff, nch)
        voff += ncols

    add_w("w0", C1, KERNEL_SIZES[0] * INPUT_SIZE)
    add_v("b0", 3, C1)
    for j in range(NB):
        add_w(f"t1w{j}", C1, C1)
        add_v(f"t1{j}", 3, C1)
        for i in range(RES2NET_SCALE - 1):
            add_w(f"r2w{j}_{i}", HID, 3 * HID)     # [w_left | w_center | w_right]
            add_v(f"r2{j}_{i}", 3, HID)
        add_w(f"t2w{j}", C1, C1)
        add_v(f"t2{j}", 3, C1)
        add_w(f"se1w{j}", SE_CHANNELS, C1)
        add_v(f"se1b{j}", 1, SE_CHANNELS)
        add_w(f"se2w{j}", C1, SE_CHANNELS)
        add_v(f"se2b{j}", 1, C1)
    add_w("mfaw", C4, NB * C1)
    add_v("mfa", 3, C4)
    add_w("aspwx", ATTENTION_CHANNELS, C4)
    add_w("aspwms", ATTENTION_CHANNELS, 2 * C4)
    add_v("asp", 3, ATTENTION_CHANNELS)
    add_w("acw", C4, ATTENTION_CHANNELS)
    add_v("acb", 1, C4)
    add_v("abn", 4, C4)                   # mean-scale, mean-shift, std-scale, std-shift
    add_w("fcw", LIN_NEURONS, 2 * C4)
    add_v("fcb", 1, LIN_NEURONS)
    return w_slots, _align8(woff), v_slots, voff


W_SLOTS, W_TOTAL, V_SLOTS, V_TOTAL = _make_layouts()


# ------------------------------- fused kernel --------------------------------
def _ecapa_kernel(x0_ref, wbank_ref, vbank_ref, o_ref, ys_ref, *, seq_len, b_blk):
    """Entire ECAPA-TDNN forward for B_BLK utterances, resident in VMEM."""
    lblk = seq_len * b_blk

    def w(name):
        off, nr, nc = W_SLOTS[name]
        return wbank_ref[off:off + nr, 0:nc]

    def vec(name, idx=0):
        col, nch = V_SLOTS[name]
        return vbank_ref[0:nch, col + idx:col + idx + 1]          # (C, 1)

    def dot(a, b):
        return jnp.dot(a.astype(MM_DTYPE), b.astype(MM_DTYPE),
                       preferred_element_type=jnp.float32)

    def bn_relu(y, name):
        # conv bias -> ReLU -> folded inference-BN affine (all f32).  The bias
        # cannot be folded into the BN shift across the ReLU; each per-channel
        # vector is loaded / broadcast exactly once per grid step.
        y = jnp.maximum(y + vec(name, 0), 0.0)
        return y * vec(name, 1) + vec(name, 2)

    # ---- per-utterance lane position + segment matrices (from iota: no extra
    #      operands, no per-utterance (C, L) broadcasts in HBM).
    lane = jax.lax.broadcasted_iota(jnp.int32, (1, lblk), 1)
    if (seq_len & (seq_len - 1)) == 0:
        pos = jnp.bitwise_and(lane, seq_len - 1)                  # lane % T
    else:
        pos = lane - (lane // seq_len) * seq_len
    r = jax.lax.broadcasted_iota(jnp.int32, (lblk, b_blk), 0)
    c = jax.lax.broadcasted_iota(jnp.int32, (lblk, b_blk), 1)
    seg = jnp.where((r >= c * seq_len) & (r < (c + 1) * seq_len), 1.0, 0.0)   # (L, B)
    rb = jax.lax.broadcasted_iota(jnp.int32, (b_blk, lblk), 0)
    cb = jax.lax.broadcasted_iota(jnp.int32, (b_blk, lblk), 1)
    segb = jnp.where((cb >= rb * seq_len) & (cb < (rb + 1) * seq_len), 1.0, 0.0)  # (B, L)
    inv_t = 1.0 / float(seq_len)

    def reflect_taps(u, d, lmask, rmask):
        """left[p]=u_elem[|p-d|], right[p]=u_elem[reflect(p+d)] per utterance.

        Main term is a cyclic pltpu.roll over the concatenated axis; the <=d
        boundary columns of each utterance are fixed up with masked selects of
        a few more rolls (reflect 'same' padding, no (L, L) matmuls, no pads).
        """
        cache = {}

        def rol(s):
            s = s % lblk
            if s == 0:
                return u
            if s not in cache:
                cache[s] = pltpu.roll(u, s, 1)                    # XLU lane rotate
            return cache[s]

        left = rol(d)          # u[t - d] (cyclic)
        right = rol(-d)        # u[t + d] (cyclic)
        for i in range(d):
            left = jnp.where(lmask[i], rol(2 * i - d), left)      # needs u[d - i]
            right = jnp.where(rmask[i], rol(d - 2 * i), right)    # needs u[T-2-i... reflected]
        return left, right

    # ---- block 0: K=5 'same' conv; im2col pre-stacked in wrapper -> 1 matmul.
    x0 = x0_ref[0]                                                # (K0*F, L)
    h = bn_relu(dot(w("w0"), x0), "b0")                           # (C1, L)

    feats = []
    for j in range(NB):                                           # static unroll
        d = DILATIONS[j + 1]
        lmask = [pos == i for i in range(d)]
        rmask = [pos == (seq_len - 1 - i) for i in range(d)]
        res = h
        # -- tdnn1: ONE (C1,C1)@(C1,L) matmul, chunks taken as static slices.
        h1 = bn_relu(dot(w(f"t1w{j}"), h), f"t1{j}")              # (C1, L)
        # -- res2net chain (dilated K=3, reflect 'same'); y chunks staged into
        #    the (C1, L) VMEM scratch so tdnn2 is a single matmul.
        ys_ref[0:HID, :] = h1[0:HID, :]                           # y0 = x0 chunk
        prev = None
        for i in range(1, RES2NET_SCALE):
            u = h1[i * HID:(i + 1) * HID, :]
            if i > 1:
                u = u + prev
            lt, rt = reflect_taps(u, d, lmask, rmask)
            wi = w(f"r2w{j}_{i - 1}")                             # (HID, 3*HID)
            conv = (dot(wi[:, 0:HID], lt)
                    + dot(wi[:, HID:2 * HID], u)
                    + dot(wi[:, 2 * HID:3 * HID], rt))
            prev = bn_relu(conv, f"r2{j}_{i - 1}")
            ys_ref[i * HID:(i + 1) * HID, :] = prev
        # -- tdnn2: ONE matmul over the staged chunks.
        g = bn_relu(dot(w(f"t2w{j}"), ys_ref[...]), f"t2{j}")     # (C1, L)
        # -- SE block (lengths=None -> per-utterance time mean via seg matmul).
        sm = dot(g, seg) * inv_t                                  # (C1, B)
        s1 = jnp.maximum(dot(w(f"se1w{j}"), sm) + vec(f"se1b{j}"), 0.0)
        s2 = jax.nn.sigmoid(dot(w(f"se2w{j}"), s1) + vec(f"se2b{j}"))
        h = dot(s2, segb) * g + res                               # gate + residual
        feats.append(h)

    # ---- MFA: ONE matmul over the (tile-aligned) concat of the block outputs.
    hc = jnp.concatenate(feats, axis=0)                           # (3*C1, L)
    h = bn_relu(dot(w("mfaw"), hc), "mfa")                        # (C4, L)

    # ---- attentive statistics pooling (global context, lengths=None).
    gmean = dot(h, seg) * inv_t                                   # (C4, B)
    gdiff = h - dot(gmean, segb)
    gvar = dot(gdiff * gdiff, seg) * inv_t
    gstd = jnp.sqrt(jnp.maximum(gvar, ASP_EPS))
    ctx = jnp.concatenate([gmean, gstd], axis=0)                  # (2*C4, B)
    # attention tdnn split into Wx (over time) and [Wmean|Wstd] (per utterance,
    # broadcast over time with segb) -> no (3C, L) concat.
    pre = dot(w("aspwx"), h) + dot(dot(w("aspwms"), ctx), segb)
    a = jnp.tanh(bn_relu(pre, "asp"))                             # (ATT, L)
    logits = dot(w("acw"), a) + vec("acb")                        # (C4, L)
    # lengths=None -> masked_fill(-inf) is a no-op.  Subtracting the per-channel
    # row max (constant across every utterance's columns) leaves the softmax
    # mathematically unchanged and avoids a segmented max.
    logits = logits - jnp.max(logits, axis=1, keepdims=True)
    e = jnp.exp(logits)
    inv_den = pl.reciprocal(dot(e, seg), approx=True)             # (C4, B), EUP
    wmean = dot(e * h, seg) * inv_den
    diff = h - dot(wmean, segb)
    wvar = dot(e * diff * diff, seg) * inv_den
    wstd = jnp.sqrt(jnp.maximum(wvar, ASP_EPS))

    # ---- asp_bn (folded, split into mean/std halves) + fc (single matmul).
    pm = wmean * vec("abn", 0) + vec("abn", 1)
    ps = wstd * vec("abn", 2) + vec("abn", 3)
    out = dot(w("fcw"), jnp.concatenate([pm, ps], axis=0)) + vec("fcb")  # (LIN, B)
    o_ref[0] = out


# -------------------------- parameter folding / packing ----------------------
def _fold_bn(p):
    scale = p["gamma"] / jnp.sqrt(p["rvar"] + BN_EPS)
    shift = p["beta"] - p["rmean"] * scale
    return scale, shift


def pack_params(params):
    """Fold BatchNorm and pack every weight into two banks so the fused kernel
    has 3 inputs total (one DMA each) and only does static slicing in VMEM."""
    wbank = np.zeros((W_TOTAL, WBANK_LANES), np.float32)
    vbank = np.zeros((VBANK_ROWS, V_TOTAL), np.float32)

    def put_w(name, mat):
        off, nr, nc = W_SLOTS[name]
        m = np.asarray(mat, np.float32)
        assert m.shape == (nr, nc), (name, m.shape, (nr, nc))
        wbank[off:off + nr, :nc] = m

    def put_v(name, idx, v):
        col, nch = V_SLOTS[name]
        v = np.asarray(v, np.float32).reshape(-1)
        assert v.shape[0] == nch, (name, v.shape, nch)
        vbank[:nch, col + idx] = v

    def put_tdnn_vecs(name, p):
        scale, shift = _fold_bn(p)
        put_v(name, 0, p["b"])
        put_v(name, 1, scale)
        put_v(name, 2, shift)

    # block0 (K=5): weight in tap-major im2col layout (Cout, K*Cin).
    p0 = params["block0"]
    cout, cin, k0 = p0["w"].shape
    put_w("w0", np.transpose(np.asarray(p0["w"]), (0, 2, 1)).reshape(cout, k0 * cin))
    put_tdnn_vecs("b0", p0)

    for j, bp in enumerate(params["se_blocks"]):
        put_w(f"t1w{j}", np.asarray(bp["tdnn1"]["w"])[:, :, 0])
        put_tdnn_vecs(f"t1{j}", bp["tdnn1"])
        for i, sub in enumerate(bp["res2net"]):
            ws = np.asarray(sub["w"])                              # (HID, HID, 3)
            put_w(f"r2w{j}_{i}",
                  np.concatenate([ws[:, :, 0], ws[:, :, 1], ws[:, :, 2]], axis=1))
            put_tdnn_vecs(f"r2{j}_{i}", sub)
        put_w(f"t2w{j}", np.asarray(bp["tdnn2"]["w"])[:, :, 0])
        put_tdnn_vecs(f"t2{j}", bp["tdnn2"])
        put_w(f"se1w{j}", np.asarray(bp["se"]["conv1"]["w"])[:, :, 0])
        put_v(f"se1b{j}", 0, bp["se"]["conv1"]["b"])
        put_w(f"se2w{j}", np.asarray(bp["se"]["conv2"]["w"])[:, :, 0])
        put_v(f"se2b{j}", 0, bp["se"]["conv2"]["b"])

    put_w("mfaw", np.asarray(params["mfa"]["w"])[:, :, 0])
    put_tdnn_vecs("mfa", params["mfa"])

    aw = np.asarray(params["asp"]["tdnn"]["w"])[:, :, 0]           # (ATT, 3*C4)
    put_w("aspwx", aw[:, :C4])
    put_w("aspwms", aw[:, C4:])
    put_tdnn_vecs("asp", params["asp"]["tdnn"])
    put_w("acw", np.asarray(params["asp"]["conv"]["w"])[:, :, 0])
    put_v("acb", 0, params["asp"]["conv"]["b"])

    bsc, bsh = _fold_bn(params["asp_bn"])
    bsc, bsh = np.asarray(bsc), np.asarray(bsh)
    put_v("abn", 0, bsc[:C4])
    put_v("abn", 1, bsh[:C4])
    put_v("abn", 2, bsc[C4:])
    put_v("abn", 3, bsh[C4:])

    put_w("fcw", np.asarray(params["fc"]["w"])[:, :, 0])
    put_v("fcb", 0, params["fc"]["b"])

    return {"wbank": jnp.asarray(wbank), "vbank": jnp.asarray(vbank)}


# ------------------------------- forward wrapper ------------------------------
def ecapa_forward(packed, x, *, batch_block=8):
    """x: [B, T, F] -> [B, 1, LIN_NEURONS]  (inference-mode BatchNorm)."""
    B, T, fdim = x.shape
    assert fdim == INPUT_SIZE
    assert B % batch_block == 0, "pad the batch to a multiple of batch_block"
    bgrid = B // batch_block
    lblk = batch_block * T                 # lane dim of every activation tile

    k0, d0 = KERNEL_SIZES[0], DILATIONS[0]
    pad0 = d0 * (k0 - 1) // 2
    dils = [DILATIONS[i + 1] for i in range(NB)]
    assert all(KERNEL_SIZES[i + 1] == 3 for i in range(NB))
    assert T - 1 >= max([pad0] + dils), (
        "reflect 'same' padding needs T > largest one-sided pad")

    # NCL layout + wrapper-side im2col for the entry K=5 conv, then pack
    # batch_block utterances per grid step: (bgrid, K*F, B_BLK*T).
    xt = jnp.transpose(x, (0, 2, 1)).astype(jnp.float32)
    xp = jnp.pad(xt, ((0, 0), (0, 0), (pad0, pad0)), mode="reflect")
    x0 = jnp.concatenate([xp[:, :, k * d0:k * d0 + T] for k in range(k0)], axis=1)
    x0 = (x0.reshape(bgrid, batch_block, k0 * fdim, T)
             .transpose(0, 2, 1, 3)
             .reshape(bgrid, k0 * fdim, lblk))

    kernel = functools.partial(_ecapa_kernel, seq_len=T, b_blk=batch_block)

    out = pl.pallas_call(
        kernel,
        out_shape=jax.ShapeDtypeStruct((bgrid, LIN_NEURONS, batch_block),
                                       jnp.float32),
        grid=(bgrid,),
        in_specs=[
            pl.BlockSpec((1, k0 * fdim, lblk), lambda g: (g, 0, 0)),
            pl.BlockSpec(packed["wbank"].shape, lambda g: (0, 0)),
            pl.BlockSpec(packed["vbank"].shape, lambda g: (0, 0)),
        ],
        out_specs=pl.BlockSpec((1, LIN_NEURONS, batch_block),
                               lambda g: (g, 0, 0)),
        scratch_shapes=[pltpu.VMEM((C1, lblk), jnp.float32)],     # res2net stage
        compiler_params=pltpu.CompilerParams(
            # batch blocks are independent -> megacore / v7x dual-TC sharding.
            dimension_semantics=("parallel",),
            # explicit budget; total residency here is <1 MiB, well inside
            # v7x's 64 MiB physical VMEM even at production T.
            vmem_limit_bytes=32 * 1024 * 1024),
    )(x0, packed["wbank"], packed["vbank"])

    # (bgrid, LIN, B_BLK) -> (B, 1, LIN)
    out = jnp.transpose(out, (0, 2, 1)).reshape(B, LIN_NEURONS)
    return out[:, None, :]


# ---------------------------- deterministic params ----------------------------
def _init_conv(key, cout, cin, k):
    k1, k2 = jax.random.split(key)
    fan = cin * k
    return {
        "w": jax.random.normal(k1, (cout, cin, k), jnp.float32) / jnp.sqrt(fan),
        "b": 0.05 * jax.random.normal(k2, (cout,), jnp.float32),
    }


def _init_bn(key, c):
    k1, k2, k3, k4 = jax.random.split(key, 4)
    return {
        "gamma": 1.0 + 0.1 * jax.random.normal(k1, (c,), jnp.float32),
        "beta": 0.1 * jax.random.normal(k2, (c,), jnp.float32),
        "rmean": 0.1 * jax.random.normal(k3, (c,), jnp.float32),
        "rvar": 1.0 + 0.1 * jnp.abs(jax.random.normal(k4, (c,), jnp.float32)),
    }


def _init_tdnn(key, cin, cout, k):
    k1, k2 = jax.random.split(key)
    p = _init_conv(k1, cout, cin, k)
    p.update(_init_bn(k2, cout))
    return p


def build_params(key):
    keys = iter(jax.random.split(key, 64))
    params = {}
    params["block0"] = _init_tdnn(next(keys), INPUT_SIZE, CHANNELS[0],
                                  KERNEL_SIZES[0])
    se_blocks = []
    for i in range(1, len(CHANNELS) - 1):
        cin, cout = CHANNELS[i - 1], CHANNELS[i]
        hid = cout // RES2NET_SCALE
        blk = {
            "tdnn1": _init_tdnn(next(keys), cin, cout, 1),
            "res2net": [
                _init_tdnn(next(keys), hid, hid, KERNEL_SIZES[i])
                for _ in range(RES2NET_SCALE - 1)
            ],
            "tdnn2": _init_tdnn(next(keys), cout, cout, 1),
            "se": {
                "conv1": _init_conv(next(keys), SE_CHANNELS, cout, 1),
                "conv2": _init_conv(next(keys), cout, SE_CHANNELS, 1),
            },
        }
        se_blocks.append(blk)
    params["se_blocks"] = se_blocks
    params["mfa"] = _init_tdnn(next(keys), CHANNELS[-1], CHANNELS[-1],
                               KERNEL_SIZES[-1])
    params["asp"] = {
        "tdnn": _init_tdnn(next(keys), CHANNELS[-1] * 3, ATTENTION_CHANNELS, 1),
        "conv": _init_conv(next(keys), CHANNELS[-1], ATTENTION_CHANNELS, 1),
    }
    params["asp_bn"] = _init_bn(next(keys), CHANNELS[-1] * 2)
    params["fc"] = _init_conv(next(keys), LIN_NEURONS, CHANNELS[-1] * 2, 1)
    return params


# ------------------------------------ main ------------------------------------
if __name__ == "__main__":
    key = jax.random.PRNGKey(0)
    pkey, xkey = jax.random.split(key)
    params = build_params(pkey)
    # TODO(synk): training-mode BatchNorm batch statistics are not implemented
    # (inference running-stats affine only); lengths=None path only (no masking).
    packed = pack_params(params)      # one-time BN folding / weight packing

    # 16 utterances, 8 per grid step -> lane dim 8*16 = 128, grid of 2 steps.
    B, T = 16, 16
    x = jax.random.normal(xkey, (B, T, INPUT_SIZE), jnp.float32)

    fwd = jax.jit(functools.partial(ecapa_forward, batch_block=8))
    out = jax.block_until_ready(fwd(packed, x))

    assert out.shape == (B, 1, LIN_NEURONS), out.shape
    assert bool(jnp.all(jnp.isfinite(out)))
    print("KERNEL_OK")
</pallas_src>

<mosaic_0001>
module attributes {stable_mosaic.version = 11 : i64} {
  func.func @_ecapa_kernel(%arg0: i32, %arg1: memref<1x40x128xf32, #tpu.memory_space<vmem>>, %arg2: memref<400x128xf32, #tpu.memory_space<vmem>>, %arg3: memref<48x66xf32, #tpu.memory_space<vmem>>, %arg4: memref<1x12x8xf32, #tpu.memory_space<vmem>>, %arg5: memref<16x128xf32, #tpu.memory_space<vmem>>) attributes {dimension_semantics = [#tpu.dimension_semantics<parallel>], iteration_bounds = array<i64: 2>, scalar_prefetch = 0 : i64, scratch_operands = 1 : i64, tpu.core_type = #tpu.core_type<tc>, window_params = [{transform_indices = @transform_0, window_bounds = array<i64: 1, 40, 128>}, {pipeline_mode = #tpu.pipeline_mode<synchronous>, transform_indices = @transform_1, window_bounds = array<i64: 400, 128>}, {pipeline_mode = #tpu.pipeline_mode<synchronous>, transform_indices = @transform_2, window_bounds = array<i64: 48, 66>}, {transform_indices = @transform_3, window_bounds = array<i64: 1, 12, 8>}]} {
    %0 = tpu.iota {dimensions = array<i32: 1>} : vector<1x128xi32>
    %c15_i32 = arith.constant 15 : i32
    %1 = vector.broadcast %c15_i32 : i32 to vector<1x128xi32>
    %2 = arith.andi %0, %1 : vector<1x128xi32>
    %3 = tpu.iota {dimensions = array<i32: 0>} : vector<128x8xi32>
    %4 = tpu.iota {dimensions = array<i32: 1>} : vector<128x8xi32>
    %c16_i32 = arith.constant 16 : i32
    %5 = vector.broadcast %c16_i32 : i32 to vector<128x8xi32>
    %6 = arith.muli %4, %5 : vector<128x8xi32>
    %7 = arith.cmpi sge, %3, %6 : vector<128x8xi32>
    %c1_i32 = arith.constant 1 : i32
    %8 = vector.broadcast %c1_i32 : i32 to vector<128x8xi32>
    %9 = arith.addi %4, %8 : vector<128x8xi32>
    %c16_i32_0 = arith.constant 16 : i32
    %10 = vector.broadcast %c16_i32_0 : i32 to vector<128x8xi32>
    %11 = arith.muli %9, %10 : vector<128x8xi32>
    %12 = arith.cmpi slt, %3, %11 : vector<128x8xi32>
    %13 = arith.andi %7, %12 : vector<128x8xi1>
    %cst = arith.constant 1.000000e+00 : f32
    %cst_1 = arith.constant 0.000000e+00 : f32
    %14 = vector.broadcast %cst : f32 to vector<128x8xf32>
    %15 = vector.broadcast %cst_1 : f32 to vector<128x8xf32>
    %16 = arith.select %13, %14, %15 : vector<128x8xi1>, vector<128x8xf32>
    %17 = tpu.iota {dimensions = array<i32: 0>} : vector<8x128xi32>
    %18 = tpu.iota {dimensions = array<i32: 1>} : vector<8x128xi32>
    %c16_i32_2 = arith.constant 16 : i32
    %19 = vector.broadcast %c16_i32_2 : i32 to vector<8x128xi32>
    %20 = arith.muli %17, %19 : vector<8x128xi32>
    %21 = arith.cmpi sge, %18, %20 : vector<8x128xi32>
    %c1_i32_3 = arith.constant 1 : i32
    %22 = vector.broadcast %c1_i32_3 : i32 to vector<8x128xi32>
    %23 = arith.addi %17, %22 : vector<8x128xi32>
    %c16_i32_4 = arith.constant 16 : i32
    %24 = vector.broadcast %c16_i32_4 : i32 to vector<8x128xi32>
    %25 = arith.muli %23, %24 : vector<8x128xi32>
    %26 = arith.cmpi slt, %18, %25 : vector<8x128xi32>
    %27 = arith.andi %21, %26 : vector<8x128xi1>
    %cst_5 = arith.constant 1.000000e+00 : f32
    %cst_6 = arith.constant 0.000000e+00 : f32
    %28 = vector.broadcast %cst_5 : f32 to vector<8x128xf32>
    %29 = vector.broadcast %cst_6 : f32 to vector<8x128xf32>
    %30 = arith.select %27, %28, %29 : vector<8x128xi1>, vector<8x128xf32>
    %c0 = arith.constant 0 : index
    %c0_7 = arith.constant 0 : index
    %c0_8 = arith.constant 0 : index
    %31 = vector.load %arg1[%c0, %c0_7, %c0_8] : memref<1x40x128xf32, #tpu.memory_space<vmem>>, vector<1x40x128xf32>
    %32 = vector.shape_cast %31 : vector<1x40x128xf32> to vector<40x128xf32>
    %c0_9 = arith.constant 0 : index
    %c0_10 = arith.constant 0 : index
    %33 = vector.load %arg2[%c0_9, %c0_10] : memref<400x128xf32, #tpu.memory_space<vmem>>, vector<16x40xf32>
    %cst_11 = arith.constant dense<0.000000e+00> : vector<16x128xf32>
    %34 = tpu.matmul %33, %32, %cst_11 {dimension_numbers = #tpu.dot_dimension_numbers<[1], [0], [0], [1], [0, 0, 1, 1], [], []>} : vector<16x40xf32>, vector<40x128xf32>, vector<16x128xf32> -> vector<16x128xf32>
    %c0_12 = arith.constant 0 : index
    %c0_13 = arith.constant 0 : index
    %35 = vector.load %arg3[%c0_12, %c0_13] : memref<48x66xf32, #tpu.memory_space<vmem>>, vector<16x1xf32>
    %36 = vector.broadcast %35 : vector<16x1xf32> to vector<16x128xf32>
    %37 = arith.addf %34, %36 : vector<16x128xf32>
    %cst_14 = arith.constant 0.000000e+00 : f32
    %38 = vector.broadcast %cst_14 : f32 to vector<16x128xf32>
    %39 = arith.maximumf %37, %38 : vector<16x128xf32>
    %c0_15 = arith.constant 0 : index
    %c1 = arith.constant 1 : index
    %40 = vector.load %arg3[%c0_15, %c1] : memref<48x66xf32, #tpu.memory_space<vmem>>, vector<16x1xf32>
    %41 = vector.broadcast %40 : vector<16x1xf32> to vector<16x128xf32>
    %42 = arith.mulf %39, %41 : vector<16x128xf32>
    %c0_16 = arith.constant 0 : index
    %c2 = arith.constant 2 : index
    %43 = vector.load %arg3[%c0_16, %c2] : memref<48x66xf32, #tpu.memory_space<vmem>>, vector<16x1xf32>
    %44 = vector.broadcast %43 : vector<16x1xf32> to vector<16x128xf32>
    %45 = arith.addf %42, %44 : vector<16x128xf32>
    %c0_i32 = arith.constant 0 : i32
    %46 = vector.broadcast %c0_i32 : i32 to vector<1x128xi32>
    %47 = arith.cmpi eq, %2, %46 : vector<1x128xi32>
    %c1_i32_17 = arith.constant 1 : i32
    %48 = vector.broadcast %c1_i32_17 : i32 to vector<1x128xi32>
    %49 = arith.cmpi eq, %2, %48 : vector<1x128xi32>
    %c15_i32_18 = arith.constant 15 : i32
    %50 = vector.broadcast %c15_i32_18 : i32 to vector<1x128xi32>
    %51 = arith.cmpi eq, %2, %50 : vector<1x128xi32>
    %c14_i32 = arith.constant 14 : i32
    %52 = vector.broadcast %c14_i32 : i32 to vector<1x128xi32>
    %53 = arith.cmpi eq, %2, %52 : vector<1x128xi32>
    %c16 = arith.constant 16 : index
    %c0_19 = arith.constant 0 : index
    %54 = vector.load %arg2[%c16, %c0_19] : memref<400x128xf32, #tpu.memory_space<vmem>>, vector<16x16xf32>
    %cst_20 = arith.constant dense<0.000000e+00> : vector<16x128xf32>
    %55 = tpu.matmul %54, %45, %cst_20 {dimension_numbers = #tpu.dot_dimension_numbers<[1], [0], [0], [1], [0, 0, 1, 1], [], []>} : vector<16x16xf32>, vector<16x128xf32>, vector<16x128xf32> -> vector<16x128xf32>
    %c0_21 = arith.constant 0 : index
    %c3 = arith.constant 3 : index
    %56 = vector.load %arg3[%c0_21, %c3] : memref<48x66xf32, #tpu.memory_space<vmem>>, vector<16x1xf32>
    %57 = vector.broadcast %56 : vector<16x1xf32> to vector<16x128xf32>
    %58 = arith.addf %55, %57 : vector<16x128xf32>
    %cst_22 = arith.constant 0.000000e+00 : f32
    %59 = vector.broadcast %cst_22 : f32 to vector<16x128xf32>
    %60 = arith.maximumf %58, %59 : vector<16x128xf32>
    %c0_23 = arith.constant 0 : index
    %c4 = arith.constant 4 : index
    %61 = vector.load %arg3[%c0_23, %c4] : memref<48x66xf32, #tpu.memory_space<vmem>>, vector<16x1xf32>
    %62 = vector.broadcast %61 : vector<16x1xf32> to vector<16x128xf32>
    %63 = arith.mulf %60, %62 : vector<16x128xf32>
    %c0_24 = arith.constant 0 : index
    %c5 = arith.constant 5 : index
    %64 = vector.load %arg3[%c0_24, %c5] : memref<48x66xf32, #tpu.memory_space<vmem>>, vector<16x1xf32>
    %65 = vector.broadcast %64 : vector<16x1xf32> to vector<16x128xf32>
    %66 = arith.addf %63, %65 : vector<16x128xf32>
    %67 = vector.extract_strided_slice %66 {offsets = [0, 0], sizes = [4, 128], strides = [1, 1]} : vector<16x128xf32> to vector<4x128xf32>
    %c0_25 = arith.constant 0 : index
    %c0_26 = arith.constant 0 : index
    %68 = vector.load %arg5[%c0_25, %c0_26] : memref<16x128xf32, #tpu.memory_space<vmem>>, vector<4x128xf32>
    tpu.vector_store %arg5[%c0_25, %c0_26], %67 {strides = array<i32>} : memref<16x128xf32, #tpu.memory_space<vmem>>, vector<4x128xf32>,
    %69 = vector.extract_strided_slice %66 {offsets = [4, 0], sizes = [4, 128], strides = [1, 1]} : vector<16x128xf32> to vector<4x128xf32>
    %c2_i32 = arith.constant 2 : i32
    %70 = tpu.dynamic_rotate %69 by %c2_i32 dim 1 : vector<4x128xf32>, i32 -> vector<4x128xf32>
    %c126_i32 = arith.constant 126 : i32
    %71 = tpu.dynamic_rotate %69 by %c126_i32 dim 1 : vector<4x128xf32>, i32 -> vector<4x128xf32>
    %72 = vector.shape_cast %47 : vector<1x128xi1> to vector<1x128xi1>
    %73 = vector.broadcast %72 : vector<1x128xi1> to vector<4x128xi1>
    %74 = arith.select %73, %71, %70 : vector<4x128xi1>, vector<4x128xf32>
    %75 = vector.shape_cast %51 : vector<1x128xi1> to vector<1x128xi1>
    %76 = vector.broadcast %75 : vector<1x128xi1> to vector<4x128xi1>
    %77 = arith.select %76, %70, %71 : vector<4x128xi1>, vector<4x128xf32>
    %78 = vector.shape_cast %49 : vector<1x128xi1> to vector<1x128xi1>
    %79 = vector.broadcast %78 : vector<1x128xi1> to vector<4x128xi1>
    %80 = arith.select %79, %69, %74 : vector<4x128xi1>, vector<4x128xf32>
    %81 = vector.shape_cast %53 : vector<1x128xi1> to vector<1x128xi1>
    %82 = vector.broadcast %81 : vector<1x128xi1> to vector<4x128xi1>
    %83 = arith.select %82, %69, %77 : vector<4x128xi1>, vector<4x128xf32>
    %c32 = arith.constant 32 : index
    %c0_27 = arith.constant 0 : index
    %84 = vector.load %arg2[%c32, %c0_27] : memref<400x128xf32, #tpu.memory_space<vmem>>, vector<4x12xf32>
    %85 = vector.extract_strided_slice %84 {offsets = [0, 0], sizes = [4, 4], strides = [1, 1]} : vector<4x12xf32> to vector<4x4xf32>
    %cst_28 = arith.constant dense<0.000000e+00> : vector<4x128xf32>
    %86 = tpu.matmul %85, %80, %cst_28 {dimension_numbers = #tpu.dot_dimension_numbers<[1], [0], [0], [1], [0, 0, 1, 1], [], []>} : vector<4x4xf32>, vector<4x128xf32>, vector<4x128xf32> -> vector<4x128xf32>
    %87 = vector.extract_strided_slice %84 {offsets = [0, 4], sizes = [4, 4], strides = [1, 1]} : vector<4x12xf32> to vector<4x4xf32>
    %cst_29 = arith.constant dense<0.000000e+00> : vector<4x128xf32>
    %88 = tpu.matmul %87, %69, %cst_29 {dimension_numbers = #tpu.dot_dimension_numbers<[1], [0], [0], [1], [0, 0, 1, 1], [], []>} : vector<4x4xf32>, vector<4x128xf32>, vector<4x128xf32> -> vector<4x128xf32>
    %89 = arith.addf %86, %88 : vector<4x128xf32>
    %90 = vector.extract_strided_slice %84 {offsets = [0, 8], sizes = [4, 4], strides = [1, 1]} : vector<4x12xf32> to vector<4x4xf32>
    %cst_30 = arith.constant dense<0.000000e+00> : vector<4x128xf32>
    %91 = tpu.matmul %90, %83, %cst_30 {dimension_numbers = #tpu.dot_dimension_numbers<[1], [0], [0], [1], [0, 0, 1, 1], [], []>} : vector<4x4xf32>, vector<4x128xf32>, vector<4x128xf32> -> vector<4x128xf32>
    %92 = arith.addf %89, %91 : vector<4x128xf32>
    %c0_31 = arith.constant 0 : index
    %c6 = arith.constant 6 : index
    %93 = vector.load %arg3[%c0_31, %c6] : memref<48x66xf32, #tpu.memory_space<vmem>>, vector<4x1xf32>
    %94 = vector.broadcast %93 : vector<4x1xf32> to vector<4x128xf32>
    %95 = arith.addf %92, %94 : vector<4x128xf32>
    %cst_32 = arith.constant 0.000000e+00 : f32
    %96 = vector.broadcast %cst_32 : f32 to vector<4x128xf32>
    %97 = arith.maximumf %95, %96 : vector<4x128xf32>
    %c0_33 = arith.constant 0 : index
    %c7 = arith.constant 7 : index
    %98 = vector.load %arg3[%c0_33, %c7] : memref<48x66xf32, #tpu.memory_space<vmem>>, vector<4x1xf32>
    %99 = vector.broadcast %98 : vector<4x1xf32> to vector<4x128xf32>
    %100 = arith.mulf %97, %99 : vector<4x128xf32>
    %c0_34 = arith.constant 0 : index
    %c8 = arith.constant 8 : index
    %101 = vector.load %arg3[%c0_34, %c8] : memref<48x66xf32, #tpu.memory_space<vmem>>, vector<4x1xf32>
    %102 = vector.broadcast %101 : vector<4x1xf32> to vector<4x128xf32>
    %103 = arith.addf %100, %102 : vector<4x128xf32>
    %c4_35 = arith.constant 4 : index
    %c0_36 = arith.constant 0 : index
    %104 = vector.load %arg5[%c4_35, %c0_36] : memref<16x128xf32, #tpu.memory_space<vmem>>, vector<4x128xf32>
    tpu.vector_store %arg5[%c4_35, %c0_36], %103 {strides = array<i32>} : memref<16x128xf32, #tpu.memory_space<vmem>>, vector<4x128xf32>,
    %105 = vector.extract_strided_slice %66 {offsets = [8, 0], sizes = [4, 128], strides = [1, 1]} : vector<16x128xf32> to vector<4x128xf32>
    %106 = arith.addf %105, %103 : vector<4x128xf32>
    %c2_i32_37 = arith.constant 2 : i32
    %107 = tpu.dynamic_rotate %106 by %c2_i32_37 dim 1 : vector<4x128xf32>, i32 -> vector<4x128xf32>
    %c126_i32_38 = arith.constant 126 : i32
    %108 = tpu.dynamic_rotate %106 by %c126_i32_38 dim 1 : vector<4x128xf32>, i32 -> vector<4x128xf32>
    %109 = vector.shape_cast %47 : vector<1x128xi1> to vector<1x128xi1>
    %110 = vector.broadcast %109 : vector<1x128xi1> to vector<4x128xi1>
    %111 = arith.select %110, %108, %107 : vector<4x128xi1>, vector<4x128xf32>
    %112 = vector.shape_cast %51 : vector<1x128xi1> to vector<1x128xi1>
    %113 = vector.broadcast %112 : vector<1x128xi1> to vector<4x128xi1>
    %114 = arith.select %113, %107, %108 : vector<4x128xi1>, vector<4x128xf32>
    %115 = vector.shape_cast %49 : vector<1x128xi1> to vector<1x128xi1>
    %116 = vector.broadcast %115 : vector<1x128xi1> to vector<4x128xi1>
    %117 = arith.select %116, %106, %111 : vector<4x128xi1>, vector<4x128xf32>
    %118 = vector.shape_cast %53 : vector<1x128xi1> to vector<1x128xi1>
    %119 = vector.broadcast %118 : vector<1x128xi1> to vector<4x128xi1>
    %120 = arith.select %119, %106, %114 : vector<4x128xi1>, vector<4x128xf32>
    %c40 = arith.constant 40 : index
    %c0_39 = arith.constant 0 : index
    %121 = vector.load %arg2[%c40, %c0_39] : memref<400x128xf32, #tpu.memory_space<vmem>>, vector<4x12xf32>
    %122 = vector.extract_strided_slice %121 {offsets = [0, 0], sizes = [4, 4], strides = [1, 1]} : vector<4x12xf32> to vector<4x4xf32>
    %cst_40 = arith.constant dense<0.000000e+00> : vector<4x128xf32>
    %123 = tpu.matmul %122, %117, %cst_40 {dimension_numbers = #tpu.dot_dimension_numbers<[1], [0], [0], [1], [0, 0, 1, 1], [], []>} : vector<4x4xf32>, vector<4x128xf32>, vector<4x128xf32> -> vector<4x128xf32>
    %124 = vector.extract_strided_slice %121 {offsets = [0, 4], sizes = [4, 4], strides = [1, 1]} : vector<4x12xf32> to vector<4x4xf32>
    %cst_41 = arith.constant dense<0.000000e+00> : vector<4x128xf32>
    %125 = tpu.matmul %124, %106, %cst_41 {dimension_numbers = #tpu.dot_dimension_numbers<[1], [0], [0], [1], [0, 0, 1, 1], [], []>} : vector<4x4xf32>, vector<4x128xf32>, vector<4x128xf32> -> vector<4x128xf32>
    %126 = arith.addf %123, %125 : vector<4x128xf32>
    %127 = vector.extract_strided_slice %121 {offsets = [0, 8], sizes = [4, 4], strides = [1, 1]} : vector<4x12xf32> to vector<4x4xf32>
    %cst_42 = arith.constant dense<0.000000e+00> : vector<4x128xf32>
    %128 = tpu.matmul %127, %120, %cst_42 {dimension_numbers = #tpu.dot_dimension_numbers<[1], [0], [0], [1], [0, 0, 1, 1], [], []>} : vector<4x4xf32>, vector<4x128xf32>, vector<4x128xf32> -> vector<4x128xf32>
    %129 = arith.addf %126, %128 : vector<4x128xf32>
    %c0_43 = arith.constant 0 : index
    %c9 = arith.constant 9 : index
    %130 = vector.load %arg3[%c0_43, %c9] : memref<48x66xf32, #tpu.memory_space<vmem>>, vector<4x1xf32>
    %131 = vector.broadcast %130 : vector<4x1xf32> to vector<4x128xf32>
    %132 = arith.addf %129, %131 : vector<4x128xf32>
    %cst_44 = arith.constant 0.000000e+00 : f32
    %133 = vector.broadcast %cst_44 : f32 to vector<4x128xf32>
    %134 = arith.maximumf %132, %133 : vector<4x128xf32>
    %c0_45 = arith.constant 0 : index
    %c10 = arith.constant 10 : index
    %135 = vector.load %arg3[%c0_45, %c10] : memref<48x66xf32, #tpu.memory_space<vmem>>, vector<4x1xf32>
    %136 = vector.broadcast %135 : vector<4x1xf32> to vector<4x128xf32>
    %137 = arith.mulf %134, %136 : vector<4x128xf32>
    %c0_46 = arith.constant 0 : index
    %c11 = arith.constant 11 : index
    %138 = vector.load %arg3[%c0_46, %c11] : memref<48x66xf32, #tpu.memory_space<vmem>>, vector<4x1xf32>
    %139 = vector.broadcast %138 : vector<4x1xf32> to vector<4x128xf32>
    %140 = arith.addf %137, %139 : vector<4x128xf32>
    %c8_47 = arith.constant 8 : index
    %c0_48 = arith.constant 0 : index
    %141 = vector.load %arg5[%c8_47, %c0_48] : memref<16x128xf32, #tpu.memory_space<vmem>>, vector<4x128xf32>
    tpu.vector_store %arg5[%c8_47, %c0_48], %140 {strides = array<i32>} : memref<16x128xf32, #tpu.memory_space<vmem>>, vector<4x128xf32>,
    %142 = vector.extract_strided_slice %66 {offsets = [12, 0], sizes = [4, 128], strides = [1, 1]} : vector<16x128xf32> to vector<4x128xf32>
    %143 = arith.addf %142, %140 : vector<4x128xf32>
    %c2_i32_49 = arith.constant 2 : i32
    %144 = tpu.dynamic_rotate %143 by %c2_i32_49 dim 1 : vector<4x128xf32>, i32 -> vector<4x128xf32>
    %c126_i32_50 = arith.constant 126 : i32
    %145 = tpu.dynamic_rotate %143 by %c126_i32_50 dim 1 : vector<4x128xf32>, i32 -> vector<4x128xf32>
    %146 = vector.shape_cast %47 : vector<1x128xi1> to vector<1x128xi1>
    %147 = vector.broadcast %146 : vector<1x128xi1> to vector<4x128xi1>
    %148 = arith.select %147, %145, %144 : vector<4x128xi1>, vector<4x128xf32>
    %149 = vector.shape_cast %51 : vector<1x128xi1> to vector<1x128xi1>
    %150 = vector.broadcast %149 : vector<1x128xi1> to vector<4x128xi1>
    %151 = arith.select %150, %144, %145 : vector<4x128xi1>, vector<4x128xf32>
    %152 = vector.shape_cast %49 : vector<1x128xi1> to vector<1x128xi1>
    %153 = vector.broadcast %152 : vector<1x128xi1> to vector<4x128xi1>
    %154 = arith.select %153, %143, %148 : vector<4x128xi1>, vector<4x128xf32>
    %155 = vector.shape_cast %53 : vector<1x128xi1> to vector<1x128xi1>
    %156 = vector.broadcast %155 : vector<1x128xi1> to vector<4x128xi1>
    %157 = arith.select %156, %143, %151 : vector<4x128xi1>, vector<4x128xf32>
    %c48 = arith.constant 48 : index
    %c0_51 = arith.constant 0 : index
    %158 = vector.load %arg2[%c48, %c0_51] : memref<400x128xf32, #tpu.memory_space<vmem>>, vector<4x12xf32>
    %159 = vector.extract_strided_slice %158 {offsets = [0, 0], sizes = [4, 4], strides = [1, 1]} : vector<4x12xf32> to vector<4x4xf32>
    %cst_52 = arith.constant dense<0.000000e+00> : vector<4x128xf32>
    %160 = tpu.matmul %159, %154, %cst_52 {dimension_numbers = #tpu.dot_dimension_numbers<[1], [0], [0], [1], [0, 0, 1, 1], [], []>} : vector<4x4xf32>, vector<4x128xf32>, vector<4x128xf32> -> vector<4x128xf32>
    %161 = vector.extract_strided_slice %158 {offsets = [0, 4], sizes = [4, 4], strides = [1, 1]} : vector<4x12xf32> to vector<4x4xf32>
    %cst_53 = arith.constant dense<0.000000e+00> : vector<4x128xf32>
    %162 = tpu.matmul %161, %143, %cst_53 {dimension_numbers = #tpu.dot_dimension_numbers<[1], [0], [0], [1], [0, 0, 1, 1], [], []>} : vector<4x4xf32>, vector<4x128xf32>, vector<4x128xf32> -> vector<4x128xf32>
    %163 = arith.addf %160, %162 : vector<4x128xf32>
    %164 = vector.extract_strided_slice %158 {offsets = [0, 8], sizes = [4, 4], strides = [1, 1]} : vector<4x12xf32> to vector<4x4xf32>
    %cst_54 = arith.constant dense<0.000000e+00> : vector<4x128xf32>
    %165 = tpu.matmul %164, %157, %cst_54 {dimension_numbers = #tpu.dot_dimension_numbers<[1], [0], [0], [1], [0, 0, 1, 1], [], []>} : vector<4x4xf32>, vector<4x128xf32>, vector<4x128xf32> -> vector<4x128xf32>
    %166 = arith.addf %163, %165 : vector<4x128xf32>
    %c0_55 = arith.constant 0 : index
    %c12 = arith.constant 12 : index
    %167 = vector.load %arg3[%c0_55, %c12] : memref<48x66xf32, #tpu.memory_space<vmem>>, vector<4x1xf32>
    %168 = vector.broadcast %167 : vector<4x1xf32> to vector<4x128xf32>
    %169 = arith.addf %166, %168 : vector<4x128xf32>
    %cst_56 = arith.constant 0.000000e+00 : f32
    %170 = vector.broadcast %cst_56 : f32 to vector<4x128xf32>
    %171 = arith.maximumf %169, %170 : vector<4x128xf32>
    %c0_57 = arith.constant 0 : index
    %c13 = arith.constant 13 : index
    %172 = vector.load %arg3[%c0_57, %c13] : memref<48x66xf32, #tpu.memory_space<vmem>>, vector<4x1xf32>
    %173 = vector.broadcast %172 : vector<4x1xf32> to vector<4x128xf32>
    %174 = arith.mulf %171, %173 : vector<4x128xf32>
    %c0_58 = arith.constant 0 : index
    %c14 = arith.constant 14 : index
    %175 = vector.load %arg3[%c0_58, %c14] : memref<48x66xf32, #tpu.memory_space<vmem>>, vector<4x1xf32>
    %176 = vector.broadcast %175 : vector<4x1xf32> to vector<4x128xf32>
    %177 = arith.addf %174, %176 : vector<4x128xf32>
    %c12_59 = arith.constant 12 : index
    %c0_60 = arith.constant 0 : index
    %178 = vector.load %arg5[%c12_59, %c0_60] : memref<16x128xf32, #tpu.memory_space<vmem>>, vector<4x128xf32>
    tpu.vector_store %arg5[%c12_59, %c0_60], %177 {strides = array<i32>} : memref<16x128xf32, #tpu.memory_space<vmem>>, vector<4x128xf32>,
    %c56 = arith.constant 56 : index
    %c0_61 = arith.constant 0 : index
    %179 = vector.load %arg2[%c56, %c0_61] : memref<400x128xf32, #tpu.memory_space<vmem>>, vector<16x16xf32>
    %c0_62 = arith.constant 0 : index
    %c0_63 = arith.constant 0 : index
    %180 = vector.load %arg5[%c0_62, %c0_63] : memref<16x128xf32, #tpu.memory_space<vmem>>, vector<16x128xf32>
    %cst_64 = arith.constant dense<0.000000e+00> : vector<16x128xf32>
    %181 = tpu.matmul %179, %180, %cst_64 {dimension_numbers = #tpu.dot_dimension_numbers<[1], [0], [0], [1], [0, 0, 1, 1], [], []>} : vector<16x16xf32>, vector<16x128xf32>, vector<16x128xf32> -> vector<16x128xf32>
    %c0_65 = arith.constant 0 : index
    %c15 = arith.constant 15 : index
    %182 = vector.load %arg3[%c0_65, %c15] : memref<48x66xf32, #tpu.memory_space<vmem>>, vector<16x1xf32>
    %183 = vector.broadcast %182 : vector<16x1xf32> to vector<16x128xf32>
    %184 = arith.addf %181, %183 : vector<16x128xf32>
    %cst_66 = arith.constant 0.000000e+00 : f32
    %185 = vector.broadcast %cst_66 : f32 to vector<16x128xf32>
    %186 = arith.maximumf %184, %185 : vector<16x128xf32>
    %c0_67 = arith.constant 0 : index
    %c16_68 = arith.constant 16 : index
    %187 = vector.load %arg3[%c0_67, %c16_68] : memref<48x66xf32, #tpu.memory_space<vmem>>, vector<16x1xf32>
    %188 = vector.broadcast %187 : vector<16x1xf32> to vector<16x128xf32>
    %189 = arith.mulf %186, %188 : vector<16x128xf32>
    %c0_69 = arith.constant 0 : index
    %c17 = arith.constant 17 : index
    %190 = vector.load %arg3[%c0_69, %c17] : memref<48x66xf32, #tpu.memory_space<vmem>>, vector<16x1xf32>
    %191 = vector.broadcast %190 : vector<16x1xf32> to vector<16x128xf32>
    %192 = arith.addf %189, %191 : vector<16x128xf32>
    %cst_70 = arith.constant dense<0.000000e+00> : vector<16x8xf32>
    %193 = tpu.matmul %192, %16, %cst_70 {dimension_numbers = #tpu.dot_dimension_numbers<[1], [0], [0], [1], [0, 0, 1, 1], [], []>} : vector<16x128xf32>, vector<128x8xf32>, vector<16x8xf32> -> vector<16x8xf32>
    %cst_71 = arith.constant 6.250000e-02 : f32
    %194 = vector.broadcast %cst_71 : f32 to vector<16x8xf32>
    %195 = arith.mulf %193, %194 : vector<16x8xf32>
    %c72 = arith.constant 72 : index
    %c0_72 = arith.constant 0 : index
    %196 = vector.load %arg2[%c72, %c0_72] : memref<400x128xf32, #tpu.memory_space<vmem>>, vector<8x16xf32>
    %cst_73 = arith.constant dense<0.000000e+00> : vector<8x8xf32>
    %197 = tpu.matmul %196, %195, %cst_73 {dimension_numbers = #tpu.dot_dimension_numbers<[1], [0], [0], [1], [0, 0, 1, 1], [], []>} : vector<8x16xf32>, vector<16x8xf32>, vector<8x8xf32> -> vector<8x8xf32>
    %c0_74 = arith.constant 0 : index
    %c18 = arith.constant 18 : index
    %198 = vector.load %arg3[%c0_74, %c18] : memref<48x66xf32, #tpu.memory_space<vmem>>, vector<8x1xf32>
    %199 = vector.broadcast %198 : vector<8x1xf32> to vector<8x8xf32>
    %200 = arith.addf %197, %199 : vector<8x8xf32>
    %cst_75 = arith.constant 0.000000e+00 : f32
    %201 = vector.broadcast %cst_75 : f32 to vector<8x8xf32>
    %202 = arith.maximumf %200, %201 : vector<8x8xf32>
    %c80 = arith.constant 80 : index
    %c0_76 = arith.constant 0 : index
    %203 = vector.load %arg2[%c80, %c0_76] : memref<400x128xf32, #tpu.memory_space<vmem>>, vector<16x8xf32>
    %cst_77 = arith.constant dense<0.000000e+00> : vector<16x8xf32>
    %204 = tpu.matmul %203, %202, %cst_77 {dimension_numbers = #tpu.dot_dimension_numbers<[1], [0], [0], [1], [0, 0, 1, 1], [], []>} : vector<16x8xf32>, vector<8x8xf32>, vector<16x8xf32> -> vector<16x8xf32>
    %c0_78 = arith.constant 0 : index
    %c19 = arith.constant 19 : index
    %205 = vector.load %arg3[%c0_78, %c19] : memref<48x66xf32, #tpu.memory_space<vmem>>, vector<16x1xf32>
    %206 = vector.broadcast %205 : vector<16x1xf32> to vector<16x8xf32>
    %207 = arith.addf %204, %206 : vector<16x8xf32>
    %208 = arith.negf %207 : vector<16x8xf32>
    %209 = math.exp %208 : vector<16x8xf32>
    %cst_79 = arith.constant 1.000000e+00 : f32
    %210 = vector.broadcast %cst_79 : f32 to vector<16x8xf32>
    %211 = arith.addf %210, %209 : vector<16x8xf32>
    %212 = arith.divf %210, %211 : vector<16x8xf32>
    %cst_80 = arith.constant dense<0.000000e+00> : vector<16x128xf32>
    %213 = tpu.matmul %212, %30, %cst_80 {dimension_numbers = #tpu.dot_dimension_numbers<[1], [0], [0], [1], [0, 0, 1, 1], [], []>} : vector<16x8xf32>, vector<8x128xf32>, vector<16x128xf32> -> vector<16x128xf32>
    %214 = arith.mulf %213, %192 : vector<16x128xf32>
    %215 = arith.addf %214, %45 : vector<16x128xf32>
    %c0_i32_81 = arith.constant 0 : i32
    %216 = vector.broadcast %c0_i32_81 : i32 to vector<1x128xi32>
    %217 = arith.cmpi eq, %2, %216 : vector<1x128xi32>
    %c1_i32_82 = arith.constant 1 : i32
    %218 = vector.broadcast %c1_i32_82 : i32 to vector<1x128xi32>
    %219 = arith.cmpi eq, %2, %218 : vector<1x128xi32>
    %c2_i32_83 = arith.constant 2 : i32
    %220 = vector.broadcast %c2_i32_83 : i32 to vector<1x128xi32>
    %221 = arith.cmpi eq, %2, %220 : vector<1x128xi32>
    %c15_i32_84 = arith.constant 15 : i32
    %222 = vector.broadcast %c15_i32_84 : i32 to vector<1x128xi32>
    %223 = arith.cmpi eq, %2, %222 : vector<1x128xi32>
    %c14_i32_85 = arith.constant 14 : i32
    %224 = vector.broadcast %c14_i32_85 : i32 to vector<1x128xi32>
    %225 = arith.cmpi eq, %2, %224 : vector<1x128xi32>
    %c13_i32 = arith.constant 13 : i32
    %226 = vector.broadcast %c13_i32 : i32 to vector<1x128xi32>
    %227 = arith.cmpi eq, %2, %226 : vector<1x128xi32>
    %c96 = arith.constant 96 : index
    %c0_86 = arith.constant 0 : index
    %228 = vector.load %arg2[%c96, %c0_86] : memref<400x128xf32, #tpu.memory_space<vmem>>, vector<16x16xf32>
    %cst_87 = arith.constant dense<0.000000e+00> : vector<16x128xf32>
    %229 = tpu.matmul %228, %215, %cst_87 {dimension_numbers = #tpu.dot_dimension_numbers<[1], [0], [0], [1], [0, 0, 1, 1], [], []>} : vector<16x16xf32>, vector<16x128xf32>, vector<16x128xf32> -> vector<16x128xf32>
    %c0_88 = arith.constant 0 : index
    %c20 = arith.constant 20 : index
    %230 = vector.load %arg3[%c0_88, %c20] : memref<48x66xf32, #tpu.memory_space<vmem>>, vector<16x1xf32>
    %231 = vector.broadcast %230 : vector<16x1xf32> to vector<16x128xf32>
    %232 = arith.addf %229, %231 : vector<16x128xf32>
    %cst_89 = arith.constant 0.000000e+00 : f32
    %233 = vector.broadcast %cst_89 : f32 to vector<16x128xf32>
    %234 = arith.maximumf %232, %233 : vector<16x128xf32>
    %c0_90 = arith.constant 0 : index
    %c21 = arith.constant 21 : index
    %235 = vector.load %arg3[%c0_90, %c21] : memref<48x66xf32, #tpu.memory_space<vmem>>, vector<16x1xf32>
    %236 = vector.broadcast %235 : vector<16x1xf32> to vector<16x128xf32>
    %237 = arith.mulf %234, %236 : vector<16x128xf32>
    %c0_91 = arith.constant 0 : index
    %c22 = arith.constant 22 : index
    %238 = vector.load %arg3[%c0_91, %c22] : memref<48x66xf32, #tpu.memory_space<vmem>>, vector<16x1xf32>
    %239 = vector.broadcast %238 : vector<16x1xf32> to vector<16x128xf32>
    %240 = arith.addf %237, %239 : vector<16x128xf32>
    %241 = vector.extract_strided_slice %240 {offsets = [0, 0], sizes = [4, 128], strides = [1, 1]} : vector<16x128xf32> to vector<4x128xf32>
    %c0_92 = arith.constant 0 : index
    %c0_93 = arith.constant 0 : index
    %242 = vector.load %arg5[%c0_92, %c0_93] : memref<16x128xf32, #tpu.memory_space<vmem>>, vector<4x128xf32>
    tpu.vector_store %arg5[%c0_92, %c0_93], %241 {strides = array<i32>} : memref<16x128xf32, #tpu.memory_space<vmem>>, vector<4x128xf32>,
    %243 = vector.extract_strided_slice %240 {offsets = [4, 0], sizes = [4, 128], strides = [1, 1]} : vector<16x128xf32> to vector<4x128xf32>
    %c3_i32 = arith.constant 3 : i32
    %244 = tpu.dynamic_rotate %243 by %c3_i32 dim 1 : vector<4x128xf32>, i32 -> vector<4x128xf32>
    %c125_i32 = arith.constant 125 : i32
    %245 = tpu.dynamic_rotate %243 by %c125_i32 dim 1 : vector<4x128xf32>, i32 -> vector<4x128xf32>
    %246 = vector.shape_cast %217 : vector<1x128xi1> to vector<1x128xi1>
    %247 = vector.broadcast %246 : vector<1x128xi1> to vector<4x128xi1>
    %248 = arith.select %247, %245, %244 : vector<4x128xi1>, vector<4x128xf32>
    %249 = vector.shape_cast %223 : vector<1x128xi1> to vector<1x128xi1>
    %250 = vector.broadcast %249 : vector<1x128xi1> to vector<4x128xi1>
    %251 = arith.select %250, %244, %245 : vector<4x128xi1>, vector<4x128xf32>
    %c127_i32 = arith.constant 127 : i32
    %252 = tpu.dynamic_rotate %243 by %c127_i32 dim 1 : vector<4x128xf32>, i32 -> vector<4x128xf32>
    %253 = vector.shape_cast %219 : vector<1x128xi1> to vector<1x128xi1>
    %254 = vector.broadcast %253 : vector<1x128xi1> to vector<4x128xi1>
    %255 = arith.select %254, %252, %248 : vector<4x128xi1>, vector<4x128xf32>
    %c1_i32_94 = arith.constant 1 : i32
    %256 = tpu.dynamic_rotate %243 by %c1_i32_94 dim 1 : vector<4x128xf32>, i32 -> vector<4x128xf32>
    %257 = vector.shape_cast %225 : vector<1x128xi1> to vector<1x128xi1>
    %258 = vector.broadcast %257 : vector<1x128xi1> to vector<4x128xi1>
    %259 = arith.select %258, %256, %251 : vector<4x128xi1>, vector<4x128xf32>
    %260 = vector.shape_cast %221 : vector<1x128xi1> to vector<1x128xi1>
    %261 = vector.broadcast %260 : vector<1x128xi1> to vector<4x128xi1>
    %262 = arith.select %261, %256, %255 : vector<4x128xi1>, vector<4x128xf32>
    %263 = vector.shape_cast %227 : vector<1x128xi1> to vector<1x128xi1>
    %264 = vector.broadcast %263 : vector<1x128xi1> to vector<4x128xi1>
    %265 = arith.select %264, %252, %259 : vector<4x128xi1>, vector<4x128xf32>
    %c112 = arith.constant 112 : index
    %c0_95 = arith.constant 0 : index
    %266 = vector.load %arg2[%c112, %c0_95] : memref<400x128xf32, #tpu.memory_space<vmem>>, vector<4x12xf32>
    %267 = vector.extract_strided_slice %266 {offsets = [0, 0], sizes = [4, 4], strides = [1, 1]} : vector<4x12xf32> to vector<4x4xf32>
    %cst_96 = arith.constant dense<0.000000e+00> : vector<4x128xf32>
    %268 = tpu.matmul %267, %262, %cst_96 {dimension_numbers = #tpu.dot_dimension_numbers<[1], [0], [0], [1], [0, 0, 1, 1], [], []>} : vector<4x4xf32>, vector<4x128xf32>, vector<4x128xf32> -> vector<4x128xf32>
    %269 = vector.extract_strided_slice %266 {offsets = [0, 4], sizes = [4, 4], strides = [1, 1]} : vector<4x12xf32> to vector<4x4xf32>
    %cst_97 = arith.constant dense<0.000000e+00> : vector<4x128xf32>
    %270 = tpu.matmul %269, %243, %cst_97 {dimension_numbers = #tpu.dot_dimension_numbers<[1], [0], [0], [1], [0, 0, 1, 1], [], []>} : vector<4x4xf32>, vector<4x128xf32>, vector<4x128xf32> -> vector<4x128xf32>
    %271 = arith.addf %268, %270 : vector<4x128xf32>
    %272 = vector.extract_strided_slice %266 {offsets = [0, 8], sizes = [4, 4], strides = [1, 1]} : vector<4x12xf32> to vector<4x4xf32>
    %cst_98 = arith.constant dense<0.000000e+00> : vector<4x128xf32>
    %273 = tpu.matmul %272, %265, %cst_98 {dimension_numbers = #tpu.dot_dimension_numbers<[1], [0], [0], [1], [0, 0, 1, 1], [], []>} : vector<4x4xf32>, vector<4x128xf32>, vector<4x128xf32> -> vector<4x128xf32>
    %274 = arith.addf %271, %273 : vector<4x128xf32>
    %c0_99 = arith.constant 0 : index
    %c23 = arith.constant 23 : index
    %275 = vector.load %arg3[%c0_99, %c23] : memref<48x66xf32, #tpu.memory_space<vmem>>, vector<4x1xf32>
    %276 = vector.broadcast %275 : vector<4x1xf32> to vector<4x128xf32>
    %277 = arith.addf %274, %276 : vector<4x128xf32>
    %cst_100 = arith.constant 0.000000e+00 : f32
    %278 = vector.broadcast %cst_100 : f32 to vector<4x128xf32>
    %279 = arith.maximumf %277, %278 : vector<4x128xf32>
    %c0_101 = arith.constant 0 : index
    %c24 = arith.constant 24 : index
    %280 = vector.load %arg3[%c0_101, %c24] : memref<48x66xf32, #tpu.memory_space<vmem>>, vector<4x1xf32>
    %281 = vector.broadcast %280 : vector<4x1xf32> to vector<4x128xf32>
    %282 = arith.mulf %279, %281 : vector<4x128xf32>
    %c0_102 = arith.constant 0 : index
    %c25 = arith.constant 25 : index
    %283 = vector.load %arg3[%c0_102, %c25] : memref<48x66xf32, #tpu.memory_space<vmem>>, vector<4x1xf32>
    %284 = vector.broadcast %283 : vector<4x1xf32> to vector<4x128xf32>
    %285 = arith.addf %282, %284 : vector<4x128xf32>
    %c4_103 = arith.constant 4 : index
    %c0_104 = arith.constant 0 : index
    %286 = vector.load %arg5[%c4_103, %c0_104] : memref<16x128xf32, #tpu.memory_space<vmem>>, vector<4x128xf32>
    tpu.vector_store %arg5[%c4_103, %c0_104], %285 {strides = array<i32>} : memref<16x128xf32, #tpu.memory_space<vmem>>, vector<4x128xf32>,
    %287 = vector.extract_strided_slice %240 {offsets = [8, 0], sizes = [4, 128], strides = [1, 1]} : vector<16x128xf32> to vector<4x128xf32>
    %288 = arith.addf %287, %285 : vector<4x128xf32>
    %c3_i32_105 = arith.constant 3 : i32
    %289 = tpu.dynamic_rotate %288 by %c3_i32_105 dim 1 : vector<4x128xf32>, i32 -> vector<4x128xf32>
    %c125_i32_106 = arith.constant 125 : i32
    %290 = tpu.dynamic_rotate %288 by %c125_i32_106 dim 1 : vector<4x128xf32>, i32 -> vector<4x128xf32>
    %291 = vector.shape_cast %217 : vector<1x128xi1> to vector<1x128xi1>
    %292 = vector.broadcast %291 : vector<1x128xi1> to vector<4x128xi1>
    %293 = arith.select %292, %290, %289 : vector<4x128xi1>, vector<4x128xf32>
    %294 = vector.shape_cast %223 : vector<1x128xi1> to vector<1x128xi1>
    %295 = vector.broadcast %294 : vector<1x128xi1> to vector<4x128xi1>
    %296 = arith.select %295, %289, %290 : vector<4x128xi1>, vector<4x128xf32>
    %c127_i32_107 = arith.constant 127 : i32
    %297 = tpu.dynamic_rotate %288 by %c127_i32_107 dim 1 : vector<4x128xf32>, i32 -> vector<4x128xf32>
    %298 = vector.shape_cast %219 : vector<1x128xi1> to vector<1x128xi1>
    %299 = vector.broadcast %298 : vector<1x128xi1> to vector<4x128xi1>
    %300 = arith.select %299, %297, %293 : vector<4x128xi1>, vector<4x128xf32>
    %c1_i32_108 = arith.constant 1 : i32
    %301 = tpu.dynamic_rotate %288 by %c1_i32_108 dim 1 : vector<4x128xf32>, i32 -> vector<4x128xf32>
    %302 = vector.shape_cast %225 : vector<1x128xi1> to vector<1x128xi1>
    %303 = vector.broadcast %302 : vector<1x128xi1> to vector<4x128xi1>
    %304 = arith.select %303, %301, %296 : vector<4x128xi1>, vector<4x128xf32>
    %305 = vector.shape_cast %221 : vector<1x128xi1> to vector<1x128xi1>
    %306 = vector.broadcast %305 : vector<1x128xi1> to vector<4x128xi1>
    %307 = arith.select %306, %301, %300 : vector<4x128xi1>, vector<4x128xf32>
    %308 = vector.shape_cast %227 : vector<1x128xi1> to vector<1x128xi1>
    %309 = vector.broadcast %308 : vector<1x128xi1> to vector<4x128xi1>
    %310 = arith.select %309, %297, %304 : vector<4x128xi1>, vector<4x128xf32>
    %c120 = arith.constant 120 : index
    %c0_109 = arith.constant 0 : index
    %311 = vector.load %arg2[%c120, %c0_109] : memref<400x128xf32, #tpu.memory_space<vmem>>, vector<4x12xf32>
    %312 = vector.extract_strided_slice %311 {offsets = [0, 0], sizes = [4, 4], strides = [1, 1]} : vector<4x12xf32> to vector<4x4xf32>
    %cst_110 = arith.constant dense<0.000000e+00> : vector<4x128xf32>
    %313 = tpu.matmul %312, %307, %cst_110 {dimension_numbers = #tpu.dot_dimension_numbers<[1], [0], [0], [1], [0, 0, 1, 1], [], []>} : vector<4x4xf32>, vector<4x128xf32>, vector<4x128xf32> -> vector<4x128xf32>
    %314 = vector.extract_strided_slice %311 {offsets = [0, 4], sizes = [4, 4], strides = [1, 1]} : vector<4x12xf32> to vector<4x4xf32>
    %cst_111 = arith.constant dense<0.000000e+00> : vector<4x128xf32>
    %315 = tpu.matmul %314, %288, %cst_111 {dimension_numbers = #tpu.dot_dimension_numbers<[1], [0], [0], [1], [0, 0, 1, 1], [], []>} : vector<4x4xf32>, vector<4x128xf32>, vector<4x128xf32> -> vector<4x128xf32>
    %316 = arith.addf %313, %315 : vector<4x128xf32>
    %317 = vector.extract_strided_slice %311 {offsets = [0, 8], sizes = [4, 4], strides = [1, 1]} : vector<4x12xf32> to vector<4x4xf32>
    %cst_112 = arith.constant dense<0.000000e+00> : vector<4x128xf32>
    %318 = tpu.matmul %317, %310, %cst_112 {dimension_numbers = #tpu.dot_dimension_numbers<[1], [0], [0], [1], [0, 0, 1, 1], [], []>} : vector<4x4xf32>, vector<4x128xf32>, vector<4x128xf32> -> vector<4x128xf32>
    %319 = arith.addf %316, %318 : vector<4x128xf32>
    %c0_113 = arith.constant 0 : index
    %c26 = arith.constant 26 : index
    %320 = vector.load %arg3[%c0_113, %c26] : memref<48x66xf32, #tpu.memory_space<vmem>>, vector<4x1xf32>
    %321 = vector.broadcast %320 : vector<4x1xf32> to vector<4x128xf32>
    %322 = arith.addf %319, %321 : vector<4x128xf32>
    %cst_114 = arith.constant 0.000000e+00 : f32
    %323 = vector.broadcast %cst_114 : f32 to vector<4x128xf32>
    %324 = arith.maximumf %322, %323 : vector<4x128xf32>
    %c0_115 = arith.constant 0 : index
    %c27 = arith.constant 27 : index
    %325 = vector.load %arg3[%c0_115, %c27] : memref<48x66xf32, #tpu.memory_space<vmem>>, vector<4x1xf32>
    %326 = vector.broadcast %325 : vector<4x1xf32> to vector<4x128xf32>
    %327 = arith.mulf %324, %326 : vector<4x128xf32>
    %c0_116 = arith.constant 0 : index
    %c28 = arith.constant 28 : index
    %328 = vector.load %arg3[%c0_116, %c28] : memref<48x66xf32, #tpu.memory_space<vmem>>, vector<4x1xf32>
    %329 = vector.broadcast %328 : vector<4x1xf32> to vector<4x128xf32>
    %330 = arith.addf %327, %329 : vector<4x128xf32>
    %c8_117 = arith.constant 8 : index
    %c0_118 = arith.constant 0 : index
    %331 = vector.load %arg5[%c8_117, %c0_118] : memref<16x128xf32, #tpu.memory_space<vmem>>, vector<4x128xf32>
    tpu.vector_store %arg5[%c8_117, %c0_118], %330 {strides = array<i32>} : memref<16x128xf32, #tpu.memory_space<vmem>>, vector<4x128xf32>,
    %332 = vector.extract_strided_slice %240 {offsets = [12, 0], sizes = [4, 128], strides = [1, 1]} : vector<16x128xf32> to vector<4x128xf32>
    %333 = arith.addf %332, %330 : vector<4x128xf32>
    %c3_i32_119 = arith.constant 3 : i32
    %334 = tpu.dynamic_rotate %333 by %c3_i32_119 dim 1 : vector<4x128xf32>, i32 -> vector<4x128xf32>
    %c125_i32_120 = arith.constant 125 : i32
    %335 = tpu.dynamic_rotate %333 by %c125_i32_120 dim 1 : vector<4x128xf32>, i32 -> vector<4x128xf32>
    %336 = vector.shape_cast %217 : vector<1x128xi1> to vector<1x128xi1>
    %337 = vector.broadcast %336 : vector<1x128xi1> to vector<4x128xi1>
    %338 = arith.select %337, %335, %334 : vector<4x128xi1>, vector<4x128xf32>
    %339 = vector.shape_cast %223 : vector<1x128xi1> to vector<1x128xi1>
    %340 = vector.broadcast %339 : vector<1x128xi1> to vector<4x128xi1>
    %341 = arith.select %340, %334, %335 : vector<4x128xi1>, vector<4x128xf32>
    %c127_i32_121 = arith.constant 127 : i32
    %342 = tpu.dynamic_rotate %333 by %c127_i32_121 dim 1 : vector<4x128xf32>, i32 -> vector<4x128xf32>
    %343 = vector.shape_cast %219 : vector<1x128xi1> to vector<1x128xi1>
    %344 = vector.broadcast %343 : vector<1x128xi1> to vector<4x128xi1>
    %345 = arith.select %344, %342, %338 : vector<4x128xi1>, vector<4x128xf32>
    %c1_i32_122 = arith.constant 1 : i32
    %346 = tpu.dynamic_rotate %333 by %c1_i32_122 dim 1 : vector<4x128xf32>, i32 -> vector<4x128xf32>
    %347 = vector.shape_cast %225 : vector<1x128xi1> to vector<1x128xi1>
    %348 = vector.broadcast %347 : vector<1x128xi1> to vector<4x128xi1>
    %349 = arith.select %348, %346, %341 : vector<4x128xi1>, vector<4x128xf32>
    %350 = vector.shape_cast %221 : vector<1x128xi1> to vector<1x128xi1>
    %351 = vector.broadcast %350 : vector<1x128xi1> to vector<4x128xi1>
    %352 = arith.select %351, %346, %345 : vector<4x128xi1>, vector<4x128xf32>
    %353 = vector.shape_cast %227 : vector<1x128xi1> to vector<1x128xi1>
    %354 = vector.broadcast %353 : vector<1x128xi1> to vector<4x128xi1>
    %355 = arith.select %354, %342, %349 : vector<4x128xi1>, vector<4x128xf32>
    %c128 = arith.constant 128 : index
    %c0_123 = arith.constant 0 : index
    %356 = vector.load %arg2[%c128, %c0_123] : memref<400x128xf32, #tpu.memory_space<vmem>>, vector<4x12xf32>
    %357 = vector.extract_strided_slice %356 {offsets = [0, 0], sizes = [4, 4], strides = [1, 1]} : vector<4x12xf32> to vector<4x4xf32>
    %cst_124 = arith.constant dense<0.000000e+00> : vector<4x128xf32>
    %358 = tpu.matmul %357, %352, %cst_124 {dimension_numbers = #tpu.dot_dimension_numbers<[1], [0], [0], [1], [0, 0, 1, 1], [], []>} : vector<4x4xf32>, vector<4x128xf32>, vector<4x128xf32> -> vector<4x128xf32>
    %359 = vector.extract_strided_slice %356 {offsets = [0, 4], sizes = [4, 4], strides = [1, 1]} : vector<4x12xf32> to vector<4x4xf32>
    %cst_125 = arith.constant dense<0.000000e+00> : vector<4x128xf32>
    %360 = tpu.matmul %359, %333, %cst_125 {dimension_numbers = #tpu.dot_dimension_numbers<[1], [0], [0], [1], [0, 0, 1, 1], [], []>} : vector<4x4xf32>, vector<4x128xf32>, vector<4x128xf32> -> vector<4x128xf32>
    %361 = arith.addf %358, %360 : vector<4x128xf32>
    %362 = vector.extract_strided_slice %356 {offsets = [0, 8], sizes = [4, 4], strides = [1, 1]} : vector<4x12xf32> to vector<4x4xf32>
    %cst_126 = arith.constant dense<0.000000e+00> : vector<4x128xf32>
    %363 = tpu.matmul %362, %355, %cst_126 {dimension_numbers = #tpu.dot_dimension_numbers<[1], [0], [0], [1], [0, 0, 1, 1], [], []>} : vector<4x4xf32>, vector<4x128xf32>, vector<4x128xf32> -> vector<4x128xf32>
    %364 = arith.addf %361, %363 : vector<4x128xf32>
    %c0_127 = arith.constant 0 : index
    %c29 = arith.constant 29 : index
    %365 = vector.load %arg3[%c0_127, %c29] : memref<48x66xf32, #tpu.memory_space<vmem>>, vector<4x1xf32>
    %366 = vector.broadcast %365 : vector<4x1xf32> to vector<4x128xf32>
    %367 = arith.addf %364, %366 : vector<4x128xf32>
    %cst_128 = arith.constant 0.000000e+00 : f32
    %368 = vector.broadcast %cst_128 : f32 to vector<4x128xf32>
    %369 = arith.maximumf %367, %368 : vector<4x128xf32>
    %c0_129 = arith.constant 0 : index
    %c30 = arith.constant 30 : index
    %370 = vector.load %arg3[%c0_129, %c30] : memref<48x66xf32, #tpu.memory_space<vmem>>, vector<4x1xf32>
    %371 = vector.broadcast %370 : vector<4x1xf32> to vector<4x128xf32>
    %372 = arith.mulf %369, %371 : vector<4x128xf32>
    %c0_130 = arith.constant 0 : index
    %c31 = arith.constant 31 : index
    %373 = vector.load %arg3[%c0_130, %c31] : memref<48x66xf32, #tpu.memory_space<vmem>>, vector<4x1xf32>
    %374 = vector.broadcast %373 : vector<4x1xf32> to vector<4x128xf32>
    %375 = arith.addf %372, %374 : vector<4x128xf32>
    %c12_131 = arith.constant 12 : index
    %c0_132 = arith.constant 0 : index
    %376 = vector.load %arg5[%c12_131, %c0_132] : memref<16x128xf32, #tpu.memory_space<vmem>>, vector<4x128xf32>
    tpu.vector_store %arg5[%c12_131, %c0_132], %375 {strides = array<i32>} : memref<16x128xf32, #tpu.memory_space<vmem>>, vector<4x128xf32>,
    %c136 = arith.constant 136 : index
    %c0_133 = arith.constant 0 : index
    %377 = vector.load %arg2[%c136, %c0_133] : memref<400x128xf32, #tpu.memory_space<vmem>>, vector<16x16xf32>
    %c0_134 = arith.constant 0 : index
    %c0_135 = arith.constant 0 : index
    %378 = vector.load %arg5[%c0_134, %c0_135] : memref<16x128xf32, #tpu.memory_space<vmem>>, vector<16x128xf32>
    %cst_136 = arith.constant dense<0.000000e+00> : vector<16x128xf32>
    %379 = tpu.matmul %377, %378, %cst_136 {dimension_numbers = #tpu.dot_dimension_numbers<[1], [0], [0], [1], [0, 0, 1, 1], [], []>} : vector<16x16xf32>, vector<16x128xf32>, vector<16x128xf32> -> vector<16x128xf32>
    %c0_137 = arith.constant 0 : index
    %c32_138 = arith.constant 32 : index
    %380 = vector.load %arg3[%c0_137, %c32_138] : memref<48x66xf32, #tpu.memory_space<vmem>>, vector<16x1xf32>
    %381 = vector.broadcast %380 : vector<16x1xf32> to vector<16x128xf32>
    %382 = arith.addf %379, %381 : vector<16x128xf32>
    %cst_139 = arith.constant 0.000000e+00 : f32
    %383 = vector.broadcast %cst_139 : f32 to vector<16x128xf32>
    %384 = arith.maximumf %382, %383 : vector<16x128xf32>
    %c0_140 = arith.constant 0 : index
    %c33 = arith.constant 33 : index
    %385 = vector.load %arg3[%c0_140, %c33] : memref<48x66xf32, #tpu.memory_space<vmem>>, vector<16x1xf32>
    %386 = vector.broadcast %385 : vector<16x1xf32> to vector<16x128xf32>
    %387 = arith.mulf %384, %386 : vector<16x128xf32>
    %c0_141 = arith.constant 0 : index
    %c34 = arith.constant 34 : index
    %388 = vector.load %arg3[%c0_141, %c34] : memref<48x66xf32, #tpu.memory_space<vmem>>, vector<16x1xf32>
    %389 = vector.broadcast %388 : vector<16x1xf32> to vector<16x128xf32>
    %390 = arith.addf %387, %389 : vector<16x128xf32>
    %cst_142 = arith.constant dense<0.000000e+00> : vector<16x8xf32>
    %391 = tpu.matmul %390, %16, %cst_142 {dimension_numbers = #tpu.dot_dimension_numbers<[1], [0], [0], [1], [0, 0, 1, 1], [], []>} : vector<16x128xf32>, vector<128x8xf32>, vector<16x8xf32> -> vector<16x8xf32>
    %cst_143 = arith.constant 6.250000e-02 : f32
    %392 = vector.broadcast %cst_143 : f32 to vector<16x8xf32>
    %393 = arith.mulf %391, %392 : vector<16x8xf32>
    %c152 = arith.constant 152 : index
    %c0_144 = arith.constant 0 : index
    %394 = vector.load %arg2[%c152, %c0_144] : memref<400x128xf32, #tpu.memory_space<vmem>>, vector<8x16xf32>
    %cst_145 = arith.constant dense<0.000000e+00> : vector<8x8xf32>
    %395 = tpu.matmul %394, %393, %cst_145 {dimension_numbers = #tpu.dot_dimension_numbers<[1], [0], [0], [1], [0, 0, 1, 1], [], []>} : vector<8x16xf32>, vector<16x8xf32>, vector<8x8xf32> -> vector<8x8xf32>
    %c0_146 = arith.constant 0 : index
    %c35 = arith.constant 35 : index
    %396 = vector.load %arg3[%c0_146, %c35] : memref<48x66xf32, #tpu.memory_space<vmem>>, vector<8x1xf32>
    %397 = vector.broadcast %396 : vector<8x1xf32> to vector<8x8xf32>
    %398 = arith.addf %395, %397 : vector<8x8xf32>
    %cst_147 = arith.constant 0.000000e+00 : f32
    %399 = vector.broadcast %cst_147 : f32 to vector<8x8xf32>
    %400 = arith.maximumf %398, %399 : vector<8x8xf32>
    %c160 = arith.constant 160 : index
    %c0_148 = arith.constant 0 : index
    %401 = vector.load %arg2[%c160, %c0_148] : memref<400x128xf32, #tpu.memory_space<vmem>>, vector<16x8xf32>
    %cst_149 = arith.constant dense<0.000000e+00> : vector<16x8xf32>
    %402 = tpu.matmul %401, %400, %cst_149 {dimension_numbers = #tpu.dot_dimension_numbers<[1], [0], [0], [1], [0, 0, 1, 1], [], []>} : vector<16x8xf32>, vector<8x8xf32>, vector<16x8xf32> -> vector<16x8xf32>
    %c0_150 = arith.constant 0 : index
    %c36 = arith.constant 36 : index
    %403 = vector.load %arg3[%c0_150, %c36] : memref<48x66xf32, #tpu.memory_space<vmem>>, vector<16x1xf32>
    %404 = vector.broadcast %403 : vector<16x1xf32> to vector<16x8xf32>
    %405 = arith.addf %402, %404 : vector<16x8xf32>
    %406 = arith.negf %405 : vector<16x8xf32>
    %407 = math.exp %406 : vector<16x8xf32>
    %cst_151 = arith.constant 1.000000e+00 : f32
    %408 = vector.broadcast %cst_151 : f32 to vector<16x8xf32>
    %409 = arith.addf %408, %407 : vector<16x8xf32>
    %410 = arith.divf %408, %409 : vector<16x8xf32>
    %cst_152 = arith.constant dense<0.000000e+00> : vector<16x128xf32>
    %411 = tpu.matmul %410, %30, %cst_152 {dimension_numbers = #tpu.dot_dimension_numbers<[1], [0], [0], [1], [0, 0, 1, 1], [], []>} : vector<16x8xf32>, vector<8x128xf32>, vector<16x128xf32> -> vector<16x128xf32>
    %412 = arith.mulf %411, %390 : vector<16x128xf32>
    %413 = arith.addf %412, %215 : vector<16x128xf32>
    %c0_i32_153 = arith.constant 0 : i32
    %414 = vector.broadcast %c0_i32_153 : i32 to vector<1x128xi32>
    %415 = arith.cmpi eq, %2, %414 : vector<1x128xi32>
    %c1_i32_154 = arith.constant 1 : i32
    %416 = vector.broadcast %c1_i32_154 : i32 to vector<1x128xi32>
    %417 = arith.cmpi eq, %2, %416 : vector<1x128xi32>
    %c2_i32_155 = arith.constant 2 : i32
    %418 = vector.broadcast %c2_i32_155 : i32 to vector<1x128xi32>
    %419 = arith.cmpi eq, %2, %418 : vector<1x128xi32>
    %c3_i32_156 = arith.constant 3 : i32
    %420 = vector.broadcast %c3_i32_156 : i32 to vector<1x128xi32>
    %421 = arith.cmpi eq, %2, %420 : vector<1x128xi32>
    %c15_i32_157 = arith.constant 15 : i32
    %422 = vector.broadcast %c15_i32_157 : i32 to vector<1x128xi32>
    %423 = arith.cmpi eq, %2, %422 : vector<1x128xi32>
    %c14_i32_158 = arith.constant 14 : i32
    %424 = vector.broadcast %c14_i32_158 : i32 to vector<1x128xi32>
    %425 = arith.cmpi eq, %2, %424 : vector<1x128xi32>
    %c13_i32_159 = arith.constant 13 : i32
    %426 = vector.broadcast %c13_i32_159 : i32 to vector<1x128xi32>
    %427 = arith.cmpi eq, %2, %426 : vector<1x128xi32>
    %c12_i32 = arith.constant 12 : i32
    %428 = vector.broadcast %c12_i32 : i32 to vector<1x128xi32>
    %429 = arith.cmpi eq, %2, %428 : vector<1x128xi32>
    %c176 = arith.constant 176 : index
    %c0_160 = arith.constant 0 : index
    %430 = vector.load %arg2[%c176, %c0_160] : memref<400x128xf32, #tpu.memory_space<vmem>>, vector<16x16xf32>
    %cst_161 = arith.constant dense<0.000000e+00> : vector<16x128xf32>
    %431 = tpu.matmul %430, %413, %cst_161 {dimension_numbers = #tpu.dot_dimension_numbers<[1], [0], [0], [1], [0, 0, 1, 1], [], []>} : vector<16x16xf32>, vector<16x128xf32>, vector<16x128xf32> -> vector<16x128xf32>
    %c0_162 = arith.constant 0 : index
    %c37 = arith.constant 37 : index
    %432 = vector.load %arg3[%c0_162, %c37] : memref<48x66xf32, #tpu.memory_space<vmem>>, vector<16x1xf32>
    %433 = vector.broadcast %432 : vector<16x1xf32> to vector<16x128xf32>
    %434 = arith.addf %431, %433 : vector<16x128xf32>
    %cst_163 = arith.constant 0.000000e+00 : f32
    %435 = vector.broadcast %cst_163 : f32 to vector<16x128xf32>
    %436 = arith.maximumf %434, %435 : vector<16x128xf32>
    %c0_164 = arith.constant 0 : index
    %c38 = arith.constant 38 : index
    %437 = vector.load %arg3[%c0_164, %c38] : memref<48x66xf32, #tpu.memory_space<vmem>>, vector<16x1xf32>
    %438 = vector.broadcast %437 : vector<16x1xf32> to vector<16x128xf32>
    %439 = arith.mulf %436, %438 : vector<16x128xf32>
    %c0_165 = arith.constant 0 : index
    %c39 = arith.constant 39 : index
    %440 = vector.load %arg3[%c0_165, %c39] : memref<48x66xf32, #tpu.memory_space<vmem>>, vector<16x1xf32>
    %441 = vector.broadcast %440 : vector<16x1xf32> to vector<16x128xf32>
    %442 = arith.addf %439, %441 : vector<16x128xf32>
    %443 = vector.extract_strided_slice %442 {offsets = [0, 0], sizes = [4, 128], strides = [1, 1]} : vector<16x128xf32> to vector<4x128xf32>
    %c0_166 = arith.constant 0 : index
    %c0_167 = arith.constant 0 : index
    %444 = vector.load %arg5[%c0_166, %c0_167] : memref<16x128xf32, #tpu.memory_space<vmem>>, vector<4x128xf32>
    tpu.vector_store %arg5[%c0_166, %c0_167], %443 {strides = array<i32>} : memref<16x128xf32, #tpu.memory_space<vmem>>, vector<4x128xf32>,
    %445 = vector.extract_strided_slice %442 {offsets = [4, 0], sizes = [4, 128], strides = [1, 1]} : vector<16x128xf32> to vector<4x128xf32>
    %c4_i32 = arith.constant 4 : i32
    %446 = tpu.dynamic_rotate %445 by %c4_i32 dim 1 : vector<4x128xf32>, i32 -> vector<4x128xf32>
    %c124_i32 = arith.constant 124 : i32
    %447 = tpu.dynamic_rotate %445 by %c124_i32 dim 1 : vector<4x128xf32>, i32 -> vector<4x128xf32>
    %448 = vector.shape_cast %415 : vector<1x128xi1> to vector<1x128xi1>
    %449 = vector.broadcast %448 : vector<1x128xi1> to vector<4x128xi1>
    %450 = arith.select %449, %447, %446 : vector<4x128xi1>, vector<4x128xf32>
    %451 = vector.shape_cast %423 : vector<1x128xi1> to vector<1x128xi1>
    %452 = vector.broadcast %451 : vector<1x128xi1> to vector<4x128xi1>
    %453 = arith.select %452, %446, %447 : vector<4x128xi1>, vector<4x128xf32>
    %c126_i32_168 = arith.constant 126 : i32
    %454 = tpu.dynamic_rotate %445 by %c126_i32_168 dim 1 : vector<4x128xf32>, i32 -> vector<4x128xf32>
    %455 = vector.shape_cast %417 : vector<1x128xi1> to vector<1x128xi1>
    %456 = vector.broadcast %455 : vector<1x128xi1> to vector<4x128xi1>
    %457 = arith.select %456, %454, %450 : vector<4x128xi1>, vector<4x128xf32>
    %c2_i32_169 = arith.constant 2 : i32
    %458 = tpu.dynamic_rotate %445 by %c2_i32_169 dim 1 : vector<4x128xf32>, i32 -> vector<4x128xf32>
    %459 = vector.shape_cast %425 : vector<1x128xi1> to vector<1x128xi1>
    %460 = vector.broadcast %459 : vector<1x128xi1> to vector<4x128xi1>
    %461 = arith.select %460, %458, %453 : vector<4x128xi1>, vector<4x128xf32>
    %462 = vector.shape_cast %419 : vector<1x128xi1> to vector<1x128xi1>
    %463 = vector.broadcast %462 : vector<1x128xi1> to vector<4x128xi1>
    %464 = arith.select %463, %445, %457 : vector<4x128xi1>, vector<4x128xf32>
    %465 = vector.shape_cast %427 : vector<1x128xi1> to vector<1x128xi1>
    %466 = vector.broadcast %465 : vector<1x128xi1> to vector<4x128xi1>
    %467 = arith.select %466, %445, %461 : vector<4x128xi1>, vector<4x128xf32>
    %468 = vector.shape_cast %421 : vector<1x128xi1> to vector<1x128xi1>
    %469 = vector.broadcast %468 : vector<1x128xi1> to vector<4x128xi1>
    %470 = arith.select %469, %458, %464 : vector<4x128xi1>, vector<4x128xf32>
    %471 = vector.shape_cast %429 : vector<1x128xi1> to vector<1x128xi1>
    %472 = vector.broadcast %471 : vector<1x128xi1> to vector<4x128xi1>
    %473 = arith.select %472, %454, %467 : vector<4x128xi1>, vector<4x128xf32>
    %c192 = arith.constant 192 : index
    %c0_170 = arith.constant 0 : index
    %474 = vector.load %arg2[%c192, %c0_170] : memref<400x128xf32, #tpu.memory_space<vmem>>, vector<4x12xf32>
    %475 = vector.extract_strided_slice %474 {offsets = [0, 0], sizes = [4, 4], strides = [1, 1]} : vector<4x12xf32> to vector<4x4xf32>
    %cst_171 = arith.constant dense<0.000000e+00> : vector<4x128xf32>
    %476 = tpu.matmul %475, %470, %cst_171 {dimension_numbers = #tpu.dot_dimension_numbers<[1], [0], [0], [1], [0, 0, 1, 1], [], []>} : vector<4x4xf32>, vector<4x128xf32>, vector<4x128xf32> -> vector<4x128xf32>
    %477 = vector.extract_strided_slice %474 {offsets = [0, 4], sizes = [4, 4], strides = [1, 1]} : vector<4x12xf32> to vector<4x4xf32>
    %cst_172 = arith.constant dense<0.000000e+00> : vector<4x128xf32>
    %478 = tpu.matmul %477, %445, %cst_172 {dimension_numbers = #tpu.dot_dimension_numbers<[1], [0], [0], [1], [0, 0, 1, 1], [], []>} : vector<4x4xf32>, vector<4x128xf32>, vector<4x128xf32> -> vector<4x128xf32>
    %479 = arith.addf %476, %478 : vector<4x128xf32>
    %480 = vector.extract_strided_slice %474 {offsets = [0, 8], sizes = [4, 4], strides = [1, 1]} : vector<4x12xf32> to vector<4x4xf32>
    %cst_173 = arith.constant dense<0.000000e+00> : vector<4x128xf32>
    %481 = tpu.matmul %480, %473, %cst_173 {dimension_numbers = #tpu.dot_dimension_numbers<[1], [0], [0], [1], [0, 0, 1, 1], [], []>} : vector<4x4xf32>, vector<4x128xf32>, vector<4x128xf32> -> vector<4x128xf32>
    %482 = arith.addf %479, %481 : vector<4x128xf32>
    %c0_174 = arith.constant 0 : index
    %c40_175 = arith.constant 40 : index
    %483 = vector.load %arg3[%c0_174, %c40_175] : memref<48x66xf32, #tpu.memory_space<vmem>>, vector<4x1xf32>
    %484 = vector.broadcast %483 : vector<4x1xf32> to vector<4x128xf32>
    %485 = arith.addf %482, %484 : vector<4x128xf32>
    %cst_176 = arith.constant 0.000000e+00 : f32
    %486 = vector.broadcast %cst_176 : f32 to vector<4x128xf32>
    %487 = arith.maximumf %485, %486 : vector<4x128xf32>
    %c0_177 = arith.constant 0 : index
    %c41 = arith.constant 41 : index
    %488 = vector.load %arg3[%c0_177, %c41] : memref<48x66xf32, #tpu.memory_space<vmem>>, vector<4x1xf32>
    %489 = vector.broadcast %488 : vector<4x1xf32> to vector<4x128xf32>
    %490 = arith.mulf %487, %489 : vector<4x128xf32>
    %c0_178 = arith.constant 0 : index
    %c42 = arith.constant 42 : index
    %491 = vector.load %arg3[%c0_178, %c42] : memref<48x66xf32, #tpu.memory_space<vmem>>, vector<4x1xf32>
    %492 = vector.broadcast %491 : vector<4x1xf32> to vector<4x128xf32>
    %493 = arith.addf %490, %492 : vector<4x128xf32>
    %c4_179 = arith.constant 4 : index
    %c0_180 = arith.constant 0 : index
    %494 = vector.load %arg5[%c4_179, %c0_180] : memref<16x128xf32, #tpu.memory_space<vmem>>, vector<4x128xf32>
    tpu.vector_store %arg5[%c4_179, %c0_180], %493 {strides = array<i32>} : memref<16x128xf32, #tpu.memory_space<vmem>>, vector<4x128xf32>,
    %495 = vector.extract_strided_slice %442 {offsets = [8, 0], sizes = [4, 128], strides = [1, 1]} : vector<16x128xf32> to vector<4x128xf32>
    %496 = arith.addf %495, %493 : vector<4x128xf32>
    %c4_i32_181 = arith.constant 4 : i32
    %497 = tpu.dynamic_rotate %496 by %c4_i32_181 dim 1 : vector<4x128xf32>, i32 -> vector<4x128xf32>
    %c124_i32_182 = arith.constant 124 : i32
    %498 = tpu.dynamic_rotate %496 by %c124_i32_182 dim 1 : vector<4x128xf32>, i32 -> vector<4x128xf32>
    %499 = vector.shape_cast %415 : vector<1x128xi1> to vector<1x128xi1>
    %500 = vector.broadcast %499 : vector<1x128xi1> to vector<4x128xi1>
    %501 = arith.select %500, %498, %497 : vector<4x128xi1>, vector<4x128xf32>
    %502 = vector.shape_cast %423 : vector<1x128xi1> to vector<1x128xi1>
    %503 = vector.broadcast %502 : vector<1x128xi1> to vector<4x128xi1>
    %504 = arith.select %503, %497, %498 : vector<4x128xi1>, vector<4x128xf32>
    %c126_i32_183 = arith.constant 126 : i32
    %505 = tpu.dynamic_rotate %496 by %c126_i32_183 dim 1 : vector<4x128xf32>, i32 -> vector<4x128xf32>
    %506 = vector.shape_cast %417 : vector<1x128xi1> to vector<1x128xi1>
    %507 = vector.broadcast %506 : vector<1x128xi1> to vector<4x128xi1>
    %508 = arith.select %507, %505, %501 : vector<4x128xi1>, vector<4x128xf32>
    %c2_i32_184 = arith.constant 2 : i32
    %509 = tpu.dynamic_rotate %496 by %c2_i32_184 dim 1 : vector<4x128xf32>, i32 -> vector<4x128xf32>
    %510 = vector.shape_cast %425 : vector<1x128xi1> to vector<1x128xi1>
    %511 = vector.broadcast %510 : vector<1x128xi1> to vector<4x128xi1>
    %512 = arith.select %511, %509, %504 : vector<4x128xi1>, vector<4x128xf32>
    %513 = vector.shape_cast %419 : vector<1x128xi1> to vector<1x128xi1>
    %514 = vector.broadcast %513 : vector<1x128xi1> to vector<4x128xi1>
    %515 = arith.select %514, %496, %508 : vector<4x128xi1>, vector<4x128xf32>
    %516 = vector.shape_cast %427 : vector<1x128xi1> to vector<1x128xi1>
    %517 = vector.broadcast %516 : vector<1x128xi1> to vector<4x128xi1>
    %518 = arith.select %517, %496, %512 : vector<4x128xi1>, vector<4x128xf32>
    %519 = vector.shape_cast %421 : vector<1x128xi1> to vector<1x128xi1>
    %520 = vector.broadcast %519 : vector<1x128xi1> to vector<4x128xi1>
    %521 = arith.select %520, %509, %515 : vector<4x128xi1>, vector<4x128xf32>
    %522 = vector.shape_cast %429 : vector<1x128xi1> to vector<1x128xi1>
    %523 = vector.broadcast %522 : vector<1x128xi1> to vector<4x128xi1>
    %524 = arith.select %523, %505, %518 : vector<4x128xi1>, vector<4x128xf32>
    %c200 = arith.constant 200 : index
    %c0_185 = arith.constant 0 : index
    %525 = vector.load %arg2[%c200, %c0_185] : memref<400x128xf32, #tpu.memory_space<vmem>>, vector<4x12xf32>
    %526 = vector.extract_strided_slice %525 {offsets = [0, 0], sizes = [4, 4], strides = [1, 1]} : vector<4x12xf32> to vector<4x4xf32>
    %cst_186 = arith.constant dense<0.000000e+00> : vector<4x128xf32>
    %527 = tpu.matmul %526, %521, %cst_186 {dimension_numbers = #tpu.dot_dimension_numbers<[1], [0], [0], [1], [0, 0, 1, 1], [], []>} : vector<4x4xf32>, vector<4x128xf32>, vector<4x128xf32> -> vector<4x128xf32>
    %528 = vector.extract_strided_slice %525 {offsets = [0, 4], sizes = [4, 4], strides = [1, 1]} : vector<4x12xf32> to vector<4x4xf32>
    %cst_187 = arith.constant dense<0.000000e+00> : vector<4x128xf32>
    %529 = tpu.matmul %528, %496, %cst_187 {dimension_numbers = #tpu.dot_dimension_numbers<[1], [0], [0], [1], [0, 0, 1, 1], [], []>} : vector<4x4xf32>, vector<4x128xf32>, vector<4x128xf32> -> vector<4x128xf32>
    %530 = arith.addf %527, %529 : vector<4x128xf32>
    %531 = vector.extract_strided_slice %525 {offsets = [0, 8], sizes = [4, 4], strides = [1, 1]} : vector<4x12xf32> to vector<4x4xf32>
    %cst_188 = arith.constant dense<0.000000e+00> : vector<4x128xf32>
    %532 = tpu.matmul %531, %524, %cst_188 {dimension_numbers = #tpu.dot_dimension_numbers<[1], [0], [0], [1], [0, 0, 1, 1], [], []>} : vector<4x4xf32>, vector<4x128xf32>, vector<4x128xf32> -> vector<4x128xf32>
    %533 = arith.addf %530, %532 : vector<4x128xf32>
    %c0_189 = arith.constant 0 : index
    %c43 = arith.constant 43 : index
    %534 = vector.load %arg3[%c0_189, %c43] : memref<48x66xf32, #tpu.memory_space<vmem>>, vector<4x1xf32>
    %535 = vector.broadcast %534 : vector<4x1xf32> to vector<4x128xf32>
    %536 = arith.addf %533, %535 : vector<4x128xf32>
    %cst_190 = arith.constant 0.000000e+00 : f32
    %537 = vector.broadcast %cst_190 : f32 to vector<4x128xf32>
    %538 = arith.maximumf %536, %537 : vector<4x128xf32>
    %c0_191 = arith.constant 0 : index
    %c44 = arith.constant 44 : index
    %539 = vector.load %arg3[%c0_191, %c44] : memref<48x66xf32, #tpu.memory_space<vmem>>, vector<4x1xf32>
    %540 = vector.broadcast %539 : vector<4x1xf32> to vector<4x128xf32>
    %541 = arith.mulf %538, %540 : vector<4x128xf32>
    %c0_192 = arith.constant 0 : index
    %c45 = arith.constant 45 : index
    %542 = vector.load %arg3[%c0_192, %c45] : memref<48x66xf32, #tpu.memory_space<vmem>>, vector<4x1xf32>
    %543 = vector.broadcast %542 : vector<4x1xf32> to vector<4x128xf32>
    %544 = arith.addf %541, %543 : vector<4x128xf32>
    %c8_193 = arith.constant 8 : index
    %c0_194 = arith.constant 0 : index
    %545 = vector.load %arg5[%c8_193, %c0_194] : memref<16x128xf32, #tpu.memory_space<vmem>>, vector<4x128xf32>
    tpu.vector_store %arg5[%c8_193, %c0_194], %544 {strides = array<i32>} : memref<16x128xf32, #tpu.memory_space<vmem>>, vector<4x128xf32>,
    %546 = vector.extract_strided_slice %442 {offsets = [12, 0], sizes = [4, 128], strides = [1, 1]} : vector<16x128xf32> to vector<4x128xf32>
    %547 = arith.addf %546, %544 : vector<4x128xf32>
    %c4_i32_195 = arith.constant 4 : i32
    %548 = tpu.dynamic_rotate %547 by %c4_i32_195 dim 1 : vector<4x128xf32>, i32 -> vector<4x128xf32>
    %c124_i32_196 = arith.constant 124 : i32
    %549 = tpu.dynamic_rotate %547 by %c124_i32_196 dim 1 : vector<4x128xf32>, i32 -> vector<4x128xf32>
    %550 = vector.shape_cast %415 : vector<1x128xi1> to vector<1x128xi1>
    %551 = vector.broadcast %550 : vector<1x128xi1> to vector<4x128xi1>
    %552 = arith.select %551, %549, %548 : vector<4x128xi1>, vector<4x128xf32>
    %553 = vector.shape_cast %423 : vector<1x128xi1> to vector<1x128xi1>
    %554 = vector.broadcast %553 : vector<1x128xi1> to vector<4x128xi1>
    %555 = arith.select %554, %548, %549 : vector<4x128xi1>, vector<4x128xf32>
    %c126_i32_197 = arith.constant 126 : i32
    %556 = tpu.dynamic_rotate %547 by %c126_i32_197 dim 1 : vector<4x128xf32>, i32 -> vector<4x128xf32>
    %557 = vector.shape_cast %417 : vector<1x128xi1> to vector<1x128xi1>
    %558 = vector.broadcast %557 : vector<1x128xi1> to vector<4x128xi1>
    %559 = arith.select %558, %556, %552 : vector<4x128xi1>, vector<4x128xf32>
    %c2_i32_198 = arith.constant 2 : i32
    %560 = tpu.dynamic_rotate %547 by %c2_i32_198 dim 1 : vector<4x128xf32>, i32 -> vector<4x128xf32>
    %561 = vector.shape_cast %425 : vector<1x128xi1> to vector<1x128xi1>
    %562 = vector.broadcast %561 : vector<1x128xi1> to vector<4x128xi1>
    %563 = arith.select %562, %560, %555 : vector<4x128xi1>, vector<4x128xf32>
    %564 = vector.shape_cast %419 : vector<1x128xi1> to vector<1x128xi1>
    %565 = vector.broadcast %564 : vector<1x128xi1> to vector<4x128xi1>
    %566 = arith.select %565, %547, %559 : vector<4x128xi1>, vector<4x128xf32>
    %567 = vector.shape_cast %427 : vector<1x128xi1> to vector<1x128xi1>
    %568 = vector.broadcast %567 : vector<1x128xi1> to vector<4x128xi1>
    %569 = arith.select %568, %547, %563 : vector<4x128xi1>, vector<4x128xf32>
    %570 = vector.shape_cast %421 : vector<1x128xi1> to vector<1x128xi1>
    %571 = vector.broadcast %570 : vector<1x128xi1> to vector<4x128xi1>
    %572 = arith.select %571, %560, %566 : vector<4x128xi1>, vector<4x128xf32>
    %573 = vector.shape_cast %429 : vector<1x128xi1> to vector<1x128xi1>
    %574 = vector.broadcast %573 : vector<1x128xi1> to vector<4x128xi1>
    %575 = arith.select %574, %556, %569 : vector<4x128xi1>, vector<4x128xf32>
    %c208 = arith.constant 208 : index
    %c0_199 = arith.constant 0 : index
    %576 = vector.load %arg2[%c208, %c0_199] : memref<400x128xf32, #tpu.memory_space<vmem>>, vector<4x12xf32>
    %577 = vector.extract_strided_slice %576 {offsets = [0, 0], sizes = [4, 4], strides = [1, 1]} : vector<4x12xf32> to vector<4x4xf32>
    %cst_200 = arith.constant dense<0.000000e+00> : vector<4x128xf32>
    %578 = tpu.matmul %577, %572, %cst_200 {dimension_numbers = #tpu.dot_dimension_numbers<[1], [0], [0], [1], [0, 0, 1, 1], [], []>} : vector<4x4xf32>, vector<4x128xf32>, vector<4x128xf32> -> vector<4x128xf32>
    %579 = vector.extract_strided_slice %576 {offsets = [0, 4], sizes = [4, 4], strides = [1, 1]} : vector<4x12xf32> to vector<4x4xf32>
    %cst_201 = arith.constant dense<0.000000e+00> : vector<4x128xf32>
    %580 = tpu.matmul %579, %547, %cst_201 {dimension_numbers = #tpu.dot_dimension_numbers<[1], [0], [0], [1], [0, 0, 1, 1], [], []>} : vector<4x4xf32>, vector<4x128xf32>, vector<4x128xf32> -> vector<4x128xf32>
    %581 = arith.addf %578, %580 : vector<4x128xf32>
    %582 = vector.extract_strided_slice %576 {offsets = [0, 8], sizes = [4, 4], strides = [1, 1]} : vector<4x12xf32> to vector<4x4xf32>
    %cst_202 = arith.constant dense<0.000000e+00> : vector<4x128xf32>
    %583 = tpu.matmul %582, %575, %cst_202 {dimension_numbers = #tpu.dot_dimension_numbers<[1], [0], [0], [1], [0, 0, 1, 1], [], []>} : vector<4x4xf32>, vector<4x128xf32>, vector<4x128xf32> -> vector<4x128xf32>
    %584 = arith.addf %581, %583 : vector<4x128xf32>
    %c0_203 = arith.constant 0 : index
    %c46 = arith.constant 46 : index
    %585 = vector.load %arg3[%c0_203, %c46] : memref<48x66xf32, #tpu.memory_space<vmem>>, vector<4x1xf32>
    %586 = vector.broadcast %585 : vector<4x1xf32> to vector<4x128xf32>
    %587 = arith.addf %584, %586 : vector<4x128xf32>
    %cst_204 = arith.constant 0.000000e+00 : f32
    %588 = vector.broadcast %cst_204 : f32 to vector<4x128xf32>
    %589 = arith.maximumf %587, %588 : vector<4x128xf32>
    %c0_205 = arith.constant 0 : index
    %c47 = arith.constant 47 : index
    %590 = vector.load %arg3[%c0_205, %c47] : memref<48x66xf32, #tpu.memory_space<vmem>>, vector<4x1xf32>
    %591 = vector.broadcast %590 : vector<4x1xf32> to vector<4x128xf32>
    %592 = arith.mulf %589, %591 : vector<4x128xf32>
    %c0_206 = arith.constant 0 : index
    %c48_207 = arith.constant 48 : index
    %593 = vector.load %arg3[%c0_206, %c48_207] : memref<48x66xf32, #tpu.memory_space<vmem>>, vector<4x1xf32>
    %594 = vector.broadcast %593 : vector<4x1xf32> to vector<4x128xf32>
    %595 = arith.addf %592, %594 : vector<4x128xf32>
    %c12_208 = arith.constant 12 : index
    %c0_209 = arith.constant 0 : index
    %596 = vector.load %arg5[%c12_208, %c0_209] : memref<16x128xf32, #tpu.memory_space<vmem>>, vector<4x128xf32>
    tpu.vector_store %arg5[%c12_208, %c0_209], %595 {strides = array<i32>} : memref<16x128xf32, #tpu.memory_space<vmem>>, vector<4x128xf32>,
    %c216 = arith.constant 216 : index
    %c0_210 = arith.constant 0 : index
    %597 = vector.load %arg2[%c216, %c0_210] : memref<400x128xf32, #tpu.memory_space<vmem>>, vector<16x16xf32>
    %c0_211 = arith.constant 0 : index
    %c0_212 = arith.constant 0 : index
    %598 = vector.load %arg5[%c0_211, %c0_212] : memref<16x128xf32, #tpu.memory_space<vmem>>, vector<16x128xf32>
    %cst_213 = arith.constant dense<0.000000e+00> : vector<16x128xf32>
    %599 = tpu.matmul %597, %598, %cst_213 {dimension_numbers = #tpu.dot_dimension_numbers<[1], [0], [0], [1], [0, 0, 1, 1], [], []>} : vector<16x16xf32>, vector<16x128xf32>, vector<16x128xf32> -> vector<16x128xf32>
    %c0_214 = arith.constant 0 : index
    %c49 = arith.constant 49 : index
    %600 = vector.load %arg3[%c0_214, %c49] : memref<48x66xf32, #tpu.memory_space<vmem>>, vector<16x1xf32>
    %601 = vector.broadcast %600 : vector<16x1xf32> to vector<16x128xf32>
    %602 = arith.addf %599, %601 : vector<16x128xf32>
    %cst_215 = arith.constant 0.000000e+00 : f32
    %603 = vector.broadcast %cst_215 : f32 to vector<16x128xf32>
    %604 = arith.maximumf %602, %603 : vector<16x128xf32>
    %c0_216 = arith.constant 0 : index
    %c50 = arith.constant 50 : index
    %605 = vector.load %arg3[%c0_216, %c50] : memref<48x66xf32, #tpu.memory_space<vmem>>, vector<16x1xf32>
    %606 = vector.broadcast %605 : vector<16x1xf32> to vector<16x128xf32>
    %607 = arith.mulf %604, %606 : vector<16x128xf32>
    %c0_217 = arith.constant 0 : index
    %c51 = arith.constant 51 : index
    %608 = vector.load %arg3[%c0_217, %c51] : memref<48x66xf32, #tpu.memory_space<vmem>>, vector<16x1xf32>
    %609 = vector.broadcast %608 : vector<16x1xf32> to vector<16x128xf32>
    %610 = arith.addf %607, %609 : vector<16x128xf32>
    %cst_218 = arith.constant dense<0.000000e+00> : vector<16x8xf32>
    %611 = tpu.matmul %610, %16, %cst_218 {dimension_numbers = #tpu.dot_dimension_numbers<[1], [0], [0], [1], [0, 0, 1, 1], [], []>} : vector<16x128xf32>, vector<128x8xf32>, vector<16x8xf32> -> vector<16x8xf32>
    %cst_219 = arith.constant 6.250000e-02 : f32
    %612 = vector.broadcast %cst_219 : f32 to vector<16x8xf32>
    %613 = arith.mulf %611, %612 : vector<16x8xf32>
    %c232 = arith.constant 232 : index
    %c0_220 = arith.constant 0 : index
    %614 = vector.load %arg2[%c232, %c0_220] : memref<400x128xf32, #tpu.memory_space<vmem>>, vector<8x16xf32>
    %cst_221 = arith.constant dense<0.000000e+00> : vector<8x8xf32>
    %615 = tpu.matmul %614, %613, %cst_221 {dimension_numbers = #tpu.dot_dimension_numbers<[1], [0], [0], [1], [0, 0, 1, 1], [], []>} : vector<8x16xf32>, vector<16x8xf32>, vector<8x8xf32> -> vector<8x8xf32>
    %c0_222 = arith.constant 0 : index
    %c52 = arith.constant 52 : index
    %616 = vector.load %arg3[%c0_222, %c52] : memref<48x66xf32, #tpu.memory_space<vmem>>, vector<8x1xf32>
    %617 = vector.broadcast %616 : vector<8x1xf32> to vector<8x8xf32>
    %618 = arith.addf %615, %617 : vector<8x8xf32>
    %cst_223 = arith.constant 0.000000e+00 : f32
    %619 = vector.broadcast %cst_223 : f32 to vector<8x8xf32>
    %620 = arith.maximumf %618, %619 : vector<8x8xf32>
    %c240 = arith.constant 240 : index
    %c0_224 = arith.constant 0 : index
    %621 = vector.load %arg2[%c240, %c0_224] : memref<400x128xf32, #tpu.memory_space<vmem>>, vector<16x8xf32>
    %cst_225 = arith.constant dense<0.000000e+00> : vector<16x8xf32>
    %622 = tpu.matmul %621, %620, %cst_225 {dimension_numbers = #tpu.dot_dimension_numbers<[1], [0], [0], [1], [0, 0, 1, 1], [], []>} : vector<16x8xf32>, vector<8x8xf32>, vector<16x8xf32> -> vector<16x8xf32>
    %c0_226 = arith.constant 0 : index
    %c53 = arith.constant 53 : index
    %623 = vector.load %arg3[%c0_226, %c53] : memref<48x66xf32, #tpu.memory_space<vmem>>, vector<16x1xf32>
    %624 = vector.broadcast %623 : vector<16x1xf32> to vector<16x8xf32>
    %625 = arith.addf %622, %624 : vector<16x8xf32>
    %626 = arith.negf %625 : vector<16x8xf32>
    %627 = math.exp %626 : vector<16x8xf32>
    %cst_227 = arith.constant 1.000000e+00 : f32
    %628 = vector.broadcast %cst_227 : f32 to vector<16x8xf32>
    %629 = arith.addf %628, %627 : vector<16x8xf32>
    %630 = arith.divf %628, %629 : vector<16x8xf32>
    %cst_228 = arith.constant dense<0.000000e+00> : vector<16x128xf32>
    %631 = tpu.matmul %630, %30, %cst_228 {dimension_numbers = #tpu.dot_dimension_numbers<[1], [0], [0], [1], [0, 0, 1, 1], [], []>} : vector<16x8xf32>, vector<8x128xf32>, vector<16x128xf32> -> vector<16x128xf32>
    %632 = arith.mulf %631, %610 : vector<16x128xf32>
    %633 = arith.addf %632, %413 : vector<16x128xf32>
    %634 = tpu.concatenate %215, %413, %633 in 0 : vector<16x128xf32>, vector<16x128xf32>, vector<16x128xf32> -> vector<48x128xf32>
    %c256 = arith.constant 256 : index
    %c0_229 = arith.constant 0 : index
    %635 = vector.load %arg2[%c256, %c0_229] : memref<400x128xf32, #tpu.memory_space<vmem>>, vector<48x48xf32>
    %cst_230 = arith.constant dense<0.000000e+00> : vector<48x128xf32>
    %636 = tpu.matmul %635, %634, %cst_230 {dimension_numbers = #tpu.dot_dimension_numbers<[1], [0], [0], [1], [0, 0, 1, 1], [], []>} : vector<48x48xf32>, vector<48x128xf32>, vector<48x128xf32> -> vector<48x128xf32>
    %c0_231 = arith.constant 0 : index
    %c54 = arith.constant 54 : index
    %637 = vector.load %arg3[%c0_231, %c54] : memref<48x66xf32, #tpu.memory_space<vmem>>, vector<48x1xf32>
    %638 = vector.broadcast %637 : vector<48x1xf32> to vector<48x128xf32>
    %639 = arith.addf %636, %638 : vector<48x128xf32>
    %cst_232 = arith.constant 0.000000e+00 : f32
    %640 = vector.broadcast %cst_232 : f32 to vector<48x128xf32>
    %641 = arith.maximumf %639, %640 : vector<48x128xf32>
    %c0_233 = arith.constant 0 : index
    %c55 = arith.constant 55 : index
    %642 = vector.load %arg3[%c0_233, %c55] : memref<48x66xf32, #tpu.memory_space<vmem>>, vector<48x1xf32>
    %643 = vector.broadcast %642 : vector<48x1xf32> to vector<48x128xf32>
    %644 = arith.mulf %641, %643 : vector<48x128xf32>
    %c0_234 = arith.constant 0 : index
    %c56_235 = arith.constant 56 : index
    %645 = vector.load %arg3[%c0_234, %c56_235] : memref<48x66xf32, #tpu.memory_space<vmem>>, vector<48x1xf32>
    %646 = vector.broadcast %645 : vector<48x1xf32> to vector<48x128xf32>
    %647 = arith.addf %644, %646 : vector<48x128xf32>
    %cst_236 = arith.constant dense<0.000000e+00> : vector<48x8xf32>
    %648 = tpu.matmul %647, %16, %cst_236 {dimension_numbers = #tpu.dot_dimension_numbers<[1], [0], [0], [1], [0, 0, 1, 1], [], []>} : vector<48x128xf32>, vector<128x8xf32>, vector<48x8xf32> -> vector<48x8xf32>
    %cst_237 = arith.constant 6.250000e-02 : f32
    %649 = vector.broadcast %cst_237 : f32 to vector<48x8xf32>
    %650 = arith.mulf %648, %649 : vector<48x8xf32>
    %cst_238 = arith.constant dense<0.000000e+00> : vector<48x128xf32>
    %651 = tpu.matmul %650, %30, %cst_238 {dimension_numbers = #tpu.dot_dimension_numbers<[1], [0], [0], [1], [0, 0, 1, 1], [], []>} : vector<48x8xf32>, vector<8x128xf32>, vector<48x128xf32> -> vector<48x128xf32>
    %652 = arith.subf %647, %651 : vector<48x128xf32>
    %653 = arith.mulf %652, %652 : vector<48x128xf32>
    %cst_239 = arith.constant dense<0.000000e+00> : vector<48x8xf32>
    %654 = tpu.matmul %653, %16, %cst_239 {dimension_numbers = #tpu.dot_dimension_numbers<[1], [0], [0], [1], [0, 0, 1, 1], [], []>} : vector<48x128xf32>, vector<128x8xf32>, vector<48x8xf32> -> vector<48x8xf32>
    %cst_240 = arith.constant 6.250000e-02 : f32
    %655 = vector.broadcast %cst_240 : f32 to vector<48x8xf32>
    %656 = arith.mulf %654, %655 : vector<48x8xf32>
    %cst_241 = arith.constant 9.99999996E-13 : f32
    %657 = vector.broadcast %cst_241 : f32 to vector<48x8xf32>
    %658 = arith.maximumf %656, %657 : vector<48x8xf32>
    %659 = math.sqrt %658 : vector<48x8xf32>
    %660 = tpu.concatenate %650, %659 in 0 : vector<48x8xf32>, vector<48x8xf32> -> vector<96x8xf32>
    %c304 = arith.constant 304 : index
    %c0_242 = arith.constant 0 : index
    %661 = vector.load %arg2[%c304, %c0_242] : memref<400x128xf32, #tpu.memory_space<vmem>>, vector<16x48xf32>
    %cst_243 = arith.constant dense<0.000000e+00> : vector<16x128xf32>
    %662 = tpu.matmul %661, %647, %cst_243 {dimension_numbers = #tpu.dot_dimension_numbers<[1], [0], [0], [1], [0, 0, 1, 1], [], []>} : vector<16x48xf32>, vector<48x128xf32>, vector<16x128xf32> -> vector<16x128xf32>
    %c320 = arith.constant 320 : index
    %c0_244 = arith.constant 0 : index
    %663 = vector.load %arg2[%c320, %c0_244] : memref<400x128xf32, #tpu.memory_space<vmem>>, vector<16x96xf32>
    %cst_245 = arith.constant dense<0.000000e+00> : vector<16x8xf32>
    %664 = tpu.matmul %663, %660, %cst_245 {dimension_numbers = #tpu.dot_dimension_numbers<[1], [0], [0], [1], [0, 0, 1, 1], [], []>} : vector<16x96xf32>, vector<96x8xf32>, vector<16x8xf32> -> vector<16x8xf32>
    %cst_246 = arith.constant dense<0.000000e+00> : vector<16x128xf32>
    %665 = tpu.matmul %664, %30, %cst_246 {dimension_numbers = #tpu.dot_dimension_numbers<[1], [0], [0], [1], [0, 0, 1, 1], [], []>} : vector<16x8xf32>, vector<8x128xf32>, vector<16x128xf32> -> vector<16x128xf32>
    %666 = arith.addf %662, %665 : vector<16x128xf32>
    %c0_247 = arith.constant 0 : index
    %c57 = arith.constant 57 : index
    %667 = vector.load %arg3[%c0_247, %c57] : memref<48x66xf32, #tpu.memory_space<vmem>>, vector<16x1xf32>
    %668 = vector.broadcast %667 : vector<16x1xf32> to vector<16x128xf32>
    %669 = arith.addf %666, %668 : vector<16x128xf32>
    %cst_248 = arith.constant 0.000000e+00 : f32
    %670 = vector.broadcast %cst_248 : f32 to vector<16x128xf32>
    %671 = arith.maximumf %669, %670 : vector<16x128xf32>
    %c0_249 = arith.constant 0 : index
    %c58 = arith.constant 58 : index
    %672 = vector.load %arg3[%c0_249, %c58] : memref<48x66xf32, #tpu.memory_space<vmem>>, vector<16x1xf32>
    %673 = vector.broadcast %672 : vector<16x1xf32> to vector<16x128xf32>
    %674 = arith.mulf %671, %673 : vector<16x128xf32>
    %c0_250 = arith.constant 0 : index
    %c59 = arith.constant 59 : index
    %675 = vector.load %arg3[%c0_250, %c59] : memref<48x66xf32, #tpu.memory_space<vmem>>, vector<16x1xf32>
    %676 = vector.broadcast %675 : vector<16x1xf32> to vector<16x128xf32>
    %677 = arith.addf %674, %676 : vector<16x128xf32>
    %678 = math.tanh %677 : vector<16x128xf32>
    %c336 = arith.constant 336 : index
    %c0_251 = arith.constant 0 : index
    %679 = vector.load %arg2[%c336, %c0_251] : memref<400x128xf32, #tpu.memory_space<vmem>>, vector<48x16xf32>
    %cst_252 = arith.constant dense<0.000000e+00> : vector<48x128xf32>
    %680 = tpu.matmul %679, %678, %cst_252 {dimension_numbers = #tpu.dot_dimension_numbers<[1], [0], [0], [1], [0, 0, 1, 1], [], []>} : vector<48x16xf32>, vector<16x128xf32>, vector<48x128xf32> -> vector<48x128xf32>
    %c0_253 = arith.constant 0 : index
    %c60 = arith.constant 60 : index
    %681 = vector.load %arg3[%c0_253, %c60] : memref<48x66xf32, #tpu.memory_space<vmem>>, vector<48x1xf32>
    %682 = vector.broadcast %681 : vector<48x1xf32> to vector<48x128xf32>
    %683 = arith.addf %680, %682 : vector<48x128xf32>
    %cst_254 = arith.constant dense<0xFF800000> : vector<48xf32>
    %684 = vector.multi_reduction <maximumf>, %683, %cst_254 [1] : vector<48x128xf32> to vector<48xf32>
    %685 = vector.shape_cast %684 : vector<48xf32> to vector<48x1xf32>
    %686 = vector.broadcast %685 : vector<48x1xf32> to vector<48x128xf32>
    %687 = arith.subf %683, %686 : vector<48x128xf32>
    %688 = math.exp %687 : vector<48x128xf32>
    %cst_255 = arith.constant dense<0.000000e+00> : vector<48x8xf32>
    %689 = tpu.matmul %688, %16, %cst_255 {dimension_numbers = #tpu.dot_dimension_numbers<[1], [0], [0], [1], [0, 0, 1, 1], [], []>} : vector<48x128xf32>, vector<128x8xf32>, vector<48x8xf32> -> vector<48x8xf32>
    %690 = tpu.reciprocal %689 {approx = true} : vector<48x8xf32> -> vector<48x8xf32>
    %691 = arith.mulf %688, %647 : vector<48x128xf32>
    %cst_256 = arith.constant dense<0.000000e+00> : vector<48x8xf32>
    %692 = tpu.matmul %691, %16, %cst_256 {dimension_numbers = #tpu.dot_dimension_numbers<[1], [0], [0], [1], [0, 0, 1, 1], [], []>} : vector<48x128xf32>, vector<128x8xf32>, vector<48x8xf32> -> vector<48x8xf32>
    %693 = arith.mulf %692, %690 : vector<48x8xf32>
    %cst_257 = arith.constant dense<0.000000e+00> : vector<48x128xf32>
    %694 = tpu.matmul %693, %30, %cst_257 {dimension_numbers = #tpu.dot_dimension_numbers<[1], [0], [0], [1], [0, 0, 1, 1], [], []>} : vector<48x8xf32>, vector<8x128xf32>, vector<48x128xf32> -> vector<48x128xf32>
    %695 = arith.subf %647, %694 : vector<48x128xf32>
    %696 = arith.mulf %688, %695 : vector<48x128xf32>
    %697 = arith.mulf %696, %695 : vector<48x128xf32>
    %cst_258 = arith.constant dense<0.000000e+00> : vector<48x8xf32>
    %698 = tpu.matmul %697, %16, %cst_258 {dimension_numbers = #tpu.dot_dimension_numbers<[1], [0], [0], [1], [0, 0, 1, 1], [], []>} : vector<48x128xf32>, vector<128x8xf32>, vector<48x8xf32> -> vector<48x8xf32>
    %699 = arith.mulf %698, %690 : vector<48x8xf32>
    %cst_259 = arith.constant 9.99999996E-13 : f32
    %700 = vector.broadcast %cst_259 : f32 to vector<48x8xf32>
    %701 = arith.maximumf %699, %700 : vector<48x8xf32>
    %702 = math.sqrt %701 : vector<48x8xf32>
    %c0_260 = arith.constant 0 : index
    %c61 = arith.constant 61 : index
    %703 = vector.load %arg3[%c0_260, %c61] : memref<48x66xf32, #tpu.memory_space<vmem>>, vector<48x1xf32>
    %704 = vector.broadcast %703 : vector<48x1xf32> to vector<48x8xf32>
    %705 = arith.mulf %693, %704 : vector<48x8xf32>
    %c0_261 = arith.constant 0 : index
    %c62 = arith.constant 62 : index
    %706 = vector.load %arg3[%c0_261, %c62] : memref<48x66xf32, #tpu.memory_space<vmem>>, vector<48x1xf32>
    %707 = vector.broadcast %706 : vector<48x1xf32> to vector<48x8xf32>
    %708 = arith.addf %705, %707 : vector<48x8xf32>
    %c0_262 = arith.constant 0 : index
    %c63 = arith.constant 63 : index
    %709 = vector.load %arg3[%c0_262, %c63] : memref<48x66xf32, #tpu.memory_space<vmem>>, vector<48x1xf32>
    %710 = vector.broadcast %709 : vector<48x1xf32> to vector<48x8xf32>
    %711 = arith.mulf %702, %710 : vector<48x8xf32>
    %c0_263 = arith.constant 0 : index
    %c64 = arith.constant 64 : index
    %712 = vector.load %arg3[%c0_263, %c64] : memref<48x66xf32, #tpu.memory_space<vmem>>, vector<48x1xf32>
    %713 = vector.broadcast %712 : vector<48x1xf32> to vector<48x8xf32>
    %714 = arith.addf %711, %713 : vector<48x8xf32>
    %c384 = arith.constant 384 : index
    %c0_264 = arith.constant 0 : index
    %715 = vector.load %arg2[%c384, %c0_264] : memref<400x128xf32, #tpu.memory_space<vmem>>, vector<12x96xf32>
    %716 = tpu.concatenate %708, %714 in 0 : vector<48x8xf32>, vector<48x8xf32> -> vector<96x8xf32>
    %cst_265 = arith.constant dense<0.000000e+00> : vector<12x8xf32>
    %717 = tpu.matmul %715, %716, %cst_265 {dimension_numbers = #tpu.dot_dimension_numbers<[1], [0], [0], [1], [0, 0, 1, 1], [], []>} : vector<12x96xf32>, vector<96x8xf32>, vector<12x8xf32> -> vector<12x8xf32>
    %c0_266 = arith.constant 0 : index
    %c65 = arith.constant 65 : index
    %718 = vector.load %arg3[%c0_266, %c65] : memref<48x66xf32, #tpu.memory_space<vmem>>, vector<12x1xf32>
    %719 = vector.broadcast %718 : vector<12x1xf32> to vector<12x8xf32>
    %720 = arith.addf %717, %719 : vector<12x8xf32>
    %c0_267 = arith.constant 0 : index
    %c0_268 = arith.constant 0 : index
    %c0_269 = arith.constant 0 : index
    %721 = vector.load %arg4[%c0_267, %c0_268, %c0_269] : memref<1x12x8xf32, #tpu.memory_space<vmem>>, vector<1x12x8xf32>
    %722 = vector.shape_cast %721 : vector<1x12x8xf32> to vector<12x8xf32>
    %723 = vector.shape_cast %720 : vector<12x8xf32> to vector<1x12x8xf32>
    tpu.vector_store %arg4[%c0_267, %c0_268, %c0_269], %723 {strides = array<i32>} : memref<1x12x8xf32, #tpu.memory_space<vmem>>, vector<1x12x8xf32>,
    return
  }
  func.func @transform_0(%arg0: i32) -> (i32, i32, i32) {
    %c0_i32 = arith.constant 0 : i32
    %c0_i32_0 = arith.constant 0 : i32
    %c0_i32_1 = arith.constant 0 : i32
    return %arg0, %c0_i32, %c0_i32_0 : i32, i32, i32
  }
  func.func @transform_1(%arg0: i32) -> (i32, i32) {
    %c0_i32 = arith.constant 0 : i32
    %c0_i32_0 = arith.constant 0 : i32
    %c0_i32_1 = arith.constant 0 : i32
    return %c0_i32, %c0_i32_0 : i32, i32
  }
  func.func @transform_2(%arg0: i32) -> (i32, i32) {
    %c0_i32 = arith.constant 0 : i32
    %c0_i32_0 = arith.constant 0 : i32
    %c0_i32_1 = arith.constant 0 : i32
    return %c0_i32, %c0_i32_0 : i32, i32
  }
  func.func @transform_3(%arg0: i32) -> (i32, i32, i32) {
    %c0_i32 = arith.constant 0 : i32
    %c0_i32_0 = arith.constant 0 : i32
    %c0_i32_1 = arith.constant 0 : i32
    return %arg0, %c0_i32, %c0_i32_0 : i32, i32, i32
  }
}

</mosaic_0001>

<llo_original>
// kernel: ecapa_forward.1
$region0: #{ecapa_forward.1}
  #allocation0 [shape = 'u32[]', space=smem, size = 0x4, offset = 0x4, fixed_abs, tag = 'smem constant byte address 0x4 - core index']
  #allocation1 [shape = 'u32[144,128]{1,0:T(1,128)}', space=vmem, size = 0x12000, scoped, tag = 'internal scratch']
  #allocation2 [shape = 'f32[16,128]{1,0:T(8,128)}', space=vmem, size = 0x2000, scoped, tag = 'scratch operand']
  %s0 = inlined_call_operand.vmem [shape: f32[2,40,128], index: 0, kind: input, shape index: {}]
  %s1 = inlined_call_operand.vmem [shape: f32[400,128], index: 1, kind: input, shape index: {}]
  %s2 = inlined_call_operand.vmem [shape: f32[48,66], index: 2, kind: input, shape index: {}]
  %s3 = inlined_call_operand.vmem [shape: f32[2,12,8], index: 3, kind: output, shape index: {}]
  %s4 = sld [smem:[#allocation0]]
  $region45: #{ecapa_forward.1} parent=0
    _
  %s6 = ssub.s32 1, %s4
  %s7 = scalar_select 0, %s6, %s4
  loop: start=0, step=1, limit=4
  $region2: #{ecapa_forward.1} parent=0 // loop_pre_header
    _
  $region3: #{ecapa_forward.1} parent=0 // loop_header
    %s9 = sphi 0, %s13
    %p10 = scmp.ge.s32.totalorder %s9, 4
    %s19 = sphi 0, %s21
    %s22 = sphi 0, %s19
    %s23 = sphi 0, %s22
    %s39 = sphi 0, %s23
    %s43 = sphi 0, %s43
    %s45 = sphi 0, %s43
    %s46 = sphi 0, %s45
    %s60 = sphi 0, %s46
    %s64 = sphi 0, %s64
    %s66 = sphi 0, %s64
    %s67 = sphi 0, %s66
    %s81 = sphi 0, %s67
    %s87 = sphi 0, %s89
    %s90 = sphi 0, %s87
    %s91 = sphi 0, %s90
    %s107 = sphi 0, %s91
  $region4: #{ecapa_forward.1} parent=0 // loop_header_branch
    %12 = sbr.rel (%p10) target = $region8
  $region5: #{ecapa_forward.1} parent=0 // loop_body
    %s14 = ssub.s32 %s9, 1
    %s15 = ssub.s32 %s9, 2
    %s16 = sadd.s32 %s9, 1
    %s17 = ssub.s32 %s9, %s16
    %p18 = scmp.eq.s32.totalorder %s17, 0
    %s20 = sadd.s32 %s19, 1
    %s21 = scalar_select %p18, %s19, %s20
    %p24 = pneg %p18
    %p25 = scmp.eq.s32.totalorder %s9, 1
    %p26 = por %p24, %p25
    %p27 = scmp.ne.s32.totalorder %s19, %s22
    %p28 = scmp.eq.s32.totalorder %s9, 0
    %p29 = por %p27, %p28
    %p30 = scmp.ne.s32.totalorder %s19, %s22
    %p31 = scmp.eq.s32.totalorder %s14, 1
    %p32 = por %p30, %p31
    %p33 = scmp.ne.s32.totalorder %s22, %s23
    %p34 = scmp.eq.s32.totalorder %s14, 0
    %p35 = por %p33, %p34
    %p36 = scmp.ne.s32.totalorder %s22, %s23
    %p37 = scmp.eq.s32.totalorder %s15, 1
    %p38 = por %p36, %p37
    %p40 = scmp.ne.s32.totalorder %s23, %s39
    %p41 = scmp.eq.s32.totalorder %s15, 0
    %p42 = por %p40, %p41
    %s44 = sadd.s32 %s43, 1
    %p47 = scmp.eq.s32.totalorder %s9, 1
    %p48 = scmp.ne.s32.totalorder %s43, %s45
    %p49 = scmp.eq.s32.totalorder %s9, 0
    %p50 = por %p48, %p49
    %p51 = scmp.ne.s32.totalorder %s43, %s45
    %p52 = scmp.eq.s32.totalorder %s14, 1
    %p53 = por %p51, %p52
    %p54 = scmp.ne.s32.totalorder %s45, %s46
    %p55 = scmp.eq.s32.totalorder %s14, 0
    %p56 = por %p54, %p55
    %p57 = scmp.ne.s32.totalorder %s45, %s46
    %p58 = scmp.eq.s32.totalorder %s15, 1
    %p59 = por %p57, %p58
    %p61 = scmp.ne.s32.totalorder %s46, %s60
    %p62 = scmp.eq.s32.totalorder %s15, 0
    %p63 = por %p61, %p62
    %s65 = sadd.s32 %s64, 1
    %p68 = scmp.eq.s32.totalorder %s9, 1
    %p69 = scmp.ne.s32.totalorder %s64, %s66
    %p70 = scmp.eq.s32.totalorder %s9, 0
    %p71 = por %p69, %p70
    %p72 = scmp.ne.s32.totalorder %s64, %s66
    %p73 = scmp.eq.s32.totalorder %s14, 1
    %p74 = por %p72, %p73
    %p75 = scmp.ne.s32.totalorder %s66, %s67
    %p76 = scmp.eq.s32.totalorder %s14, 0
    %p77 = por %p75, %p76
    %p78 = scmp.ne.s32.totalorder %s66, %s67
    %p79 = scmp.eq.s32.totalorder %s15, 1
    %p80 = por %p78, %p79
    %p82 = scmp.ne.s32.totalorder %s67, %s81
    %p83 = scmp.eq.s32.totalorder %s15, 0
    %p84 = por %p82, %p83
    %s85 = ssub.s32 %s9, %s16
    %p86 = scmp.eq.s32.totalorder %s85, 0
    %s88 = sadd.s32 %s87, 1
    %s89 = scalar_select %p86, %s87, %s88
    %p92 = pneg %p86
    %p93 = scmp.eq.s32.totalorder %s9, 1
    %p94 = por %p92, %p93
    %p95 = scmp.ne.s32.totalorder %s87, %s90
    %p96 = scmp.eq.s32.totalorder %s9, 0
    %p97 = por %p95, %p96
    %p98 = scmp.ne.s32.totalorder %s87, %s90
    %p99 = scmp.eq.s32.totalorder %s14, 1
    %p100 = por %p98, %p99
    %p101 = scmp.ne.s32.totalorder %s90, %s91
    %p102 = scmp.eq.s32.totalorder %s14, 0
    %p103 = por %p101, %p102
    %p104 = scmp.ne.s32.totalorder %s90, %s91
    %p105 = scmp.eq.s32.totalorder %s15, 1
    %p106 = por %p104, %p105
    %p108 = scmp.ne.s32.totalorder %s91, %s107
    %p109 = scmp.eq.s32.totalorder %s15, 0
    %p110 = por %p108, %p109
    %p111 = scmp.le.s32.totalorder 1, %s9
    %p112 = scmp.lt.s32.totalorder %s9, 3
    %p113 = pnand %p111, %p112
    %p114 = pneg %p113
    // Predicated region
    $region9: #{ecapa_forward.1} parent=5 // pred_check
      _
    $region10: #{ecapa_forward.1} parent=5 // pred_check_branch
      %116 = sbr.rel (%p113) target = $region12
    $region11: #{ecapa_forward.1} parent=5 // pred_region
      %s117 = ssub.s32 %s9, 1
      // Predicated region
      $region13: #{ecapa_forward.1} parent=11 // pred_check
        %p118 = pneg %p56
      $region14: #{ecapa_forward.1} parent=11 // pred_check_branch
        %120 = sbr.rel (%p118) target = $region16
      $region15: #{ecapa_forward.1} parent=11 // pred_region
        _
      $region16: #{ecapa_forward.1} parent=11 // pred_fallthru
        _
      // Predicated region
      $region17: #{ecapa_forward.1} parent=11 // pred_check
        %p121 = pneg %p77
      $region18: #{ecapa_forward.1} parent=11 // pred_check_branch
        %123 = sbr.rel (%p121) target = $region20
      $region19: #{ecapa_forward.1} parent=11 // pred_region
        _
      $region20: #{ecapa_forward.1} parent=11 // pred_fallthru
        _
    $region12: #{ecapa_forward.1} parent=5 // pred_fallthru
      _
    %p124 = scmp.lt.s32.totalorder %s9, 2
    // Predicated region
    $region21: #{ecapa_forward.1} parent=5 // pred_check
      %p125 = pneg %p124
    $region22: #{ecapa_forward.1} parent=5 // pred_check_branch
      %127 = sbr.rel (%p125) target = $region24
    $region23: #{ecapa_forward.1} parent=5 // pred_region
      // Predicated region
      $region25: #{ecapa_forward.1} parent=23 // pred_check
        %p128 = pneg %p29
      $region26: #{ecapa_forward.1} parent=23 // pred_check_branch
        %130 = sbr.rel (%p128) target = $region28
      $region27: #{ecapa_forward.1} parent=23 // pred_region
        %p131 = scmp.lt.s32.totalorder %s9, 1
        %s132 = scalar_select %p131, %s9, 1
        %s133 = smul.addr %s132, 5
        %s134 = smul.addr %s133, 8
        %s135 = scalar_lea.vmem %s0, %s134
      $region28: #{ecapa_forward.1} parent=23 // pred_fallthru
        _
    $region24: #{ecapa_forward.1} parent=5 // pred_fallthru
      _
    %p136 = scmp.le.s32.totalorder 1, %s9
    %p137 = scmp.lt.s32.totalorder %s9, 3
    %p138 = pnand %p136, %p137
    %p139 = pneg %p138
    // Predicated region
    $region29: #{ecapa_forward.1} parent=5 // pred_check
      _
    $region30: #{ecapa_forward.1} parent=5 // pred_check_branch
      %141 = sbr.rel (%p138) target = $region32
    $region31: #{ecapa_forward.1} parent=5 // pred_region
      %s142 = ssub.s32 %s9, 1
      %p143 = scmp.lt.s32.totalorder %s14, 1
      %s144 = scalar_select %p143, %s14, 1
      %s145 = smul.addr %s144, 5
      %s146 = smul.addr %s145, 8
      %s147 = scalar_lea.vmem %s0, %s146
      %p148 = pneg %p35
      %p149 = pneg %p32
      %p150 = pneg %p56
      %p151 = pneg %p53
      %p152 = pneg %p77
      %p153 = pneg %p74
      %p154 = pneg %p103
      %p155 = pneg %p100
      %p156 = scmp.lt.s32.totalorder %s14, 1
      %s157 = scalar_select %p156, %s14, 1
      %s158 = smul.addr %s157, 2
      %s159 = smul.addr %s158, 8
      %s160 = scalar_lea.vmem %s3, %s159
      %p161 = scmp.lt.s32.totalorder %s14, 1
      %s162 = scalar_select %p161, %s14, 1
      %s163 = smul.addr %s162, 5
      %s164 = smul.addr %s163, 8
      %s165 = scalar_lea.vmem %s0, %s164
      %p166 = scmp.lt.s32.totalorder %s14, 1
      %s167 = scalar_select %p166, %s14, 1
      %s168 = smul.addr %s167, 2
      %s169 = smul.addr %s168, 8
      %s170 = scalar_lea.vmem %s3, %s169
      %v171 = vlaneseq
      %v172 = vand.u32 %v171, 127
      %v173 = vand.u32 %v172, 15
      %v174 = vlaneseq
      %v175 = vshrl.u32 %v174, 7
      %v176 = vadd.s32 %v175, 8
      %v177 = vadd.s32 %v175, 16
      %v178 = vadd.s32 %v175, 24
      %v179 = vadd.s32 %v175, 32
      %v180 = vadd.s32 %v175, 40
      %v181 = vadd.s32 %v175, 48
      %v182 = vadd.s32 %v175, 56
      %v183 = vadd.s32 %v175, 64
      %v184 = vadd.s32 %v175, 72
      %v185 = vadd.s32 %v175, 80
      %v186 = vadd.s32 %v175, 88
      %v187 = vadd.s32 %v175, 96
      %v188 = vadd.s32 %v175, 104
      %v189 = vadd.s32 %v175, 112
      %v190 = vadd.s32 %v175, 120
      %v191 = vmul.u32 %v172, 16
      %vm192 = vcmp.ge.s32.totalorder %v175, %v191
      %vm193 = vcmp.ge.s32.totalorder %v176, %v191
      %vm194 = vcmp.ge.s32.totalorder %v177, %v191
      %vm195 = vcmp.ge.s32.totalorder %v178, %v191
      %vm196 = vcmp.ge.s32.totalorder %v179, %v191
      %vm197 = vcmp.ge.s32.totalorder %v180, %v191
      %vm198 = vcmp.ge.s32.totalorder %v181, %v191
      %vm199 = vcmp.ge.s32.totalorder %v182, %v191
      %vm200 = vcmp.ge.s32.totalorder %v183, %v191
      %vm201 = vcmp.ge.s32.totalorder %v184, %v191
      %vm202 = vcmp.ge.s32.totalorder %v185, %v191
      %vm203 = vcmp.ge.s32.totalorder %v186, %v191
      %vm204 = vcmp.ge.s32.totalorder %v187, %v191
      %vm205 = vcmp.ge.s32.totalorder %v188, %v191
      %vm206 = vcmp.ge.s32.totalorder %v189, %v191
      %vm207 = vcmp.ge.s32.totalorder %v190, %v191
      %v208 = vadd.s32 %v172, 1
      %v209 = vmul.u32 %v208, 16
      %vm210 = vcmp.lt.s32.totalorder %v175, %v209
      %vm211 = vcmp.lt.s32.totalorder %v176, %v209
      %vm212 = vcmp.lt.s32.totalorder %v177, %v209
      %vm213 = vcmp.lt.s32.totalorder %v178, %v209
      %vm214 = vcmp.lt.s32.totalorder %v179, %v209
      %vm215 = vcmp.lt.s32.totalorder %v180, %v209
      %vm216 = vcmp.lt.s32.totalorder %v181, %v209
      %vm217 = vcmp.lt.s32.totalorder %v182, %v209
      %vm218 = vcmp.lt.s32.totalorder %v183, %v209
      %vm219 = vcmp.lt.s32.totalorder %v184, %v209
      %vm220 = vcmp.lt.s32.totalorder %v185, %v209
      %vm221 = vcmp.lt.s32.totalorder %v186, %v209
      %vm222 = vcmp.lt.s32.totalorder %v187, %v209
      %vm223 = vcmp.lt.s32.totalorder %v188, %v209
      %vm224 = vcmp.lt.s32.totalorder %v189, %v209
      %vm225 = vcmp.lt.s32.totalorder %v190, %v209
      %vm226 = vmand %vm192, %vm210
      %vm227 = vmand %vm193, %vm211
      %vm228 = vmand %vm194, %vm212
      %vm229 = vmand %vm195, %vm213
      %vm230 = vmand %vm196, %vm214
      %vm231 = vmand %vm197, %vm215
      %vm232 = vmand %vm198, %vm216
      %vm233 = vmand %vm199, %vm217
      %vm234 = vmand %vm200, %vm218
      %vm235 = vmand %vm201, %vm219
      %vm236 = vmand %vm202, %vm220
      %vm237 = vmand %vm203, %vm221
      %vm238 = vmand %vm204, %vm222
      %vm239 = vmand %vm205, %vm223
      %vm240 = vmand %vm206, %vm224
      %vm241 = vmand %vm207, %vm225
      %v242 = vsel %vm226, 1.0, 0.0
      %v243 = vsel %vm227, 1.0, 0.0
      %v244 = vsel %vm228, 1.0, 0.0
      %v245 = vsel %vm229, 1.0, 0.0
      %v246 = vsel %vm230, 1.0, 0.0
      %v247 = vsel %vm231, 1.0, 0.0
      %v248 = vsel %vm232, 1.0, 0.0
      %v249 = vsel %vm233, 1.0, 0.0
      %v250 = vsel %vm234, 1.0, 0.0
      %v251 = vsel %vm235, 1.0, 0.0
      %v252 = vsel %vm236, 1.0, 0.0
      %v253 = vsel %vm237, 1.0, 0.0
      %v254 = vsel %vm238, 1.0, 0.0
      %v255 = vsel %vm239, 1.0, 0.0
      %v256 = vsel %vm240, 1.0, 0.0
      %v257 = vsel %vm241, 1.0, 0.0
      %v258 = vmul.u32 %v175, 16
      %vm259 = vcmp.ge.s32.totalorder %v172, %v258
      %v260 = vadd.s32 %v175, 1
      %v261 = vmul.u32 %v260, 16
      %vm262 = vcmp.lt.s32.totalorder %v172, %v261
      %vm263 = vmand %vm259, %vm262
      %v264 = vsel %vm263, 1.0, 0.0
      %v265 = vld [vmem:[%s165] sm:$0xff]
      %v266 = vld [vmem:[%s165 + $0x8] sm:$0xff]
      %v267 = vld [vmem:[%s165 + $0x10] sm:$0xff]
      %v268 = vld [vmem:[%s165 + $0x18] sm:$0xff]
      %v269 = vld [vmem:[%s165 + $0x20] sm:$0xff]
      %v270 = vld [vmem:[%s1] sm:$0xff]
      %v271 = vld [vmem:[%s1 + $0x8] sm:$0xff]
      %v272 = vld [vmem:[%s2] sm:$0xff]
      %v273 = vld [vmem:[%s2 + $0x8] sm:$0xff]
      %275 = vset.pattern.permute.xlu0 0
      %276 = vperm.xlu0 %275, %v272
      %v277 = vpop.permute.xlu0 %276
      %280 = vset.pattern.permute.xlu0 0
      %281 = vperm.xlu0 %280, %v273
      %v282 = vpop.permute.xlu0 %281
      %vm284 = vcmask 326656
      %v286 = vsel %vm284, %v270, 0
      %v289 = vsel %vm284, %v271, 0
      %291 = vmatprep.subr.mxu0 0.0
      %292 = vmatpush1.msra.mxu0 %v265
      %293 = vmatprep.subr.mxu0 0.0
      %294 = vmatpush1.msra.mxu0 %v266
      %295 = vmatprep.subr.mxu0 0.0
      %296 = vmatpush1.msra.mxu0 %v267
      %297 = vmatprep.subr.mxu0 0.0
      %298 = vmatpush1.msra.mxu0 %v268
      %299 = vmatprep.subr.mxu0 0.0
      %300 = vmatpush1.msra.mxu0 %v269
      %301 = vmatprep.subr.mxu0 0.0
      %302 = vmatpush1.msra.mxu0 0.0
      %303 = vmatprep.subr.mxu0 0.0
      %304 = vmatpush1.msra.mxu0 0.0
      %305 = vmatprep.subr.mxu0 0.0
      %306 = vmatpush1.msra.mxu0 0.0
      %307 = vmatprep.subr.mxu0 0.0
      %308 = vmatpush1.msra.mxu0 0.0
      %309 = vmatprep.subr.mxu0 0.0
      %310 = vmatpush1.msra.mxu0 0.0
      %311 = vmatprep.subr.mxu0 0.0
      %312 = vmatpush1.msra.mxu0 0.0
      %313 = vmatprep.subr.mxu0 0.0
      %314 = vmatpush1.msra.mxu0 0.0
      %315 = vmatprep.subr.mxu0 0.0
      %316 = vmatpush1.msra.mxu0 0.0
      %317 = vmatprep.subr.mxu0 0.0
      %318 = vmatpush1.msra.mxu0 0.0
      %319 = vmatprep.subr.mxu0 0.0
      %320 = vmatpush1.msra.mxu0 0.0
      %321 = vmatprep.subr.mxu0 0.0
      %322 = vmatpush1.msra.mxu0 0.0
      %323 = vmatprep.subr.mxu0 0.0
      %324 = vmatpush1.msra.mxu0 0.0
      %325 = vmatprep.subr.mxu0 0.0
      %326 = vmatpush1.msra.mxu0 0.0
      %327 = vmatprep.subr.mxu0 0.0
      %328 = vmatpush1.msra.mxu0 0.0
      %329 = vmatprep.subr.mxu0 0.0
      %330 = vmatpush1.msra.mxu0 0.0
      %331 = vmatprep.subr.mxu0 0.0
      %332 = vmatpush1.msra.mxu0 0.0
      %333 = vmatprep.subr.mxu0 0.0
      %334 = vmatpush1.msra.mxu0 0.0
      %335 = vmatprep.subr.mxu0 0.0
      %336 = vmatpush1.msra.mxu0 0.0
      %337 = vmatprep.subr.mxu0 0.0
      %338 = vmatpush1.msra.mxu0 0.0
      %339 = vmatprep.subr.mxu0 0.0
      %340 = vmatpush1.msra.mxu0 0.0
      %341 = vmatprep.subr.mxu0 0.0
      %342 = vmatpush1.msra.mxu0 0.0
      %343 = vmatprep.subr.mxu0 0.0
      %344 = vmatpush1.msra.mxu0 0.0
      %345 = vmatprep.subr.mxu0 0.0
      %346 = vmatpush1.msra.mxu0 0.0
      %347 = vmatprep.subr.mxu0 0.0
      %348 = vmatpush1.msra.mxu0 0.0
      %349 = vmatprep.subr.mxu0 0.0
      %350 = vmatpush1.msra.mxu0 0.0
      %351 = vmatprep.subr.mxu0 0.0
      %352 = vmatpush1.msra.mxu0 0.0
      %353 = vmatprep.subr.mxu0 0.0
      %354 = vmatpush1.msra.mxu0 0.0
      %355 = vmatprep.mubr.f32.mxu0 0.0
      %356 = vmatmul.mubr.f32.gmra.mrb[0].mxu0 %v286
      %v357 = vpop.f32.mrb[0].mxu0
      %v358 = vadd.f32 %v277, %v357
      %v359 = vpop.f32.mrb[0].mxu0
      %360 = vmatprep.mubr.f32.mxu0 0.0
      %361 = vmatmul.mubr.f32.gmra.mrb[0].mxu0 %v289
      %v362 = vpop.f32.mrb[0].mxu0
      %v363 = vadd.f32 %v282, %v362
      %v364 = vpop.f32.mrb[0].mxu0
      %365 = vdwg.mxu0
      %v366 = vmax.f32 %v358, 0.0
      %v367 = vmax.f32 %v363, 0.0
      %368 = vset.pattern.permute.xlu0 1
      %369 = vperm.xlu0 %368, %v272
      %v370 = vpop.permute.xlu0 %369
      %372 = vset.pattern.permute.xlu0 1
      %373 = vperm.xlu0 %372, %v273
      %v374 = vpop.permute.xlu0 %373
      %v376 = vmul.f32 %v366, %v370
      %v377 = vmul.f32 %v367, %v374
      %378 = vset.pattern.permute.xlu0 2
      %379 = vperm.xlu0 %378, %v272
      %v380 = vpop.permute.xlu0 %379
      %382 = vset.pattern.permute.xlu0 2
      %383 = vperm.xlu0 %382, %v273
      %v384 = vpop.permute.xlu0 %383
      %v386 = vadd.f32 %v376, %v380
      %v387 = vadd.f32 %v377, %v384
      %vm388 = vcmp.eq.s32.totalorder %v173, 0
      %vm389 = vcmp.eq.s32.totalorder %v173, 1
      %vm390 = vcmp.eq.s32.totalorder %v173, 15
      %vm391 = vcmp.eq.s32.totalorder %v173, 14
      %v392 = vld [vmem:[%s1 + $0x10] sm:$0xff]
      %v393 = vld [vmem:[%s1 + $0x18] sm:$0xff]
      %394 = vset.pattern.permute.xlu0 3
      %395 = vperm.xlu0 %394, %v272
      %v396 = vpop.permute.xlu0 %395
      %398 = vset.pattern.permute.xlu0 3
      %399 = vperm.xlu0 %398, %v273
      %v400 = vpop.permute.xlu0 %399
      %vm402 = vcmask 130048
      %v404 = vsel %vm402, %v392, 0
      %v407 = vsel %vm402, %v393, 0
      %409 = vmatprep.subr.mxu0 0.0
      %410 = vmatpush1.msra.mxu0 %v386
      %411 = vmatprep.subr.mxu0 0.0
      %412 = vmatpush1.msra.mxu0 %v387
      %413 = vmatprep.subr.mxu0 0.0
      %414 = vmatpush1.msra.mxu0 0.0
      %415 = vmatprep.subr.mxu0 0.0
      %416 = vmatpush1.msra.mxu0 0.0
      %417 = vmatprep.subr.mxu0 0.0
      %418 = vmatpush1.msra.mxu0 0.0
      %419 = vmatprep.subr.mxu0 0.0
      %420 = vmatpush1.msra.mxu0 0.0
      %421 = vmatprep.subr.mxu0 0.0
      %422 = vmatpush1.msra.mxu0 0.0
      %423 = vmatprep.subr.mxu0 0.0
      %424 = vmatpush1.msra.mxu0 0.0
      %425 = vmatprep.subr.mxu0 0.0
      %426 = vmatpush1.msra.mxu0 0.0
      %427 = vmatprep.subr.mxu0 0.0
      %428 = vmatpush1.msra.mxu0 0.0
      %429 = vmatprep.subr.mxu0 0.0
      %430 = vmatpush1.msra.mxu0 0.0
      %431 = vmatprep.subr.mxu0 0.0
      %432 = vmatpush1.msra.mxu0 0.0
      %433 = vmatprep.subr.mxu0 0.0
      %434 = vmatpush1.msra.mxu0 0.0
      %435 = vmatprep.subr.mxu0 0.0
      %436 = vmatpush1.msra.mxu0 0.0
      %437 = vmatprep.subr.mxu0 0.0
      %438 = vmatpush1.msra.mxu0 0.0
      %439 = vmatprep.subr.mxu0 0.0
      %440 = vmatpush1.msra.mxu0 0.0
      %441 = vmatprep.subr.mxu0 0.0
      %442 = vmatpush1.msra.mxu0 0.0
      %443 = vmatprep.subr.mxu0 0.0
      %444 = vmatpush1.msra.mxu0 0.0
      %445 = vmatprep.subr.mxu0 0.0
      %446 = vmatpush1.msra.mxu0 0.0
      %447 = vmatprep.subr.mxu0 0.0
      %448 = vmatpush1.msra.mxu0 0.0
      %449 = vmatprep.subr.mxu0 0.0
      %450 = vmatpush1.msra.mxu0 0.0
      %451 = vmatprep.subr.mxu0 0.0
      %452 = vmatpush1.msra.mxu0 0.0
      %453 = vmatprep.subr.mxu0 0.0
      %454 = vmatpush1.msra.mxu0 0.0
      %455 = vmatprep.subr.mxu0 0.0
      %456 = vmatpush1.msra.mxu0 0.0
      %457 = vmatprep.subr.mxu0 0.0
      %458 = vmatpush1.msra.mxu0 0.0
      %459 = vmatprep.subr.mxu0 0.0
      %460 = vmatpush1.msra.mxu0 0.0
      %461 = vmatprep.subr.mxu0 0.0
      %462 = vmatpush1.msra.mxu0 0.0
      %463 = vmatprep.subr.mxu0 0.0
      %464 = vmatpush1.msra.mxu0 0.0
      %465 = vmatprep.subr.mxu0 0.0
      %466 = vmatpush1.msra.mxu0 0.0
      %467 = vmatprep.subr.mxu0 0.0
      %468 = vmatpush1.msra.mxu0 0.0
      %469 = vmatprep.subr.mxu0 0.0
      %470 = vmatpush1.msra.mxu0 0.0
      %471 = vmatprep.subr.mxu0 0.0
      %472 = vmatpush1.msra.mxu0 0.0
      %473 = vmatprep.mubr.f32.mxu0 0.0
      %474 = vmatmul.mubr.f32.gmra.mrb[0].mxu0 %v404
      %v475 = vpop.f32.mrb[0].mxu0
      %v476 = vadd.f32 %v396, %v475
      %v477 = vpop.f32.mrb[0].mxu0
      %478 = vmatprep.mubr.f32.mxu0 0.0
      %479 = vmatmul.mubr.f32.gmra.mrb[0].mxu0 %v407
      %v480 = vpop.f32.mrb[0].mxu0
      %v481 = vadd.f32 %v400, %v480
      %v482 = vpop.f32.mrb[0].mxu0
      %483 = vdwg.mxu0
      %v484 = vmax.f32 %v476, 0.0
      %v485 = vmax.f32 %v481, 0.0
      %486 = vset.pattern.permute.xlu0 4
      %487 = vperm.xlu0 %486, %v272
      %v488 = vpop.permute.xlu0 %487
      %490 = vset.pattern.permute.xlu0 4
      %491 = vperm.xlu0 %490, %v273
      %v492 = vpop.permute.xlu0 %491
      %v494 = vmul.f32 %v484, %v488
      %v495 = vmul.f32 %v485, %v492
      %496 = vset.pattern.permute.xlu0 5
      %497 = vperm.xlu0 %496, %v272
      %v498 = vpop.permute.xlu0 %497
      %500 = vset.pattern.permute.xlu0 5
      %501 = vperm.xlu0 %500, %v273
      %v502 = vpop.permute.xlu0 %501
      %v504 = vadd.f32 %v494, %v498
      %v505 = vadd.f32 %v495, %v502
      %506 = vst [vmem:[#allocation2] sm:$0xf] %v504
      %v508 = vrot.slane %v504, 4
      %510 = vrot.lane.b32.xlu0 %v508, 2
      %v511 = vpop.permute.xlu0 %510
      %512 = vrot.lane.b32.xlu0 %v508, 126
      %v513 = vpop.permute.xlu0 %512
      %v514 = vsel %vm388, 1, 0
      %vm515 = vcmp.eq.s32.totalorder %v514, 1
      %v516 = vsel %vm515, %v513, %v511
      %v517 = vsel %vm390, 1, 0
      %vm518 = vcmp.eq.s32.totalorder %v517, 1
      %v519 = vsel %vm518, %v511, %v513
      %v520 = vsel %vm389, 1, 0
      %vm521 = vcmp.eq.s32.totalorder %v520, 1
      %v523 = vrot.slane %v516, 4
      %v525 = vsel %vm521, %v504, %v523
      %v526 = vsel %vm391, 1, 0
      %vm527 = vcmp.eq.s32.totalorder %v526, 1
      %v529 = vrot.slane %v519, 4
      %v531 = vsel %vm527, %v504, %v529
      %v532 = vld [vmem:[%s1 + $0x20] sm:$0xf]
      %534 = vrot.lane.b32.xlu0 %v532, 124
      %v535 = vpop.permute.xlu0 %534
      %vm536 = vcmask 31744
      %v537 = vsel %vm536, %v535, 0
      %vm539 = vcmask 1043456
      %v540 = vsel %vm539, %v508, 0
      %542 = vmatprep.subr.mxu0 0.0
      %543 = vmatpush1.msra.mxu0 %v540
      %544 = vmatprep.subr.mxu0 0.0
      %545 = vmatpush1.msra.mxu0 0.0
      %546 = vmatprep.subr.mxu0 0.0
      %547 = vmatpush1.msra.mxu0 0.0
      %548 = vmatprep.subr.mxu0 0.0
      %549 = vmatpush1.msra.mxu0 0.0
      %550 = vmatprep.subr.mxu0 0.0
      %551 = vmatpush1.msra.mxu0 0.0
      %552 = vmatprep.subr.mxu0 0.0
      %553 = vmatpush1.msra.mxu0 0.0
      %554 = vmatprep.subr.mxu0 0.0
      %555 = vmatpush1.msra.mxu0 0.0
      %556 = vmatprep.subr.mxu0 0.0
      %557 = vmatpush1.msra.mxu0 0.0
      %558 = vmatprep.subr.mxu0 0.0
      %559 = vmatpush1.msra.mxu0 0.0
      %560 = vmatprep.subr.mxu0 0.0
      %561 = vmatpush1.msra.mxu0 0.0
      %562 = vmatprep.subr.mxu0 0.0
      %563 = vmatpush1.msra.mxu0 0.0
      %564 = vmatprep.subr.mxu0 0.0
      %565 = vmatpush1.msra.mxu0 0.0
      %566 = vmatprep.subr.mxu0 0.0
      %567 = vmatpush1.msra.mxu0 0.0
      %568 = vmatprep.subr.mxu0 0.0
      %569 = vmatpush1.msra.mxu0 0.0
      %570 = vmatprep.subr.mxu0 0.0
      %571 = vmatpush1.msra.mxu0 0.0
      %572 = vmatprep.subr.mxu0 0.0
      %573 = vmatpush1.msra.mxu0 0.0
      %574 = vmatprep.subr.mxu0 0.0
      %575 = vmatpush1.msra.mxu0 0.0
      %576 = vmatprep.subr.mxu0 0.0
      %577 = vmatpush1.msra.mxu0 0.0
      %578 = vmatprep.subr.mxu0 0.0
      %579 = vmatpush1.msra.mxu0 0.0
      %580 = vmatprep.subr.mxu0 0.0
      %581 = vmatpush1.msra.mxu0 0.0
      %582 = vmatprep.subr.mxu0 0.0
      %583 = vmatpush1.msra.mxu0 0.0
      %584 = vmatprep.subr.mxu0 0.0
      %585 = vmatpush1.msra.mxu0 0.0
      %586 = vmatprep.subr.mxu0 0.0
      %587 = vmatpush1.msra.mxu0 0.0
      %588 = vmatprep.subr.mxu0 0.0
      %589 = vmatpush1.msra.mxu0 0.0
      %590 = vmatprep.subr.mxu0 0.0
      %591 = vmatpush1.msra.mxu0 0.0
      %592 = vmatprep.subr.mxu0 0.0
      %593 = vmatpush1.msra.mxu0 0.0
      %594 = vmatprep.subr.mxu0 0.0
      %595 = vmatpush1.msra.mxu0 0.0
      %596 = vmatprep.subr.mxu0 0.0
      %597 = vmatpush1.msra.mxu0 0.0
      %598 = vmatprep.subr.mxu0 0.0
      %599 = vmatpush1.msra.mxu0 0.0
      %600 = vmatprep.subr.mxu0 0.0
      %601 = vmatpush1.msra.mxu0 0.0
      %602 = vmatprep.subr.mxu0 0.0
      %603 = vmatpush1.msra.mxu0 0.0
      %604 = vmatprep.subr.mxu0 0.0
      %605 = vmatpush1.msra.mxu0 0.0
      %606 = vmatprep.mubr.f32.mxu0 0.0
      %607 = vmatmul.mubr.f32.gmra.mrb[0].mxu0 %v537
      %v608 = vpop.f32.mrb[0].mxu0
      %v609 = vadd.f32 0.0, %v608
      %v610 = vpop.f32.mrb[0].mxu0
      %611 = vdwg.mxu0
      %v613 = vrot.slane %v525, 4
      %v614 = vsel %vm536, %v532, 0
      %v616 = vsel %vm539, %v613, 0
      %618 = vmatprep.subr.mxu0 0.0
      %619 = vmatpush1.msra.mxu0 %v616
      %620 = vmatprep.subr.mxu0 0.0
      %621 = vmatpush1.msra.mxu0 0.0
      %622 = vmatprep.subr.mxu0 0.0
      %623 = vmatpush1.msra.mxu0 0.0
      %624 = vmatprep.subr.mxu0 0.0
      %625 = vmatpush1.msra.mxu0 0.0
      %626 = vmatprep.subr.mxu0 0.0
      %627 = vmatpush1.msra.mxu0 0.0
      %628 = vmatprep.subr.mxu0 0.0
      %629 = vmatpush1.msra.mxu0 0.0
      %630 = vmatprep.subr.mxu0 0.0
      %631 = vmatpush1.msra.mxu0 0.0
      %632 = vmatprep.subr.mxu0 0.0
      %633 = vmatpush1.msra.mxu0 0.0
      %634 = vmatprep.subr.mxu0 0.0
      %635 = vmatpush1.msra.mxu0 0.0
      %636 = vmatprep.subr.mxu0 0.0
      %637 = vmatpush1.msra.mxu0 0.0
      %638 = vmatprep.subr.mxu0 0.0
      %639 = vmatpush1.msra.mxu0 0.0
      %640 = vmatprep.subr.mxu0 0.0
      %641 = vmatpush1.msra.mxu0 0.0
      %642 = vmatprep.subr.mxu0 0.0
      %643 = vmatpush1.msra.mxu0 0.0
      %644 = vmatprep.subr.mxu0 0.0
      %645 = vmatpush1.msra.mxu0 0.0
      %646 = vmatprep.subr.mxu0 0.0
      %647 = vmatpush1.msra.mxu0 0.0
      %648 = vmatprep.subr.mxu0 0.0
      %649 = vmatpush1.msra.mxu0 0.0
      %650 = vmatprep.subr.mxu0 0.0
      %651 = vmatpush1.msra.mxu0 0.0
      %652 = vmatprep.subr.mxu0 0.0
      %653 = vmatpush1.msra.mxu0 0.0
      %654 = vmatprep.subr.mxu0 0.0
      %655 = vmatpush1.msra.mxu0 0.0
      %656 = vmatprep.subr.mxu0 0.0
      %657 = vmatpush1.msra.mxu0 0.0
      %658 = vmatprep.subr.mxu0 0.0
      %659 = vmatpush1.msra.mxu0 0.0
      %660 = vmatprep.subr.mxu0 0.0
      %661 = vmatpush1.msra.mxu0 0.0
      %662 = vmatprep.subr.mxu0 0.0
      %663 = vmatpush1.msra.mxu0 0.0
      %664 = vmatprep.subr.mxu0 0.0
      %665 = vmatpush1.msra.mxu0 0.0
      %666 = vmatprep.subr.mxu0 0.0
      %667 = vmatpush1.msra.mxu0 0.0
      %668 = vmatprep.subr.mxu0 0.0
      %669 = vmatpush1.msra.mxu0 0.0
      %670 = vmatprep.subr.mxu0 0.0
      %671 = vmatpush1.msra.mxu0 0.0
      %672 = vmatprep.subr.mxu0 0.0
      %673 = vmatpush1.msra.mxu0 0.0
      %674 = vmatprep.subr.mxu0 0.0
      %675 = vmatpush1.msra.mxu0 0.0
      %676 = vmatprep.subr.mxu0 0.0
      %677 = vmatpush1.msra.mxu0 0.0
      %678 = vmatprep.subr.mxu0 0.0
      %679 = vmatpush1.msra.mxu0 0.0
      %680 = vmatprep.subr.mxu0 0.0
      %681 = vmatpush1.msra.mxu0 0.0
      %682 = vmatprep.mubr.f32.mxu0 0.0
      %683 = vmatmul.mubr.f32.gmra.mrb[0].mxu0 %v614
      %v684 = vpop.f32.mrb[0].mxu0
      %v685 = vadd.f32 %v609, %v684
      %v686 = vpop.f32.mrb[0].mxu0
      %687 = vdwg.mxu0
      %688 = vrot.lane.b32.xlu0 %v532, 120
      %v689 = vpop.permute.xlu0 %688
      %v691 = vrot.slane %v531, 4
      %v692 = vsel %vm536, %v689, 0
      %v694 = vsel %vm539, %v691, 0
      %696 = vmatprep.subr.mxu0 0.0
      %697 = vmatpush1.msra.mxu0 %v694
      %698 = vmatprep.subr.mxu0 0.0
      %699 = vmatpush1.msra.mxu0 0.0
      %700 = vmatprep.subr.mxu0 0.0
      %701 = vmatpush1.msra.mxu0 0.0
      %702 = vmatprep.subr.mxu0 0.0
      %703 = vmatpush1.msra.mxu0 0.0
      %704 = vmatprep.subr.mxu0 0.0
      %705 = vmatpush1.msra.mxu0 0.0
      %706 = vmatprep.subr.mxu0 0.0
      %707 = vmatpush1.msra.mxu0 0.0
      %708 = vmatprep.subr.mxu0 0.0
      %709 = vmatpush1.msra.mxu0 0.0
      %710 = vmatprep.subr.mxu0 0.0
      %711 = vmatpush1.msra.mxu0 0.0
      %712 = vmatprep.subr.mxu0 0.0
      %713 = vmatpush1.msra.mxu0 0.0
      %714 = vmatprep.subr.mxu0 0.0
      %715 = vmatpush1.msra.mxu0 0.0
      %716 = vmatprep.subr.mxu0 0.0
      %717 = vmatpush1.msra.mxu0 0.0
      %718 = vmatprep.subr.mxu0 0.0
      %719 = vmatpush1.msra.mxu0 0.0
      %720 = vmatprep.subr.mxu0 0.0
      %721 = vmatpush1.msra.mxu0 0.0
      %722 = vmatprep.subr.mxu0 0.0
      %723 = vmatpush1.msra.mxu0 0.0
      %724 = vmatprep.subr.mxu0 0.0
      %725 = vmatpush1.msra.mxu0 0.0
      %726 = vmatprep.subr.mxu0 0.0
      %727 = vmatpush1.msra.mxu0 0.0
      %728 = vmatprep.subr.mxu0 0.0
      %729 = vmatpush1.msra.mxu0 0.0
      %730 = vmatprep.subr.mxu0 0.0
      %731 = vmatpush1.msra.mxu0 0.0
      %732 = vmatprep.subr.mxu0 0.0
      %733 = vmatpush1.msra.mxu0 0.0
      %734 = vmatprep.subr.mxu0 0.0
      %735 = vmatpush1.msra.mxu0 0.0
      %736 = vmatprep.subr.mxu0 0.0
      %737 = vmatpush1.msra.mxu0 0.0
      %738 = vmatprep.subr.mxu0 0.0
      %739 = vmatpush1.msra.mxu0 0.0
      %740 = vmatprep.subr.mxu0 0.0
      %741 = vmatpush1.msra.mxu0 0.0
      %742 = vmatprep.subr.mxu0 0.0
      %743 = vmatpush1.msra.mxu0 0.0
      %744 = vmatprep.subr.mxu0 0.0
      %745 = vmatpush1.msra.mxu0 0.0
      %746 = vmatprep.subr.mxu0 0.0
      %747 = vmatpush1.msra.mxu0 0.0
      %748 = vmatprep.subr.mxu0 0.0
      %749 = vmatpush1.msra.mxu0 0.0
      %750 = vmatprep.subr.mxu0 0.0
      %751 = vmatpush1.msra.mxu0 0.0
      %752 = vmatprep.subr.mxu0 0.0
      %753 = vmatpush1.msra.mxu0 0.0
      %754 = vmatprep.subr.mxu0 0.0
      %755 = vmatpush1.msra.mxu0 0.0
      %756 = vmatprep.subr.mxu0 0.0
      %757 = vmatpush1.msra.mxu0 0.0
      %758 = vmatprep.subr.mxu0 0.0
      %759 = vmatpush1.msra.mxu0 0.0
      %760 = vmatprep.mubr.f32.mxu0 0.0
      %761 = vmatmul.mubr.f32.gmra.mrb[0].mxu0 %v692
      %v762 = vpop.f32.mrb[0].mxu0
      %v763 = vadd.f32 0.0, %v762
      %v764 = vpop.f32.mrb[0].mxu0
      %765 = vdwg.mxu0
      %v766 = vadd.f32 %v685, %v763
      %v767 = vld [vmem:[%s2] sm:$0xf]
      %769 = vset.pattern.permute.xlu0 6
      %770 = vperm.xlu0 %769, %v767
      %v771 = vpop.permute.xlu0 %770
      %v773 = vadd.f32 %v766, %v771
      %v774 = vmax.f32 %v773, 0.0
      %775 = vset.pattern.permute.xlu0 7
      %776 = vperm.xlu0 %775, %v767
      %v777 = vpop.permute.xlu0 %776
      %v779 = vmul.f32 %v774, %v777
      %780 = vset.pattern.permute.xlu0 8
      %781 = vperm.xlu0 %780, %v767
      %v782 = vpop.permute.xlu0 %781
      %v784 = vadd.f32 %v779, %v782
      %785 = vst [vmem:[#allocation2 + $0x4] sm:$0xf] %v784
      %v786 = vadd.f32 %v505, %v784
      %787 = vrot.lane.b32.xlu0 %v786, 2
      %v788 = vpop.permute.xlu0 %787
      %789 = vrot.lane.b32.xlu0 %v786, 126
      %v790 = vpop.permute.xlu0 %789
      %v791 = vsel %vm515, %v790, %v788
      %v792 = vsel %vm518, %v788, %v790
      %v793 = vsel %vm521, %v786, %v791
      %v794 = vsel %vm527, %v786, %v792
      %v795 = vld [vmem:[%s1 + $0x28] sm:$0xf]
      %797 = vrot.lane.b32.xlu0 %v795, 124
      %v798 = vpop.permute.xlu0 %797
      %v799 = vsel %vm536, %v798, 0
      %v802 = vsel %vm539, %v786, 0
      %804 = vmatprep.subr.mxu0 0.0
      %805 = vmatpush1.msra.mxu0 %v802
      %806 = vmatprep.subr.mxu0 0.0
      %807 = vmatpush1.msra.mxu0 0.0
      %808 = vmatprep.subr.mxu0 0.0
      %809 = vmatpush1.msra.mxu0 0.0
      %810 = vmatprep.subr.mxu0 0.0
      %811 = vmatpush1.msra.mxu0 0.0
      %812 = vmatprep.subr.mxu0 0.0
      %813 = vmatpush1.msra.mxu0 0.0
      %814 = vmatprep.subr.mxu0 0.0
      %815 = vmatpush1.msra.mxu0 0.0
      %816 = vmatprep.subr.mxu0 0.0
      %817 = vmatpush1.msra.mxu0 0.0
      %818 = vmatprep.subr.mxu0 0.0
      %819 = vmatpush1.msra.mxu0 0.0
      %820 = vmatprep.subr.mxu0 0.0
      %821 = vmatpush1.msra.mxu0 0.0
      %822 = vmatprep.subr.mxu0 0.0
      %823 = vmatpush1.msra.mxu0 0.0
      %824 = vmatprep.subr.mxu0 0.0
      %825 = vmatpush1.msra.mxu0 0.0
      %826 = vmatprep.subr.mxu0 0.0
      %827 = vmatpush1.msra.mxu0 0.0
      %828 = vmatprep.subr.mxu0 0.0
      %829 = vmatpush1.msra.mxu0 0.0
      %830 = vmatprep.subr.mxu0 0.0
      %831 = vmatpush1.msra.mxu0 0.0
      %832 = vmatprep.subr.mxu0 0.0
      %833 = vmatpush1.msra.mxu0 0.0
      %834 = vmatprep.subr.mxu0 0.0
      %835 = vmatpush1.msra.mxu0 0.0
      %836 = vmatprep.subr.mxu0 0.0
      %837 = vmatpush1.msra.mxu0 0.0
      %838 = vmatprep.subr.mxu0 0.0
      %839 = vmatpush1.msra.mxu0 0.0
      %840 = vmatprep.subr.mxu0 0.0
      %841 = vmatpush1.msra.mxu0 0.0
      %842 = vmatprep.subr.mxu0 0.0
      %843 = vmatpush1.msra.mxu0 0.0
      %844 = vmatprep.subr.mxu0 0.0
      %845 = vmatpush1.msra.mxu0 0.0
      %846 = vmatprep.subr.mxu0 0.0
      %847 = vmatpush1.msra.mxu0 0.0
      %848 = vmatprep.subr.mxu0 0.0
      %849 = vmatpush1.msra.mxu0 0.0
      %850 = vmatprep.subr.mxu0 0.0
      %851 = vmatpush1.msra.mxu0 0.0
      %852 = vmatprep.subr.mxu0 0.0
      %853 = vmatpush1.msra.mxu0 0.0
      %854 = vmatprep.subr.mxu0 0.0
      %855 = vmatpush1.msra.mxu0 0.0
      %856 = vmatprep.subr.mxu0 0.0
      %857 = vmatpush1.msra.mxu0 0.0
      %858 = vmatprep.subr.mxu0 0.0
      %859 = vmatpush1.msra.mxu0 0.0
      %860 = vmatprep.subr.mxu0 0.0
      %861 = vmatpush1.msra.mxu0 0.0
      %862 = vmatprep.subr.mxu0 0.0
      %863 = vmatpush1.msra.mxu0 0.0
      %864 = vmatprep.subr.mxu0 0.0
      %865 = vmatpush1.msra.mxu0 0.0
      %866 = vmatprep.subr.mxu0 0.0
      %867 = vmatpush1.msra.mxu0 0.0
      %868 = vmatprep.mubr.f32.mxu0 0.0
      %869 = vmatmul.mubr.f32.gmra.mrb[0].mxu0 %v799
      %v870 = vpop.f32.mrb[0].mxu0
      %v871 = vadd.f32 0.0, %v870
      %v872 = vpop.f32.mrb[0].mxu0
      %873 = vdwg.mxu0
      %v874 = vsel %vm536, %v795, 0
      %v877 = vsel %vm539, %v793, 0
      %879 = vmatprep.subr.mxu0 0.0
      %880 = vmatpush1.msra.mxu0 %v877
      %881 = vmatprep.subr.mxu0 0.0
      %882 = vmatpush1.msra.mxu0 0.0
      %883 = vmatprep.subr.mxu0 0.0
      %884 = vmatpush1.msra.mxu0 0.0
      %885 = vmatprep.subr.mxu0 0.0
      %886 = vmatpush1.msra.mxu0 0.0
      %887 = vmatprep.subr.mxu0 0.0
      %888 = vmatpush1.msra.mxu0 0.0
      %889 = vmatprep.subr.mxu0 0.0
      %890 = vmatpush1.msra.mxu0 0.0
      %891 = vmatprep.subr.mxu0 0.0
      %892 = vmatpush1.msra.mxu0 0.0
      %893 = vmatprep.subr.mxu0 0.0
      %894 = vmatpush1.msra.mxu0 0.0
      %895 = vmatprep.subr.mxu0 0.0
      %896 = vmatpush1.msra.mxu0 0.0
      %897 = vmatprep.subr.mxu0 0.0
      %898 = vmatpush1.msra.mxu0 0.0
      %899 = vmatprep.subr.mxu0 0.0
      %900 = vmatpush1.msra.mxu0 0.0
      %901 = vmatprep.subr.mxu0 0.0
      %902 = vmatpush1.msra.mxu0 0.0
      %903 = vmatprep.subr.mxu0 0.0
      %904 = vmatpush1.msra.mxu0 0.0
      %905 = vmatprep.subr.mxu0 0.0
      %906 = vmatpush1.msra.mxu0 0.0
      %907 = vmatprep.subr.mxu0 0.0
      %908 = vmatpush1.msra.mxu0 0.0
      %909 = vmatprep.subr.mxu0 0.0
      %910 = vmatpush1.msra.mxu0 0.0
      %911 = vmatprep.subr.mxu0 0.0
      %912 = vmatpush1.msra.mxu0 0.0
      %913 = vmatprep.subr.mxu0 0.0
      %914 = vmatpush1.msra.mxu0 0.0
      %915 = vmatprep.subr.mxu0 0.0
      %916 = vmatpush1.msra.mxu0 0.0
      %917 = vmatprep.subr.mxu0 0.0
      %918 = vmatpush1.msra.mxu0 0.0
      %919 = vmatprep.subr.mxu0 0.0
      %920 = vmatpush1.msra.mxu0 0.0
      %921 = vmatprep.subr.mxu0 0.0
      %922 = vmatpush1.msra.mxu0 0.0
      %923 = vmatprep.subr.mxu0 0.0
      %924 = vmatpush1.msra.mxu0 0.0
      %925 = vmatprep.subr.mxu0 0.0
      %926 = vmatpush1.msra.mxu0 0.0
      %927 = vmatprep.subr.mxu0 0.0
      %928 = vmatpush1.msra.mxu0 0.0
      %929 = vmatprep.subr.mxu0 0.0
      %930 = vmatpush1.msra.mxu0 0.0
      %931 = vmatprep.subr.mxu0 0.0
      %932 = vmatpush1.msra.mxu0 0.0
      %933 = vmatprep.subr.mxu0 0.0
      %934 = vmatpush1.msra.mxu0 0.0
      %935 = vmatprep.subr.mxu0 0.0
      %936 = vmatpush1.msra.mxu0 0.0
      %937 = vmatprep.subr.mxu0 0.0
      %938 = vmatpush1.msra.mxu0 0.0
      %939 = vmatprep.subr.mxu0 0.0
      %940 = vmatpush1.msra.mxu0 0.0
      %941 = vmatprep.subr.mxu0 0.0
      %942 = vmatpush1.msra.mxu0 0.0
      %943 = vmatprep.mubr.f32.mxu0 0.0
      %944 = vmatmul.mubr.f32.gmra.mrb[0].mxu0 %v874
      %v945 = vpop.f32.mrb[0].mxu0
      %v946 = vadd.f32 %v871, %v945
      %v947 = vpop.f32.mrb[0].mxu0
      %948 = vdwg.mxu0
      %949 = vrot.lane.b32.xlu0 %v795, 120
      %v950 = vpop.permute.xlu0 %949
      %v951 = vsel %vm536, %v950, 0
      %v954 = vsel %vm539, %v794, 0
      %956 = vmatprep.subr.mxu0 0.0
      %957 = vmatpush1.msra.mxu0 %v954
      %958 = vmatprep.subr.mxu0 0.0
      %959 = vmatpush1.msra.mxu0 0.0
      %960 = vmatprep.subr.mxu0 0.0
      %961 = vmatpush1.msra.mxu0 0.0
      %962 = vmatprep.subr.mxu0 0.0
      %963 = vmatpush1.msra.mxu0 0.0
      %964 = vmatprep.subr.mxu0 0.0
      %965 = vmatpush1.msra.mxu0 0.0
      %966 = vmatprep.subr.mxu0 0.0
      %967 = vmatpush1.msra.mxu0 0.0
      %968 = vmatprep.subr.mxu0 0.0
      %969 = vmatpush1.msra.mxu0 0.0
      %970 = vmatprep.subr.mxu0 0.0
      %971 = vmatpush1.msra.mxu0 0.0
      %972 = vmatprep.subr.mxu0 0.0
      %973 = vmatpush1.msra.mxu0 0.0
      %974 = vmatprep.subr.mxu0 0.0
      %975 = vmatpush1.msra.mxu0 0.0
      %976 = vmatprep.subr.mxu0 0.0
      %977 = vmatpush1.msra.mxu0 0.0
      %978 = vmatprep.subr.mxu0 0.0
      %979 = vmatpush1.msra.mxu0 0.0
      %980 = vmatprep.subr.mxu0 0.0
      %981 = vmatpush1.msra.mxu0 0.0
      %982 = vmatprep.subr.mxu0 0.0
      %983 = vmatpush1.msra.mxu0 0.0
      %984 = vmatprep.subr.mxu0 0.0
      %985 = vmatpush1.msra.mxu0 0.0
      %986 = vmatprep.subr.mxu0 0.0
      %987 = vmatpush1.msra.mxu0 0.0
      %988 = vmatprep.subr.mxu0 0.0
      %989 = vmatpush1.msra.mxu0 0.0
      %990 = vmatprep.subr.mxu0 0.0
      %991 = vmatpush1.msra.mxu0 0.0
      %992 = vmatprep.subr.mxu0 0.0
      %993 = vmatpush1.msra.mxu0 0.0
      %994 = vmatprep.subr.mxu0 0.0
      %995 = vmatpush1.msra.mxu0 0.0
      %996 = vmatprep.subr.mxu0 0.0
      %997 = vmatpush1.msra.mxu0 0.0
      %998 = vmatprep.subr.mxu0 0.0
      %999 = vmatpush1.msra.mxu0 0.0
      %1000 = vmatprep.subr.mxu0 0.0
      %1001 = vmatpush1.msra.mxu0 0.0
      %1002 = vmatprep.subr.mxu0 0.0
      %1003 = vmatpush1.msra.mxu0 0.0
      %1004 = vmatprep.subr.mxu0 0.0
      %1005 = vmatpush1.msra.mxu0 0.0
      %1006 = vmatprep.subr.mxu0 0.0
      %1007 = vmatpush1.msra.mxu0 0.0
      %1008 = vmatprep.subr.mxu0 0.0
      %1009 = vmatpush1.msra.mxu0 0.0
      %1010 = vmatprep.subr.mxu0 0.0
      %1011 = vmatpush1.msra.mxu0 0.0
      %1012 = vmatprep.subr.mxu0 0.0
      %1013 = vmatpush1.msra.mxu0 0.0
      %1014 = vmatprep.subr.mxu0 0.0
      %1015 = vmatpush1.msra.mxu0 0.0
      %1016 = vmatprep.subr.mxu0 0.0
      %1017 = vmatpush1.msra.mxu0 0.0
      %1018 = vmatprep.subr.mxu0 0.0
      %1019 = vmatpush1.msra.mxu0 0.0
      %1020 = vmatprep.mubr.f32.mxu0 0.0
      %1021 = vmatmul.mubr.f32.gmra.mrb[0].mxu0 %v951
      %v1022 = vpop.f32.mrb[0].mxu0
      %v1023 = vadd.f32 0.0, %v1022
      %v1024 = vpop.f32.mrb[0].mxu0
      %1025 = vdwg.mxu0
      %v1026 = vadd.f32 %v946, %v1023
      %v1027 = vld [vmem:[%s2] sm:$0xf]
      %1029 = vset.pattern.permute.xlu0 9
      %1030 = vperm.xlu0 %1029, %v1027
      %v1031 = vpop.permute.xlu0 %1030
      %v1033 = vadd.f32 %v1026, %v1031
      %v1034 = vmax.f32 %v1033, 0.0
      %1035 = vset.pattern.permute.xlu0 10
      %1036 = vperm.xlu0 %1035, %v1027
      %v1037 = vpop.permute.xlu0 %1036
      %v1039 = vmul.f32 %v1034, %v1037
      %1040 = vset.pattern.permute.xlu0 11
      %1041 = vperm.xlu0 %1040, %v1027
      %v1042 = vpop.permute.xlu0 %1041
      %v1044 = vadd.f32 %v1039, %v1042
      %1045 = vst [vmem:[#allocation2 + $0x8] sm:$0xf] %v1044
      %v1047 = vrot.slane %v1044, 4
      %v1049 = vadd.f32 %v505, %v1047
      %v1051 = vrot.slane %v1049, 4
      %1053 = vrot.lane.b32.xlu0 %v1051, 2
      %v1054 = vpop.permute.xlu0 %1053
      %1055 = vrot.lane.b32.xlu0 %v1051, 126
      %v1056 = vpop.permute.xlu0 %1055
      %v1057 = vsel %vm515, %v1056, %v1054
      %v1058 = vsel %vm518, %v1054, %v1056
      %v1060 = vrot.slane %v1057, 4
      %v1062 = vsel %vm521, %v1049, %v1060
      %v1064 = vrot.slane %v1058, 4
      %v1066 = vsel %vm527, %v1049, %v1064
      %v1067 = vld [vmem:[%s1 + $0x30] sm:$0xf]
      %1069 = vrot.lane.b32.xlu0 %v1067, 124
      %v1070 = vpop.permute.xlu0 %1069
      %v1071 = vsel %vm536, %v1070, 0
      %v1073 = vsel %vm539, %v1051, 0
      %1075 = vmatprep.subr.mxu0 0.0
      %1076 = vmatpush1.msra.mxu0 %v1073
      %1077 = vmatprep.subr.mxu0 0.0
      %1078 = vmatpush1.msra.mxu0 0.0
      %1079 = vmatprep.subr.mxu0 0.0
      %1080 = vmatpush1.msra.mxu0 0.0
      %1081 = vmatprep.subr.mxu0 0.0
      %1082 = vmatpush1.msra.mxu0 0.0
      %1083 = vmatprep.subr.mxu0 0.0
      %1084 = vmatpush1.msra.mxu0 0.0
      %1085 = vmatprep.subr.mxu0 0.0
      %1086 = vmatpush1.msra.mxu0 0.0
      %1087 = vmatprep.subr.mxu0 0.0
      %1088 = vmatpush1.msra.mxu0 0.0
      %1089 = vmatprep.subr.mxu0 0.0
      %1090 = vmatpush1.msra.mxu0 0.0
      %1091 = vmatprep.subr.mxu0 0.0
      %1092 = vmatpush1.msra.mxu0 0.0
      %1093 = vmatprep.subr.mxu0 0.0
      %1094 = vmatpush1.msra.mxu0 0.0
      %1095 = vmatprep.subr.mxu0 0.0
      %1096 = vmatpush1.msra.mxu0 0.0
      %1097 = vmatprep.subr.mxu0 0.0
      %1098 = vmatpush1.msra.mxu0 0.0
      %1099 = vmatprep.subr.mxu0 0.0
      %1100 = vmatpush1.msra.mxu0 0.0
      %1101 = vmatprep.subr.mxu0 0.0
      %1102 = vmatpush1.msra.mxu0 0.0
      %1103 = vmatprep.subr.mxu0 0.0
      %1104 = vmatpush1.msra.mxu0 0.0
      %1105 = vmatprep.subr.mxu0 0.0
      %1106 = vmatpush1.msra.mxu0 0.0
      %1107 = vmatprep.subr.mxu0 0.0
      %1108 = vmatpush1.msra.mxu0 0.0
      %1109 = vmatprep.subr.mxu0 0.0
      %1110 = vmatpush1.msra.mxu0 0.0
      %1111 = vmatprep.subr.mxu0 0.0
      %1112 = vmatpush1.msra.mxu0 0.0
      %1113 = vmatprep.subr.mxu0 0.0
      %1114 = vmatpush1.msra.mxu0 0.0
      %1115 = vmatprep.subr.mxu0 0.0
      %1116 = vmatpush1.msra.mxu0 0.0
      %1117 = vmatprep.subr.mxu0 0.0
      %1118 = vmatpush1.msra.mxu0 0.0
      %1119 = vmatprep.subr.mxu0 0.0
      %1120 = vmatpush1.msra.mxu0 0.0
      %1121 = vmatprep.subr.mxu0 0.0
      %1122 = vmatpush1.msra.mxu0 0.0
      %1123 = vmatprep.subr.mxu0 0.0
      %1124 = vmatpush1.msra.mxu0 0.0
      %1125 = vmatprep.subr.mxu0 0.0
      %1126 = vmatpush1.msra.mxu0 0.0
      %1127 = vmatprep.subr.mxu0 0.0
      %1128 = vmatpush1.msra.mxu0 0.0
      %1129 = vmatprep.subr.mxu0 0.0
      %1130 = vmatpush1.msra.mxu0 0.0
      %1131 = vmatprep.subr.mxu0 0.0
      %1132 = vmatpush1.msra.mxu0 0.0
      %1133 = vmatprep.subr.mxu0 0.0
      %1134 = vmatpush1.msra.mxu0 0.0
      %1135 = vmatprep.subr.mxu0 0.0
      %1136 = vmatpush1.msra.mxu0 0.0
      %1137 = vmatprep.subr.mxu0 0.0
      %1138 = vmatpush1.msra.mxu0 0.0
      %1139 = vmatprep.mubr.f32.mxu0 0.0
      %1140 = vmatmul.mubr.f32.gmra.mrb[0].mxu0 %v1071
      %v1141 = vpop.f32.mrb[0].mxu0
      %v1142 = vadd.f32 0.0, %v1141
      %v1143 = vpop.f32.mrb[0].mxu0
      %1144 = vdwg.mxu0
      %v1146 = vrot.slane %v1062, 4
      %v1147 = vsel %vm536, %v1067, 0
      %v1149 = vsel %vm539, %v1146, 0
      %1151 = vmatprep.subr.mxu0 0.0
      %1152 = vmatpush1.msra.mxu0 %v1149
      %1153 = vmatprep.subr.mxu0 0.0
      %1154 = vmatpush1.msra.mxu0 0.0
      %1155 = vmatprep.subr.mxu0 0.0
      %1156 = vmatpush1.msra.mxu0 0.0
      %1157 = vmatprep.subr.mxu0 0.0
      %1158 = vmatpush1.msra.mxu0 0.0
      %1159 = vmatprep.subr.mxu0 0.0
      %1160 = vmatpush1.msra.mxu0 0.0
      %1161 = vmatprep.subr.mxu0 0.0
      %1162 = vmatpush1.msra.mxu0 0.0
      %1163 = vmatprep.subr.mxu0 0.0
      %1164 = vmatpush1.msra.mxu0 0.0
      %1165 = vmatprep.subr.mxu0 0.0
      %1166 = vmatpush1.msra.mxu0 0.0
      %1167 = vmatprep.subr.mxu0 0.0
      %1168 = vmatpush1.msra.mxu0 0.0
      %1169 = vmatprep.subr.mxu0 0.0
      %1170 = vmatpush1.msra.mxu0 0.0
      %1171 = vmatprep.subr.mxu0 0.0
      %1172 = vmatpush1.msra.mxu0 0.0
      %1173 = vmatprep.subr.mxu0 0.0
      %1174 = vmatpush1.msra.mxu0 0.0
      %1175 = vmatprep.subr.mxu0 0.0
      %1176 = vmatpush1.msra.mxu0 0.0
      %1177 = vmatprep.subr.mxu0 0.0
      %1178 = vmatpush1.msra.mxu0 0.0
      %1179 = vmatprep.subr.mxu0 0.0
      %1180 = vmatpush1.msra.mxu0 0.0
      %1181 = vmatprep.subr.mxu0 0.0
      %1182 = vmatpush1.msra.mxu0 0.0
      %1183 = vmatprep.subr.mxu0 0.0
      %1184 = vmatpush1.msra.mxu0 0.0
      %1185 = vmatprep.subr.mxu0 0.0
      %1186 = vmatpush1.msra.mxu0 0.0
      %1187 = vmatprep.subr.mxu0 0.0
      %1188 = vmatpush1.msra.mxu0 0.0
      %1189 = vmatprep.subr.mxu0 0.0
      %1190 = vmatpush1.msra.mxu0 0.0
      %1191 = vmatprep.subr.mxu0 0.0
      %1192 = vmatpush1.msra.mxu0 0.0
      %1193 = vmatprep.subr.mxu0 0.0
      %1194 = vmatpush1.msra.mxu0 0.0
      %1195 = vmatprep.subr.mxu0 0.0
      %1196 = vmatpush1.msra.mxu0 0.0
      %1197 = vmatprep.subr.mxu0 0.0
      %1198 = vmatpush1.msra.mxu0 0.0
      %1199 = vmatprep.subr.mxu0 0.0
      %1200 = vmatpush1.msra.mxu0 0.0
      %1201 = vmatprep.subr.mxu0 0.0
      %1202 = vmatpush1.msra.mxu0 0.0
      %1203 = vmatprep.subr.mxu0 0.0
      %1204 = vmatpush1.msra.mxu0 0.0
      %1205 = vmatprep.subr.mxu0 0.0
      %1206 = vmatpush1.msra.mxu0 0.0
      %1207 = vmatprep.subr.mxu0 0.0
      %1208 = vmatpush1.msra.mxu0 0.0
      %1209 = vmatprep.subr.mxu0 0.0
      %1210 = vmatpush1.msra.mxu0 0.0
      %1211 = vmatprep.subr.mxu0 0.0
      %1212 = vmatpush1.msra.mxu0 0.0
      %1213 = vmatprep.subr.mxu0 0.0
      %1214 = vmatpush1.msra.mxu0 0.0
      %1215 = vmatprep.mubr.f32.mxu0 0.0
      %1216 = vmatmul.mubr.f32.gmra.mrb[0].mxu0 %v1147
      %v1217 = vpop.f32.mrb[0].mxu0
      %v1218 = vadd.f32 %v1142, %v1217
      %v1219 = vpop.f32.mrb[0].mxu0
      %1220 = vdwg.mxu0
      %1221 = vrot.lane.b32.xlu0 %v1067, 120
      %v1222 = vpop.permute.xlu0 %1221
      %v1224 = vrot.slane %v1066, 4
      %v1225 = vsel %vm536, %v1222, 0
      %v1227 = vsel %vm539, %v1224, 0
      %1229 = vmatprep.subr.mxu0 0.0
      %1230 = vmatpush1.msra.mxu0 %v1227
      %1231 = vmatprep.subr.mxu0 0.0
      %1232 = vmatpush1.msra.mxu0 0.0
      %1233 = vmatprep.subr.mxu0 0.0
      %1234 = vmatpush1.msra.mxu0 0.0
      %1235 = vmatprep.subr.mxu0 0.0
      %1236 = vmatpush1.msra.mxu0 0.0
      %1237 = vmatprep.subr.mxu0 0.0
      %1238 = vmatpush1.msra.mxu0 0.0
      %1239 = vmatprep.subr.mxu0 0.0
      %1240 = vmatpush1.msra.mxu0 0.0
      %1241 = vmatprep.subr.mxu0 0.0
      %1242 = vmatpush1.msra.mxu0 0.0
      %1243 = vmatprep.subr.mxu0 0.0
      %1244 = vmatpush1.msra.mxu0 0.0
      %1245 = vmatprep.subr.mxu0 0.0
      %1246 = vmatpush1.msra.mxu0 0.0
      %1247 = vmatprep.subr.mxu0 0.0
      %1248 = vmatpush1.msra.mxu0 0.0
      %1249 = vmatprep.subr.mxu0 0.0
      %1250 = vmatpush1.msra.mxu0 0.0
      %1251 = vmatprep.subr.mxu0 0.0
      %1252 = vmatpush1.msra.mxu0 0.0
      %1253 = vmatprep.subr.mxu0 0.0
      %1254 = vmatpush1.msra.mxu0 0.0
      %1255 = vmatprep.subr.mxu0 0.0
      %1256 = vmatpush1.msra.mxu0 0.0
      %1257 = vmatprep.subr.mxu0 0.0
      %1258 = vmatpush1.msra.mxu0 0.0
      %1259 = vmatprep.subr.mxu0 0.0
      %1260 = vmatpush1.msra.mxu0 0.0
      %1261 = vmatprep.subr.mxu0 0.0
      %1262 = vmatpush1.msra.mxu0 0.0
      %1263 = vmatprep.subr.mxu0 0.0
      %1264 = vmatpush1.msra.mxu0 0.0
      %1265 = vmatprep.subr.mxu0 0.0
      %1266 = vmatpush1.msra.mxu0 0.0
      %1267 = vmatprep.subr.mxu0 0.0
      %1268 = vmatpush1.msra.mxu0 0.0
      %1269 = vmatprep.subr.mxu0 0.0
      %1270 = vmatpush1.msra.mxu0 0.0
      %1271 = vmatprep.subr.mxu0 0.0
      %1272 = vmatpush1.msra.mxu0 0.0
      %1273 = vmatprep.subr.mxu0 0.0
      %1274 = vmatpush1.msra.mxu0 0.0
      %1275 = vmatprep.subr.mxu0 0.0
      %1276 = vmatpush1.msra.mxu0 0.0
      %1277 = vmatprep.subr.mxu0 0.0
      %1278 = vmatpush1.msra.mxu0 0.0
      %1279 = vmatprep.subr.mxu0 0.0
      %1280 = vmatpush1.msra.mxu0 0.0
      %1281 = vmatprep.subr.mxu0 0.0
      %1282 = vmatpush1.msra.mxu0 0.0
      %1283 = vmatprep.subr.mxu0 0.0
      %1284 = vmatpush1.msra.mxu0 0.0
      %1285 = vmatprep.subr.mxu0 0.0
      %1286 = vmatpush1.msra.mxu0 0.0
      %1287 = vmatprep.subr.mxu0 0.0
      %1288 = vmatpush1.msra.mxu0 0.0
      %1289 = vmatprep.subr.mxu0 0.0
      %1290 = vmatpush1.msra.mxu0 0.0
      %1291 = vmatprep.subr.mxu0 0.0
      %1292 = vmatpush1.msra.mxu0 0.0
      %1293 = vmatprep.mubr.f32.mxu0 0.0
      %1294 = vmatmul.mubr.f32.gmra.mrb[0].mxu0 %v1225
      %v1295 = vpop.f32.mrb[0].mxu0
      %v1296 = vadd.f32 0.0, %v1295
      %v1297 = vpop.f32.mrb[0].mxu0
      %1298 = vdwg.mxu0
      %v1299 = vadd.f32 %v1218, %v1296
      %v1300 = vld [vmem:[%s2] sm:$0xf]
      %1302 = vset.pattern.permute.xlu0 12
      %1303 = vperm.xlu0 %1302, %v1300
      %v1304 = vpop.permute.xlu0 %1303
      %v1306 = vadd.f32 %v1299, %v1304
      %v1307 = vmax.f32 %v1306, 0.0
      %1308 = vset.pattern.permute.xlu0 13
      %1309 = vperm.xlu0 %1308, %v1300
      %v1310 = vpop.permute.xlu0 %1309
      %v1312 = vmul.f32 %v1307, %v1310
      %1313 = vset.pattern.permute.xlu0 14
      %1314 = vperm.xlu0 %1313, %v1300
      %v1315 = vpop.permute.xlu0 %1314
      %v1317 = vadd.f32 %v1312, %v1315
      %1318 = vst [vmem:[#allocation2 + $0xc] sm:$0xf] %v1317
      %v1319 = vld [vmem:[%s1 + $0x38] sm:$0xff]
      %v1320 = vld [vmem:[%s1 + $0x40] sm:$0xff]
      %v1321 = vld [vmem:[#allocation2] sm:$0xff]
      %v1322 = vld [vmem:[#allocation2 + $0x8] sm:$0xff]
      %v1323 = vld [vmem:[%s2] sm:$0xff]
      %v1324 = vld [vmem:[%s2 + $0x8] sm:$0xff]
      %1326 = vset.pattern.permute.xlu0 15
      %1327 = vperm.xlu0 %1326, %v1323
      %v1328 = vpop.permute.xlu0 %1327
      %1331 = vset.pattern.permute.xlu0 15
      %1332 = vperm.xlu0 %1331, %v1324
      %v1333 = vpop.permute.xlu0 %1332
      %v1336 = vsel %vm402, %v1319, 0
      %v1339 = vsel %vm402, %v1320, 0
      %1341 = vmatprep.subr.mxu0 0.0
      %1342 = vmatpush1.msra.mxu0 %v1321
      %1343 = vmatprep.subr.mxu0 0.0
      %1344 = vmatpush1.msra.mxu0 %v1322
      %1345 = vmatprep.subr.mxu0 0.0
      %1346 = vmatpush1.msra.mxu0 0.0
      %1347 = vmatprep.subr.mxu0 0.0
      %1348 = vmatpush1.msra.mxu0 0.0
      %1349 = vmatprep.subr.mxu0 0.0
      %1350 = vmatpush1.msra.mxu0 0.0
      %1351 = vmatprep.subr.mxu0 0.0
      %1352 = vmatpush1.msra.mxu0 0.0
      %1353 = vmatprep.subr.mxu0 0.0
      %1354 = vmatpush1.msra.mxu0 0.0
      %1355 = vmatprep.subr.mxu0 0.0
      %1356 = vmatpush1.msra.mxu0 0.0
      %1357 = vmatprep.subr.mxu0 0.0
      %1358 = vmatpush1.msra.mxu0 0.0
      %1359 = vmatprep.subr.mxu0 0.0
      %1360 = vmatpush1.msra.mxu0 0.0
      %1361 = vmatprep.subr.mxu0 0.0
      %1362 = vmatpush1.msra.mxu0 0.0
      %1363 = vmatprep.subr.mxu0 0.0
      %1364 = vmatpush1.msra.mxu0 0.0
      %1365 = vmatprep.subr.mxu0 0.0
      %1366 = vmatpush1.msra.mxu0 0.0
      %1367 = vmatprep.subr.mxu0 0.0
      %1368 = vmatpush1.msra.mxu0 0.0
      %1369 = vmatprep.subr.mxu0 0.0
      %1370 = vmatpush1.msra.mxu0 0.0
      %1371 = vmatprep.subr.mxu0 0.0
      %1372 = vmatpush1.msra.mxu0 0.0
      %1373 = vmatprep.subr.mxu0 0.0
      %1374 = vmatpush1.msra.mxu0 0.0
      %1375 = vmatprep.subr.mxu0 0.0
      %1376 = vmatpush1.msra.mxu0 0.0
      %1377 = vmatprep.subr.mxu0 0.0
      %1378 = vmatpush1.msra.mxu0 0.0
      %1379 = vmatprep.subr.mxu0 0.0
      %1380 = vmatpush1.msra.mxu0 0.0
      %1381 = vmatprep.subr.mxu0 0.0
      %1382 = vmatpush1.msra.mxu0 0.0
      %1383 = vmatprep.subr.mxu0 0.0
      %1384 = vmatpush1.msra.mxu0 0.0
      %1385 = vmatprep.subr.mxu0 0.0
      %1386 = vmatpush1.msra.mxu0 0.0
      %1387 = vmatprep.subr.mxu0 0.0
      %1388 = vmatpush1.msra.mxu0 0.0
      %1389 = vmatprep.subr.mxu0 0.0
      %1390 = vmatpush1.msra.mxu0 0.0
      %1391 = vmatprep.subr.mxu0 0.0
      %1392 = vmatpush1.msra.mxu0 0.0
      %1393 = vmatprep.subr.mxu0 0.0
      %1394 = vmatpush1.msra.mxu0 0.0
      %1395 = vmatprep.subr.mxu0 0.0
      %1396 = vmatpush1.msra.mxu0 0.0
      %1397 = vmatprep.subr.mxu0 0.0
      %1398 = vmatpush1.msra.mxu0 0.0
      %1399 = vmatprep.subr.mxu0 0.0
      %1400 = vmatpush1.msra.mxu0 0.0
      %1401 = vmatprep.subr.mxu0 0.0
      %1402 = vmatpush1.msra.mxu0 0.0
      %1403 = vmatprep.subr.mxu0 0.0
      %1404 = vmatpush1.msra.mxu0 0.0
      %1405 = vmatprep.mubr.f32.mxu0 0.0
      %1406 = vmatmul.mubr.f32.gmra.mrb[0].mxu0 %v1336
      %v1407 = vpop.f32.mrb[0].mxu0
      %v1408 = vadd.f32 %v1328, %v1407
      %v1409 = vpop.f32.mrb[0].mxu0
      %1410 = vmatprep.mubr.f32.mxu0 0.0
      %1411 = vmatmul.mubr.f32.gmra.mrb[0].mxu0 %v1339
      %v1412 = vpop.f32.mrb[0].mxu0
      %v1413 = vadd.f32 %v1333, %v1412
      %v1414 = vpop.f32.mrb[0].mxu0
      %1415 = vdwg.mxu0
      %v1416 = vmax.f32 %v1408, 0.0
      %v1417 = vmax.f32 %v1413, 0.0
      %1418 = vset.pattern.permute.xlu0 16
      %1419 = vperm.xlu0 %1418, %v1323
      %v1420 = vpop.permute.xlu0 %1419
      %1422 = vset.pattern.permute.xlu0 16
      %1423 = vperm.xlu0 %1422, %v1324
      %v1424 = vpop.permute.xlu0 %1423
      %v1426 = vmul.f32 %v1416, %v1420
      %v1427 = vmul.f32 %v1417, %v1424
      %1428 = vset.pattern.permute.xlu0 17
      %1429 = vperm.xlu0 %1428, %v1323
      %v1430 = vpop.permute.xlu0 %1429
      %1432 = vset.pattern.permute.xlu0 17
      %1433 = vperm.xlu0 %1432, %v1324
      %v1434 = vpop.permute.xlu0 %1433
      %v1436 = vadd.f32 %v1426, %v1430
      %v1437 = vadd.f32 %v1427, %v1434
      %1438 = vmatprep.subr.mxu0 0.0
      %1439 = vmatpush1.msra.mxu0 %v242
      %1440 = vmatprep.subr.mxu0 0.0
      %1441 = vmatpush1.msra.mxu0 %v243
      %1442 = vmatprep.subr.mxu0 0.0
      %1443 = vmatpush1.msra.mxu0 %v244
      %1444 = vmatprep.subr.mxu0 0.0
      %1445 = vmatpush1.msra.mxu0 %v245
      %1446 = vmatprep.subr.mxu0 0.0
      %1447 = vmatpush1.msra.mxu0 %v246
      %1448 = vmatprep.subr.mxu0 0.0
      %1449 = vmatpush1.msra.mxu0 %v247
      %1450 = vmatprep.subr.mxu0 0.0
      %1451 = vmatpush1.msra.mxu0 %v248
      %1452 = vmatprep.subr.mxu0 0.0
      %1453 = vmatpush1.msra.mxu0 %v249
      %1454 = vmatprep.subr.mxu0 0.0
      %1455 = vmatpush1.msra.mxu0 %v250
      %1456 = vmatprep.subr.mxu0 0.0
      %1457 = vmatpush1.msra.mxu0 %v251
      %1458 = vmatprep.subr.mxu0 0.0
      %1459 = vmatpush1.msra.mxu0 %v252
      %1460 = vmatprep.subr.mxu0 0.0
      %1461 = vmatpush1.msra.mxu0 %v253
      %1462 = vmatprep.subr.mxu0 0.0
      %1463 = vmatpush1.msra.mxu0 %v254
      %1464 = vmatprep.subr.mxu0 0.0
      %1465 = vmatpush1.msra.mxu0 %v255
      %1466 = vmatprep.subr.mxu0 0.0
      %1467 = vmatpush1.msra.mxu0 %v256
      %1468 = vmatprep.subr.mxu0 0.0
      %1469 = vmatpush1.msra.mxu0 %v257
      %1470 = vmatprep.subr.mxu0 0.0
      %1471 = vmatpush1.msra.mxu0 0.0
      %1472 = vmatprep.subr.mxu0 0.0
      %1473 = vmatpush1.msra.mxu0 0.0
      %1474 = vmatprep.subr.mxu0 0.0
      %1475 = vmatpush1.msra.mxu0 0.0
      %1476 = vmatprep.subr.mxu0 0.0
      %1477 = vmatpush1.msra.mxu0 0.0
      %1478 = vmatprep.subr.mxu0 0.0
      %1479 = vmatpush1.msra.mxu0 0.0
      %1480 = vmatprep.subr.mxu0 0.0
      %1481 = vmatpush1.msra.mxu0 0.0
      %1482 = vmatprep.subr.mxu0 0.0
      %1483 = vmatpush1.msra.mxu0 0.0
      %1484 = vmatprep.subr.mxu0 0.0
      %1485 = vmatpush1.msra.mxu0 0.0
      %1486 = vmatprep.subr.mxu0 0.0
      %1487 = vmatpush1.msra.mxu0 0.0
      %1488 = vmatprep.subr.mxu0 0.0
      %1489 = vmatpush1.msra.mxu0 0.0
      %1490 = vmatprep.subr.mxu0 0.0
      %1491 = vmatpush1.msra.mxu0 0.0
      %1492 = vmatprep.subr.mxu0 0.0
      %1493 = vmatpush1.msra.mxu0 0.0
      %1494 = vmatprep.subr.mxu0 0.0
      %1495 = vmatpush1.msra.mxu0 0.0
      %1496 = vmatprep.subr.mxu0 0.0
      %1497 = vmatpush1.msra.mxu0 0.0
      %1498 = vmatprep.subr.mxu0 0.0
      %1499 = vmatpush1.msra.mxu0 0.0
      %1500 = vmatprep.subr.mxu0 0.0
      %1501 = vmatpush1.msra.mxu0 0.0
      %1502 = vmatprep.mubr.f32.mxu0 0.0
      %1503 = vmatmul.mubr.f32.gmra.mrb[0].mxu0 %v1436
      %v1504 = vpop.f32.mrb[0].mxu0
      %v1505 = vadd.f32 0.0, %v1504
      %v1506 = vpop.f32.mrb[0].mxu0
      %1507 = vmatprep.mubr.f32.mxu0 0.0
      %1508 = vmatmul.mubr.f32.gmra.mrb[0].mxu0 %v1437
      %v1509 = vpop.f32.mrb[0].mxu0
      %v1510 = vadd.f32 0.0, %v1509
      %v1511 = vpop.f32.mrb[0].mxu0
      %1512 = vdwg.mxu0
      %v1513 = vmul.f32 %v1505, 0.0625
      %v1514 = vmul.f32 %v1510, 0.0625
      %v1515 = vld [vmem:[%s1 + $0x48] sm:$0xff]
      %v1516 = vld [vmem:[%s2] sm:$0xff]
      %1518 = vset.pattern.permute.xlu0 18
      %1519 = vperm.xlu0 %1518, %v1516
      %v1520 = vpop.permute.xlu0 %1519
      %v1523 = vsel %vm402, %v1515, 0
      %1525 = vmatprep.subr.mxu0 0.0
      %1526 = vmatpush1.msra.mxu0 %v1513
      %1527 = vmatprep.subr.mxu0 0.0
      %1528 = vmatpush1.msra.mxu0 %v1514
      %1529 = vmatprep.subr.mxu0 0.0
      %1530 = vmatpush1.msra.mxu0 0.0
      %1531 = vmatprep.subr.mxu0 0.0
      %1532 = vmatpush1.msra.mxu0 0.0
      %1533 = vmatprep.subr.mxu0 0.0
      %1534 = vmatpush1.msra.mxu0 0.0
      %1535 = vmatprep.subr.mxu0 0.0
      %1536 = vmatpush1.msra.mxu0 0.0
      %1537 = vmatprep.subr.mxu0 0.0
      %1538 = vmatpush1.msra.mxu0 0.0
      %1539 = vmatprep.subr.mxu0 0.0
      %1540 = vmatpush1.msra.mxu0 0.0
      %1541 = vmatprep.subr.mxu0 0.0
      %1542 = vmatpush1.msra.mxu0 0.0
      %1543 = vmatprep.subr.mxu0 0.0
      %1544 = vmatpush1.msra.mxu0 0.0
      %1545 = vmatprep.subr.mxu0 0.0
      %1546 = vmatpush1.msra.mxu0 0.0
      %1547 = vmatprep.subr.mxu0 0.0
      %1548 = vmatpush1.msra.mxu0 0.0
      %1549 = vmatprep.subr.mxu0 0.0
      %1550 = vmatpush1.msra.mxu0 0.0
      %1551 = vmatprep.subr.mxu0 0.0
      %1552 = vmatpush1.msra.mxu0 0.0
      %1553 = vmatprep.subr.mxu0 0.0
      %1554 = vmatpush1.msra.mxu0 0.0
      %1555 = vmatprep.subr.mxu0 0.0
      %1556 = vmatpush1.msra.mxu0 0.0
      %1557 = vmatprep.subr.mxu0 0.0
      %1558 = vmatpush1.msra.mxu0 0.0
      %1559 = vmatprep.subr.mxu0 0.0
      %1560 = vmatpush1.msra.mxu0 0.0
      %1561 = vmatprep.subr.mxu0 0.0
      %1562 = vmatpush1.msra.mxu0 0.0
      %1563 = vmatprep.subr.mxu0 0.0
      %1564 = vmatpush1.msra.mxu0 0.0
      %1565 = vmatprep.subr.mxu0 0.0
      %1566 = vmatpush1.msra.mxu0 0.0
      %1567 = vmatprep.subr.mxu0 0.0
      %1568 = vmatpush1.msra.mxu0 0.0
      %1569 = vmatprep.subr.mxu0 0.0
      %1570 = vmatpush1.msra.mxu0 0.0
      %1571 = vmatprep.subr.mxu0 0.0
      %1572 = vmatpush1.msra.mxu0 0.0
      %1573 = vmatprep.subr.mxu0 0.0
      %1574 = vmatpush1.msra.mxu0 0.0
      %1575 = vmatprep.subr.mxu0 0.0
      %1576 = vmatpush1.msra.mxu0 0.0
      %1577 = vmatprep.subr.mxu0 0.0
      %1578 = vmatpush1.msra.mxu0 0.0
      %1579 = vmatprep.subr.mxu0 0.0
      %1580 = vmatpush1.msra.mxu0 0.0
      %1581 = vmatprep.subr.mxu0 0.0
      %1582 = vmatpush1.msra.mxu0 0.0
      %1583 = vmatprep.subr.mxu0 0.0
      %1584 = vmatpush1.msra.mxu0 0.0
      %1585 = vmatprep.subr.mxu0 0.0
      %1586 = vmatpush1.msra.mxu0 0.0
      %1587 = vmatprep.subr.mxu0 0.0
      %1588 = vmatpush1.msra.mxu0 0.0
      %1589 = vmatprep.mubr.f32.mxu0 0.0
      %1590 = vmatmul.mubr.f32.gmra.mrb[0].mxu0 %v1523
      %v1591 = vpop.f32.mrb[0].mxu0
      %v1592 = vadd.f32 %v1520, %v1591
      %v1593 = vpop.f32.mrb[0].mxu0
      %1594 = vdwg.mxu0
      %v1595 = vmax.f32 %v1592, 0.0
      %v1596 = vld [vmem:[%s1 + $0x50] sm:$0xff]
      %v1597 = vld [vmem:[%s1 + $0x58] sm:$0xff]
      %1598 = vset.pattern.permute.xlu0 19
      %1599 = vperm.xlu0 %1598, %v1323
      %v1600 = vpop.permute.xlu0 %1599
      %1602 = vset.pattern.permute.xlu0 19
      %1603 = vperm.xlu0 %1602, %v1324
      %v1604 = vpop.permute.xlu0 %1603
      %vm1606 = vcmask 64512
      %v1608 = vsel %vm1606, %v1596, 0
      %v1611 = vsel %vm1606, %v1597, 0
      %1613 = vmatprep.subr.mxu0 0.0
      %1614 = vmatpush1.msra.mxu0 %v1595
      %1615 = vmatprep.subr.mxu0 0.0
      %1616 = vmatpush1.msra.mxu0 0.0
      %1617 = vmatprep.subr.mxu0 0.0
      %1618 = vmatpush1.msra.mxu0 0.0
      %1619 = vmatprep.subr.mxu0 0.0
      %1620 = vmatpush1.msra.mxu0 0.0
      %1621 = vmatprep.subr.mxu0 0.0
      %1622 = vmatpush1.msra.mxu0 0.0
      %1623 = vmatprep.subr.mxu0 0.0
      %1624 = vmatpush1.msra.mxu0 0.0
      %1625 = vmatprep.subr.mxu0 0.0
      %1626 = vmatpush1.msra.mxu0 0.0
      %1627 = vmatprep.subr.mxu0 0.0
      %1628 = vmatpush1.msra.mxu0 0.0
      %1629 = vmatprep.subr.mxu0 0.0
      %1630 = vmatpush1.msra.mxu0 0.0
      %1631 = vmatprep.subr.mxu0 0.0
      %1632 = vmatpush1.msra.mxu0 0.0
      %1633 = vmatprep.subr.mxu0 0.0
      %1634 = vmatpush1.msra.mxu0 0.0
      %1635 = vmatprep.subr.mxu0 0.0
      %1636 = vmatpush1.msra.mxu0 0.0
      %1637 = vmatprep.subr.mxu0 0.0
      %1638 = vmatpush1.msra.mxu0 0.0
      %1639 = vmatprep.subr.mxu0 0.0
      %1640 = vmatpush1.msra.mxu0 0.0
      %1641 = vmatprep.subr.mxu0 0.0
      %1642 = vmatpush1.msra.mxu0 0.0
      %1643 = vmatprep.subr.mxu0 0.0
      %1644 = vmatpush1.msra.mxu0 0.0
      %1645 = vmatprep.subr.mxu0 0.0
      %1646 = vmatpush1.msra.mxu0 0.0
      %1647 = vmatprep.subr.mxu0 0.0
      %1648 = vmatpush1.msra.mxu0 0.0
      %1649 = vmatprep.subr.mxu0 0.0
      %1650 = vmatpush1.msra.mxu0 0.0
      %1651 = vmatprep.subr.mxu0 0.0
      %1652 = vmatpush1.msra.mxu0 0.0
      %1653 = vmatprep.subr.mxu0 0.0
      %1654 = vmatpush1.msra.mxu0 0.0
      %1655 = vmatprep.subr.mxu0 0.0
      %1656 = vmatpush1.msra.mxu0 0.0
      %1657 = vmatprep.subr.mxu0 0.0
      %1658 = vmatpush1.msra.mxu0 0.0
      %1659 = vmatprep.subr.mxu0 0.0
      %1660 = vmatpush1.msra.mxu0 0.0
      %1661 = vmatprep.subr.mxu0 0.0
      %1662 = vmatpush1.msra.mxu0 0.0
      %1663 = vmatprep.subr.mxu0 0.0
      %1664 = vmatpush1.msra.mxu0 0.0
      %1665 = vmatprep.subr.mxu0 0.0
      %1666 = vmatpush1.msra.mxu0 0.0
      %1667 = vmatprep.subr.mxu0 0.0
      %1668 = vmatpush1.msra.mxu0 0.0
      %1669 = vmatprep.subr.mxu0 0.0
      %1670 = vmatpush1.msra.mxu0 0.0
      %1671 = vmatprep.subr.mxu0 0.0
      %1672 = vmatpush1.msra.mxu0 0.0
      %1673 = vmatprep.subr.mxu0 0.0
      %1674 = vmatpush1.msra.mxu0 0.0
      %1675 = vmatprep.subr.mxu0 0.0
      %1676 = vmatpush1.msra.mxu0 0.0
      %1677 = vmatprep.mubr.f32.mxu0 0.0
      %1678 = vmatmul.mubr.f32.gmra.mrb[0].mxu0 %v1608
      %v1679 = vpop.f32.mrb[0].mxu0
      %v1680 = vadd.f32 %v1600, %v1679
      %v1681 = vpop.f32.mrb[0].mxu0
      %1682 = vmatprep.mubr.f32.mxu0 0.0
      %1683 = vmatmul.mubr.f32.gmra.mrb[0].mxu0 %v1611
      %v1684 = vpop.f32.mrb[0].mxu0
      %v1685 = vadd.f32 %v1604, %v1684
      %v1686 = vpop.f32.mrb[0].mxu0
      %1687 = vdwg.mxu0
      %v1688 = vxor.u32 %v1680, 2147483648
      %v1689 = vxor.u32 %v1685, 2147483648
      %v1690 = vmul.f32 %v1688, 1.442695
      %v1691 = vpow.pop %v1690
      %v1692 = vmul.f32 %v1689, 1.442695
      %v1693 = vpow.pop %v1692
      %v1694 = vadd.f32 %v1691, 1.0
      %v1695 = vadd.f32 %v1693, 1.0
      %v1696 = vrcp.pop %v1694
      %v1697 = vmul.f32 1.0, %v1696
      %v1698 = vrcp.pop %v1695
      %v1699 = vmul.f32 1.0, %v1698
      %v1701 = vsel %vm1606, %v1697, 0
      %v1704 = vsel %vm1606, %v1699, 0
      %1706 = vmatprep.subr.mxu0 0.0
      %1707 = vmatpush1.msra.mxu0 %v264
      %1708 = vmatprep.subr.mxu0 0.0
      %1709 = vmatpush1.msra.mxu0 0.0
      %1710 = vmatprep.subr.mxu0 0.0
      %1711 = vmatpush1.msra.mxu0 0.0
      %1712 = vmatprep.subr.mxu0 0.0
      %1713 = vmatpush1.msra.mxu0 0.0
      %1714 = vmatprep.subr.mxu0 0.0
      %1715 = vmatpush1.msra.mxu0 0.0
      %1716 = vmatprep.subr.mxu0 0.0
      %1717 = vmatpush1.msra.mxu0 0.0
      %1718 = vmatprep.subr.mxu0 0.0
      %1719 = vmatpush1.msra.mxu0 0.0
      %1720 = vmatprep.subr.mxu0 0.0
      %1721 = vmatpush1.msra.mxu0 0.0
      %1722 = vmatprep.subr.mxu0 0.0
      %1723 = vmatpush1.msra.mxu0 0.0
      %1724 = vmatprep.subr.mxu0 0.0
      %1725 = vmatpush1.msra.mxu0 0.0
      %1726 = vmatprep.subr.mxu0 0.0
      %1727 = vmatpush1.msra.mxu0 0.0
      %1728 = vmatprep.subr.mxu0 0.0
      %1729 = vmatpush1.msra.mxu0 0.0
      %1730 = vmatprep.subr.mxu0 0.0
      %1731 = vmatpush1.msra.mxu0 0.0
      %1732 = vmatprep.subr.mxu0 0.0
      %1733 = vmatpush1.msra.mxu0 0.0
      %1734 = vmatprep.subr.mxu0 0.0
      %1735 = vmatpush1.msra.mxu0 0.0
      %1736 = vmatprep.subr.mxu0 0.0
      %1737 = vmatpush1.msra.mxu0 0.0
      %1738 = vmatprep.subr.mxu0 0.0
      %1739 = vmatpush1.msra.mxu0 0.0
      %1740 = vmatprep.subr.mxu0 0.0
      %1741 = vmatpush1.msra.mxu0 0.0
      %1742 = vmatprep.subr.mxu0 0.0
      %1743 = vmatpush1.msra.mxu0 0.0
      %1744 = vmatprep.subr.mxu0 0.0
      %1745 = vmatpush1.msra.mxu0 0.0
      %1746 = vmatprep.subr.mxu0 0.0
      %1747 = vmatpush1.msra.mxu0 0.0
      %1748 = vmatprep.subr.mxu0 0.0
      %1749 = vmatpush1.msra.mxu0 0.0
      %1750 = vmatprep.subr.mxu0 0.0
      %1751 = vmatpush1.msra.mxu0 0.0
      %1752 = vmatprep.subr.mxu0 0.0
      %1753 = vmatpush1.msra.mxu0 0.0
      %1754 = vmatprep.subr.mxu0 0.0
      %1755 = vmatpush1.msra.mxu0 0.0
      %1756 = vmatprep.subr.mxu0 0.0
      %1757 = vmatpush1.msra.mxu0 0.0
      %1758 = vmatprep.subr.mxu0 0.0
      %1759 = vmatpush1.msra.mxu0 0.0
      %1760 = vmatprep.subr.mxu0 0.0
      %1761 = vmatpush1.msra.mxu0 0.0
      %1762 = vmatprep.subr.mxu0 0.0
      %1763 = vmatpush1.msra.mxu0 0.0
      %1764 = vmatprep.subr.mxu0 0.0
      %1765 = vmatpush1.msra.mxu0 0.0
      %1766 = vmatprep.subr.mxu0 0.0
      %1767 = vmatpush1.msra.mxu0 0.0
      %1768 = vmatprep.subr.mxu0 0.0
      %1769 = vmatpush1.msra.mxu0 0.0
      %1770 = vmatprep.mubr.f32.mxu0 0.0
      %1771 = vmatmul.mubr.f32.gmra.mrb[0].mxu0 %v1701
      %v1772 = vpop.f32.mrb[0].mxu0
      %v1773 = vadd.f32 0.0, %v1772
      %v1774 = vpop.f32.mrb[0].mxu0
      %1775 = vmatprep.mubr.f32.mxu0 0.0
      %1776 = vmatmul.mubr.f32.gmra.mrb[0].mxu0 %v1704
      %v1777 = vpop.f32.mrb[0].mxu0
      %v1778 = vadd.f32 0.0, %v1777
      %v1779 = vpop.f32.mrb[0].mxu0
      %1780 = vdwg.mxu0
      %v1781 = vmul.f32 %v1773, %v1436
      %v1782 = vmul.f32 %v1778, %v1437
      %v1783 = vadd.f32 %v1781, %v386
      %v1784 = vadd.f32 %v1782, %v387
      %vm1785 = vcmp.eq.s32.totalorder %v173, 2
      %vm1786 = vcmp.eq.s32.totalorder %v173, 13
      %v1787 = vld [vmem:[%s1 + $0x60] sm:$0xff]
      %v1788 = vld [vmem:[%s1 + $0x68] sm:$0xff]
      %1789 = vset.pattern.permute.xlu0 20
      %1790 = vperm.xlu0 %1789, %v1323
      %v1791 = vpop.permute.xlu0 %1790
      %1793 = vset.pattern.permute.xlu0 20
      %1794 = vperm.xlu0 %1793, %v1324
      %v1795 = vpop.permute.xlu0 %1794
      %v1798 = vsel %vm402, %v1787, 0
      %v1801 = vsel %vm402, %v1788, 0
      %1803 = vmatprep.subr.mxu0 0.0
      %1804 = vmatpush1.msra.mxu0 %v1783
      %1805 = vmatprep.subr.mxu0 0.0
      %1806 = vmatpush1.msra.mxu0 %v1784
      %1807 = vmatprep.subr.mxu0 0.0
      %1808 = vmatpush1.msra.mxu0 0.0
      %1809 = vmatprep.subr.mxu0 0.0
      %1810 = vmatpush1.msra.mxu0 0.0
      %1811 = vmatprep.subr.mxu0 0.0
      %1812 = vmatpush1.msra.mxu0 0.0
      %1813 = vmatprep.subr.mxu0 0.0
      %1814 = vmatpush1.msra.mxu0 0.0
      %1815 = vmatprep.subr.mxu0 0.0
      %1816 = vmatpush1.msra.mxu0 0.0
      %1817 = vmatprep.subr.mxu0 0.0
      %1818 = vmatpush1.msra.mxu0 0.0
      %1819 = vmatprep.subr.mxu0 0.0
      %1820 = vmatpush1.msra.mxu0 0.0
      %1821 = vmatprep.subr.mxu0 0.0
      %1822 = vmatpush1.msra.mxu0 0.0
      %1823 = vmatprep.subr.mxu0 0.0
      %1824 = vmatpush1.msra.mxu0 0.0
      %1825 = vmatprep.subr.mxu0 0.0
      %1826 = vmatpush1.msra.mxu0 0.0
      %1827 = vmatprep.subr.mxu0 0.0
      %1828 = vmatpush1.msra.mxu0 0.0
      %1829 = vmatprep.subr.mxu0 0.0
      %1830 = vmatpush1.msra.mxu0 0.0
      %1831 = vmatprep.subr.mxu0 0.0
      %1832 = vmatpush1.msra.mxu0 0.0
      %1833 = vmatprep.subr.mxu0 0.0
      %1834 = vmatpush1.msra.mxu0 0.0
      %1835 = vmatprep.subr.mxu0 0.0
      %1836 = vmatpush1.msra.mxu0 0.0
      %1837 = vmatprep.subr.mxu0 0.0
      %1838 = vmatpush1.msra.mxu0 0.0
      %1839 = vmatprep.subr.mxu0 0.0
      %1840 = vmatpush1.msra.mxu0 0.0
      %1841 = vmatprep.subr.mxu0 0.0
      %1842 = vmatpush1.msra.mxu0 0.0
      %1843 = vmatprep.subr.mxu0 0.0
      %1844 = vmatpush1.msra.mxu0 0.0
      %1845 = vmatprep.subr.mxu0 0.0
      %1846 = vmatpush1.msra.mxu0 0.0
      %1847 = vmatprep.subr.mxu0 0.0
      %1848 = vmatpush1.msra.mxu0 0.0
      %1849 = vmatprep.subr.mxu0 0.0
      %1850 = vmatpush1.msra.mxu0 0.0
      %1851 = vmatprep.subr.mxu0 0.0
      %1852 = vmatpush1.msra.mxu0 0.0
      %1853 = vmatprep.subr.mxu0 0.0
      %1854 = vmatpush1.msra.mxu0 0.0
      %1855 = vmatprep.subr.mxu0 0.0
      %1856 = vmatpush1.msra.mxu0 0.0
      %1857 = vmatprep.subr.mxu0 0.0
      %1858 = vmatpush1.msra.mxu0 0.0
      %1859 = vmatprep.subr.mxu0 0.0
      %1860 = vmatpush1.msra.mxu0 0.0
      %1861 = vmatprep.subr.mxu0 0.0
      %1862 = vmatpush1.msra.mxu0 0.0
      %1863 = vmatprep.subr.mxu0 0.0
      %1864 = vmatpush1.msra.mxu0 0.0
      %1865 = vmatprep.subr.mxu0 0.0
      %1866 = vmatpush1.msra.mxu0 0.0
      %1867 = vmatprep.mubr.f32.mxu0 0.0
      %1868 = vmatmul.mubr.f32.gmra.mrb[0].mxu0 %v1798
      %v1869 = vpop.f32.mrb[0].mxu0
      %v1870 = vadd.f32 %v1791, %v1869
      %v1871 = vpop.f32.mrb[0].mxu0
      %1872 = vmatprep.mubr.f32.mxu0 0.0
      %1873 = vmatmul.mubr.f32.gmra.mrb[0].mxu0 %v1801
      %v1874 = vpop.f32.mrb[0].mxu0
      %v1875 = vadd.f32 %v1795, %v1874
      %v1876 = vpop.f32.mrb[0].mxu0
      %1877 = vdwg.mxu0
      %v1878 = vmax.f32 %v1870, 0.0
      %v1879 = vmax.f32 %v1875, 0.0
      %1880 = vset.pattern.permute.xlu0 21
      %1881 = vperm.xlu0 %1880, %v1323
      %v1882 = vpop.permute.xlu0 %1881
      %1884 = vset.pattern.permute.xlu0 21
      %1885 = vperm.xlu0 %1884, %v1324
      %v1886 = vpop.permute.xlu0 %1885
      %v1888 = vmul.f32 %v1878, %v1882
      %v1889 = vmul.f32 %v1879, %v1886
      %1890 = vset.pattern.permute.xlu0 22
      %1891 = vperm.xlu0 %1890, %v1323
      %v1892 = vpop.permute.xlu0 %1891
      %1894 = vset.pattern.permute.xlu0 22
      %1895 = vperm.xlu0 %1894, %v1324
      %v1896 = vpop.permute.xlu0 %1895
      %v1898 = vadd.f32 %v1888, %v1892
      %v1899 = vadd.f32 %v1889, %v1896
      %1900 = vst [vmem:[#allocation2] sm:$0xf] %v1898
      %v1902 = vrot.slane %v1898, 4
      %1904 = vrot.lane.b32.xlu0 %v1902, 3
      %v1905 = vpop.permute.xlu0 %1904
      %1906 = vrot.lane.b32.xlu0 %v1902, 125
      %v1907 = vpop.permute.xlu0 %1906
      %v1908 = vsel %vm515, %v1907, %v1905
      %v1909 = vsel %vm518, %v1905, %v1907
      %1910 = vrot.lane.b32.xlu0 %v1902, 127
      %v1911 = vpop.permute.xlu0 %1910
      %v1912 = vsel %vm521, %v1911, %v1908
      %1913 = vrot.lane.b32.xlu0 %v1902, 1
      %v1914 = vpop.permute.xlu0 %1913
      %v1915 = vsel %vm527, %v1914, %v1909
      %v1916 = vsel %vm1785, 1, 0
      %vm1917 = vcmp.eq.s32.totalorder %v1916, 1
      %v1918 = vsel %vm1917, %v1914, %v1912
      %v1919 = vsel %vm1786, 1, 0
      %vm1920 = vcmp.eq.s32.totalorder %v1919, 1
      %v1921 = vsel %vm1920, %v1911, %v1915
      %v1922 = vld [vmem:[%s1 + $0x70] sm:$0xf]
      %1924 = vrot.lane.b32.xlu0 %v1922, 124
      %v1925 = vpop.permute.xlu0 %1924
      %v1926 = vsel %vm536, %v1925, 0
      %v1928 = vsel %vm539, %v1902, 0
      %1930 = vmatprep.subr.mxu0 0.0
      %1931 = vmatpush1.msra.mxu0 %v1928
      %1932 = vmatprep.subr.mxu0 0.0
      %1933 = vmatpush1.msra.mxu0 0.0
      %1934 = vmatprep.subr.mxu0 0.0
      %1935 = vmatpush1.msra.mxu0 0.0
      %1936 = vmatprep.subr.mxu0 0.0
      %1937 = vmatpush1.msra.mxu0 0.0
      %1938 = vmatprep.subr.mxu0 0.0
      %1939 = vmatpush1.msra.mxu0 0.0
      %1940 = vmatprep.subr.mxu0 0.0
      %1941 = vmatpush1.msra.mxu0 0.0
      %1942 = vmatprep.subr.mxu0 0.0
      %1943 = vmatpush1.msra.mxu0 0.0
      %1944 = vmatprep.subr.mxu0 0.0
      %1945 = vmatpush1.msra.mxu0 0.0
      %1946 = vmatprep.subr.mxu0 0.0
      %1947 = vmatpush1.msra.mxu0 0.0
      %1948 = vmatprep.subr.mxu0 0.0
      %1949 = vmatpush1.msra.mxu0 0.0
      %1950 = vmatprep.subr.mxu0 0.0
      %1951 = vmatpush1.msra.mxu0 0.0
      %1952 = vmatprep.subr.mxu0 0.0
      %1953 = vmatpush1.msra.mxu0 0.0
      %1954 = vmatprep.subr.mxu0 0.0
      %1955 = vmatpush1.msra.mxu0 0.0
      %1956 = vmatprep.subr.mxu0 0.0
      %1957 = vmatpush1.msra.mxu0 0.0
      %1958 = vmatprep.subr.mxu0 0.0
      %1959 = vmatpush1.msra.mxu0 0.0
      %1960 = vmatprep.subr.mxu0 0.0
      %1961 = vmatpush1.msra.mxu0 0.0
      %1962 = vmatprep.subr.mxu0 0.0
      %1963 = vmatpush1.msra.mxu0 0.0
      %1964 = vmatprep.subr.mxu0 0.0
      %1965 = vmatpush1.msra.mxu0 0.0
      %1966 = vmatprep.subr.mxu0 0.0
      %1967 = vmatpush1.msra.mxu0 0.0
      %1968 = vmatprep.subr.mxu0 0.0
      %1969 = vmatpush1.msra.mxu0 0.0
      %1970 = vmatprep.subr.mxu0 0.0
      %1971 = vmatpush1.msra.mxu0 0.0
      %1972 = vmatprep.subr.mxu0 0.0
      %1973 = vmatpush1.msra.mxu0 0.0
      %1974 = vmatprep.subr.mxu0 0.0
      %1975 = vmatpush1.msra.mxu0 0.0
      %1976 = vmatprep.subr.mxu0 0.0
      %1977 = vmatpush1.msra.mxu0 0.0
      %1978 = vmatprep.subr.mxu0 0.0
      %1979 = vmatpush1.msra.mxu0 0.0
      %1980 = vmatprep.subr.mxu0 0.0
      %1981 = vmatpush1.msra.mxu0 0.0
      %1982 = vmatprep.subr.mxu0 0.0
      %1983 = vmatpush1.msra.mxu0 0.0
      %1984 = vmatprep.subr.mxu0 0.0
      %1985 = vmatpush1.msra.mxu0 0.0
      %1986 = vmatprep.subr.mxu0 0.0
      %1987 = vmatpush1.msra.mxu0 0.0
      %1988 = vmatprep.subr.mxu0 0.0
      %1989 = vmatpush1.msra.mxu0 0.0
      %1990 = vmatprep.subr.mxu0 0.0
      %1991 = vmatpush1.msra.mxu0 0.0
      %1992 = vmatprep.subr.mxu0 0.0
      %1993 = vmatpush1.msra.mxu0 0.0
      %1994 = vmatprep.mubr.f32.mxu0 0.0
      %1995 = vmatmul.mubr.f32.gmra.mrb[0].mxu0 %v1926
      %v1996 = vpop.f32.mrb[0].mxu0
      %v1997 = vadd.f32 0.0, %v1996
      %v1998 = vpop.f32.mrb[0].mxu0
      %1999 = vdwg.mxu0
      %v2000 = vsel %vm536, %v1922, 0
      %v2003 = vsel %vm539, %v1918, 0
      %2005 = vmatprep.subr.mxu0 0.0
      %2006 = vmatpush1.msra.mxu0 %v2003
      %2007 = vmatprep.subr.mxu0 0.0
      %2008 = vmatpush1.msra.mxu0 0.0
      %2009 = vmatprep.subr.mxu0 0.0
      %2010 = vmatpush1.msra.mxu0 0.0
      %2011 = vmatprep.subr.mxu0 0.0
      %2012 = vmatpush1.msra.mxu0 0.0
      %2013 = vmatprep.subr.mxu0 0.0
      %2014 = vmatpush1.msra.mxu0 0.0
      %2015 = vmatprep.subr.mxu0 0.0
      %2016 = vmatpush1.msra.mxu0 0.0
      %2017 = vmatprep.subr.mxu0 0.0
      %2018 = vmatpush1.msra.mxu0 0.0
      %2019 = vmatprep.subr.mxu0 0.0
      %2020 = vmatpush1.msra.mxu0 0.0
      %2021 = vmatprep.subr.mxu0 0.0
      %2022 = vmatpush1.msra.mxu0 0.0
      %2023 = vmatprep.subr.mxu0 0.0
      %2024 = vmatpush1.msra.mxu0 0.0
      %2025 = vmatprep.subr.mxu0 0.0
      %2026 = vmatpush1.msra.mxu0 0.0
      %2027 = vmatprep.subr.mxu0 0.0
      %2028 = vmatpush1.msra.mxu0 0.0
      %2029 = vmatprep.subr.mxu0 0.0
      %2030 = vmatpush1.msra.mxu0 0.0
      %2031 = vmatprep.subr.mxu0 0.0
      %2032 = vmatpush1.msra.mxu0 0.0
      %2033 = vmatprep.subr.mxu0 0.0
      %2034 = vmatpush1.msra.mxu0 0.0
      %2035 = vmatprep.subr.mxu0 0.0
      %2036 = vmatpush1.msra.mxu0 0.0
      %2037 = vmatprep.subr.mxu0 0.0
      %2038 = vmatpush1.msra.mxu0 0.0
      %2039 = vmatprep.subr.mxu0 0.0
      %2040 = vmatpush1.msra.mxu0 0.0
      %2041 = vmatprep.subr.mxu0 0.0
      %2042 = vmatpush1.msra.mxu0 0.0
      %2043 = vmatprep.subr.mxu0 0.0
      %2044 = vmatpush1.msra.mxu0 0.0
      %2045 = vmatprep.subr.mxu0 0.0
      %2046 = vmatpush1.msra.mxu0 0.0
      %2047 = vmatprep.subr.mxu0 0.0
      %2048 = vmatpush1.msra.mxu0 0.0
      %2049 = vmatprep.subr.mxu0 0.0
      %2050 = vmatpush1.msra.mxu0 0.0
      %2051 = vmatprep.subr.mxu0 0.0
      %2052 = vmatpush1.msra.mxu0 0.0
      %2053 = vmatprep.subr.mxu0 0.0
      %2054 = vmatpush1.msra.mxu0 0.0
      %2055 = vmatprep.subr.mxu0 0.0
      %2056 = vmatpush1.msra.mxu0 0.0
      %2057 = vmatprep.subr.mxu0 0.0
      %2058 = vmatpush1.msra.mxu0 0.0
      %2059 = vmatprep.subr.mxu0 0.0
      %2060 = vmatpush1.msra.mxu0 0.0
      %2061 = vmatprep.subr.mxu0 0.0
      %2062 = vmatpush1.msra.mxu0 0.0
      %2063 = vmatprep.subr.mxu0 0.0
      %2064 = vmatpush1.msra.mxu0 0.0
      %2065 = vmatprep.subr.mxu0 0.0
      %2066 = vmatpush1.msra.mxu0 0.0
      %2067 = vmatprep.subr.mxu0 0.0
      %2068 = vmatpush1.msra.mxu0 0.0
      %2069 = vmatprep.mubr.f32.mxu0 0.0
      %2070 = vmatmul.mubr.f32.gmra.mrb[0].mxu0 %v2000
      %v2071 = vpop.f32.mrb[0].mxu0
      %v2072 = vadd.f32 %v1997, %v2071
      %v2073 = vpop.f32.mrb[0].mxu0
      %2074 = vdwg.mxu0
      %2075 = vrot.lane.b32.xlu0 %v1922, 120
      %v2076 = vpop.permute.xlu0 %2075
      %v2077 = vsel %vm536, %v2076, 0
      %v2080 = vsel %vm539, %v1921, 0
      %2082 = vmatprep.subr.mxu0 0.0
      %2083 = vmatpush1.msra.mxu0 %v2080
      %2084 = vmatprep.subr.mxu0 0.0
      %2085 = vmatpush1.msra.mxu0 0.0
      %2086 = vmatprep.subr.mxu0 0.0
      %2087 = vmatpush1.msra.mxu0 0.0
      %2088 = vmatprep.subr.mxu0 0.0
      %2089 = vmatpush1.msra.mxu0 0.0
      %2090 = vmatprep.subr.mxu0 0.0
      %2091 = vmatpush1.msra.mxu0 0.0
      %2092 = vmatprep.subr.mxu0 0.0
      %2093 = vmatpush1.msra.mxu0 0.0
      %2094 = vmatprep.subr.mxu0 0.0
      %2095 = vmatpush1.msra.mxu0 0.0
      %2096 = vmatprep.subr.mxu0 0.0
      %2097 = vmatpush1.msra.mxu0 0.0
      %2098 = vmatprep.subr.mxu0 0.0
      %2099 = vmatpush1.msra.mxu0 0.0
      %2100 = vmatprep.subr.mxu0 0.0
      %2101 = vmatpush1.msra.mxu0 0.0
      %2102 = vmatprep.subr.mxu0 0.0
      %2103 = vmatpush1.msra.mxu0 0.0
      %2104 = vmatprep.subr.mxu0 0.0
      %2105 = vmatpush1.msra.mxu0 0.0
      %2106 = vmatprep.subr.mxu0 0.0
      %2107 = vmatpush1.msra.mxu0 0.0
      %2108 = vmatprep.subr.mxu0 0.0
      %2109 = vmatpush1.msra.mxu0 0.0
      %2110 = vmatprep.subr.mxu0 0.0
      %2111 = vmatpush1.msra.mxu0 0.0
      %2112 = vmatprep.subr.mxu0 0.0
      %2113 = vmatpush1.msra.mxu0 0.0
      %2114 = vmatprep.subr.mxu0 0.0
      %2115 = vmatpush1.msra.mxu0 0.0
      %2116 = vmatprep.subr.mxu0 0.0
      %2117 = vmatpush1.msra.mxu0 0.0
      %2118 = vmatprep.subr.mxu0 0.0
      %2119 = vmatpush1.msra.mxu0 0.0
      %2120 = vmatprep.subr.mxu0 0.0
      %2121 = vmatpush1.msra.mxu0 0.0
      %2122 = vmatprep.subr.mxu0 0.0
      %2123 = vmatpush1.msra.mxu0 0.0
      %2124 = vmatprep.subr.mxu0 0.0
      %2125 = vmatpush1.msra.mxu0 0.0
      %2126 = vmatprep.subr.mxu0 0.0
      %2127 = vmatpush1.msra.mxu0 0.0
      %2128 = vmatprep.subr.mxu0 0.0
      %2129 = vmatpush1.msra.mxu0 0.0
      %2130 = vmatprep.subr.mxu0 0.0
      %2131 = vmatpush1.msra.mxu0 0.0
      %2132 = vmatprep.subr.mxu0 0.0
      %2133 = vmatpush1.msra.mxu0 0.0
      %2134 = vmatprep.subr.mxu0 0.0
      %2135 = vmatpush1.msra.mxu0 0.0
      %2136 = vmatprep.subr.mxu0 0.0
      %2137 = vmatpush1.msra.mxu0 0.0
      %2138 = vmatprep.subr.mxu0 0.0
      %2139 = vmatpush1.msra.mxu0 0.0
      %2140 = vmatprep.subr.mxu0 0.0
      %2141 = vmatpush1.msra.mxu0 0.0
      %2142 = vmatprep.subr.mxu0 0.0
      %2143 = vmatpush1.msra.mxu0 0.0
      %2144 = vmatprep.subr.mxu0 0.0
      %2145 = vmatpush1.msra.mxu0 0.0
      %2146 = vmatprep.mubr.f32.mxu0 0.0
      %2147 = vmatmul.mubr.f32.gmra.mrb[0].mxu0 %v2077
      %v2148 = vpop.f32.mrb[0].mxu0
      %v2149 = vadd.f32 0.0, %v2148
      %v2150 = vpop.f32.mrb[0].mxu0
      %2151 = vdwg.mxu0
      %v2152 = vadd.f32 %v2072, %v2149
      %v2153 = vld [vmem:[%s2] sm:$0xf]
      %2155 = vset.pattern.permute.xlu0 23
      %2156 = vperm.xlu0 %2155, %v2153
      %v2157 = vpop.permute.xlu0 %2156
      %v2159 = vadd.f32 %v2152, %v2157
      %v2160 = vmax.f32 %v2159, 0.0
      %2161 = vset.pattern.permute.xlu0 24
      %2162 = vperm.xlu0 %2161, %v2153
      %v2163 = vpop.permute.xlu0 %2162
      %v2165 = vmul.f32 %v2160, %v2163
      %2166 = vset.pattern.permute.xlu0 25
      %2167 = vperm.xlu0 %2166, %v2153
      %v2168 = vpop.permute.xlu0 %2167
      %v2170 = vadd.f32 %v2165, %v2168
      %2171 = vst [vmem:[#allocation2 + $0x4] sm:$0xf] %v2170
      %v2172 = vadd.f32 %v1899, %v2170
      %2173 = vrot.lane.b32.xlu0 %v2172, 3
      %v2174 = vpop.permute.xlu0 %2173
      %2175 = vrot.lane.b32.xlu0 %v2172, 125
      %v2176 = vpop.permute.xlu0 %2175
      %v2177 = vsel %vm515, %v2176, %v2174
      %v2178 = vsel %vm518, %v2174, %v2176
      %2179 = vrot.lane.b32.xlu0 %v2172, 127
      %v2180 = vpop.permute.xlu0 %2179
      %v2181 = vsel %vm521, %v2180, %v2177
      %2182 = vrot.lane.b32.xlu0 %v2172, 1
      %v2183 = vpop.permute.xlu0 %2182
      %v2184 = vsel %vm527, %v2183, %v2178
      %v2185 = vsel %vm1917, %v2183, %v2181
      %v2186 = vsel %vm1920, %v2180, %v2184
      %v2187 = vld [vmem:[%s1 + $0x78] sm:$0xf]
      %2189 = vrot.lane.b32.xlu0 %v2187, 124
      %v2190 = vpop.permute.xlu0 %2189
      %v2191 = vsel %vm536, %v2190, 0
      %v2194 = vsel %vm539, %v2172, 0
      %2196 = vmatprep.subr.mxu0 0.0
      %2197 = vmatpush1.msra.mxu0 %v2194
      %2198 = vmatprep.subr.mxu0 0.0
      %2199 = vmatpush1.msra.mxu0 0.0
      %2200 = vmatprep.subr.mxu0 0.0
      %2201 = vmatpush1.msra.mxu0 0.0
      %2202 = vmatprep.subr.mxu0 0.0
      %2203 = vmatpush1.msra.mxu0 0.0
      %2204 = vmatprep.subr.mxu0 0.0
      %2205 = vmatpush1.msra.mxu0 0.0
      %2206 = vmatprep.subr.mxu0 0.0
      %2207 = vmatpush1.msra.mxu0 0.0
      %2208 = vmatprep.subr.mxu0 0.0
      %2209 = vmatpush1.msra.mxu0 0.0
      %2210 = vmatprep.subr.mxu0 0.0
      %2211 = vmatpush1.msra.mxu0 0.0
      %2212 = vmatprep.subr.mxu0 0.0
      %2213 = vmatpush1.msra.mxu0 0.0
      %2214 = vmatprep.subr.mxu0 0.0
      %2215 = vmatpush1.msra.mxu0 0.0
      %2216 = vmatprep.subr.mxu0 0.0
      %2217 = vmatpush1.msra.mxu0 0.0
      %2218 = vmatprep.subr.mxu0 0.0
      %2219 = vmatpush1.msra.mxu0 0.0
      %2220 = vmatprep.subr.mxu0 0.0
      %2221 = vmatpush1.msra.mxu0 0.0
      %2222 = vmatprep.subr.mxu0 0.0
      %2223 = vmatpush1.msra.mxu0 0.0
      %2224 = vmatprep.subr.mxu0 0.0
      %2225 = vmatpush1.msra.mxu0 0.0
      %2226 = vmatprep.subr.mxu0 0.0
      %2227 = vmatpush1.msra.mxu0 0.0
      %2228 = vmatprep.subr.mxu0 0.0
      %2229 = vmatpush1.msra.mxu0 0.0
      %2230 = vmatprep.subr.mxu0 0.0
      %2231 = vmatpush1.msra.mxu0 0.0
      %2232 = vmatprep.subr.mxu0 0.0
      %2233 = vmatpush1.msra.mxu0 0.0
      %2234 = vmatprep.subr.mxu0 0.0
      %2235 = vmatpush1.msra.mxu0 0.0
      %2236 = vmatprep.subr.mxu0 0.0
      %2237 = vmatpush1.msra.mxu0 0.0
      %2238 = vmatprep.subr.mxu0 0.0
      %2239 = vmatpush1.msra.mxu0 0.0
      %2240 = vmatprep.subr.mxu0 0.0
      %2241 = vmatpush1.msra.mxu0 0.0
      %2242 = vmatprep.subr.mxu0 0.0
      %2243 = vmatpush1.msra.mxu0 0.0
      %2244 = vmatprep.subr.mxu0 0.0
      %2245 = vmatpush1.msra.mxu0 0.0
      %2246 = vmatprep.subr.mxu0 0.0
      %2247 = vmatpush1.msra.mxu0 0.0
      %2248 = vmatprep.subr.mxu0 0.0
      %2249 = vmatpush1.msra.mxu0 0.0
      %2250 = vmatprep.subr.mxu0 0.0
      %2251 = vmatpush1.msra.mxu0 0.0
      %2252 = vmatprep.subr.mxu0 0.0
      %2253 = vmatpush1.msra.mxu0 0.0
      %2254 = vmatprep.subr.mxu0 0.0
      %2255 = vmatpush1.msra.mxu0 0.0
      %2256 = vmatprep.subr.mxu0 0.0
      %2257 = vmatpush1.msra.mxu0 0.0
      %2258 = vmatprep.subr.mxu0 0.0
      %2259 = vmatpush1.msra.mxu0 0.0
      %2260 = vmatprep.mubr.f32.mxu0 0.0
      %2261 = vmatmul.mubr.f32.gmra.mrb[0].mxu0 %v2191
      %v2262 = vpop.f32.mrb[0].mxu0
      %v2263 = vadd.f32 0.0, %v2262
      %v2264 = vpop.f32.mrb[0].mxu0
      %2265 = vdwg.mxu0
      %v2266 = vsel %vm536, %v2187, 0
      %v2269 = vsel %vm539, %v2185, 0
      %2271 = vmatprep.subr.mxu0 0.0
      %2272 = vmatpush1.msra.mxu0 %v2269
      %2273 = vmatprep.subr.mxu0 0.0
      %2274 = vmatpush1.msra.mxu0 0.0
      %2275 = vmatprep.subr.mxu0 0.0
      %2276 = vmatpush1.msra.mxu0 0.0
      %2277 = vmatprep.subr.mxu0 0.0
      %2278 = vmatpush1.msra.mxu0 0.0
      %2279 = vmatprep.subr.mxu0 0.0
      %2280 = vmatpush1.msra.mxu0 0.0
      %2281 = vmatprep.subr.mxu0 0.0
      %2282 = vmatpush1.msra.mxu0 0.0
      %2283 = vmatprep.subr.mxu0 0.0
      %2284 = vmatpush1.msra.mxu0 0.0
      %2285 = vmatprep.subr.mxu0 0.0
      %2286 = vmatpush1.msra.mxu0 0.0
      %2287 = vmatprep.subr.mxu0 0.0
      %2288 = vmatpush1.msra.mxu0 0.0
      %2289 = vmatprep.subr.mxu0 0.0
      %2290 = vmatpush1.msra.mxu0 0.0
      %2291 = vmatprep.subr.mxu0 0.0
      %2292 = vmatpush1.msra.mxu0 0.0
      %2293 = vmatprep.subr.mxu0 0.0
      %2294 = vmatpush1.msra.mxu0 0.0
      %2295 = vmatprep.subr.mxu0 0.0
      %2296 = vmatpush1.msra.mxu0 0.0
      %2297 = vmatprep.subr.mxu0 0.0
      %2298 = vmatpush1.msra.mxu0 0.0
      %2299 = vmatprep.subr.mxu0 0.0
      %2300 = vmatpush1.msra.mxu0 0.0
      %2301 = vmatprep.subr.mxu0 0.0
      %2302 = vmatpush1.msra.mxu0 0.0
      %2303 = vmatprep.subr.mxu0 0.0
      %2304 = vmatpush1.msra.mxu0 0.0
      %2305 = vmatprep.subr.mxu0 0.0
      %2306 = vmatpush1.msra.mxu0 0.0
      %2307 = vmatprep.subr.mxu0 0.0
      %2308 = vmatpush1.msra.mxu0 0.0
      %2309 = vmatprep.subr.mxu0 0.0
      %2310 = vmatpush1.msra.mxu0 0.0
      %2311 = vmatprep.subr.mxu0 0.0
      %2312 = vmatpush1.msra.mxu0 0.0
      %2313 = vmatprep.subr.mxu0 0.0
      %2314 = vmatpush1.msra.mxu0 0.0
      %2315 = vmatprep.subr.mxu0 0.0
      %2316 = vmatpush1.msra.mxu0 0.0
      %2317 = vmatprep.subr.mxu0 0.0
      %2318 = vmatpush1.msra.mxu0 0.0
      %2319 = vmatprep.subr.mxu0 0.0
      %2320 = vmatpush1.msra.mxu0 0.0
      %2321 = vmatprep.subr.mxu0 0.0
      %2322 = vmatpush1.msra.mxu0 0.0
      %2323 = vmatprep.subr.mxu0 0.0
      %2324 = vmatpush1.msra.mxu0 0.0
      %2325 = vmatprep.subr.mxu0 0.0
      %2326 = vmatpush1.msra.mxu0 0.0
      %2327 = vmatprep.subr.mxu0 0.0
      %2328 = vmatpush1.msra.mxu0 0.0
      %2329 = vmatprep.subr.mxu0 0.0
      %2330 = vmatpush1.msra.mxu0 0.0
      %2331 = vmatprep.subr.mxu0 0.0
      %2332 = vmatpush1.msra.mxu0 0.0
      %2333 = vmatprep.subr.mxu0 0.0
      %2334 = vmatpush1.msra.mxu0 0.0
      %2335 = vmatprep.mubr.f32.mxu0 0.0
      %2336 = vmatmul.mubr.f32.gmra.mrb[0].mxu0 %v2266
      %v2337 = vpop.f32.mrb[0].mxu0
      %v2338 = vadd.f32 %v2263, %v2337
      %v2339 = vpop.f32.mrb[0].mxu0
      %2340 = vdwg.mxu0
      %2341 = vrot.lane.b32.xlu0 %v2187, 120
      %v2342 = vpop.permute.xlu0 %2341
      %v2343 = vsel %vm536, %v2342, 0
      %v2346 = vsel %vm539, %v2186, 0
      %2348 = vmatprep.subr.mxu0 0.0
      %2349 = vmatpush1.msra.mxu0 %v2346
      %2350 = vmatprep.subr.mxu0 0.0
      %2351 = vmatpush1.msra.mxu0 0.0
      %2352 = vmatprep.subr.mxu0 0.0
      %2353 = vmatpush1.msra.mxu0 0.0
      %2354 = vmatprep.subr.mxu0 0.0
      %2355 = vmatpush1.msra.mxu0 0.0
      %2356 = vmatprep.subr.mxu0 0.0
      %2357 = vmatpush1.msra.mxu0 0.0
      %2358 = vmatprep.subr.mxu0 0.0
      %2359 = vmatpush1.msra.mxu0 0.0
      %2360 = vmatprep.subr.mxu0 0.0
      %2361 = vmatpush1.msra.mxu0 0.0
      %2362 = vmatprep.subr.mxu0 0.0
      %2363 = vmatpush1.msra.mxu0 0.0
      %2364 = vmatprep.subr.mxu0 0.0
      %2365 = vmatpush1.msra.mxu0 0.0
      %2366 = vmatprep.subr.mxu0 0.0
      %2367 = vmatpush1.msra.mxu0 0.0
      %2368 = vmatprep.subr.mxu0 0.0
      %2369 = vmatpush1.msra.mxu0 0.0
      %2370 = vmatprep.subr.mxu0 0.0
      %2371 = vmatpush1.msra.mxu0 0.0
      %2372 = vmatprep.subr.mxu0 0.0
      %2373 = vmatpush1.msra.mxu0 0.0
      %2374 = vmatprep.subr.mxu0 0.0
      %2375 = vmatpush1.msra.mxu0 0.0
      %2376 = vmatprep.subr.mxu0 0.0
      %2377 = vmatpush1.msra.mxu0 0.0
      %2378 = vmatprep.subr.mxu0 0.0
      %2379 = vmatpush1.msra.mxu0 0.0
      %2380 = vmatprep.subr.mxu0 0.0
      %2381 = vmatpush1.msra.mxu0 0.0
      %2382 = vmatprep.subr.mxu0 0.0
      %2383 = vmatpush1.msra.mxu0 0.0
      %2384 = vmatprep.subr.mxu0 0.0
      %2385 = vmatpush1.msra.mxu0 0.0
      %2386 = vmatprep.subr.mxu0 0.0
      %2387 = vmatpush1.msra.mxu0 0.0
      %2388 = vmatprep.subr.mxu0 0.0
      %2389 = vmatpush1.msra.mxu0 0.0
      %2390 = vmatprep.subr.mxu0 0.0
      %2391 = vmatpush1.msra.mxu0 0.0
      %2392 = vmatprep.subr.mxu0 0.0
      %2393 = vmatpush1.msra.mxu0 0.0
      %2394 = vmatprep.subr.mxu0 0.0
      %2395 = vmatpush1.msra.mxu0 0.0
      %2396 = vmatprep.subr.mxu0 0.0
      %2397 = vmatpush1.msra.mxu0 0.0
      %2398 = vmatprep.subr.mxu0 0.0
      %2399 = vmatpush1.msra.mxu0 0.0
      %2400 = vmatprep.subr.mxu0 0.0
      %2401 = vmatpush1.msra.mxu0 0.0
      %2402 = vmatprep.subr.mxu0 0.0
      %2403 = vmatpush1.msra.mxu0 0.0
      %2404 = vmatprep.subr.mxu0 0.0
      %2405 = vmatpush1.msra.mxu0 0.0
      %2406 = vmatprep.subr.mxu0 0.0
      %2407 = vmatpush1.msra.mxu0 0.0
      %2408 = vmatprep.subr.mxu0 0.0
      %2409 = vmatpush1.msra.mxu0 0.0
      %2410 = vmatprep.subr.mxu0 0.0
      %2411 = vmatpush1.msra.mxu0 0.0
      %2412 = vmatprep.mubr.f32.mxu0 0.0
      %2413 = vmatmul.mubr.f32.gmra.mrb[0].mxu0 %v2343
      %v2414 = vpop.f32.mrb[0].mxu0
      %v2415 = vadd.f32 0.0, %v2414
      %v2416 = vpop.f32.mrb[0].mxu0
      %2417 = vdwg.mxu0
      %v2418 = vadd.f32 %v2338, %v2415
      %v2419 = vld [vmem:[%s2] sm:$0xf]
      %2421 = vset.pattern.permute.xlu0 26
      %2422 = vperm.xlu0 %2421, %v2419
      %v2423 = vpop.permute.xlu0 %2422
      %v2425 = vadd.f32 %v2418, %v2423
      %v2426 = vmax.f32 %v2425, 0.0
      %2427 = vset.pattern.permute.xlu0 27
      %2428 = vperm.xlu0 %2427, %v2419
      %v2429 = vpop.permute.xlu0 %2428
      %v2431 = vmul.f32 %v2426, %v2429
      %2432 = vset.pattern.permute.xlu0 28
      %2433 = vperm.xlu0 %2432, %v2419
      %v2434 = vpop.permute.xlu0 %2433
      %v2436 = vadd.f32 %v2431, %v2434
      %2437 = vst [vmem:[#allocation2 + $0x8] sm:$0xf] %v2436
      %v2439 = vrot.slane %v2436, 4
      %v2441 = vadd.f32 %v1899, %v2439
      %v2443 = vrot.slane %v2441, 4
      %2445 = vrot.lane.b32.xlu0 %v2443, 3
      %v2446 = vpop.permute.xlu0 %2445
      %2447 = vrot.lane.b32.xlu0 %v2443, 125
      %v2448 = vpop.permute.xlu0 %2447
      %v2449 = vsel %vm515, %v2448, %v2446
      %v2450 = vsel %vm518, %v2446, %v2448
      %2451 = vrot.lane.b32.xlu0 %v2443, 127
      %v2452 = vpop.permute.xlu0 %2451
      %v2453 = vsel %vm521, %v2452, %v2449
      %2454 = vrot.lane.b32.xlu0 %v2443, 1
      %v2455 = vpop.permute.xlu0 %2454
      %v2456 = vsel %vm527, %v2455, %v2450
      %v2457 = vsel %vm1917, %v2455, %v2453
      %v2458 = vsel %vm1920, %v2452, %v2456
      %v2459 = vld [vmem:[%s1 + $0x80] sm:$0xf]
      %2461 = vrot.lane.b32.xlu0 %v2459, 124
      %v2462 = vpop.permute.xlu0 %2461
      %v2463 = vsel %vm536, %v2462, 0
      %v2465 = vsel %vm539, %v2443, 0
      %2467 = vmatprep.subr.mxu0 0.0
      %2468 = vmatpush1.msra.mxu0 %v2465
      %2469 = vmatprep.subr.mxu0 0.0
      %2470 = vmatpush1.msra.mxu0 0.0
      %2471 = vmatprep.subr.mxu0 0.0
      %2472 = vmatpush1.msra.mxu0 0.0
      %2473 = vmatprep.subr.mxu0 0.0
      %2474 = vmatpush1.msra.mxu0 0.0
      %2475 = vmatprep.subr.mxu0 0.0
      %2476 = vmatpush1.msra.mxu0 0.0
      %2477 = vmatprep.subr.mxu0 0.0
      %2478 = vmatpush1.msra.mxu0 0.0
      %2479 = vmatprep.subr.mxu0 0.0
      %2480 = vmatpush1.msra.mxu0 0.0
      %2481 = vmatprep.subr.mxu0 0.0
      %2482 = vmatpush1.msra.mxu0 0.0
      %2483 = vmatprep.subr.mxu0 0.0
      %2484 = vmatpush1.msra.mxu0 0.0
      %2485 = vmatprep.subr.mxu0 0.0
      %2486 = vmatpush1.msra.mxu0 0.0
      %2487 = vmatprep.subr.mxu0 0.0
      %2488 = vmatpush1.msra.mxu0 0.0
      %2489 = vmatprep.subr.mxu0 0.0
      %2490 = vmatpush1.msra.mxu0 0.0
      %2491 = vmatprep.subr.mxu0 0.0
      %2492 = vmatpush1.msra.mxu0 0.0
      %2493 = vmatprep.subr.mxu0 0.0
      %2494 = vmatpush1.msra.mxu0 0.0
      %2495 = vmatprep.subr.mxu0 0.0
      %2496 = vmatpush1.msra.mxu0 0.0
      %2497 = vmatprep.subr.mxu0 0.0
      %2498 = vmatpush1.msra.mxu0 0.0
      %2499 = vmatprep.subr.mxu0 0.0
      %2500 = vmatpush1.msra.mxu0 0.0
      %2501 = vmatprep.subr.mxu0 0.0
      %2502 = vmatpush1.msra.mxu0 0.0
      %2503 = vmatprep.subr.mxu0 0.0
      %2504 = vmatpush1.msra.mxu0 0.0
      %2505 = vmatprep.subr.mxu0 0.0
      %2506 = vmatpush1.msra.mxu0 0.0
      %2507 = vmatprep.subr.mxu0 0.0
      %2508 = vmatpush1.msra.mxu0 0.0
      %2509 = vmatprep.subr.mxu0 0.0
      %2510 = vmatpush1.msra.mxu0 0.0
      %2511 = vmatprep.subr.mxu0 0.0
      %2512 = vmatpush1.msra.mxu0 0.0
      %2513 = vmatprep.subr.mxu0 0.0
      %2514 = vmatpush1.msra.mxu0 0.0
      %2515 = vmatprep.subr.mxu0 0.0
      %2516 = vmatpush1.msra.mxu0 0.0
      %2517 = vmatprep.subr.mxu0 0.0
      %2518 = vmatpush1.msra.mxu0 0.0
      %2519 = vmatprep.subr.mxu0 0.0
      %2520 = vmatpush1.msra.mxu0 0.0
      %2521 = vmatprep.subr.mxu0 0.0
      %2522 = vmatpush1.msra.mxu0 0.0
      %2523 = vmatprep.subr.mxu0 0.0
      %2524 = vmatpush1.msra.mxu0 0.0
      %2525 = vmatprep.subr.mxu0 0.0
      %2526 = vmatpush1.msra.mxu0 0.0
      %2527 = vmatprep.subr.mxu0 0.0
      %2528 = vmatpush1.msra.mxu0 0.0
      %2529 = vmatprep.subr.mxu0 0.0
      %2530 = vmatpush1.msra.mxu0 0.0
      %2531 = vmatprep.mubr.f32.mxu0 0.0
      %2532 = vmatmul.mubr.f32.gmra.mrb[0].mxu0 %v2463
      %v2533 = vpop.f32.mrb[0].mxu0
      %v2534 = vadd.f32 0.0, %v2533
      %v2535 = vpop.f32.mrb[0].mxu0
      %2536 = vdwg.mxu0
      %v2537 = vsel %vm536, %v2459, 0
      %v2540 = vsel %vm539, %v2457, 0
      %2542 = vmatprep.subr.mxu0 0.0
      %2543 = vmatpush1.msra.mxu0 %v2540
      %2544 = vmatprep.subr.mxu0 0.0
      %2545 = vmatpush1.msra.mxu0 0.0
      %2546 = vmatprep.subr.mxu0 0.0
      %2547 = vmatpush1.msra.mxu0 0.0
      %2548 = vmatprep.subr.mxu0 0.0
      %2549 = vmatpush1.msra.mxu0 0.0
      %2550 = vmatprep.subr.mxu0 0.0
      %2551 = vmatpush1.msra.mxu0 0.0
      %2552 = vmatprep.subr.mxu0 0.0
      %2553 = vmatpush1.msra.mxu0 0.0
      %2554 = vmatprep.subr.mxu0 0.0
      %2555 = vmatpush1.msra.mxu0 0.0
      %2556 = vmatprep.subr.mxu0 0.0
      %2557 = vmatpush1.msra.mxu0 0.0
      %2558 = vmatprep.subr.mxu0 0.0
      %2559 = vmatpush1.msra.mxu0 0.0
      %2560 = vmatprep.subr.mxu0 0.0
      %2561 = vmatpush1.msra.mxu0 0.0
      %2562 = vmatprep.subr.mxu0 0.0
      %2563 = vmatpush1.msra.mxu0 0.0
      %2564 = vmatprep.subr.mxu0 0.0
      %2565 = vmatpush1.msra.mxu0 0.0
      %2566 = vmatprep.subr.mxu0 0.0
      %2567 = vmatpush1.msra.mxu0 0.0
      %2568 = vmatprep.subr.mxu0 0.0
      %2569 = vmatpush1.msra.mxu0 0.0
      %2570 = vmatprep.subr.mxu0 0.0
      %2571 = vmatpush1.msra.mxu0 0.0
      %2572 = vmatprep.subr.mxu0 0.0
      %2573 = vmatpush1.msra.mxu0 0.0
      %2574 = vmatprep.subr.mxu0 0.0
      %2575 = vmatpush1.msra.mxu0 0.0
      %2576 = vmatprep.subr.mxu0 0.0
      %2577 = vmatpush1.msra.mxu0 0.0
      %2578 = vmatprep.subr.mxu0 0.0
      %2579 = vmatpush1.msra.mxu0 0.0
      %2580 = vmatprep.subr.mxu0 0.0
      %2581 = vmatpush1.msra.mxu0 0.0
      %2582 = vmatprep.subr.mxu0 0.0
      %2583 = vmatpush1.msra.mxu0 0.0
      %2584 = vmatprep.subr.mxu0 0.0
      %2585 = vmatpush1.msra.mxu0 0.0
      %2586 = vmatprep.subr.mxu0 0.0
      %2587 = vmatpush1.msra.mxu0 0.0
      %2588 = vmatprep.subr.mxu0 0.0
      %2589 = vmatpush1.msra.mxu0 0.0
      %2590 = vmatprep.subr.mxu0 0.0
      %2591 = vmatpush1.msra.mxu0 0.0
      %2592 = vmatprep.subr.mxu0 0.0
      %2593 = vmatpush1.msra.mxu0 0.0
      %2594 = vmatprep.subr.mxu0 0.0
      %2595 = vmatpush1.msra.mxu0 0.0
      %2596 = vmatprep.subr.mxu0 0.0
      %2597 = vmatpush1.msra.mxu0 0.0
      %2598 = vmatprep.subr.mxu0 0.0
      %2599 = vmatpush1.msra.mxu0 0.0
      %2600 = vmatprep.subr.mxu0 0.0
      %2601 = vmatpush1.msra.mxu0 0.0
      %2602 = vmatprep.subr.mxu0 0.0
      %2603 = vmatpush1.msra.mxu0 0.0
      %2604 = vmatprep.subr.mxu0 0.0
      %2605 = vmatpush1.msra.mxu0 0.0
      %2606 = vmatprep.mubr.f32.mxu0 0.0
      %2607 = vmatmul.mubr.f32.gmra.mrb[0].mxu0 %v2537
      %v2608 = vpop.f32.mrb[0].mxu0
      %v2609 = vadd.f32 %v2534, %v2608
      %v2610 = vpop.f32.mrb[0].mxu0
      %2611 = vdwg.mxu0
      %2612 = vrot.lane.b32.xlu0 %v2459, 120
      %v2613 = vpop.permute.xlu0 %2612
      %v2614 = vsel %vm536, %v2613, 0
      %v2617 = vsel %vm539, %v2458, 0
      %2619 = vmatprep.subr.mxu0 0.0
      %2620 = vmatpush1.msra.mxu0 %v2617
      %2621 = vmatprep.subr.mxu0 0.0
      %2622 = vmatpush1.msra.mxu0 0.0
      %2623 = vmatprep.subr.mxu0 0.0
      %2624 = vmatpush1.msra.mxu0 0.0
      %2625 = vmatprep.subr.mxu0 0.0
      %2626 = vmatpush1.msra.mxu0 0.0
      %2627 = vmatprep.subr.mxu0 0.0
      %2628 = vmatpush1.msra.mxu0 0.0
      %2629 = vmatprep.subr.mxu0 0.0
      %2630 = vmatpush1.msra.mxu0 0.0
      %2631 = vmatprep.subr.mxu0 0.0
      %2632 = vmatpush1.msra.mxu0 0.0
      %2633 = vmatprep.subr.mxu0 0.0
      %2634 = vmatpush1.msra.mxu0 0.0
      %2635 = vmatprep.subr.mxu0 0.0
      %2636 = vmatpush1.msra.mxu0 0.0
      %2637 = vmatprep.subr.mxu0 0.0
      %2638 = vmatpush1.msra.mxu0 0.0
      %2639 = vmatprep.subr.mxu0 0.0
      %2640 = vmatpush1.msra.mxu0 0.0
      %2641 = vmatprep.subr.mxu0 0.0
      %2642 = vmatpush1.msra.mxu0 0.0
      %2643 = vmatprep.subr.mxu0 0.0
      %2644 = vmatpush1.msra.mxu0 0.0
      %2645 = vmatprep.subr.mxu0 0.0
      %2646 = vmatpush1.msra.mxu0 0.0
      %2647 = vmatprep.subr.mxu0 0.0
      %2648 = vmatpush1.msra.mxu0 0.0
      %2649 = vmatprep.subr.mxu0 0.0
      %2650 = vmatpush1.msra.mxu0 0.0
      %2651 = vmatprep.subr.mxu0 0.0
      %2652 = vmatpush1.msra.mxu0 0.0
      %2653 = vmatprep.subr.mxu0 0.0
      %2654 = vmatpush1.msra.mxu0 0.0
      %2655 = vmatprep.subr.mxu0 0.0
      %2656 = vmatpush1.msra.mxu0 0.0
      %2657 = vmatprep.subr.mxu0 0.0
      %2658 = vmatpush1.msra.mxu0 0.0
      %2659 = vmatprep.subr.mxu0 0.0
      %2660 = vmatpush1.msra.mxu0 0.0
      %2661 = vmatprep.subr.mxu0 0.0
      %2662 = vmatpush1.msra.mxu0 0.0
      %2663 = vmatprep.subr.mxu0 0.0
      %2664 = vmatpush1.msra.mxu0 0.0
      %2665 = vmatprep.subr.mxu0 0.0
      %2666 = vmatpush1.msra.mxu0 0.0
      %2667 = vmatprep.subr.mxu0 0.0
      %2668 = vmatpush1.msra.mxu0 0.0
      %2669 = vmatprep.subr.mxu0 0.0
      %2670 = vmatpush1.msra.mxu0 0.0
      %2671 = vmatprep.subr.mxu0 0.0
      %2672 = vmatpush1.msra.mxu0 0.0
      %2673 = vmatprep.subr.mxu0 0.0
      %2674 = vmatpush1.msra.mxu0 0.0
      %2675 = vmatprep.subr.mxu0 0.0
      %2676 = vmatpush1.msra.mxu0 0.0
      %2677 = vmatprep.subr.mxu0 0.0
      %2678 = vmatpush1.msra.mxu0 0.0
      %2679 = vmatprep.subr.mxu0 0.0
      %2680 = vmatpush1.msra.mxu0 0.0
      %2681 = vmatprep.subr.mxu0 0.0
      %2682 = vmatpush1.msra.mxu0 0.0
      %2683 = vmatprep.mubr.f32.mxu0 0.0
      %2684 = vmatmul.mubr.f32.gmra.mrb[0].mxu0 %v2614
      %v2685 = vpop.f32.mrb[0].mxu0
      %v2686 = vadd.f32 0.0, %v2685
      %v2687 = vpop.f32.mrb[0].mxu0
      %2688 = vdwg.mxu0
      %v2689 = vadd.f32 %v2609, %v2686
      %v2690 = vld [vmem:[%s2] sm:$0xf]
      %2692 = vset.pattern.permute.xlu0 29
      %2693 = vperm.xlu0 %2692, %v2690
      %v2694 = vpop.permute.xlu0 %2693
      %v2696 = vadd.f32 %v2689, %v2694
      %v2697 = vmax.f32 %v2696, 0.0
      %2698 = vset.pattern.permute.xlu0 30
      %2699 = vperm.xlu0 %2698, %v2690
      %v2700 = vpop.permute.xlu0 %2699
      %v2702 = vmul.f32 %v2697, %v2700
      %2703 = vset.pattern.permute.xlu0 31
      %2704 = vperm.xlu0 %2703, %v2690
      %v2705 = vpop.permute.xlu0 %2704
      %v2707 = vadd.f32 %v2702, %v2705
      %2708 = vst [vmem:[#allocation2 + $0xc] sm:$0xf] %v2707
      %v2709 = vld [vmem:[%s1 + $0x88] sm:$0xff]
      %v2710 = vld [vmem:[%s1 + $0x90] sm:$0xff]
      %v2711 = vld [vmem:[#allocation2] sm:$0xff]
      %v2712 = vld [vmem:[#allocation2 + $0x8] sm:$0xff]
      %v2713 = vld [vmem:[%s2] sm:$0xff]
      %v2714 = vld [vmem:[%s2 + $0x8] sm:$0xff]
      %2716 = vset.pattern.permute.xlu0 32
      %2717 = vperm.xlu0 %2716, %v2713
      %v2718 = vpop.permute.xlu0 %2717
      %2721 = vset.pattern.permute.xlu0 32
      %2722 = vperm.xlu0 %2721, %v2714
      %v2723 = vpop.permute.xlu0 %2722
      %v2726 = vsel %vm402, %v2709, 0
      %v2729 = vsel %vm402, %v2710, 0
      %2731 = vmatprep.subr.mxu0 0.0
      %2732 = vmatpush1.msra.mxu0 %v2711
      %2733 = vmatprep.subr.mxu0 0.0
      %2734 = vmatpush1.msra.mxu0 %v2712
      %2735 = vmatprep.subr.mxu0 0.0
      %2736 = vmatpush1.msra.mxu0 0.0
      %2737 = vmatprep.subr.mxu0 0.0
      %2738 = vmatpush1.msra.mxu0 0.0
      %2739 = vmatprep.subr.mxu0 0.0
      %2740 = vmatpush1.msra.mxu0 0.0
      %2741 = vmatprep.subr.mxu0 0.0
      %2742 = vmatpush1.msra.mxu0 0.0
      %2743 = vmatprep.subr.mxu0 0.0
      %2744 = vmatpush1.msra.mxu0 0.0
      %2745 = vmatprep.subr.mxu0 0.0
      %2746 = vmatpush1.msra.mxu0 0.0
      %2747 = vmatprep.subr.mxu0 0.0
      %2748 = vmatpush1.msra.mxu0 0.0
      %2749 = vmatprep.subr.mxu0 0.0
      %2750 = vmatpush1.msra.mxu0 0.0
      %2751 = vmatprep.subr.mxu0 0.0
      %2752 = vmatpush1.msra.mxu0 0.0
      %2753 = vmatprep.subr.mxu0 0.0
      %2754 = vmatpush1.msra.mxu0 0.0
      %2755 = vmatprep.subr.mxu0 0.0
      %2756 = vmatpush1.msra.mxu0 0.0
      %2757 = vmatprep.subr.mxu0 0.0
      %2758 = vmatpush1.msra.mxu0 0.0
      %2759 = vmatprep.subr.mxu0 0.0
      %2760 = vmatpush1.msra.mxu0 0.0
      %2761 = vmatprep.subr.mxu0 0.0
      %2762 = vmatpush1.msra.mxu0 0.0
      %2763 = vmatprep.subr.mxu0 0.0
      %2764 = vmatpush1.msra.mxu0 0.0
      %2765 = vmatprep.subr.mxu0 0.0
      %2766 = vmatpush1.msra.mxu0 0.0
      %2767 = vmatprep.subr.mxu0 0.0
      %2768 = vmatpush1.msra.mxu0 0.0
      %2769 = vmatprep.subr.mxu0 0.0
      %2770 = vmatpush1.msra.mxu0 0.0
      %2771 = vmatprep.subr.mxu0 0.0
      %2772 = vmatpush1.msra.mxu0 0.0
      %2773 = vmatprep.subr.mxu0 0.0
      %2774 = vmatpush1.msra.mxu0 0.0
      %2775 = vmatprep.subr.mxu0 0.0
      %2776 = vmatpush1.msra.mxu0 0.0
      %2777 = vmatprep.subr.mxu0 0.0
      %2778 = vmatpush1.msra.mxu0 0.0
      %2779 = vmatprep.subr.mxu0 0.0
      %2780 = vmatpush1.msra.mxu0 0.0
      %2781 = vmatprep.subr.mxu0 0.0
      %2782 = vmatpush1.msra.mxu0 0.0
      %2783 = vmatprep.subr.mxu0 0.0
      %2784 = vmatpush1.msra.mxu0 0.0
      %2785 = vmatprep.subr.mxu0 0.0
      %2786 = vmatpush1.msra.mxu0 0.0
      %2787 = vmatprep.subr.mxu0 0.0
      %2788 = vmatpush1.msra.mxu0 0.0
      %2789 = vmatprep.subr.mxu0 0.0
      %2790 = vmatpush1.msra.mxu0 0.0
      %2791 = vmatprep.subr.mxu0 0.0
      %2792 = vmatpush1.msra.mxu0 0.0
      %2793 = vmatprep.subr.mxu0 0.0
      %2794 = vmatpush1.msra.mxu0 0.0
      %2795 = vmatprep.mubr.f32.mxu0 0.0
      %2796 = vmatmul.mubr.f32.gmra.mrb[0].mxu0 %v2726
      %v2797 = vpop.f32.mrb[0].mxu0
      %v2798 = vadd.f32 %v2718, %v2797
      %v2799 = vpop.f32.mrb[0].mxu0
      %2800 = vmatprep.mubr.f32.mxu0 0.0
      %2801 = vmatmul.mubr.f32.gmra.mrb[0].mxu0 %v2729
      %v2802 = vpop.f32.mrb[0].mxu0
      %v2803 = vadd.f32 %v2723, %v2802
      %v2804 = vpop.f32.mrb[0].mxu0
      %2805 = vdwg.mxu0
      %v2806 = vmax.f32 %v2798, 0.0
      %v2807 = vmax.f32 %v2803, 0.0
      %2808 = vset.pattern.permute.xlu0 33
      %2809 = vperm.xlu0 %2808, %v2713
      %v2810 = vpop.permute.xlu0 %2809
      %2812 = vset.pattern.permute.xlu0 33
      %2813 = vperm.xlu0 %2812, %v2714
      %v2814 = vpop.permute.xlu0 %2813
      %v2816 = vmul.f32 %v2806, %v2810
      %v2817 = vmul.f32 %v2807, %v2814
      %2818 = vset.pattern.permute.xlu0 34
      %2819 = vperm.xlu0 %2818, %v2713
      %v2820 = vpop.permute.xlu0 %2819
      %2822 = vset.pattern.permute.xlu0 34
      %2823 = vperm.xlu0 %2822, %v2714
      %v2824 = vpop.permute.xlu0 %2823
      %v2826 = vadd.f32 %v2816, %v2820
      %v2827 = vadd.f32 %v2817, %v2824
      %2828 = vmatprep.subr.mxu0 0.0
      %2829 = vmatpush1.msra.mxu0 %v242
      %2830 = vmatprep.subr.mxu0 0.0
      %2831 = vmatpush1.msra.mxu0 %v243
      %2832 = vmatprep.subr.mxu0 0.0
      %2833 = vmatpush1.msra.mxu0 %v244
      %2834 = vmatprep.subr.mxu0 0.0
      %2835 = vmatpush1.msra.mxu0 %v245
      %2836 = vmatprep.subr.mxu0 0.0
      %2837 = vmatpush1.msra.mxu0 %v246
      %2838 = vmatprep.subr.mxu0 0.0
      %2839 = vmatpush1.msra.mxu0 %v247
      %2840 = vmatprep.subr.mxu0 0.0
      %2841 = vmatpush1.msra.mxu0 %v248
      %2842 = vmatprep.subr.mxu0 0.0
      %2843 = vmatpush1.msra.mxu0 %v249
      %2844 = vmatprep.subr.mxu0 0.0
      %2845 = vmatpush1.msra.mxu0 %v250
      %2846 = vmatprep.subr.mxu0 0.0
      %2847 = vmatpush1.msra.mxu0 %v251
      %2848 = vmatprep.subr.mxu0 0.0
      %2849 = vmatpush1.msra.mxu0 %v252
      %2850 = vmatprep.subr.mxu0 0.0
      %2851 = vmatpush1.msra.mxu0 %v253
      %2852 = vmatprep.subr.mxu0 0.0
      %2853 = vmatpush1.msra.mxu0 %v254
      %2854 = vmatprep.subr.mxu0 0.0
      %2855 = vmatpush1.msra.mxu0 %v255
      %2856 = vmatprep.subr.mxu0 0.0
      %2857 = vmatpush1.msra.mxu0 %v256
      %2858 = vmatprep.subr.mxu0 0.0
      %2859 = vmatpush1.msra.mxu0 %v257
      %2860 = vmatprep.subr.mxu0 0.0
      %2861 = vmatpush1.msra.mxu0 0.0
      %2862 = vmatprep.subr.mxu0 0.0
      %2863 = vmatpush1.msra.mxu0 0.0
      %2864 = vmatprep.subr.mxu0 0.0
      %2865 = vmatpush1.msra.mxu0 0.0
      %2866 = vmatprep.subr.mxu0 0.0
      %2867 = vmatpush1.msra.mxu0 0.0
      %2868 = vmatprep.subr.mxu0 0.0
      %2869 = vmatpush1.msra.mxu0 0.0
      %2870 = vmatprep.subr.mxu0 0.0
      %2871 = vmatpush1.msra.mxu0 0.0
      %2872 = vmatprep.subr.mxu0 0.0
      %2873 = vmatpush1.msra.mxu0 0.0
      %2874 = vmatprep.subr.mxu0 0.0
      %2875 = vmatpush1.msra.mxu0 0.0
      %2876 = vmatprep.subr.mxu0 0.0
      %2877 = vmatpush1.msra.mxu0 0.0
      %2878 = vmatprep.subr.mxu0 0.0
      %2879 = vmatpush1.msra.mxu0 0.0
      %2880 = vmatprep.subr.mxu0 0.0
      %2881 = vmatpush1.msra.mxu0 0.0
      %2882 = vmatprep.subr.mxu0 0.0
      %2883 = vmatpush1.msra.mxu0 0.0
      %2884 = vmatprep.subr.mxu0 0.0
      %2885 = vmatpush1.msra.mxu0 0.0
      %2886 = vmatprep.subr.mxu0 0.0
      %2887 = vmatpush1.msra.mxu0 0.0
      %2888 = vmatprep.subr.mxu0 0.0
      %2889 = vmatpush1.msra.mxu0 0.0
      %2890 = vmatprep.subr.mxu0 0.0
      %2891 = vmatpush1.msra.mxu0 0.0
      %2892 = vmatprep.mubr.f32.mxu0 0.0
      %2893 = vmatmul.mubr.f32.gmra.mrb[0].mxu0 %v2826
      %v2894 = vpop.f32.mrb[0].mxu0
      %v2895 = vadd.f32 0.0, %v2894
      %v2896 = vpop.f32.mrb[0].mxu0
      %2897 = vmatprep.mubr.f32.mxu0 0.0
      %2898 = vmatmul.mubr.f32.gmra.mrb[0].mxu0 %v2827
      %v2899 = vpop.f32.mrb[0].mxu0
      %v2900 = vadd.f32 0.0, %v2899
      %v2901 = vpop.f32.mrb[0].mxu0
      %2902 = vdwg.mxu0
      %v2903 = vmul.f32 %v2895, 0.0625
      %v2904 = vmul.f32 %v2900, 0.0625
      %v2905 = vld [vmem:[%s1 + $0x98] sm:$0xff]
      %v2906 = vld [vmem:[%s2] sm:$0xff]
      %2908 = vset.pattern.permute.xlu0 35
      %2909 = vperm.xlu0 %2908, %v2906
      %v2910 = vpop.permute.xlu0 %2909
      %v2913 = vsel %vm402, %v2905, 0
      %2915 = vmatprep.subr.mxu0 0.0
      %2916 = vmatpush1.msra.mxu0 %v2903
      %2917 = vmatprep.subr.mxu0 0.0
      %2918 = vmatpush1.msra.mxu0 %v2904
      %2919 = vmatprep.subr.mxu0 0.0
      %2920 = vmatpush1.msra.mxu0 0.0
      %2921 = vmatprep.subr.mxu0 0.0
      %2922 = vmatpush1.msra.mxu0 0.0
      %2923 = vmatprep.subr.mxu0 0.0
      %2924 = vmatpush1.msra.mxu0 0.0
      %2925 = vmatprep.subr.mxu0 0.0
      %2926 = vmatpush1.msra.mxu0 0.0
      %2927 = vmatprep.subr.mxu0 0.0
      %2928 = vmatpush1.msra.mxu0 0.0
      %2929 = vmatprep.subr.mxu0 0.0
      %2930 = vmatpush1.msra.mxu0 0.0
      %2931 = vmatprep.subr.mxu0 0.0
      %2932 = vmatpush1.msra.mxu0 0.0
      %2933 = vmatprep.subr.mxu0 0.0
      %2934 = vmatpush1.msra.mxu0 0.0
      %2935 = vmatprep.subr.mxu0 0.0
      %2936 = vmatpush1.msra.mxu0 0.0
      %2937 = vmatprep.subr.mxu0 0.0
      %2938 = vmatpush1.msra.mxu0 0.0
      %2939 = vmatprep.subr.mxu0 0.0
      %2940 = vmatpush1.msra.mxu0 0.0
      %2941 = vmatprep.subr.mxu0 0.0
      %2942 = vmatpush1.msra.mxu0 0.0
      %2943 = vmatprep.subr.mxu0 0.0
      %2944 = vmatpush1.msra.mxu0 0.0
      %2945 = vmatprep.subr.mxu0 0.0
      %2946 = vmatpush1.msra.mxu0 0.0
      %2947 = vmatprep.subr.mxu0 0.0
      %2948 = vmatpush1.msra.mxu0 0.0
      %2949 = vmatprep.subr.mxu0 0.0
      %2950 = vmatpush1.msra.mxu0 0.0
      %2951 = vmatprep.subr.mxu0 0.0
      %2952 = vmatpush1.msra.mxu0 0.0
      %2953 = vmatprep.subr.mxu0 0.0
      %2954 = vmatpush1.msra.mxu0 0.0
      %2955 = vmatprep.subr.mxu0 0.0
      %2956 = vmatpush1.msra.mxu0 0.0
      %2957 = vmatprep.subr.mxu0 0.0
      %2958 = vmatpush1.msra.mxu0 0.0
      %2959 = vmatprep.subr.mxu0 0.0
      %2960 = vmatpush1.msra.mxu0 0.0
      %2961 = vmatprep.subr.mxu0 0.0
      %2962 = vmatpush1.msra.mxu0 0.0
      %2963 = vmatprep.subr.mxu0 0.0
      %2964 = vmatpush1.msra.mxu0 0.0
      %2965 = vmatprep.subr.mxu0 0.0
      %2966 = vmatpush1.msra.mxu0 0.0
      %2967 = vmatprep.subr.mxu0 0.0
      %2968 = vmatpush1.msra.mxu0 0.0
      %2969 = vmatprep.subr.mxu0 0.0
      %2970 = vmatpush1.msra.mxu0 0.0
      %2971 = vmatprep.subr.mxu0 0.0
      %2972 = vmatpush1.msra.mxu0 0.0
      %2973 = vmatprep.subr.mxu0 0.0
      %2974 = vmatpush1.msra.mxu0 0.0
      %2975 = vmatprep.subr.mxu0 0.0
      %2976 = vmatpush1.msra.mxu0 0.0
      %2977 = vmatprep.subr.mxu0 0.0
      %2978 = vmatpush1.msra.mxu0 0.0
      %2979 = vmatprep.mubr.f32.mxu0 0.0
      %2980 = vmatmul.mubr.f32.gmra.mrb[0].mxu0 %v2913
      %v2981 = vpop.f32.mrb[0].mxu0
      %v2982 = vadd.f32 %v2910, %v2981
      %v2983 = vpop.f32.mrb[0].mxu0
      %2984 = vdwg.mxu0
      %v2985 = vmax.f32 %v2982, 0.0
      %v2986 = vld [vmem:[%s1 + $0xa0] sm:$0xff]
      %v2987 = vld [vmem:[%s1 + $0xa8] sm:$0xff]
      %2988 = vset.pattern.permute.xlu0 36
      %2989 = vperm.xlu0 %2988, %v2713
      %v2990 = vpop.permute.xlu0 %2989
      %2992 = vset.pattern.permute.xlu0 36
      %2993 = vperm.xlu0 %2992, %v2714
      %v2994 = vpop.permute.xlu0 %2993
      %v2997 = vsel %vm1606, %v2986, 0
      %v3000 = vsel %vm1606, %v2987, 0
      %3002 = vmatprep.subr.mxu0 0.0
      %3003 = vmatpush1.msra.mxu0 %v2985
      %3004 = vmatprep.subr.mxu0 0.0
      %3005 = vmatpush1.msra.mxu0 0.0
      %3006 = vmatprep.subr.mxu0 0.0
      %3007 = vmatpush1.msra.mxu0 0.0
      %3008 = vmatprep.subr.mxu0 0.0
      %3009 = vmatpush1.msra.mxu0 0.0
      %3010 = vmatprep.subr.mxu0 0.0
      %3011 = vmatpush1.msra.mxu0 0.0
      %3012 = vmatprep.subr.mxu0 0.0
      %3013 = vmatpush1.msra.mxu0 0.0
      %3014 = vmatprep.subr.mxu0 0.0
      %3015 = vmatpush1.msra.mxu0 0.0
      %3016 = vmatprep.subr.mxu0 0.0
      %3017 = vmatpush1.msra.mxu0 0.0
      %3018 = vmatprep.subr.mxu0 0.0
      %3019 = vmatpush1.msra.mxu0 0.0
      %3020 = vmatprep.subr.mxu0 0.0
      %3021 = vmatpush1.msra.mxu0 0.0
      %3022 = vmatprep.subr.mxu0 0.0
      %3023 = vmatpush1.msra.mxu0 0.0
      %3024 = vmatprep.subr.mxu0 0.0
      %3025 = vmatpush1.msra.mxu0 0.0
      %3026 = vmatprep.subr.mxu0 0.0
      %3027 = vmatpush1.msra.mxu0 0.0
      %3028 = vmatprep.subr.mxu0 0.0
      %3029 = vmatpush1.msra.mxu0 0.0
      %3030 = vmatprep.subr.mxu0 0.0
      %3031 = vmatpush1.msra.mxu0 0.0
      %3032 = vmatprep.subr.mxu0 0.0
      %3033 = vmatpush1.msra.mxu0 0.0
      %3034 = vmatprep.subr.mxu0 0.0
      %3035 = vmatpush1.msra.mxu0 0.0
      %3036 = vmatprep.subr.mxu0 0.0
      %3037 = vmatpush1.msra.mxu0 0.0
      %3038 = vmatprep.subr.mxu0 0.0
      %3039 = vmatpush1.msra.mxu0 0.0
      %3040 = vmatprep.subr.mxu0 0.0
      %3041 = vmatpush1.msra.mxu0 0.0
      %3042 = vmatprep.subr.mxu0 0.0
      %3043 = vmatpush1.msra.mxu0 0.0
      %3044 = vmatprep.subr.mxu0 0.0
      %3045 = vmatpush1.msra.mxu0 0.0
      %3046 = vmatprep.subr.mxu0 0.0
      %3047 = vmatpush1.msra.mxu0 0.0
      %3048 = vmatprep.subr.mxu0 0.0
      %3049 = vmatpush1.msra.mxu0 0.0
      %3050 = vmatprep.subr.mxu0 0.0
      %3051 = vmatpush1.msra.mxu0 0.0
      %3052 = vmatprep.subr.mxu0 0.0
      %3053 = vmatpush1.msra.mxu0 0.0
      %3054 = vmatprep.subr.mxu0 0.0
      %3055 = vmatpush1.msra.mxu0 0.0
      %3056 = vmatprep.subr.mxu0 0.0
      %3057 = vmatpush1.msra.mxu0 0.0
      %3058 = vmatprep.subr.mxu0 0.0
      %3059 = vmatpush1.msra.mxu0 0.0
      %3060 = vmatprep.subr.mxu0 0.0
      %3061 = vmatpush1.msra.mxu0 0.0
      %3062 = vmatprep.subr.mxu0 0.0
      %3063 = vmatpush1.msra.mxu0 0.0
      %3064 = vmatprep.subr.mxu0 0.0
      %3065 = vmatpush1.msra.mxu0 0.0
      %3066 = vmatprep.mubr.f32.mxu0 0.0
      %3067 = vmatmul.mubr.f32.gmra.mrb[0].mxu0 %v2997
      %v3068 = vpop.f32.mrb[0].mxu0
      %v3069 = vadd.f32 %v2990, %v3068
      %v3070 = vpop.f32.mrb[0].mxu0
      %3071 = vmatprep.mubr.f32.mxu0 0.0
      %3072 = vmatmul.mubr.f32.gmra.mrb[0].mxu0 %v3000
      %v3073 = vpop.f32.mrb[0].mxu0
      %v3074 = vadd.f32 %v2994, %v3073
      %v3075 = vpop.f32.mrb[0].mxu0
      %3076 = vdwg.mxu0
      %v3077 = vxor.u32 %v3069, 2147483648
      %v3078 = vxor.u32 %v3074, 2147483648
      %v3079 = vmul.f32 %v3077, 1.442695
      %v3080 = vpow.pop %v3079
      %v3081 = vmul.f32 %v3078, 1.442695
      %v3082 = vpow.pop %v3081
      %v3083 = vadd.f32 %v3080, 1.0
      %v3084 = vadd.f32 %v3082, 1.0
      %v3085 = vrcp.pop %v3083
      %v3086 = vmul.f32 1.0, %v3085
      %v3087 = vrcp.pop %v3084
      %v3088 = vmul.f32 1.0, %v3087
      %v3090 = vsel %vm1606, %v3086, 0
      %v3093 = vsel %vm1606, %v3088, 0
      %3095 = vmatprep.subr.mxu0 0.0
      %3096 = vmatpush1.msra.mxu0 %v264
      %3097 = vmatprep.subr.mxu0 0.0
      %3098 = vmatpush1.msra.mxu0 0.0
      %3099 = vmatprep.subr.mxu0 0.0
      %3100 = vmatpush1.msra.mxu0 0.0
      %3101 = vmatprep.subr.mxu0 0.0
      %3102 = vmatpush1.msra.mxu0 0.0
      %3103 = vmatprep.subr.mxu0 0.0
      %3104 = vmatpush1.msra.mxu0 0.0
      %3105 = vmatprep.subr.mxu0 0.0
      %3106 = vmatpush1.msra.mxu0 0.0
      %3107 = vmatprep.subr.mxu0 0.0
      %3108 = vmatpush1.msra.mxu0 0.0
      %3109 = vmatprep.subr.mxu0 0.0
      %3110 = vmatpush1.msra.mxu0 0.0
      %3111 = vmatprep.subr.mxu0 0.0
      %3112 = vmatpush1.msra.mxu0 0.0
      %3113 = vmatprep.subr.mxu0 0.0
      %3114 = vmatpush1.msra.mxu0 0.0
      %3115 = vmatprep.subr.mxu0 0.0
      %3116 = vmatpush1.msra.mxu0 0.0
      %3117 = vmatprep.subr.mxu0 0.0
      %3118 = vmatpush1.msra.mxu0 0.0
      %3119 = vmatprep.subr.mxu0 0.0
      %3120 = vmatpush1.msra.mxu0 0.0
      %3121 = vmatprep.subr.mxu0 0.0
      %3122 = vmatpush1.msra.mxu0 0.0
      %3123 = vmatprep.subr.mxu0 0.0
      %3124 = vmatpush1.msra.mxu0 0.0
      %3125 = vmatprep.subr.mxu0 0.0
      %3126 = vmatpush1.msra.mxu0 0.0
      %3127 = vmatprep.subr.mxu0 0.0
      %3128 = vmatpush1.msra.mxu0 0.0
      %3129 = vmatprep.subr.mxu0 0.0
      %3130 = vmatpush1.msra.mxu0 0.0
      %3131 = vmatprep.subr.mxu0 0.0
      %3132 = vmatpush1.msra.mxu0 0.0
      %3133 = vmatprep.subr.mxu0 0.0
      %3134 = vmatpush1.msra.mxu0 0.0
      %3135 = vmatprep.subr.mxu0 0.0
      %3136 = vmatpush1.msra.mxu0 0.0
      %3137 = vmatprep.subr.mxu0 0.0
      %3138 = vmatpush1.msra.mxu0 0.0
      %3139 = vmatprep.subr.mxu0 0.0
      %3140 = vmatpush1.msra.mxu0 0.0
      %3141 = vmatprep.subr.mxu0 0.0
      %3142 = vmatpush1.msra.mxu0 0.0
      %3143 = vmatprep.subr.mxu0 0.0
      %3144 = vmatpush1.msra.mxu0 0.0
      %3145 = vmatprep.subr.mxu0 0.0
      %3146 = vmatpush1.msra.mxu0 0.0
      %3147 = vmatprep.subr.mxu0 0.0
      %3148 = vmatpush1.msra.mxu0 0.0
      %3149 = vmatprep.subr.mxu0 0.0
      %3150 = vmatpush1.msra.mxu0 0.0
      %3151 = vmatprep.subr.mxu0 0.0
      %3152 = vmatpush1.msra.mxu0 0.0
      %3153 = vmatprep.subr.mxu0 0.0
      %3154 = vmatpush1.msra.mxu0 0.0
      %3155 = vmatprep.subr.mxu0 0.0
      %3156 = vmatpush1.msra.mxu0 0.0
      %3157 = vmatprep.subr.mxu0 0.0
      %3158 = vmatpush1.msra.mxu0 0.0
      %3159 = vmatprep.mubr.f32.mxu0 0.0
      %3160 = vmatmul.mubr.f32.gmra.mrb[0].mxu0 %v3090
      %v3161 = vpop.f32.mrb[0].mxu0
      %v3162 = vadd.f32 0.0, %v3161
      %v3163 = vpop.f32.mrb[0].mxu0
      %3164 = vmatprep.mubr.f32.mxu0 0.0
      %3165 = vmatmul.mubr.f32.gmra.mrb[0].mxu0 %v3093
      %v3166 = vpop.f32.mrb[0].mxu0
      %v3167 = vadd.f32 0.0, %v3166
      %v3168 = vpop.f32.mrb[0].mxu0
      %3169 = vdwg.mxu0
      %v3170 = vmul.f32 %v3162, %v2826
      %v3171 = vmul.f32 %v3167, %v2827
      %v3172 = vadd.f32 %v3170, %v1783
      %v3173 = vadd.f32 %v3171, %v1784
      %vm3174 = vcmp.eq.s32.totalorder %v173, 3
      %vm3175 = vcmp.eq.s32.totalorder %v173, 12
      %v3176 = vld [vmem:[%s1 + $0xb0] sm:$0xff]
      %v3177 = vld [vmem:[%s1 + $0xb8] sm:$0xff]
      %3178 = vset.pattern.permute.xlu0 37
      %3179 = vperm.xlu0 %3178, %v2713
      %v3180 = vpop.permute.xlu0 %3179
      %3182 = vset.pattern.permute.xlu0 37
      %3183 = vperm.xlu0 %3182, %v2714
      %v3184 = vpop.permute.xlu0 %3183
      %v3187 = vsel %vm402, %v3176, 0
      %v3190 = vsel %vm402, %v3177, 0
      %3192 = vmatprep.subr.mxu0 0.0
      %3193 = vmatpush1.msra.mxu0 %v3172
      %3194 = vmatprep.subr.mxu0 0.0
      %3195 = vmatpush1.msra.mxu0 %v3173
      %3196 = vmatprep.subr.mxu0 0.0
      %3197 = vmatpush1.msra.mxu0 0.0
      %3198 = vmatprep.subr.mxu0 0.0
      %3199 = vmatpush1.msra.mxu0 0.0
      %3200 = vmatprep.subr.mxu0 0.0
      %3201 = vmatpush1.msra.mxu0 0.0
      %3202 = vmatprep.subr.mxu0 0.0
      %3203 = vmatpush1.msra.mxu0 0.0
      %3204 = vmatprep.subr.mxu0 0.0
      %3205 = vmatpush1.msra.mxu0 0.0
      %3206 = vmatprep.subr.mxu0 0.0
      %3207 = vmatpush1.msra.mxu0 0.0
      %3208 = vmatprep.subr.mxu0 0.0
      %3209 = vmatpush1.msra.mxu0 0.0
      %3210 = vmatprep.subr.mxu0 0.0
      %3211 = vmatpush1.msra.mxu0 0.0
      %3212 = vmatprep.subr.mxu0 0.0
      %3213 = vmatpush1.msra.mxu0 0.0
      %3214 = vmatprep.subr.mxu0 0.0
      %3215 = vmatpush1.msra.mxu0 0.0
      %3216 = vmatprep.subr.mxu0 0.0
      %3217 = vmatpush1.msra.mxu0 0.0
      %3218 = vmatprep.subr.mxu0 0.0
      %3219 = vmatpush1.msra.mxu0 0.0
      %3220 = vmatprep.subr.mxu0 0.0
      %3221 = vmatpush1.msra.mxu0 0.0
      %3222 = vmatprep.subr.mxu0 0.0
      %3223 = vmatpush1.msra.mxu0 0.0
      %3224 = vmatprep.subr.mxu0 0.0
      %3225 = vmatpush1.msra.mxu0 0.0
      %3226 = vmatprep.subr.mxu0 0.0
      %3227 = vmatpush1.msra.mxu0 0.0
      %3228 = vmatprep.subr.mxu0 0.0
      %3229 = vmatpush1.msra.mxu0 0.0
      %3230 = vmatprep.subr.mxu0 0.0
      %3231 = vmatpush1.msra.mxu0 0.0
      %3232 = vmatprep.subr.mxu0 0.0
      %3233 = vmatpush1.msra.mxu0 0.0
      %3234 = vmatprep.subr.mxu0 0.0
      %3235 = vmatpush1.msra.mxu0 0.0
      %3236 = vmatprep.subr.mxu0 0.0
      %3237 = vmatpush1.msra.mxu0 0.0
      %3238 = vmatprep.subr.mxu0 0.0
      %3239 = vmatpush1.msra.mxu0 0.0
      %3240 = vmatprep.subr.mxu0 0.0
      %3241 = vmatpush1.msra.mxu0 0.0
      %3242 = vmatprep.subr.mxu0 0.0
      %3243 = vmatpush1.msra.mxu0 0.0
      %3244 = vmatprep.subr.mxu0 0.0
      %3245 = vmatpush1.msra.mxu0 0.0
      %3246 = vmatprep.subr.mxu0 0.0
      %3247 = vmatpush1.msra.mxu0 0.0
      %3248 = vmatprep.subr.mxu0 0.0
      %3249 = vmatpush1.msra.mxu0 0.0
      %3250 = vmatprep.subr.mxu0 0.0
      %3251 = vmatpush1.msra.mxu0 0.0
      %3252 = vmatprep.subr.mxu0 0.0
      %3253 = vmatpush1.msra.mxu0 0.0
      %3254 = vmatprep.subr.mxu0 0.0
      %3255 = vmatpush1.msra.mxu0 0.0
      %3256 = vmatprep.mubr.f32.mxu0 0.0
      %3257 = vmatmul.mubr.f32.gmra.mrb[0].mxu0 %v3187
      %v3258 = vpop.f32.mrb[0].mxu0
      %v3259 = vadd.f32 %v3180, %v3258
      %v3260 = vpop.f32.mrb[0].mxu0
      %3261 = vmatprep.mubr.f32.mxu0 0.0
      %3262 = vmatmul.mubr.f32.gmra.mrb[0].mxu0 %v3190
      %v3263 = vpop.f32.mrb[0].mxu0
      %v3264 = vadd.f32 %v3184, %v3263
      %v3265 = vpop.f32.mrb[0].mxu0
      %3266 = vdwg.mxu0
      %v3267 = vmax.f32 %v3259, 0.0
      %v3268 = vmax.f32 %v3264, 0.0
      %3269 = vset.pattern.permute.xlu0 38
      %3270 = vperm.xlu0 %3269, %v2713
      %v3271 = vpop.permute.xlu0 %3270
      %3273 = vset.pattern.permute.xlu0 38
      %3274 = vperm.xlu0 %3273, %v2714
      %v3275 = vpop.permute.xlu0 %3274
      %v3277 = vmul.f32 %v3267, %v3271
      %v3278 = vmul.f32 %v3268, %v3275
      %3279 = vset.pattern.permute.xlu0 39
      %3280 = vperm.xlu0 %3279, %v2713
      %v3281 = vpop.permute.xlu0 %3280
      %3283 = vset.pattern.permute.xlu0 39
      %3284 = vperm.xlu0 %3283, %v2714
      %v3285 = vpop.permute.xlu0 %3284
      %v3287 = vadd.f32 %v3277, %v3281
      %v3288 = vadd.f32 %v3278, %v3285
      %3289 = vst [vmem:[#allocation2] sm:$0xf] %v3287
      %v3291 = vrot.slane %v3287, 4
      %3293 = vrot.lane.b32.xlu0 %v3291, 4
      %v3294 = vpop.permute.xlu0 %3293
      %3295 = vrot.lane.b32.xlu0 %v3291, 124
      %v3296 = vpop.permute.xlu0 %3295
      %v3297 = vsel %vm515, %v3296, %v3294
      %v3298 = vsel %vm518, %v3294, %v3296
      %3299 = vrot.lane.b32.xlu0 %v3291, 126
      %v3300 = vpop.permute.xlu0 %3299
      %v3301 = vsel %vm521, %v3300, %v3297
      %3302 = vrot.lane.b32.xlu0 %v3291, 2
      %v3303 = vpop.permute.xlu0 %3302
      %v3304 = vsel %vm527, %v3303, %v3298
      %v3306 = vrot.slane %v3301, 4
      %v3308 = vsel %vm1917, %v3287, %v3306
      %v3310 = vrot.slane %v3304, 4
      %v3312 = vsel %vm1920, %v3287, %v3310
      %v3313 = vsel %vm3174, 1, 0
      %vm3314 = vcmp.eq.s32.totalorder %v3313, 1
      %v3316 = vrot.slane %v3308, 4
      %v3318 = vsel %vm3314, %v3303, %v3316
      %v3319 = vsel %vm3175, 1, 0
      %vm3320 = vcmp.eq.s32.totalorder %v3319, 1
      %v3322 = vrot.slane %v3312, 4
      %v3324 = vsel %vm3320, %v3300, %v3322
      %v3325 = vld [vmem:[%s1 + $0xc0] sm:$0xf]
      %3327 = vrot.lane.b32.xlu0 %v3325, 124
      %v3328 = vpop.permute.xlu0 %3327
      %v3329 = vsel %vm536, %v3328, 0
      %v3331 = vsel %vm539, %v3291, 0
      %3333 = vmatprep.subr.mxu0 0.0
      %3334 = vmatpush1.msra.mxu0 %v3331
      %3335 = vmatprep.subr.mxu0 0.0
      %3336 = vmatpush1.msra.mxu0 0.0
      %3337 = vmatprep.subr.mxu0 0.0
      %3338 = vmatpush1.msra.mxu0 0.0
      %3339 = vmatprep.subr.mxu0 0.0
      %3340 = vmatpush1.msra.mxu0 0.0
      %3341 = vmatprep.subr.mxu0 0.0
      %3342 = vmatpush1.msra.mxu0 0.0
      %3343 = vmatprep.subr.mxu0 0.0
      %3344 = vmatpush1.msra.mxu0 0.0
      %3345 = vmatprep.subr.mxu0 0.0
      %3346 = vmatpush1.msra.mxu0 0.0
      %3347 = vmatprep.subr.mxu0 0.0
      %3348 = vmatpush1.msra.mxu0 0.0
      %3349 = vmatprep.subr.mxu0 0.0
      %3350 = vmatpush1.msra.mxu0 0.0
      %3351 = vmatprep.subr.mxu0 0.0
      %3352 = vmatpush1.msra.mxu0 0.0
      %3353 = vmatprep.subr.mxu0 0.0
      %3354 = vmatpush1.msra.mxu0 0.0
      %3355 = vmatprep.subr.mxu0 0.0
      %3356 = vmatpush1.msra.mxu0 0.0
      %3357 = vmatprep.subr.mxu0 0.0
      %3358 = vmatpush1.msra.mxu0 0.0
      %3359 = vmatprep.subr.mxu0 0.0
      %3360 = vmatpush1.msra.mxu0 0.0
      %3361 = vmatprep.subr.mxu0 0.0
      %3362 = vmatpush1.msra.mxu0 0.0
      %3363 = vmatprep.subr.mxu0 0.0
      %3364 = vmatpush1.msra.mxu0 0.0
      %3365 = vmatprep.subr.mxu0 0.0
      %3366 = vmatpush1.msra.mxu0 0.0
      %3367 = vmatprep.subr.mxu0 0.0
      %3368 = vmatpush1.msra.mxu0 0.0
      %3369 = vmatprep.subr.mxu0 0.0
      %3370 = vmatpush1.msra.mxu0 0.0
      %3371 = vmatprep.subr.mxu0 0.0
      %3372 = vmatpush1.msra.mxu0 0.0
      %3373 = vmatprep.subr.mxu0 0.0
      %3374 = vmatpush1.msra.mxu0 0.0
      %3375 = vmatprep.subr.mxu0 0.0
      %3376 = vmatpush1.msra.mxu0 0.0
      %3377 = vmatprep.subr.mxu0 0.0
      %3378 = vmatpush1.msra.mxu0 0.0
      %3379 = vmatprep.subr.mxu0 0.0
      %3380 = vmatpush1.msra.mxu0 0.0
      %3381 = vmatprep.subr.mxu0 0.0
      %3382 = vmatpush1.msra.mxu0 0.0
      %3383 = vmatprep.subr.mxu0 0.0
      %3384 = vmatpush1.msra.mxu0 0.0
      %3385 = vmatprep.subr.mxu0 0.0
      %3386 = vmatpush1.msra.mxu0 0.0
      %3387 = vmatprep.subr.mxu0 0.0
      %3388 = vmatpush1.msra.mxu0 0.0
      %3389 = vmatprep.subr.mxu0 0.0
      %3390 = vmatpush1.msra.mxu0 0.0
      %3391 = vmatprep.subr.mxu0 0.0
      %3392 = vmatpush1.msra.mxu0 0.0
      %3393 = vmatprep.subr.mxu0 0.0
      %3394 = vmatpush1.msra.mxu0 0.0
      %3395 = vmatprep.subr.mxu0 0.0
      %3396 = vmatpush1.msra.mxu0 0.0
      %3397 = vmatprep.mubr.f32.mxu0 0.0
      %3398 = vmatmul.mubr.f32.gmra.mrb[0].mxu0 %v3329
      %v3399 = vpop.f32.mrb[0].mxu0
      %v3400 = vadd.f32 0.0, %v3399
      %v3401 = vpop.f32.mrb[0].mxu0
      %3402 = vdwg.mxu0
      %v3403 = vsel %vm536, %v3325, 0
      %v3406 = vsel %vm539, %v3318, 0
      %3408 = vmatprep.subr.mxu0 0.0
      %3409 = vmatpush1.msra.mxu0 %v3406
      %3410 = vmatprep.subr.mxu0 0.0
      %3411 = vmatpush1.msra.mxu0 0.0
      %3412 = vmatprep.subr.mxu0 0.0
      %3413 = vmatpush1.msra.mxu0 0.0
      %3414 = vmatprep.subr.mxu0 0.0
      %3415 = vmatpush1.msra.mxu0 0.0
      %3416 = vmatprep.subr.mxu0 0.0
      %3417 = vmatpush1.msra.mxu0 0.0
      %3418 = vmatprep.subr.mxu0 0.0
      %3419 = vmatpush1.msra.mxu0 0.0
      %3420 = vmatprep.subr.mxu0 0.0
      %3421 = vmatpush1.msra.mxu0 0.0
      %3422 = vmatprep.subr.mxu0 0.0
      %3423 = vmatpush1.msra.mxu0 0.0
      %3424 = vmatprep.subr.mxu0 0.0
      %3425 = vmatpush1.msra.mxu0 0.0
      %3426 = vmatprep.subr.mxu0 0.0
      %3427 = vmatpush1.msra.mxu0 0.0
      %3428 = vmatprep.subr.mxu0 0.0
      %3429 = vmatpush1.msra.mxu0 0.0
      %3430 = vmatprep.subr.mxu0 0.0
      %3431 = vmatpush1.msra.mxu0 0.0
      %3432 = vmatprep.subr.mxu0 0.0
      %3433 = vmatpush1.msra.mxu0 0.0
      %3434 = vmatprep.subr.mxu0 0.0
      %3435 = vmatpush1.msra.mxu0 0.0
      %3436 = vmatprep.subr.mxu0 0.0
      %3437 = vmatpush1.msra.mxu0 0.0
      %3438 = vmatprep.subr.mxu0 0.0
      %3439 = vmatpush1.msra.mxu0 0.0
      %3440 = vmatprep.subr.mxu0 0.0
      %3441 = vmatpush1.msra.mxu0 0.0
      %3442 = vmatprep.subr.mxu0 0.0
      %3443 = vmatpush1.msra.mxu0 0.0
      %3444 = vmatprep.subr.mxu0 0.0
      %3445 = vmatpush1.msra.mxu0 0.0
      %3446 = vmatprep.subr.mxu0 0.0
      %3447 = vmatpush1.msra.mxu0 0.0
      %3448 = vmatprep.subr.mxu0 0.0
      %3449 = vmatpush1.msra.mxu0 0.0
      %3450 = vmatprep.subr.mxu0 0.0
      %3451 = vmatpush1.msra.mxu0 0.0
      %3452 = vmatprep.subr.mxu0 0.0
      %3453 = vmatpush1.msra.mxu0 0.0
      %3454 = vmatprep.subr.mxu0 0.0
      %3455 = vmatpush1.msra.mxu0 0.0
      %3456 = vmatprep.subr.mxu0 0.0
      %3457 = vmatpush1.msra.mxu0 0.0
      %3458 = vmatprep.subr.mxu0 0.0
      %3459 = vmatpush1.msra.mxu0 0.0
      %3460 = vmatprep.subr.mxu0 0.0
      %3461 = vmatpush1.msra.mxu0 0.0
      %3462 = vmatprep.subr.mxu0 0.0
      %3463 = vmatpush1.msra.mxu0 0.0
      %3464 = vmatprep.subr.mxu0 0.0
      %3465 = vmatpush1.msra.mxu0 0.0
      %3466 = vmatprep.subr.mxu0 0.0
      %3467 = vmatpush1.msra.mxu0 0.0
      %3468 = vmatprep.subr.mxu0 0.0
      %3469 = vmatpush1.msra.mxu0 0.0
      %3470 = vmatprep.subr.mxu0 0.0
      %3471 = vmatpush1.msra.mxu0 0.0
      %3472 = vmatprep.mubr.f32.mxu0 0.0
      %3473 = vmatmul.mubr.f32.gmra.mrb[0].mxu0 %v3403
      %v3474 = vpop.f32.mrb[0].mxu0
      %v3475 = vadd.f32 %v3400, %v3474
      %v3476 = vpop.f32.mrb[0].mxu0
      %3477 = vdwg.mxu0
      %3478 = vrot.lane.b32.xlu0 %v3325, 120
      %v3479 = vpop.permute.xlu0 %3478
      %v3480 = vsel %vm536, %v3479, 0
      %v3483 = vsel %vm539, %v3324, 0
      %3485 = vmatprep.subr.mxu0 0.0
      %3486 = vmatpush1.msra.mxu0 %v3483
      %3487 = vmatprep.subr.mxu0 0.0
      %3488 = vmatpush1.msra.mxu0 0.0
      %3489 = vmatprep.subr.mxu0 0.0
      %3490 = vmatpush1.msra.mxu0 0.0
      %3491 = vmatprep.subr.mxu0 0.0
      %3492 = vmatpush1.msra.mxu0 0.0
      %3493 = vmatprep.subr.mxu0 0.0
      %3494 = vmatpush1.msra.mxu0 0.0
      %3495 = vmatprep.subr.mxu0 0.0
      %3496 = vmatpush1.msra.mxu0 0.0
      %3497 = vmatprep.subr.mxu0 0.0
      %3498 = vmatpush1.msra.mxu0 0.0
      %3499 = vmatprep.subr.mxu0 0.0
      %3500 = vmatpush1.msra.mxu0 0.0
      %3501 = vmatprep.subr.mxu0 0.0
      %3502 = vmatpush1.msra.mxu0 0.0
      %3503 = vmatprep.subr.mxu0 0.0
      %3504 = vmatpush1.msra.mxu0 0.0
      %3505 = vmatprep.subr.mxu0 0.0
      %3506 = vmatpush1.msra.mxu0 0.0
      %3507 = vmatprep.subr.mxu0 0.0
      %3508 = vmatpush1.msra.mxu0 0.0
      %3509 = vmatprep.subr.mxu0 0.0
      %3510 = vmatpush1.msra.mxu0 0.0
      %3511 = vmatprep.subr.mxu0 0.0
      %3512 = vmatpush1.msra.mxu0 0.0
      %3513 = vmatprep.subr.mxu0 0.0
      %3514 = vmatpush1.msra.mxu0 0.0
      %3515 = vmatprep.subr.mxu0 0.0
      %3516 = vmatpush1.msra.mxu0 0.0
      %3517 = vmatprep.subr.mxu0 0.0
      %3518 = vmatpush1.msra.mxu0 0.0
      %3519 = vmatprep.subr.mxu0 0.0
      %3520 = vmatpush1.msra.mxu0 0.0
      %3521 = vmatprep.subr.mxu0 0.0
      %3522 = vmatpush1.msra.mxu0 0.0
      %3523 = vmatprep.subr.mxu0 0.0
      %3524 = vmatpush1.msra.mxu0 0.0
      %3525 = vmatprep.subr.mxu0 0.0
      %3526 = vmatpush1.msra.mxu0 0.0
      %3527 = vmatprep.subr.mxu0 0.0
      %3528 = vmatpush1.msra.mxu0 0.0
      %3529 = vmatprep.subr.mxu0 0.0
      %3530 = vmatpush1.msra.mxu0 0.0
      %3531 = vmatprep.subr.mxu0 0.0
      %3532 = vmatpush1.msra.mxu0 0.0
      %3533 = vmatprep.subr.mxu0 0.0
      %3534 = vmatpush1.msra.mxu0 0.0
      %3535 = vmatprep.subr.mxu0 0.0
      %3536 = vmatpush1.msra.mxu0 0.0
      %3537 = vmatprep.subr.mxu0 0.0
      %3538 = vmatpush1.msra.mxu0 0.0
      %3539 = vmatprep.subr.mxu0 0.0
      %3540 = vmatpush1.msra.mxu0 0.0
      %3541 = vmatprep.subr.mxu0 0.0
      %3542 = vmatpush1.msra.mxu0 0.0
      %3543 = vmatprep.subr.mxu0 0.0
      %3544 = vmatpush1.msra.mxu0 0.0
      %3545 = vmatprep.subr.mxu0 0.0
      %3546 = vmatpush1.msra.mxu0 0.0
      %3547 = vmatprep.subr.mxu0 0.0
      %3548 = vmatpush1.msra.mxu0 0.0
      %3549 = vmatprep.mubr.f32.mxu0 0.0
      %3550 = vmatmul.mubr.f32.gmra.mrb[0].mxu0 %v3480
      %v3551 = vpop.f32.mrb[0].mxu0
      %v3552 = vadd.f32 0.0, %v3551
      %v3553 = vpop.f32.mrb[0].mxu0
      %3554 = vdwg.mxu0
      %v3555 = vadd.f32 %v3475, %v3552
      %v3556 = vld [vmem:[%s2] sm:$0xf]
      %3558 = vset.pattern.permute.xlu0 40
      %3559 = vperm.xlu0 %3558, %v3556
      %v3560 = vpop.permute.xlu0 %3559
      %v3562 = vadd.f32 %v3555, %v3560
      %v3563 = vmax.f32 %v3562, 0.0
      %3564 = vset.pattern.permute.xlu0 41
      %3565 = vperm.xlu0 %3564, %v3556
      %v3566 = vpop.permute.xlu0 %3565
      %v3568 = vmul.f32 %v3563, %v3566
      %3569 = vset.pattern.permute.xlu0 42
      %3570 = vperm.xlu0 %3569, %v3556
      %v3571 = vpop.permute.xlu0 %3570
      %v3573 = vadd.f32 %v3568, %v3571
      %3574 = vst [vmem:[#allocation2 + $0x4] sm:$0xf] %v3573
      %v3575 = vadd.f32 %v3288, %v3573
      %3576 = vrot.lane.b32.xlu0 %v3575, 4
      %v3577 = vpop.permute.xlu0 %3576
      %3578 = vrot.lane.b32.xlu0 %v3575, 124
      %v3579 = vpop.permute.xlu0 %3578
      %v3580 = vsel %vm515, %v3579, %v3577
      %v3581 = vsel %vm518, %v3577, %v3579
      %3582 = vrot.lane.b32.xlu0 %v3575, 126
      %v3583 = vpop.permute.xlu0 %3582
      %v3584 = vsel %vm521, %v3583, %v3580
      %3585 = vrot.lane.b32.xlu0 %v3575, 2
      %v3586 = vpop.permute.xlu0 %3585
      %v3587 = vsel %vm527, %v3586, %v3581
      %v3588 = vsel %vm1917, %v3575, %v3584
      %v3589 = vsel %vm1920, %v3575, %v3587
      %v3590 = vsel %vm3314, %v3586, %v3588
      %v3591 = vsel %vm3320, %v3583, %v3589
      %v3592 = vld [vmem:[%s1 + $0xc8] sm:$0xf]
      %3594 = vrot.lane.b32.xlu0 %v3592, 124
      %v3595 = vpop.permute.xlu0 %3594
      %v3596 = vsel %vm536, %v3595, 0
      %v3599 = vsel %vm539, %v3575, 0
      %3601 = vmatprep.subr.mxu0 0.0
      %3602 = vmatpush1.msra.mxu0 %v3599
      %3603 = vmatprep.subr.mxu0 0.0
      %3604 = vmatpush1.msra.mxu0 0.0
      %3605 = vmatprep.subr.mxu0 0.0
      %3606 = vmatpush1.msra.mxu0 0.0
      %3607 = vmatprep.subr.mxu0 0.0
      %3608 = vmatpush1.msra.mxu0 0.0
      %3609 = vmatprep.subr.mxu0 0.0
      %3610 = vmatpush1.msra.mxu0 0.0
      %3611 = vmatprep.subr.mxu0 0.0
      %3612 = vmatpush1.msra.mxu0 0.0
      %3613 = vmatprep.subr.mxu0 0.0
      %3614 = vmatpush1.msra.mxu0 0.0
      %3615 = vmatprep.subr.mxu0 0.0
      %3616 = vmatpush1.msra.mxu0 0.0
      %3617 = vmatprep.subr.mxu0 0.0
      %3618 = vmatpush1.msra.mxu0 0.0
      %3619 = vmatprep.subr.mxu0 0.0
      %3620 = vmatpush1.msra.mxu0 0.0
      %3621 = vmatprep.subr.mxu0 0.0
      %3622 = vmatpush1.msra.mxu0 0.0
      %3623 = vmatprep.subr.mxu0 0.0
      %3624 = vmatpush1.msra.mxu0 0.0
      %3625 = vmatprep.subr.mxu0 0.0
      %3626 = vmatpush1.msra.mxu0 0.0
      %3627 = vmatprep.subr.mxu0 0.0
      %3628 = vmatpush1.msra.mxu0 0.0
      %3629 = vmatprep.subr.mxu0 0.0
      %3630 = vmatpush1.msra.mxu0 0.0
      %3631 = vmatprep.subr.mxu0 0.0
      %3632 = vmatpush1.msra.mxu0 0.0
      %3633 = vmatprep.subr.mxu0 0.0
      %3634 = vmatpush1.msra.mxu0 0.0
      %3635 = vmatprep.subr.mxu0 0.0
      %3636 = vmatpush1.msra.mxu0 0.0
      %3637 = vmatprep.subr.mxu0 0.0
      %3638 = vmatpush1.msra.mxu0 0.0
      %3639 = vmatprep.subr.mxu0 0.0
      %3640 = vmatpush1.msra.mxu0 0.0
      %3641 = vmatprep.subr.mxu0 0.0
      %3642 = vmatpush1.msra.mxu0 0.0
      %3643 = vmatprep.subr.mxu0 0.0
      %3644 = vmatpush1.msra.mxu0 0.0
      %3645 = vmatprep.subr.mxu0 0.0
      %3646 = vmatpush1.msra.mxu0 0.0
      %3647 = vmatprep.subr.mxu0 0.0
      %3648 = vmatpush1.msra.mxu0 0.0
      %3649 = vmatprep.subr.mxu0 0.0
      %3650 = vmatpush1.msra.mxu0 0.0
      %3651 = vmatprep.subr.mxu0 0.0
      %3652 = vmatpush1.msra.mxu0 0.0
      %3653 = vmatprep.subr.mxu0 0.0
      %3654 = vmatpush1.msra.mxu0 0.0
      %3655 = vmatprep.subr.mxu0 0.0
      %3656 = vmatpush1.msra.mxu0 0.0
      %3657 = vmatprep.subr.mxu0 0.0
      %3658 = vmatpush1.msra.mxu0 0.0
      %3659 = vmatprep.subr.mxu0 0.0
      %3660 = vmatpush1.msra.mxu0 0.0
      %3661 = vmatprep.subr.mxu0 0.0
      %3662 = vmatpush1.msra.mxu0 0.0
      %3663 = vmatprep.subr.mxu0 0.0
      %3664 = vmatpush1.msra.mxu0 0.0
      %3665 = vmatprep.mubr.f32.mxu0 0.0
      %3666 = vmatmul.mubr.f32.gmra.mrb[0].mxu0 %v3596
      %v3667 = vpop.f32.mrb[0].mxu0
      %v3668 = vadd.f32 0.0, %v3667
      %v3669 = vpop.f32.mrb[0].mxu0
      %3670 = vdwg.mxu0
      %v3671 = vsel %vm536, %v3592, 0
      %v3674 = vsel %vm539, %v3590, 0
      %3676 = vmatprep.subr.mxu0 0.0
      %3677 = vmatpush1.msra.mxu0 %v3674
      %3678 = vmatprep.subr.mxu0 0.0
      %3679 = vmatpush1.msra.mxu0 0.0
      %3680 = vmatprep.subr.mxu0 0.0
      %3681 = vmatpush1.msra.mxu0 0.0
      %3682 = vmatprep.subr.mxu0 0.0
      %3683 = vmatpush1.msra.mxu0 0.0
      %3684 = vmatprep.subr.mxu0 0.0
      %3685 = vmatpush1.msra.mxu0 0.0
      %3686 = vmatprep.subr.mxu0 0.0
      %3687 = vmatpush1.msra.mxu0 0.0
      %3688 = vmatprep.subr.mxu0 0.0
      %3689 = vmatpush1.msra.mxu0 0.0
      %3690 = vmatprep.subr.mxu0 0.0
      %3691 = vmatpush1.msra.mxu0 0.0
      %3692 = vmatprep.subr.mxu0 0.0
      %3693 = vmatpush1.msra.mxu0 0.0
      %3694 = vmatprep.subr.mxu0 0.0
      %3695 = vmatpush1.msra.mxu0 0.0
      %3696 = vmatprep.subr.mxu0 0.0
      %3697 = vmatpush1.msra.mxu0 0.0
      %3698 = vmatprep.subr.mxu0 0.0
      %3699 = vmatpush1.msra.mxu0 0.0
      %3700 = vmatprep.subr.mxu0 0.0
      %3701 = vmatpush1.msra.mxu0 0.0
      %3702 = vmatprep.subr.mxu0 0.0
      %3703 = vmatpush1.msra.mxu0 0.0
      %3704 = vmatprep.subr.mxu0 0.0
      %3705 = vmatpush1.msra.mxu0 0.0
      %3706 = vmatprep.subr.mxu0 0.0
      %3707 = vmatpush1.msra.mxu0 0.0
      %3708 = vmatprep.subr.mxu0 0.0
      %3709 = vmatpush1.msra.mxu0 0.0
      %3710 = vmatprep.subr.mxu0 0.0
      %3711 = vmatpush1.msra.mxu0 0.0
      %3712 = vmatprep.subr.mxu0 0.0
      %3713 = vmatpush1.msra.mxu0 0.0
      %3714 = vmatprep.subr.mxu0 0.0
      %3715 = vmatpush1.msra.mxu0 0.0
      %3716 = vmatprep.subr.mxu0 0.0
      %3717 = vmatpush1.msra.mxu0 0.0
      %3718 = vmatprep.subr.mxu0 0.0
      %3719 = vmatpush1.msra.mxu0 0.0
      %3720 = vmatprep.subr.mxu0 0.0
      %3721 = vmatpush1.msra.mxu0 0.0
      %3722 = vmatprep.subr.mxu0 0.0
      %3723 = vmatpush1.msra.mxu0 0.0
      %3724 = vmatprep.subr.mxu0 0.0
      %3725 = vmatpush1.msra.mxu0 0.0
      %3726 = vmatprep.subr.mxu0 0.0
      %3727 = vmatpush1.msra.mxu0 0.0
      %3728 = vmatprep.subr.mxu0 0.0
      %3729 = vmatpush1.msra.mxu0 0.0
      %3730 = vmatprep.subr.mxu0 0.0
      %3731 = vmatpush1.msra.mxu0 0.0
      %3732 = vmatprep.subr.mxu0 0.0
      %3733 = vmatpush1.msra.mxu0 0.0
      %3734 = vmatprep.subr.mxu0 0.0
      %3735 = vmatpush1.msra.mxu0 0.0
      %3736 = vmatprep.subr.mxu0 0.0
      %3737 = vmatpush1.msra.mxu0 0.0
      %3738 = vmatprep.subr.mxu0 0.0
      %3739 = vmatpush1.msra.mxu0 0.0
      %3740 = vmatprep.mubr.f32.mxu0 0.0
      %3741 = vmatmul.mubr.f32.gmra.mrb[0].mxu0 %v3671
      %v3742 = vpop.f32.mrb[0].mxu0
      %v3743 = vadd.f32 %v3668, %v3742
      %v3744 = vpop.f32.mrb[0].mxu0
      %3745 = vdwg.mxu0
      %3746 = vrot.lane.b32.xlu0 %v3592, 120
      %v3747 = vpop.permute.xlu0 %3746
      %v3748 = vsel %vm536, %v3747, 0
      %v3751 = vsel %vm539, %v3591, 0
      %3753 = vmatprep.subr.mxu0 0.0
      %3754 = vmatpush1.msra.mxu0 %v3751
      %3755 = vmatprep.subr.mxu0 0.0
      %3756 = vmatpush1.msra.mxu0 0.0
      %3757 = vmatprep.subr.mxu0 0.0
      %3758 = vmatpush1.msra.mxu0 0.0
      %3759 = vmatprep.subr.mxu0 0.0
      %3760 = vmatpush1.msra.mxu0 0.0
      %3761 = vmatprep.subr.mxu0 0.0
      %3762 = vmatpush1.msra.mxu0 0.0
      %3763 = vmatprep.subr.mxu0 0.0
      %3764 = vmatpush1.msra.mxu0 0.0
      %3765 = vmatprep.subr.mxu0 0.0
      %3766 = vmatpush1.msra.mxu0 0.0
      %3767 = vmatprep.subr.mxu0 0.0
      %3768 = vmatpush1.msra.mxu0 0.0
      %3769 = vmatprep.subr.mxu0 0.0
      %3770 = vmatpush1.msra.mxu0 0.0
      %3771 = vmatprep.subr.mxu0 0.0
      %3772 = vmatpush1.msra.mxu0 0.0
      %3773 = vmatprep.subr.mxu0 0.0
      %3774 = vmatpush1.msra.mxu0 0.0
      %3775 = vmatprep.subr.mxu0 0.0
      %3776 = vmatpush1.msra.mxu0 0.0
      %3777 = vmatprep.subr.mxu0 0.0
      %3778 = vmatpush1.msra.mxu0 0.0
      %3779 = vmatprep.subr.mxu0 0.0
      %3780 = vmatpush1.msra.mxu0 0.0
      %3781 = vmatprep.subr.mxu0 0.0
      %3782 = vmatpush1.msra.mxu0 0.0
      %3783 = vmatprep.subr.mxu0 0.0
      %3784 = vmatpush1.msra.mxu0 0.0
      %3785 = vmatprep.subr.mxu0 0.0
      %3786 = vmatpush1.msra.mxu0 0.0
      %3787 = vmatprep.subr.mxu0 0.0
      %3788 = vmatpush1.msra.mxu0 0.0
      %3789 = vmatprep.subr.mxu0 0.0
      %3790 = vmatpush1.msra.mxu0 0.0
      %3791 = vmatprep.subr.mxu0 0.0
      %3792 = vmatpush1.msra.mxu0 0.0
      %3793 = vmatprep.subr.mxu0 0.0
      %3794 = vmatpush1.msra.mxu0 0.0
      %3795 = vmatprep.subr.mxu0 0.0
      %3796 = vmatpush1.msra.mxu0 0.0
      %3797 = vmatprep.subr.mxu0 0.0
      %3798 = vmatpush1.msra.mxu0 0.0
      %3799 = vmatprep.subr.mxu0 0.0
      %3800 = vmatpush1.msra.mxu0 0.0
      %3801 = vmatprep.subr.mxu0 0.0
      %3802 = vmatpush1.msra.mxu0 0.0
      %3803 = vmatprep.subr.mxu0 0.0
      %3804 = vmatpush1.msra.mxu0 0.0
      %3805 = vmatprep.subr.mxu0 0.0
      %3806 = vmatpush1.msra.mxu0 0.0
      %3807 = vmatprep.subr.mxu0 0.0
      %3808 = vmatpush1.msra.mxu0 0.0
      %3809 = vmatprep.subr.mxu0 0.0
      %3810 = vmatpush1.msra.mxu0 0.0
      %3811 = vmatprep.subr.mxu0 0.0
      %3812 = vmatpush1.msra.mxu0 0.0
      %3813 = vmatprep.subr.mxu0 0.0
      %3814 = vmatpush1.msra.mxu0 0.0
      %3815 = vmatprep.subr.mxu0 0.0
      %3816 = vmatpush1.msra.mxu0 0.0
      %3817 = vmatprep.mubr.f32.mxu0 0.0
      %3818 = vmatmul.mubr.f32.gmra.mrb[0].mxu0 %v3748
      %v3819 = vpop.f32.mrb[0].mxu0
      %v3820 = vadd.f32 0.0, %v3819
      %v3821 = vpop.f32.mrb[0].mxu0
      %3822 = vdwg.mxu0
      %v3823 = vadd.f32 %v3743, %v3820
      %v3824 = vld [vmem:[%s2] sm:$0xf]
      %3826 = vset.pattern.permute.xlu0 43
      %3827 = vperm.xlu0 %3826, %v3824
      %v3828 = vpop.permute.xlu0 %3827
      %v3830 = vadd.f32 %v3823, %v3828
      %v3831 = vmax.f32 %v3830, 0.0
      %3832 = vset.pattern.permute.xlu0 44
      %3833 = vperm.xlu0 %3832, %v3824
      %v3834 = vpop.permute.xlu0 %3833
      %v3836 = vmul.f32 %v3831, %v3834
      %3837 = vset.pattern.permute.xlu0 45
      %3838 = vperm.xlu0 %3837, %v3824
      %v3839 = vpop.permute.xlu0 %3838
      %v3841 = vadd.f32 %v3836, %v3839
      %3842 = vst [vmem:[#allocation2 + $0x8] sm:$0xf] %v3841
      %v3844 = vrot.slane %v3841, 4
      %v3846 = vadd.f32 %v3288, %v3844
      %v3848 = vrot.slane %v3846, 4
      %3850 = vrot.lane.b32.xlu0 %v3848, 4
      %v3851 = vpop.permute.xlu0 %3850
      %3852 = vrot.lane.b32.xlu0 %v3848, 124
      %v3853 = vpop.permute.xlu0 %3852
      %v3854 = vsel %vm515, %v3853, %v3851
      %v3855 = vsel %vm518, %v3851, %v3853
      %3856 = vrot.lane.b32.xlu0 %v3848, 126
      %v3857 = vpop.permute.xlu0 %3856
      %v3858 = vsel %vm521, %v3857, %v3854
      %3859 = vrot.lane.b32.xlu0 %v3848, 2
      %v3860 = vpop.permute.xlu0 %3859
      %v3861 = vsel %vm527, %v3860, %v3855
      %v3863 = vrot.slane %v3858, 4
      %v3865 = vsel %vm1917, %v3846, %v3863
      %v3867 = vrot.slane %v3861, 4
      %v3869 = vsel %vm1920, %v3846, %v3867
      %v3871 = vrot.slane %v3865, 4
      %v3873 = vsel %vm3314, %v3860, %v3871
      %v3875 = vrot.slane %v3869, 4
      %v3877 = vsel %vm3320, %v3857, %v3875
      %v3878 = vld [vmem:[%s1 + $0xd0] sm:$0xf]
      %3880 = vrot.lane.b32.xlu0 %v3878, 124
      %v3881 = vpop.permute.xlu0 %3880
      %v3882 = vsel %vm536, %v3881, 0
      %v3884 = vsel %vm539, %v3848, 0
      %3886 = vmatprep.subr.mxu0 0.0
      %3887 = vmatpush1.msra.mxu0 %v3884
      %3888 = vmatprep.subr.mxu0 0.0
      %3889 = vmatpush1.msra.mxu0 0.0
      %3890 = vmatprep.subr.mxu0 0.0
      %3891 = vmatpush1.msra.mxu0 0.0
      %3892 = vmatprep.subr.mxu0 0.0
      %3893 = vmatpush1.msra.mxu0 0.0
      %3894 = vmatprep.subr.mxu0 0.0
      %3895 = vmatpush1.msra.mxu0 0.0
      %3896 = vmatprep.subr.mxu0 0.0
      %3897 = vmatpush1.msra.mxu0 0.0
      %3898 = vmatprep.subr.mxu0 0.0
      %3899 = vmatpush1.msra.mxu0 0.0
      %3900 = vmatprep.subr.mxu0 0.0
      %3901 = vmatpush1.msra.mxu0 0.0
      %3902 = vmatprep.subr.mxu0 0.0
      %3903 = vmatpush1.msra.mxu0 0.0
      %3904 = vmatprep.subr.mxu0 0.0
      %3905 = vmatpush1.msra.mxu0 0.0
      %3906 = vmatprep.subr.mxu0 0.0
      %3907 = vmatpush1.msra.mxu0 0.0
      %3908 = vmatprep.subr.mxu0 0.0
      %3909 = vmatpush1.msra.mxu0 0.0
      %3910 = vmatprep.subr.mxu0 0.0
      %3911 = vmatpush1.msra.mxu0 0.0
      %3912 = vmatprep.subr.mxu0 0.0
      %3913 = vmatpush1.msra.mxu0 0.0
      %3914 = vmatprep.subr.mxu0 0.0
      %3915 = vmatpush1.msra.mxu0 0.0
      %3916 = vmatprep.subr.mxu0 0.0
      %3917 = vmatpush1.msra.mxu0 0.0
      %3918 = vmatprep.subr.mxu0 0.0
      %3919 = vmatpush1.msra.mxu0 0.0
      %3920 = vmatprep.subr.mxu0 0.0
      %3921 = vmatpush1.msra.mxu0 0.0
      %3922 = vmatprep.subr.mxu0 0.0
      %3923 = vmatpush1.msra.mxu0 0.0
      %3924 = vmatprep.subr.mxu0 0.0
      %3925 = vmatpush1.msra.mxu0 0.0
      %3926 = vmatprep.subr.mxu0 0.0
      %3927 = vmatpush1.msra.mxu0 0.0
      %3928 = vmatprep.subr.mxu0 0.0
      %3929 = vmatpush1.msra.mxu0 0.0
      %3930 = vmatprep.subr.mxu0 0.0
      %3931 = vmatpush1.msra.mxu0 0.0
      %3932 = vmatprep.subr.mxu0 0.0
      %3933 = vmatpush1.msra.mxu0 0.0
      %3934 = vmatprep.subr.mxu0 0.0
      %3935 = vmatpush1.msra.mxu0 0.0
      %3936 = vmatprep.subr.mxu0 0.0
      %3937 = vmatpush1.msra.mxu0 0.0
      %3938 = vmatprep.subr.mxu0 0.0
      %3939 = vmatpush1.msra.mxu0 0.0
      %3940 = vmatprep.subr.mxu0 0.0
      %3941 = vmatpush1.msra.mxu0 0.0
      %3942 = vmatprep.subr.mxu0 0.0
      %3943 = vmatpush1.msra.mxu0 0.0
      %3944 = vmatprep.subr.mxu0 0.0
      %3945 = vmatpush1.msra.mxu0 0.0
      %3946 = vmatprep.subr.mxu0 0.0
      %3947 = vmatpush1.msra.mxu0 0.0
      %3948 = vmatprep.subr.mxu0 0.0
      %3949 = vmatpush1.msra.mxu0 0.0
      %3950 = vmatprep.mubr.f32.mxu0 0.0
      %3951 = vmatmul.mubr.f32.gmra.mrb[0].mxu0 %v3882
      %v3952 = vpop.f32.mrb[0].mxu0
      %v3953 = vadd.f32 0.0, %v3952
      %v3954 = vpop.f32.mrb[0].mxu0
      %3955 = vdwg.mxu0
      %v3956 = vsel %vm536, %v3878, 0
      %v3959 = vsel %vm539, %v3873, 0
      %3961 = vmatprep.subr.mxu0 0.0
      %3962 = vmatpush1.msra.mxu0 %v3959
      %3963 = vmatprep.subr.mxu0 0.0
      %3964 = vmatpush1.msra.mxu0 0.0
      %3965 = vmatprep.subr.mxu0 0.0
      %3966 = vmatpush1.msra.mxu0 0.0
      %3967 = vmatprep.subr.mxu0 0.0
      %3968 = vmatpush1.msra.mxu0 0.0
      %3969 = vmatprep.subr.mxu0 0.0
      %3970 = vmatpush1.msra.mxu0 0.0
      %3971 = vmatprep.subr.mxu0 0.0
      %3972 = vmatpush1.msra.mxu0 0.0
      %3973 = vmatprep.subr.mxu0 0.0
      %3974 = vmatpush1.msra.mxu0 0.0
      %3975 = vmatprep.subr.mxu0 0.0
      %3976 = vmatpush1.msra.mxu0 0.0
      %3977 = vmatprep.subr.mxu0 0.0
      %3978 = vmatpush1.msra.mxu0 0.0
      %3979 = vmatprep.subr.mxu0 0.0
      %3980 = vmatpush1.msra.mxu0 0.0
      %3981 = vmatprep.subr.mxu0 0.0
      %3982 = vmatpush1.msra.mxu0 0.0
      %3983 = vmatprep.subr.mxu0 0.0
      %3984 = vmatpush1.msra.mxu0 0.0
      %3985 = vmatprep.subr.mxu0 0.0
      %3986 = vmatpush1.msra.mxu0 0.0
      %3987 = vmatprep.subr.mxu0 0.0
      %3988 = vmatpush1.msra.mxu0 0.0
      %3989 = vmatprep.subr.mxu0 0.0
      %3990 = vmatpush1.msra.mxu0 0.0
      %3991 = vmatprep.subr.mxu0 0.0
      %3992 = vmatpush1.msra.mxu0 0.0
      %3993 = vmatprep.subr.mxu0 0.0
      %3994 = vmatpush1.msra.mxu0 0.0
      %3995 = vmatprep.subr.mxu0 0.0
      %3996 = vmatpush1.msra.mxu0 0.0
      %3997 = vmatprep.subr.mxu0 0.0
      %3998 = vmatpush1.msra.mxu0 0.0
      %3999 = vmatprep.subr.mxu0 0.0
      %4000 = vmatpush1.msra.mxu0 0.0
      %4001 = vmatprep.subr.mxu0 0.0
      %4002 = vmatpush1.msra.mxu0 0.0
      %4003 = vmatprep.subr.mxu0 0.0
      %4004 = vmatpush1.msra.mxu0 0.0
      %4005 = vmatprep.subr.mxu0 0.0
      %4006 = vmatpush1.msra.mxu0 0.0
      %4007 = vmatprep.subr.mxu0 0.0
      %4008 = vmatpush1.msra.mxu0 0.0
      %4009 = vmatprep.subr.mxu0 0.0
      %4010 = vmatpush1.msra.mxu0 0.0
      %4011 = vmatprep.subr.mxu0 0.0
      %4012 = vmatpush1.msra.mxu0 0.0
      %4013 = vmatprep.subr.mxu0 0.0
      %4014 = vmatpush1.msra.mxu0 0.0
      %4015 = vmatprep.subr.mxu0 0.0
      %4016 = vmatpush1.msra.mxu0 0.0
      %4017 = vmatprep.subr.mxu0 0.0
      %4018 = vmatpush1.msra.mxu0 0.0
      %4019 = vmatprep.subr.mxu0 0.0
      %4020 = vmatpush1.msra.mxu0 0.0
      %4021 = vmatprep.subr.mxu0 0.0
      %4022 = vmatpush1.msra.mxu0 0.0
      %4023 = vmatprep.subr.mxu0 0.0
      %4024 = vmatpush1.msra.mxu0 0.0
      %4025 = vmatprep.mubr.f32.mxu0 0.0
      %4026 = vmatmul.mubr.f32.gmra.mrb[0].mxu0 %v3956
      %v4027 = vpop.f32.mrb[0].mxu0
      %v4028 = vadd.f32 %v3953, %v4027
      %v4029 = vpop.f32.mrb[0].mxu0
      %4030 = vdwg.mxu0
      %4031 = vrot.lane.b32.xlu0 %v3878, 120
      %v4032 = vpop.permute.xlu0 %4031
      %v4033 = vsel %vm536, %v4032, 0
      %v4036 = vsel %vm539, %v3877, 0
      %4038 = vmatprep.subr.mxu0 0.0
      %4039 = vmatpush1.msra.mxu0 %v4036
      %4040 = vmatprep.subr.mxu0 0.0
      %4041 = vmatpush1.msra.mxu0 0.0
      %4042 = vmatprep.subr.mxu0 0.0
      %4043 = vmatpush1.msra.mxu0 0.0
      %4044 = vmatprep.subr.mxu0 0.0
      %4045 = vmatpush1.msra.mxu0 0.0
      %4046 = vmatprep.subr.mxu0 0.0
      %4047 = vmatpush1.msra.mxu0 0.0
      %4048 = vmatprep.subr.mxu0 0.0
      %4049 = vmatpush1.msra.mxu0 0.0
      %4050 = vmatprep.subr.mxu0 0.0
      %4051 = vmatpush1.msra.mxu0 0.0
      %4052 = vmatprep.subr.mxu0 0.0
      %4053 = vmatpush1.msra.mxu0 0.0
      %4054 = vmatprep.subr.mxu0 0.0
      %4055 = vmatpush1.msra.mxu0 0.0
      %4056 = vmatprep.subr.mxu0 0.0
      %4057 = vmatpush1.msra.mxu0 0.0
      %4058 = vmatprep.subr.mxu0 0.0
      %4059 = vmatpush1.msra.mxu0 0.0
      %4060 = vmatprep.subr.mxu0 0.0
      %4061 = vmatpush1.msra.mxu0 0.0
      %4062 = vmatprep.subr.mxu0 0.0
      %4063 = vmatpush1.msra.mxu0 0.0
      %4064 = vmatprep.subr.mxu0 0.0
      %4065 = vmatpush1.msra.mxu0 0.0
      %4066 = vmatprep.subr.mxu0 0.0
      %4067 = vmatpush1.msra.mxu0 0.0
      %4068 = vmatprep.subr.mxu0 0.0
      %4069 = vmatpush1.msra.mxu0 0.0
      %4070 = vmatprep.subr.mxu0 0.0
      %4071 = vmatpush1.msra.mxu0 0.0
      %4072 = vmatprep.subr.mxu0 0.0
      %4073 = vmatpush1.msra.mxu0 0.0
      %4074 = vmatprep.subr.mxu0 0.0
      %4075 = vmatpush1.msra.mxu0 0.0
      %4076 = vmatprep.subr.mxu0 0.0
      %4077 = vmatpush1.msra.mxu0 0.0
      %4078 = vmatprep.subr.mxu0 0.0
      %4079 = vmatpush1.msra.mxu0 0.0
      %4080 = vmatprep.subr.mxu0 0.0
      %4081 = vmatpush1.msra.mxu0 0.0
      %4082 = vmatprep.subr.mxu0 0.0
      %4083 = vmatpush1.msra.mxu0 0.0
      %4084 = vmatprep.subr.mxu0 0.0
      %4085 = vmatpush1.msra.mxu0 0.0
      %4086 = vmatprep.subr.mxu0 0.0
      %4087 = vmatpush1.msra.mxu0 0.0
      %4088 = vmatprep.subr.mxu0 0.0
      %4089 = vmatpush1.msra.mxu0 0.0
      %4090 = vmatprep.subr.mxu0 0.0
      %4091 = vmatpush1.msra.mxu0 0.0
      %4092 = vmatprep.subr.mxu0 0.0
      %4093 = vmatpush1.msra.mxu0 0.0
      %4094 = vmatprep.subr.mxu0 0.0
      %4095 = vmatpush1.msra.mxu0 0.0
      %4096 = vmatprep.subr.mxu0 0.0
      %4097 = vmatpush1.msra.mxu0 0.0
      %4098 = vmatprep.subr.mxu0 0.0
      %4099 = vmatpush1.msra.mxu0 0.0
      %4100 = vmatprep.subr.mxu0 0.0
      %4101 = vmatpush1.msra.mxu0 0.0
      %4102 = vmatprep.mubr.f32.mxu0 0.0
      %4103 = vmatmul.mubr.f32.gmra.mrb[0].mxu0 %v4033
      %v4104 = vpop.f32.mrb[0].mxu0
      %v4105 = vadd.f32 0.0, %v4104
      %v4106 = vpop.f32.mrb[0].mxu0
      %4107 = vdwg.mxu0
      %v4108 = vadd.f32 %v4028, %v4105
      %v4109 = vld [vmem:[%s2] sm:$0xf]
      %4111 = vset.pattern.permute.xlu0 46
      %4112 = vperm.xlu0 %4111, %v4109
      %v4113 = vpop.permute.xlu0 %4112
      %v4115 = vadd.f32 %v4108, %v4113
      %v4116 = vmax.f32 %v4115, 0.0
      %4117 = vset.pattern.permute.xlu0 47
      %4118 = vperm.xlu0 %4117, %v4109
      %v4119 = vpop.permute.xlu0 %4118
      %v4121 = vmul.f32 %v4116, %v4119
      %4122 = vset.pattern.permute.xlu0 48
      %4123 = vperm.xlu0 %4122, %v4109
      %v4124 = vpop.permute.xlu0 %4123
      %v4126 = vadd.f32 %v4121, %v4124
      %4127 = vst [vmem:[#allocation2 + $0xc] sm:$0xf] %v4126
      %v4128 = vld [vmem:[%s1 + $0xd8] sm:$0xff]
      %v4129 = vld [vmem:[%s1 + $0xe0] sm:$0xff]
      %v4130 = vld [vmem:[#allocation2] sm:$0xff]
      %v4131 = vld [vmem:[#allocation2 + $0x8] sm:$0xff]
      %v4132 = vld [vmem:[%s2] sm:$0xff]
      %v4133 = vld [vmem:[%s2 + $0x8] sm:$0xff]
      %4135 = vset.pattern.permute.xlu0 49
      %4136 = vperm.xlu0 %4135, %v4132
      %v4137 = vpop.permute.xlu0 %4136
      %4140 = vset.pattern.permute.xlu0 49
      %4141 = vperm.xlu0 %4140, %v4133
      %v4142 = vpop.permute.xlu0 %4141
      %v4145 = vsel %vm402, %v4128, 0
      %v4148 = vsel %vm402, %v4129, 0
      %4150 = vmatprep.subr.mxu0 0.0
      %4151 = vmatpush1.msra.mxu0 %v4130
      %4152 = vmatprep.subr.mxu0 0.0
      %4153 = vmatpush1.msra.mxu0 %v4131
      %4154 = vmatprep.subr.mxu0 0.0
      %4155 = vmatpush1.msra.mxu0 0.0
      %4156 = vmatprep.subr.mxu0 0.0
      %4157 = vmatpush1.msra.mxu0 0.0
      %4158 = vmatprep.subr.mxu0 0.0
      %4159 = vmatpush1.msra.mxu0 0.0
      %4160 = vmatprep.subr.mxu0 0.0
      %4161 = vmatpush1.msra.mxu0 0.0
      %4162 = vmatprep.subr.mxu0 0.0
      %4163 = vmatpush1.msra.mxu0 0.0
      %4164 = vmatprep.subr.mxu0 0.0
      %4165 = vmatpush1.msra.mxu0 0.0
      %4166 = vmatprep.subr.mxu0 0.0
      %4167 = vmatpush1.msra.mxu0 0.0
      %4168 = vmatprep.subr.mxu0 0.0
      %4169 = vmatpush1.msra.mxu0 0.0
      %4170 = vmatprep.subr.mxu0 0.0
      %4171 = vmatpush1.msra.mxu0 0.0
      %4172 = vmatprep.subr.mxu0 0.0
      %4173 = vmatpush1.msra.mxu0 0.0
      %4174 = vmatprep.subr.mxu0 0.0
      %4175 = vmatpush1.msra.mxu0 0.0
      %4176 = vmatprep.subr.mxu0 0.0
      %4177 = vmatpush1.msra.mxu0 0.0
      %4178 = vmatprep.subr.mxu0 0.0
      %4179 = vmatpush1.msra.mxu0 0.0
      %4180 = vmatprep.subr.mxu0 0.0
      %4181 = vmatpush1.msra.mxu0 0.0
      %4182 = vmatprep.subr.mxu0 0.0
      %4183 = vmatpush1.msra.mxu0 0.0
      %4184 = vmatprep.subr.mxu0 0.0
      %4185 = vmatpush1.msra.mxu0 0.0
      %4186 = vmatprep.subr.mxu0 0.0
      %4187 = vmatpush1.msra.mxu0 0.0
      %4188 = vmatprep.subr.mxu0 0.0
      %4189 = vmatpush1.msra.mxu0 0.0
      %4190 = vmatprep.subr.mxu0 0.0
      %4191 = vmatpush1.msra.mxu0 0.0
      %4192 = vmatprep.subr.mxu0 0.0
      %4193 = vmatpush1.msra.mxu0 0.0
      %4194 = vmatprep.subr.mxu0 0.0
      %4195 = vmatpush1.msra.mxu0 0.0
      %4196 = vmatprep.subr.mxu0 0.0
      %4197 = vmatpush1.msra.mxu0 0.0
      %4198 = vmatprep.subr.mxu0 0.0
      %4199 = vmatpush1.msra.mxu0 0.0
      %4200 = vmatprep.subr.mxu0 0.0
      %4201 = vmatpush1.msra.mxu0 0.0
      %4202 = vmatprep.subr.mxu0 0.0
      %4203 = vmatpush1.msra.mxu0 0.0
      %4204 = vmatprep.subr.mxu0 0.0
      %4205 = vmatpush1.msra.mxu0 0.0
      %4206 = vmatprep.subr.mxu0 0.0
      %4207 = vmatpush1.msra.mxu0 0.0
      %4208 = vmatprep.subr.mxu0 0.0
      %4209 = vmatpush1.msra.mxu0 0.0
      %4210 = vmatprep.subr.mxu0 0.0
      %4211 = vmatpush1.msra.mxu0 0.0
      %4212 = vmatprep.subr.mxu0 0.0
      %4213 = vmatpush1.msra.mxu0 0.0
      %4214 = vmatprep.mubr.f32.mxu0 0.0
      %4215 = vmatmul.mubr.f32.gmra.mrb[0].mxu0 %v4145
      %v4216 = vpop.f32.mrb[0].mxu0
      %v4217 = vadd.f32 %v4137, %v4216
      %v4218 = vpop.f32.mrb[0].mxu0
      %4219 = vmatprep.mubr.f32.mxu0 0.0
      %4220 = vmatmul.mubr.f32.gmra.mrb[0].mxu0 %v4148
      %v4221 = vpop.f32.mrb[0].mxu0
      %v4222 = vadd.f32 %v4142, %v4221
      %v4223 = vpop.f32.mrb[0].mxu0
      %4224 = vdwg.mxu0
      %v4225 = vmax.f32 %v4217, 0.0
      %v4226 = vmax.f32 %v4222, 0.0
      %4227 = vset.pattern.permute.xlu0 50
      %4228 = vperm.xlu0 %4227, %v4132
      %v4229 = vpop.permute.xlu0 %4228
      %4231 = vset.pattern.permute.xlu0 50
      %4232 = vperm.xlu0 %4231, %v4133
      %v4233 = vpop.permute.xlu0 %4232
      %v4235 = vmul.f32 %v4225, %v4229
      %v4236 = vmul.f32 %v4226, %v4233
      %4237 = vset.pattern.permute.xlu0 51
      %4238 = vperm.xlu0 %4237, %v4132
      %v4239 = vpop.permute.xlu0 %4238
      %4241 = vset.pattern.permute.xlu0 51
      %4242 = vperm.xlu0 %4241, %v4133
      %v4243 = vpop.permute.xlu0 %4242
      %v4245 = vadd.f32 %v4235, %v4239
      %v4246 = vadd.f32 %v4236, %v4243
      %4247 = vmatprep.subr.mxu0 0.0
      %4248 = vmatpush1.msra.mxu0 %v242
      %4249 = vmatprep.subr.mxu0 0.0
      %4250 = vmatpush1.msra.mxu0 %v243
      %4251 = vmatprep.subr.mxu0 0.0
      %4252 = vmatpush1.msra.mxu0 %v244
      %4253 = vmatprep.subr.mxu0 0.0
      %4254 = vmatpush1.msra.mxu0 %v245
      %4255 = vmatprep.subr.mxu0 0.0
      %4256 = vmatpush1.msra.mxu0 %v246
      %4257 = vmatprep.subr.mxu0 0.0
      %4258 = vmatpush1.msra.mxu0 %v247
      %4259 = vmatprep.subr.mxu0 0.0
      %4260 = vmatpush1.msra.mxu0 %v248
      %4261 = vmatprep.subr.mxu0 0.0
      %4262 = vmatpush1.msra.mxu0 %v249
      %4263 = vmatprep.subr.mxu0 0.0
      %4264 = vmatpush1.msra.mxu0 %v250
      %4265 = vmatprep.subr.mxu0 0.0
      %4266 = vmatpush1.msra.mxu0 %v251
      %4267 = vmatprep.subr.mxu0 0.0
      %4268 = vmatpush1.msra.mxu0 %v252
      %4269 = vmatprep.subr.mxu0 0.0
      %4270 = vmatpush1.msra.mxu0 %v253
      %4271 = vmatprep.subr.mxu0 0.0
      %4272 = vmatpush1.msra.mxu0 %v254
      %4273 = vmatprep.subr.mxu0 0.0
      %4274 = vmatpush1.msra.mxu0 %v255
      %4275 = vmatprep.subr.mxu0 0.0
      %4276 = vmatpush1.msra.mxu0 %v256
      %4277 = vmatprep.subr.mxu0 0.0
      %4278 = vmatpush1.msra.mxu0 %v257
      %4279 = vmatprep.subr.mxu0 0.0
      %4280 = vmatpush1.msra.mxu0 0.0
      %4281 = vmatprep.subr.mxu0 0.0
      %4282 = vmatpush1.msra.mxu0 0.0
      %4283 = vmatprep.subr.mxu0 0.0
      %4284 = vmatpush1.msra.mxu0 0.0
      %4285 = vmatprep.subr.mxu0 0.0
      %4286 = vmatpush1.msra.mxu0 0.0
      %4287 = vmatprep.subr.mxu0 0.0
      %4288 = vmatpush1.msra.mxu0 0.0
      %4289 = vmatprep.subr.mxu0 0.0
      %4290 = vmatpush1.msra.mxu0 0.0
      %4291 = vmatprep.subr.mxu0 0.0
      %4292 = vmatpush1.msra.mxu0 0.0
      %4293 = vmatprep.subr.mxu0 0.0
      %4294 = vmatpush1.msra.mxu0 0.0
      %4295 = vmatprep.subr.mxu0 0.0
      %4296 = vmatpush1.msra.mxu0 0.0
      %4297 = vmatprep.subr.mxu0 0.0
      %4298 = vmatpush1.msra.mxu0 0.0
      %4299 = vmatprep.subr.mxu0 0.0
      %4300 = vmatpush1.msra.mxu0 0.0
      %4301 = vmatprep.subr.mxu0 0.0
      %4302 = vmatpush1.msra.mxu0 0.0
      %4303 = vmatprep.subr.mxu0 0.0
      %4304 = vmatpush1.msra.mxu0 0.0
      %4305 = vmatprep.subr.mxu0 0.0
      %4306 = vmatpush1.msra.mxu0 0.0
      %4307 = vmatprep.subr.mxu0 0.0
      %4308 = vmatpush1.msra.mxu0 0.0
      %4309 = vmatprep.subr.mxu0 0.0
      %4310 = vmatpush1.msra.mxu0 0.0
      %4311 = vmatprep.mubr.f32.mxu0 0.0
      %4312 = vmatmul.mubr.f32.gmra.mrb[0].mxu0 %v4245
      %v4313 = vpop.f32.mrb[0].mxu0
      %v4314 = vadd.f32 0.0, %v4313
      %v4315 = vpop.f32.mrb[0].mxu0
      %4316 = vmatprep.mubr.f32.mxu0 0.0
      %4317 = vmatmul.mubr.f32.gmra.mrb[0].mxu0 %v4246
      %v4318 = vpop.f32.mrb[0].mxu0
      %v4319 = vadd.f32 0.0, %v4318
      %v4320 = vpop.f32.mrb[0].mxu0
      %4321 = vdwg.mxu0
      %v4322 = vmul.f32 %v4314, 0.0625
      %v4323 = vmul.f32 %v4319, 0.0625
      %v4324 = vld [vmem:[%s1 + $0xe8] sm:$0xff]
      %v4325 = vld [vmem:[%s2] sm:$0xff]
      %4327 = vset.pattern.permute.xlu0 52
      %4328 = vperm.xlu0 %4327, %v4325
      %v4329 = vpop.permute.xlu0 %4328
      %v4332 = vsel %vm402, %v4324, 0
      %4334 = vmatprep.subr.mxu0 0.0
      %4335 = vmatpush1.msra.mxu0 %v4322
      %4336 = vmatprep.subr.mxu0 0.0
      %4337 = vmatpush1.msra.mxu0 %v4323
      %4338 = vmatprep.subr.mxu0 0.0
      %4339 = vmatpush1.msra.mxu0 0.0
      %4340 = vmatprep.subr.mxu0 0.0
      %4341 = vmatpush1.msra.mxu0 0.0
      %4342 = vmatprep.subr.mxu0 0.0
      %4343 = vmatpush1.msra.mxu0 0.0
      %4344 = vmatprep.subr.mxu0 0.0
      %4345 = vmatpush1.msra.mxu0 0.0
      %4346 = vmatprep.subr.mxu0 0.0
      %4347 = vmatpush1.msra.mxu0 0.0
      %4348 = vmatprep.subr.mxu0 0.0
      %4349 = vmatpush1.msra.mxu0 0.0
      %4350 = vmatprep.subr.mxu0 0.0
      %4351 = vmatpush1.msra.mxu0 0.0
      %4352 = vmatprep.subr.mxu0 0.0
      %4353 = vmatpush1.msra.mxu0 0.0
      %4354 = vmatprep.subr.mxu0 0.0
      %4355 = vmatpush1.msra.mxu0 0.0
      %4356 = vmatprep.subr.mxu0 0.0
      %4357 = vmatpush1.msra.mxu0 0.0
      %4358 = vmatprep.subr.mxu0 0.0
      %4359 = vmatpush1.msra.mxu0 0.0
      %4360 = vmatprep.subr.mxu0 0.0
      %4361 = vmatpush1.msra.mxu0 0.0
      %4362 = vmatprep.subr.mxu0 0.0
      %4363 = vmatpush1.msra.mxu0 0.0
      %4364 = vmatprep.subr.mxu0 0.0
      %4365 = vmatpush1.msra.mxu0 0.0
      %4366 = vmatprep.subr.mxu0 0.0
      %4367 = vmatpush1.msra.mxu0 0.0
      %4368 = vmatprep.subr.mxu0 0.0
      %4369 = vmatpush1.msra.mxu0 0.0
      %4370 = vmatprep.subr.mxu0 0.0
      %4371 = vmatpush1.msra.mxu0 0.0
      %4372 = vmatprep.subr.mxu0 0.0
      %4373 = vmatpush1.msra.mxu0 0.0
      %4374 = vmatprep.subr.mxu0 0.0
      %4375 = vmatpush1.msra.mxu0 0.0
      %4376 = vmatprep.subr.mxu0 0.0
      %4377 = vmatpush1.msra.mxu0 0.0
      %4378 = vmatprep.subr.mxu0 0.0
      %4379 = vmatpush1.msra.mxu0 0.0
      %4380 = vmatprep.subr.mxu0 0.0
      %4381 = vmatpush1.msra.mxu0 0.0
      %4382 = vmatprep.subr.mxu0 0.0
      %4383 = vmatpush1.msra.mxu0 0.0
      %4384 = vmatprep.subr.mxu0 0.0
      %4385 = vmatpush1.msra.mxu0 0.0
      %4386 = vmatprep.subr.mxu0 0.0
      %4387 = vmatpush1.msra.mxu0 0.0
      %4388 = vmatprep.subr.mxu0 0.0
      %4389 = vmatpush1.msra.mxu0 0.0
      %4390 = vmatprep.subr.mxu0 0.0
      %4391 = vmatpush1.msra.mxu0 0.0
      %4392 = vmatprep.subr.mxu0 0.0
      %4393 = vmatpush1.msra.mxu0 0.0
      %4394 = vmatprep.subr.mxu0 0.0
      %4395 = vmatpush1.msra.mxu0 0.0
      %4396 = vmatprep.subr.mxu0 0.0
      %4397 = vmatpush1.msra.mxu0 0.0
      %4398 = vmatprep.mubr.f32.mxu0 0.0
      %4399 = vmatmul.mubr.f32.gmra.mrb[0].mxu0 %v4332
      %v4400 = vpop.f32.mrb[0].mxu0
      %v4401 = vadd.f32 %v4329, %v4400
      %v4402 = vpop.f32.mrb[0].mxu0
      %4403 = vdwg.mxu0
      %v4404 = vmax.f32 %v4401, 0.0
      %v4405 = vld [vmem:[%s1 + $0xf0] sm:$0xff]
      %v4406 = vld [vmem:[%s1 + $0xf8] sm:$0xff]
      %4407 = vset.pattern.permute.xlu0 53
      %4408 = vperm.xlu0 %4407, %v4132
      %v4409 = vpop.permute.xlu0 %4408
      %4411 = vset.pattern.permute.xlu0 53
      %4412 = vperm.xlu0 %4411, %v4133
      %v4413 = vpop.permute.xlu0 %4412
      %v4416 = vsel %vm1606, %v4405, 0
      %v4419 = vsel %vm1606, %v4406, 0
      %4421 = vmatprep.subr.mxu0 0.0
      %4422 = vmatpush1.msra.mxu0 %v4404
      %4423 = vmatprep.subr.mxu0 0.0
      %4424 = vmatpush1.msra.mxu0 0.0
      %4425 = vmatprep.subr.mxu0 0.0
      %4426 = vmatpush1.msra.mxu0 0.0
      %4427 = vmatprep.subr.mxu0 0.0
      %4428 = vmatpush1.msra.mxu0 0.0
      %4429 = vmatprep.subr.mxu0 0.0
      %4430 = vmatpush1.msra.mxu0 0.0
      %4431 = vmatprep.subr.mxu0 0.0
      %4432 = vmatpush1.msra.mxu0 0.0
      %4433 = vmatprep.subr.mxu0 0.0
      %4434 = vmatpush1.msra.mxu0 0.0
      %4435 = vmatprep.subr.mxu0 0.0
      %4436 = vmatpush1.msra.mxu0 0.0
      %4437 = vmatprep.subr.mxu0 0.0
      %4438 = vmatpush1.msra.mxu0 0.0
      %4439 = vmatprep.subr.mxu0 0.0
      %4440 = vmatpush1.msra.mxu0 0.0
      %4441 = vmatprep.subr.mxu0 0.0
      %4442 = vmatpush1.msra.mxu0 0.0
      %4443 = vmatprep.subr.mxu0 0.0
      %4444 = vmatpush1.msra.mxu0 0.0
      %4445 = vmatprep.subr.mxu0 0.0
      %4446 = vmatpush1.msra.mxu0 0.0
      %4447 = vmatprep.subr.mxu0 0.0
      %4448 = vmatpush1.msra.mxu0 0.0
      %4449 = vmatprep.subr.mxu0 0.0
      %4450 = vmatpush1.msra.mxu0 0.0
      %4451 = vmatprep.subr.mxu0 0.0
      %4452 = vmatpush1.msra.mxu0 0.0
      %4453 = vmatprep.subr.mxu0 0.0
      %4454 = vmatpush1.msra.mxu0 0.0
      %4455 = vmatprep.subr.mxu0 0.0
      %4456 = vmatpush1.msra.mxu0 0.0
      %4457 = vmatprep.subr.mxu0 0.0
      %4458 = vmatpush1.msra.mxu0 0.0
      %4459 = vmatprep.subr.mxu0 0.0
      %4460 = vmatpush1.msra.mxu0 0.0
      %4461 = vmatprep.subr.mxu0 0.0
      %4462 = vmatpush1.msra.mxu0 0.0
      %4463 = vmatprep.subr.mxu0 0.0
      %4464 = vmatpush1.msra.mxu0 0.0
      %4465 = vmatprep.subr.mxu0 0.0
      %4466 = vmatpush1.msra.mxu0 0.0
      %4467 = vmatprep.subr.mxu0 0.0
      %4468 = vmatpush1.msra.mxu0 0.0
      %4469 = vmatprep.subr.mxu0 0.0
      %4470 = vmatpush1.msra.mxu0 0.0
      %4471 = vmatprep.subr.mxu0 0.0
      %4472 = vmatpush1.msra.mxu0 0.0
      %4473 = vmatprep.subr.mxu0 0.0
      %4474 = vmatpush1.msra.mxu0 0.0
      %4475 = vmatprep.subr.mxu0 0.0
      %4476 = vmatpush1.msra.mxu0 0.0
      %4477 = vmatprep.subr.mxu0 0.0
      %4478 = vmatpush1.msra.mxu0 0.0
      %4479 = vmatprep.subr.mxu0 0.0
      %4480 = vmatpush1.msra.mxu0 0.0
      %4481 = vmatprep.subr.mxu0 0.0
      %4482 = vmatpush1.msra.mxu0 0.0
      %4483 = vmatprep.subr.mxu0 0.0
      %4484 = vmatpush1.msra.mxu0 0.0
      %4485 = vmatprep.mubr.f32.mxu0 0.0
      %4486 = vmatmul.mubr.f32.gmra.mrb[0].mxu0 %v4416
      %v4487 = vpop.f32.mrb[0].mxu0
      %v4488 = vadd.f32 %v4409, %v4487
      %v4489 = vpop.f32.mrb[0].mxu0
      %4490 = vmatprep.mubr.f32.mxu0 0.0
      %4491 = vmatmul.mubr.f32.gmra.mrb[0].mxu0 %v4419
      %v4492 = vpop.f32.mrb[0].mxu0
      %v4493 = vadd.f32 %v4413, %v4492
      %v4494 = vpop.f32.mrb[0].mxu0
      %4495 = vdwg.mxu0
      %v4496 = vxor.u32 %v4488, 2147483648
      %v4497 = vxor.u32 %v4493, 2147483648
      %v4498 = vmul.f32 %v4496, 1.442695
      %v4499 = vpow.pop %v4498
      %v4500 = vmul.f32 %v4497, 1.442695
      %v4501 = vpow.pop %v4500
      %v4502 = vadd.f32 %v4499, 1.0
      %v4503 = vadd.f32 %v4501, 1.0
      %v4504 = vrcp.pop %v4502
      %v4505 = vmul.f32 1.0, %v4504
      %v4506 = vrcp.pop %v4503
      %v4507 = vmul.f32 1.0, %v4506
      %v4509 = vsel %vm1606, %v4505, 0
      %v4512 = vsel %vm1606, %v4507, 0
      %4514 = vmatprep.subr.mxu0 0.0
      %4515 = vmatpush1.msra.mxu0 %v264
      %4516 = vmatprep.subr.mxu0 0.0
      %4517 = vmatpush1.msra.mxu0 0.0
      %4518 = vmatprep.subr.mxu0 0.0
      %4519 = vmatpush1.msra.mxu0 0.0
      %4520 = vmatprep.subr.mxu0 0.0
      %4521 = vmatpush1.msra.mxu0 0.0
      %4522 = vmatprep.subr.mxu0 0.0
      %4523 = vmatpush1.msra.mxu0 0.0
      %4524 = vmatprep.subr.mxu0 0.0
      %4525 = vmatpush1.msra.mxu0 0.0
      %4526 = vmatprep.subr.mxu0 0.0
      %4527 = vmatpush1.msra.mxu0 0.0
      %4528 = vmatprep.subr.mxu0 0.0
      %4529 = vmatpush1.msra.mxu0 0.0
      %4530 = vmatprep.subr.mxu0 0.0
      %4531 = vmatpush1.msra.mxu0 0.0
      %4532 = vmatprep.subr.mxu0 0.0
      %4533 = vmatpush1.msra.mxu0 0.0
      %4534 = vmatprep.subr.mxu0 0.0
      %4535 = vmatpush1.msra.mxu0 0.0
      %4536 = vmatprep.subr.mxu0 0.0
      %4537 = vmatpush1.msra.mxu0 0.0
      %4538 = vmatprep.subr.mxu0 0.0
      %4539 = vmatpush1.msra.mxu0 0.0
      %4540 = vmatprep.subr.mxu0 0.0
      %4541 = vmatpush1.msra.mxu0 0.0
      %4542 = vmatprep.subr.mxu0 0.0
      %4543 = vmatpush1.msra.mxu0 0.0
      %4544 = vmatprep.subr.mxu0 0.0
      %4545 = vmatpush1.msra.mxu0 0.0
      %4546 = vmatprep.subr.mxu0 0.0
      %4547 = vmatpush1.msra.mxu0 0.0
      %4548 = vmatprep.subr.mxu0 0.0
      %4549 = vmatpush1.msra.mxu0 0.0
      %4550 = vmatprep.subr.mxu0 0.0
      %4551 = vmatpush1.msra.mxu0 0.0
      %4552 = vmatprep.subr.mxu0 0.0
      %4553 = vmatpush1.msra.mxu0 0.0
      %4554 = vmatprep.subr.mxu0 0.0
      %4555 = vmatpush1.msra.mxu0 0.0
      %4556 = vmatprep.subr.mxu0 0.0
      %4557 = vmatpush1.msra.mxu0 0.0
      %4558 = vmatprep.subr.mxu0 0.0
      %4559 = vmatpush1.msra.mxu0 0.0
      %4560 = vmatprep.subr.mxu0 0.0
      %4561 = vmatpush1.msra.mxu0 0.0
      %4562 = vmatprep.subr.mxu0 0.0
      %4563 = vmatpush1.msra.mxu0 0.0
      %4564 = vmatprep.subr.mxu0 0.0
      %4565 = vmatpush1.msra.mxu0 0.0
      %4566 = vmatprep.subr.mxu0 0.0
      %4567 = vmatpush1.msra.mxu0 0.0
      %4568 = vmatprep.subr.mxu0 0.0
      %4569 = vmatpush1.msra.mxu0 0.0
      %4570 = vmatprep.subr.mxu0 0.0
      %4571 = vmatpush1.msra.mxu0 0.0
      %4572 = vmatprep.subr.mxu0 0.0
      %4573 = vmatpush1.msra.mxu0 0.0
      %4574 = vmatprep.subr.mxu0 0.0
      %4575 = vmatpush1.msra.mxu0 0.0
      %4576 = vmatprep.subr.mxu0 0.0
      %4577 = vmatpush1.msra.mxu0 0.0
      %4578 = vmatprep.mubr.f32.mxu0 0.0
      %4579 = vmatmul.mubr.f32.gmra.mrb[0].mxu0 %v4509
      %v4580 = vpop.f32.mrb[0].mxu0
      %v4581 = vadd.f32 0.0, %v4580
      %v4582 = vpop.f32.mrb[0].mxu0
      %4583 = vmatprep.mubr.f32.mxu0 0.0
      %4584 = vmatmul.mubr.f32.gmra.mrb[0].mxu0 %v4512
      %v4585 = vpop.f32.mrb[0].mxu0
      %v4586 = vadd.f32 0.0, %v4585
      %v4587 = vpop.f32.mrb[0].mxu0
      %4588 = vdwg.mxu0
      %v4589 = vmul.f32 %v4581, %v4245
      %v4590 = vmul.f32 %v4586, %v4246
      %v4591 = vadd.f32 %v4589, %v3172
      %v4592 = vadd.f32 %v4590, %v3173
      %v4593 = vld [vmem:[%s1 + $0x100] sm:$0xff]
      %v4594 = vld [vmem:[%s1 + $0x108] sm:$0xff]
      %v4595 = vld [vmem:[%s1 + $0x110] sm:$0xff]
      %v4596 = vld [vmem:[%s1 + $0x118] sm:$0xff]
      %v4597 = vld [vmem:[%s1 + $0x120] sm:$0xff]
      %v4598 = vld [vmem:[%s1 + $0x128] sm:$0xff]
      %v4599 = vld [vmem:[%s2] sm:$0xff]
      %v4600 = vld [vmem:[%s2 + $0x8] sm:$0xff]
      %v4601 = vld [vmem:[%s2 + $0x10] sm:$0xff]
      %v4602 = vld [vmem:[%s2 + $0x18] sm:$0xff]
      %v4603 = vld [vmem:[%s2 + $0x20] sm:$0xff]
      %v4604 = vld [vmem:[%s2 + $0x28] sm:$0xff]
      %4606 = vset.pattern.permute.xlu0 54
      %4607 = vperm.xlu0 %4606, %v4599
      %v4608 = vpop.permute.xlu0 %4607
      %4611 = vset.pattern.permute.xlu0 54
      %4612 = vperm.xlu0 %4611, %v4600
      %v4613 = vpop.permute.xlu0 %4612
      %4616 = vset.pattern.permute.xlu0 54
      %4617 = vperm.xlu0 %4616, %v4601
      %v4618 = vpop.permute.xlu0 %4617
      %4621 = vset.pattern.permute.xlu0 54
      %4622 = vperm.xlu0 %4621, %v4602
      %v4623 = vpop.permute.xlu0 %4622
      %4626 = vset.pattern.permute.xlu0 54
      %4627 = vperm.xlu0 %4626, %v4603
      %v4628 = vpop.permute.xlu0 %4627
      %4631 = vset.pattern.permute.xlu0 54
      %4632 = vperm.xlu0 %4631, %v4604
      %v4633 = vpop.permute.xlu0 %4632
      %vm4635 = vcmask 392192
      %v4637 = vsel %vm4635, %v4593, 0
      %v4640 = vsel %vm4635, %v4594, 0
      %v4643 = vsel %vm4635, %v4595, 0
      %v4646 = vsel %vm4635, %v4596, 0
      %v4649 = vsel %vm4635, %v4597, 0
      %v4652 = vsel %vm4635, %v4598, 0
      %4654 = vmatprep.subr.mxu0 0.0
      %4655 = vmatpush1.msra.mxu0 %v1783
      %4656 = vmatprep.subr.mxu0 0.0
      %4657 = vmatpush1.msra.mxu0 %v1784
      %4658 = vmatprep.subr.mxu0 0.0
      %4659 = vmatpush1.msra.mxu0 %v3172
      %4660 = vmatprep.subr.mxu0 0.0
      %4661 = vmatpush1.msra.mxu0 %v3173
      %4662 = vmatprep.subr.mxu0 0.0
      %4663 = vmatpush1.msra.mxu0 %v4591
      %4664 = vmatprep.subr.mxu0 0.0
      %4665 = vmatpush1.msra.mxu0 %v4592
      %4666 = vmatprep.subr.mxu0 0.0
      %4667 = vmatpush1.msra.mxu0 0.0
      %4668 = vmatprep.subr.mxu0 0.0
      %4669 = vmatpush1.msra.mxu0 0.0
      %4670 = vmatprep.subr.mxu0 0.0
      %4671 = vmatpush1.msra.mxu0 0.0
      %4672 = vmatprep.subr.mxu0 0.0
      %4673 = vmatpush1.msra.mxu0 0.0
      %4674 = vmatprep.subr.mxu0 0.0
      %4675 = vmatpush1.msra.mxu0 0.0
      %4676 = vmatprep.subr.mxu0 0.0
      %4677 = vmatpush1.msra.mxu0 0.0
      %4678 = vmatprep.subr.mxu0 0.0
      %4679 = vmatpush1.msra.mxu0 0.0
      %4680 = vmatprep.subr.mxu0 0.0
      %4681 = vmatpush1.msra.mxu0 0.0
      %4682 = vmatprep.subr.mxu0 0.0
      %4683 = vmatpush1.msra.mxu0 0.0
      %4684 = vmatprep.subr.mxu0 0.0
      %4685 = vmatpush1.msra.mxu0 0.0
      %4686 = vmatprep.subr.mxu0 0.0
      %4687 = vmatpush1.msra.mxu0 0.0
      %4688 = vmatprep.subr.mxu0 0.0
      %4689 = vmatpush1.msra.mxu0 0.0
      %4690 = vmatprep.subr.mxu0 0.0
      %4691 = vmatpush1.msra.mxu0 0.0
      %4692 = vmatprep.subr.mxu0 0.0
      %4693 = vmatpush1.msra.mxu0 0.0
      %4694 = vmatprep.subr.mxu0 0.0
      %4695 = vmatpush1.msra.mxu0 0.0
      %4696 = vmatprep.subr.mxu0 0.0
      %4697 = vmatpush1.msra.mxu0 0.0
      %4698 = vmatprep.subr.mxu0 0.0
      %4699 = vmatpush1.msra.mxu0 0.0
      %4700 = vmatprep.subr.mxu0 0.0
      %4701 = vmatpush1.msra.mxu0 0.0
      %4702 = vmatprep.subr.mxu0 0.0
      %4703 = vmatpush1.msra.mxu0 0.0
      %4704 = vmatprep.subr.mxu0 0.0
      %4705 = vmatpush1.msra.mxu0 0.0
      %4706 = vmatprep.subr.mxu0 0.0
      %4707 = vmatpush1.msra.mxu0 0.0
      %4708 = vmatprep.subr.mxu0 0.0
      %4709 = vmatpush1.msra.mxu0 0.0
      %4710 = vmatprep.subr.mxu0 0.0
      %4711 = vmatpush1.msra.mxu0 0.0
      %4712 = vmatprep.subr.mxu0 0.0
      %4713 = vmatpush1.msra.mxu0 0.0
      %4714 = vmatprep.subr.mxu0 0.0
      %4715 = vmatpush1.msra.mxu0 0.0
      %4716 = vmatprep.subr.mxu0 0.0
      %4717 = vmatpush1.msra.mxu0 0.0
      %4718 = vmatprep.mubr.f32.mxu0 0.0
      %4719 = vmatmul.mubr.f32.gmra.mrb[0].mxu0 %v4637
      %v4720 = vpop.f32.mrb[0].mxu0
      %v4721 = vadd.f32 %v4608, %v4720
      %v4722 = vpop.f32.mrb[0].mxu0
      %4723 = vmatprep.mubr.f32.mxu0 0.0
      %4724 = vmatmul.mubr.f32.gmra.mrb[0].mxu0 %v4640
      %v4725 = vpop.f32.mrb[0].mxu0
      %v4726 = vadd.f32 %v4613, %v4725
      %v4727 = vpop.f32.mrb[0].mxu0
      %4728 = vmatprep.mubr.f32.mxu0 0.0
      %4729 = vmatmul.mubr.f32.gmra.mrb[0].mxu0 %v4643
      %v4730 = vpop.f32.mrb[0].mxu0
      %v4731 = vadd.f32 %v4618, %v4730
      %v4732 = vpop.f32.mrb[0].mxu0
      %4733 = vmatprep.mubr.f32.mxu0 0.0
      %4734 = vmatmul.mubr.f32.gmra.mrb[0].mxu0 %v4646
      %v4735 = vpop.f32.mrb[0].mxu0
      %v4736 = vadd.f32 %v4623, %v4735
      %v4737 = vpop.f32.mrb[0].mxu0
      %4738 = vmatprep.mubr.f32.mxu0 0.0
      %4739 = vmatmul.mubr.f32.gmra.mrb[0].mxu0 %v4649
      %v4740 = vpop.f32.mrb[0].mxu0
      %v4741 = vadd.f32 %v4628, %v4740
      %v4742 = vpop.f32.mrb[0].mxu0
      %4743 = vmatprep.mubr.f32.mxu0 0.0
      %4744 = vmatmul.mubr.f32.gmra.mrb[0].mxu0 %v4652
      %v4745 = vpop.f32.mrb[0].mxu0
      %v4746 = vadd.f32 %v4633, %v4745
      %v4747 = vpop.f32.mrb[0].mxu0
      %4748 = vdwg.mxu0
      %v4749 = vmax.f32 %v4721, 0.0
      %v4750 = vmax.f32 %v4726, 0.0
      %v4751 = vmax.f32 %v4731, 0.0
      %v4752 = vmax.f32 %v4736, 0.0
      %v4753 = vmax.f32 %v4741, 0.0
      %v4754 = vmax.f32 %v4746, 0.0
      %4755 = vset.pattern.permute.xlu0 55
      %4756 = vperm.xlu0 %4755, %v4599
      %v4757 = vpop.permute.xlu0 %4756
      %4759 = vset.pattern.permute.xlu0 55
      %4760 = vperm.xlu0 %4759, %v4600
      %v4761 = vpop.permute.xlu0 %4760
      %4763 = vset.pattern.permute.xlu0 55
      %4764 = vperm.xlu0 %4763, %v4601
      %v4765 = vpop.permute.xlu0 %4764
      %4767 = vset.pattern.permute.xlu0 55
      %4768 = vperm.xlu0 %4767, %v4602
      %v4769 = vpop.permute.xlu0 %4768
      %4771 = vset.pattern.permute.xlu0 55
      %4772 = vperm.xlu0 %4771, %v4603
      %v4773 = vpop.permute.xlu0 %4772
      %4775 = vset.pattern.permute.xlu0 55
      %4776 = vperm.xlu0 %4775, %v4604
      %v4777 = vpop.permute.xlu0 %4776
      %v4779 = vmul.f32 %v4749, %v4757
      %v4780 = vmul.f32 %v4750, %v4761
      %v4781 = vmul.f32 %v4751, %v4765
      %v4782 = vmul.f32 %v4752, %v4769
      %v4783 = vmul.f32 %v4753, %v4773
      %v4784 = vmul.f32 %v4754, %v4777
      %4785 = vset.pattern.permute.xlu0 56
      %4786 = vperm.xlu0 %4785, %v4599
      %v4787 = vpop.permute.xlu0 %4786
      %4789 = vset.pattern.permute.xlu0 56
      %4790 = vperm.xlu0 %4789, %v4600
      %v4791 = vpop.permute.xlu0 %4790
      %4793 = vset.pattern.permute.xlu0 56
      %4794 = vperm.xlu0 %4793, %v4601
      %v4795 = vpop.permute.xlu0 %4794
      %4797 = vset.pattern.permute.xlu0 56
      %4798 = vperm.xlu0 %4797, %v4602
      %v4799 = vpop.permute.xlu0 %4798
      %4801 = vset.pattern.permute.xlu0 56
      %4802 = vperm.xlu0 %4801, %v4603
      %v4803 = vpop.permute.xlu0 %4802
      %4805 = vset.pattern.permute.xlu0 56
      %4806 = vperm.xlu0 %4805, %v4604
      %v4807 = vpop.permute.xlu0 %4806
      %v4809 = vadd.f32 %v4779, %v4787
      %v4810 = vadd.f32 %v4780, %v4791
      %v4811 = vadd.f32 %v4781, %v4795
      %v4812 = vadd.f32 %v4782, %v4799
      %v4813 = vadd.f32 %v4783, %v4803
      %v4814 = vadd.f32 %v4784, %v4807
      %4815 = vmatprep.subr.mxu0 0.0
      %4816 = vmatpush1.msra.mxu0 %v242
      %4817 = vmatprep.subr.mxu0 0.0
      %4818 = vmatpush1.msra.mxu0 %v243
      %4819 = vmatprep.subr.mxu0 0.0
      %4820 = vmatpush1.msra.mxu0 %v244
      %4821 = vmatprep.subr.mxu0 0.0
      %4822 = vmatpush1.msra.mxu0 %v245
      %4823 = vmatprep.subr.mxu0 0.0
      %4824 = vmatpush1.msra.mxu0 %v246
      %4825 = vmatprep.subr.mxu0 0.0
      %4826 = vmatpush1.msra.mxu0 %v247
      %4827 = vmatprep.subr.mxu0 0.0
      %4828 = vmatpush1.msra.mxu0 %v248
      %4829 = vmatprep.subr.mxu0 0.0
      %4830 = vmatpush1.msra.mxu0 %v249
      %4831 = vmatprep.subr.mxu0 0.0
      %4832 = vmatpush1.msra.mxu0 %v250
      %4833 = vmatprep.subr.mxu0 0.0
      %4834 = vmatpush1.msra.mxu0 %v251
      %4835 = vmatprep.subr.mxu0 0.0
      %4836 = vmatpush1.msra.mxu0 %v252
      %4837 = vmatprep.subr.mxu0 0.0
      %4838 = vmatpush1.msra.mxu0 %v253
      %4839 = vmatprep.subr.mxu0 0.0
      %4840 = vmatpush1.msra.mxu0 %v254
      %4841 = vmatprep.subr.mxu0 0.0
      %4842 = vmatpush1.msra.mxu0 %v255
      %4843 = vmatprep.subr.mxu0 0.0
      %4844 = vmatpush1.msra.mxu0 %v256
      %4845 = vmatprep.subr.mxu0 0.0
      %4846 = vmatpush1.msra.mxu0 %v257
      %4847 = vmatprep.subr.mxu0 0.0
      %4848 = vmatpush1.msra.mxu0 0.0
      %4849 = vmatprep.subr.mxu0 0.0
      %4850 = vmatpush1.msra.mxu0 0.0
      %4851 = vmatprep.subr.mxu0 0.0
      %4852 = vmatpush1.msra.mxu0 0.0
      %4853 = vmatprep.subr.mxu0 0.0
      %4854 = vmatpush1.msra.mxu0 0.0
      %4855 = vmatprep.subr.mxu0 0.0
      %4856 = vmatpush1.msra.mxu0 0.0
      %4857 = vmatprep.subr.mxu0 0.0
      %4858 = vmatpush1.msra.mxu0 0.0
      %4859 = vmatprep.subr.mxu0 0.0
      %4860 = vmatpush1.msra.mxu0 0.0
      %4861 = vmatprep.subr.mxu0 0.0
      %4862 = vmatpush1.msra.mxu0 0.0
      %4863 = vmatprep.subr.mxu0 0.0
      %4864 = vmatpush1.msra.mxu0 0.0
      %4865 = vmatprep.subr.mxu0 0.0
      %4866 = vmatpush1.msra.mxu0 0.0
      %4867 = vmatprep.subr.mxu0 0.0
      %4868 = vmatpush1.msra.mxu0 0.0
      %4869 = vmatprep.subr.mxu0 0.0
      %4870 = vmatpush1.msra.mxu0 0.0
      %4871 = vmatprep.subr.mxu0 0.0
      %4872 = vmatpush1.msra.mxu0 0.0
      %4873 = vmatprep.subr.mxu0 0.0
      %4874 = vmatpush1.msra.mxu0 0.0
      %4875 = vmatprep.subr.mxu0 0.0
      %4876 = vmatpush1.msra.mxu0 0.0
      %4877 = vmatprep.subr.mxu0 0.0
      %4878 = vmatpush1.msra.mxu0 0.0
      %4879 = vmatprep.mubr.f32.mxu0 0.0
      %4880 = vmatmul.mubr.f32.gmra.mrb[0].mxu0 %v4809
      %v4881 = vpop.f32.mrb[0].mxu0
      %v4882 = vadd.f32 0.0, %v4881
      %v4883 = vpop.f32.mrb[0].mxu0
      %4884 = vmatprep.mubr.f32.mxu0 0.0
      %4885 = vmatmul.mubr.f32.gmra.mrb[0].mxu0 %v4810
      %v4886 = vpop.f32.mrb[0].mxu0
      %v4887 = vadd.f32 0.0, %v4886
      %v4888 = vpop.f32.mrb[0].mxu0
      %4889 = vmatprep.mubr.f32.mxu0 0.0
      %4890 = vmatmul.mubr.f32.gmra.mrb[0].mxu0 %v4811
      %v4891 = vpop.f32.mrb[0].mxu0
      %v4892 = vadd.f32 0.0, %v4891
      %v4893 = vpop.f32.mrb[0].mxu0
      %4894 = vmatprep.mubr.f32.mxu0 0.0
      %4895 = vmatmul.mubr.f32.gmra.mrb[0].mxu0 %v4812
      %v4896 = vpop.f32.mrb[0].mxu0
      %v4897 = vadd.f32 0.0, %v4896
      %v4898 = vpop.f32.mrb[0].mxu0
      %4899 = vmatprep.mubr.f32.mxu0 0.0
      %4900 = vmatmul.mubr.f32.gmra.mrb[0].mxu0 %v4813
      %v4901 = vpop.f32.mrb[0].mxu0
      %v4902 = vadd.f32 0.0, %v4901
      %v4903 = vpop.f32.mrb[0].mxu0
      %4904 = vmatprep.mubr.f32.mxu0 0.0
      %4905 = vmatmul.mubr.f32.gmra.mrb[0].mxu0 %v4814
      %v4906 = vpop.f32.mrb[0].mxu0
      %v4907 = vadd.f32 0.0, %v4906
      %v4908 = vpop.f32.mrb[0].mxu0
      %4909 = vdwg.mxu0
      %v4910 = vmul.f32 %v4882, 0.0625
      %v4911 = vmul.f32 %v4887, 0.0625
      %v4912 = vmul.f32 %v4892, 0.0625
      %v4913 = vmul.f32 %v4897, 0.0625
      %v4914 = vmul.f32 %v4902, 0.0625
      %v4915 = vmul.f32 %v4907, 0.0625
      %v4917 = vsel %vm1606, %v4910, 0
      %v4920 = vsel %vm1606, %v4911, 0
      %v4923 = vsel %vm1606, %v4912, 0
      %v4926 = vsel %vm1606, %v4913, 0
      %v4929 = vsel %vm1606, %v4914, 0
      %v4932 = vsel %vm1606, %v4915, 0
      %4934 = vmatprep.subr.mxu0 0.0
      %4935 = vmatpush1.msra.mxu0 %v264
      %4936 = vmatprep.subr.mxu0 0.0
      %4937 = vmatpush1.msra.mxu0 0.0
      %4938 = vmatprep.subr.mxu0 0.0
      %4939 = vmatpush1.msra.mxu0 0.0
      %4940 = vmatprep.subr.mxu0 0.0
      %4941 = vmatpush1.msra.mxu0 0.0
      %4942 = vmatprep.subr.mxu0 0.0
      %4943 = vmatpush1.msra.mxu0 0.0
      %4944 = vmatprep.subr.mxu0 0.0
      %4945 = vmatpush1.msra.mxu0 0.0
      %4946 = vmatprep.subr.mxu0 0.0
      %4947 = vmatpush1.msra.mxu0 0.0
      %4948 = vmatprep.subr.mxu0 0.0
      %4949 = vmatpush1.msra.mxu0 0.0
      %4950 = vmatprep.subr.mxu0 0.0
      %4951 = vmatpush1.msra.mxu0 0.0
      %4952 = vmatprep.subr.mxu0 0.0
      %4953 = vmatpush1.msra.mxu0 0.0
      %4954 = vmatprep.subr.mxu0 0.0
      %4955 = vmatpush1.msra.mxu0 0.0
      %4956 = vmatprep.subr.mxu0 0.0
      %4957 = vmatpush1.msra.mxu0 0.0
      %4958 = vmatprep.subr.mxu0 0.0
      %4959 = vmatpush1.msra.mxu0 0.0
      %4960 = vmatprep.subr.mxu0 0.0
      %4961 = vmatpush1.msra.mxu0 0.0
      %4962 = vmatprep.subr.mxu0 0.0
      %4963 = vmatpush1.msra.mxu0 0.0
      %4964 = vmatprep.subr.mxu0 0.0
      %4965 = vmatpush1.msra.mxu0 0.0
      %4966 = vmatprep.subr.mxu0 0.0
      %4967 = vmatpush1.msra.mxu0 0.0
      %4968 = vmatprep.subr.mxu0 0.0
      %4969 = vmatpush1.msra.mxu0 0.0
      %4970 = vmatprep.subr.mxu0 0.0
      %4971 = vmatpush1.msra.mxu0 0.0
      %4972 = vmatprep.subr.mxu0 0.0
      %4973 = vmatpush1.msra.mxu0 0.0
      %4974 = vmatprep.subr.mxu0 0.0
      %4975 = vmatpush1.msra.mxu0 0.0
      %4976 = vmatprep.subr.mxu0 0.0
      %4977 = vmatpush1.msra.mxu0 0.0
      %4978 = vmatprep.subr.mxu0 0.0
      %4979 = vmatpush1.msra.mxu0 0.0
      %4980 = vmatprep.subr.mxu0 0.0
      %4981 = vmatpush1.msra.mxu0 0.0
      %4982 = vmatprep.subr.mxu0 0.0
      %4983 = vmatpush1.msra.mxu0 0.0
      %4984 = vmatprep.subr.mxu0 0.0
      %4985 = vmatpush1.msra.mxu0 0.0
      %4986 = vmatprep.subr.mxu0 0.0
      %4987 = vmatpush1.msra.mxu0 0.0
      %4988 = vmatprep.subr.mxu0 0.0
      %4989 = vmatpush1.msra.mxu0 0.0
      %4990 = vmatprep.subr.mxu0 0.0
      %4991 = vmatpush1.msra.mxu0 0.0
      %4992 = vmatprep.subr.mxu0 0.0
      %4993 = vmatpush1.msra.mxu0 0.0
      %4994 = vmatprep.subr.mxu0 0.0
      %4995 = vmatpush1.msra.mxu0 0.0
      %4996 = vmatprep.subr.mxu0 0.0
      %4997 = vmatpush1.msra.mxu0 0.0
      %4998 = vmatprep.mubr.f32.mxu0 0.0
      %4999 = vmatmul.mubr.f32.gmra.mrb[0].mxu0 %v4917
      %v5000 = vpop.f32.mrb[0].mxu0
      %v5001 = vadd.f32 0.0, %v5000
      %v5002 = vpop.f32.mrb[0].mxu0
      %5003 = vmatprep.mubr.f32.mxu0 0.0
      %5004 = vmatmul.mubr.f32.gmra.mrb[0].mxu0 %v4920
      %v5005 = vpop.f32.mrb[0].mxu0
      %v5006 = vadd.f32 0.0, %v5005
      %v5007 = vpop.f32.mrb[0].mxu0
      %5008 = vmatprep.mubr.f32.mxu0 0.0
      %5009 = vmatmul.mubr.f32.gmra.mrb[0].mxu0 %v4923
      %v5010 = vpop.f32.mrb[0].mxu0
      %v5011 = vadd.f32 0.0, %v5010
      %v5012 = vpop.f32.mrb[0].mxu0
      %5013 = vmatprep.mubr.f32.mxu0 0.0
      %5014 = vmatmul.mubr.f32.gmra.mrb[0].mxu0 %v4926
      %v5015 = vpop.f32.mrb[0].mxu0
      %v5016 = vadd.f32 0.0, %v5015
      %v5017 = vpop.f32.mrb[0].mxu0
      %5018 = vmatprep.mubr.f32.mxu0 0.0
      %5019 = vmatmul.mubr.f32.gmra.mrb[0].mxu0 %v4929
      %v5020 = vpop.f32.mrb[0].mxu0
      %v5021 = vadd.f32 0.0, %v5020
      %v5022 = vpop.f32.mrb[0].mxu0
      %5023 = vmatprep.mubr.f32.mxu0 0.0
      %5024 = vmatmul.mubr.f32.gmra.mrb[0].mxu0 %v4932
      %v5025 = vpop.f32.mrb[0].mxu0
      %v5026 = vadd.f32 0.0, %v5025
      %v5027 = vpop.f32.mrb[0].mxu0
      %5028 = vdwg.mxu0
      %v5029 = vsub.f32 %v4809, %v5001
      %v5030 = vsub.f32 %v4810, %v5006
      %v5031 = vsub.f32 %v4811, %v5011
      %v5032 = vsub.f32 %v4812, %v5016
      %v5033 = vsub.f32 %v4813, %v5021
      %v5034 = vsub.f32 %v4814, %v5026
      %v5035 = vmul.f32 %v5029, %v5029
      %v5036 = vmul.f32 %v5030, %v5030
      %v5037 = vmul.f32 %v5031, %v5031
      %v5038 = vmul.f32 %v5032, %v5032
      %v5039 = vmul.f32 %v5033, %v5033
      %v5040 = vmul.f32 %v5034, %v5034
      %5041 = vmatprep.subr.mxu0 0.0
      %5042 = vmatpush1.msra.mxu0 %v242
      %5043 = vmatprep.subr.mxu0 0.0
      %5044 = vmatpush1.msra.mxu0 %v243
      %5045 = vmatprep.subr.mxu0 0.0
      %5046 = vmatpush1.msra.mxu0 %v244
      %5047 = vmatprep.subr.mxu0 0.0
      %5048 = vmatpush1.msra.mxu0 %v245
      %5049 = vmatprep.subr.mxu0 0.0
      %5050 = vmatpush1.msra.mxu0 %v246
      %5051 = vmatprep.subr.mxu0 0.0
      %5052 = vmatpush1.msra.mxu0 %v247
      %5053 = vmatprep.subr.mxu0 0.0
      %5054 = vmatpush1.msra.mxu0 %v248
      %5055 = vmatprep.subr.mxu0 0.0
      %5056 = vmatpush1.msra.mxu0 %v249
      %5057 = vmatprep.subr.mxu0 0.0
      %5058 = vmatpush1.msra.mxu0 %v250
      %5059 = vmatprep.subr.mxu0 0.0
      %5060 = vmatpush1.msra.mxu0 %v251
      %5061 = vmatprep.subr.mxu0 0.0
      %5062 = vmatpush1.msra.mxu0 %v252
      %5063 = vmatprep.subr.mxu0 0.0
      %5064 = vmatpush1.msra.mxu0 %v253
      %5065 = vmatprep.subr.mxu0 0.0
      %5066 = vmatpush1.msra.mxu0 %v254
      %5067 = vmatprep.subr.mxu0 0.0
      %5068 = vmatpush1.msra.mxu0 %v255
      %5069 = vmatprep.subr.mxu0 0.0
      %5070 = vmatpush1.msra.mxu0 %v256
      %5071 = vmatprep.subr.mxu0 0.0
      %5072 = vmatpush1.msra.mxu0 %v257
      %5073 = vmatprep.subr.mxu0 0.0
      %5074 = vmatpush1.msra.mxu0 0.0
      %5075 = vmatprep.subr.mxu0 0.0
      %5076 = vmatpush1.msra.mxu0 0.0
      %5077 = vmatprep.subr.mxu0 0.0
      %5078 = vmatpush1.msra.mxu0 0.0
      %5079 = vmatprep.subr.mxu0 0.0
      %5080 = vmatpush1.msra.mxu0 0.0
      %5081 = vmatprep.subr.mxu0 0.0
      %5082 = vmatpush1.msra.mxu0 0.0
      %5083 = vmatprep.subr.mxu0 0.0
      %5084 = vmatpush1.msra.mxu0 0.0
      %5085 = vmatprep.subr.mxu0 0.0
      %5086 = vmatpush1.msra.mxu0 0.0
      %5087 = vmatprep.subr.mxu0 0.0
      %5088 = vmatpush1.msra.mxu0 0.0
      %5089 = vmatprep.subr.mxu0 0.0
      %5090 = vmatpush1.msra.mxu0 0.0
      %5091 = vmatprep.subr.mxu0 0.0
      %5092 = vmatpush1.msra.mxu0 0.0
      %5093 = vmatprep.subr.mxu0 0.0
      %5094 = vmatpush1.msra.mxu0 0.0
      %5095 = vmatprep.subr.mxu0 0.0
      %5096 = vmatpush1.msra.mxu0 0.0
      %5097 = vmatprep.subr.mxu0 0.0
      %5098 = vmatpush1.msra.mxu0 0.0
      %5099 = vmatprep.subr.mxu0 0.0
      %5100 = vmatpush1.msra.mxu0 0.0
      %5101 = vmatprep.subr.mxu0 0.0
      %5102 = vmatpush1.msra.mxu0 0.0
      %5103 = vmatprep.subr.mxu0 0.0
      %5104 = vmatpush1.msra.mxu0 0.0
      %5105 = vmatprep.mubr.f32.mxu0 0.0
      %5106 = vmatmul.mubr.f32.gmra.mrb[0].mxu0 %v5035
      %v5107 = vpop.f32.mrb[0].mxu0
      %v5108 = vadd.f32 0.0, %v5107
      %v5109 = vpop.f32.mrb[0].mxu0
      %5110 = vmatprep.mubr.f32.mxu0 0.0
      %5111 = vmatmul.mubr.f32.gmra.mrb[0].mxu0 %v5036
      %v5112 = vpop.f32.mrb[0].mxu0
      %v5113 = vadd.f32 0.0, %v5112
      %v5114 = vpop.f32.mrb[0].mxu0
      %5115 = vmatprep.mubr.f32.mxu0 0.0
      %5116 = vmatmul.mubr.f32.gmra.mrb[0].mxu0 %v5037
      %v5117 = vpop.f32.mrb[0].mxu0
      %v5118 = vadd.f32 0.0, %v5117
      %v5119 = vpop.f32.mrb[0].mxu0
      %5120 = vmatprep.mubr.f32.mxu0 0.0
      %5121 = vmatmul.mubr.f32.gmra.mrb[0].mxu0 %v5038
      %v5122 = vpop.f32.mrb[0].mxu0
      %v5123 = vadd.f32 0.0, %v5122
      %v5124 = vpop.f32.mrb[0].mxu0
      %5125 = vmatprep.mubr.f32.mxu0 0.0
      %5126 = vmatmul.mubr.f32.gmra.mrb[0].mxu0 %v5039
      %v5127 = vpop.f32.mrb[0].mxu0
      %v5128 = vadd.f32 0.0, %v5127
      %v5129 = vpop.f32.mrb[0].mxu0
      %5130 = vmatprep.mubr.f32.mxu0 0.0
      %5131 = vmatmul.mubr.f32.gmra.mrb[0].mxu0 %v5040
      %v5132 = vpop.f32.mrb[0].mxu0
      %v5133 = vadd.f32 0.0, %v5132
      %v5134 = vpop.f32.mrb[0].mxu0
      %5135 = vdwg.mxu0
      %v5136 = vmul.f32 %v5108, 0.0625
      %v5137 = vmul.f32 %v5113, 0.0625
      %v5138 = vmul.f32 %v5118, 0.0625
      %v5139 = vmul.f32 %v5123, 0.0625
      %v5140 = vmul.f32 %v5128, 0.0625
      %v5141 = vmul.f32 %v5133, 0.0625
      %v5142 = vmax.f32 %v5136, 1e-12
      %v5143 = vmax.f32 %v5137, 1e-12
      %v5144 = vmax.f32 %v5138, 1e-12
      %v5145 = vmax.f32 %v5139, 1e-12
      %v5146 = vmax.f32 %v5140, 1e-12
      %v5147 = vmax.f32 %v5141, 1e-12
      %v5148 = vrsqrt.pop %v5142
      %v5149 = vmul.f32 %v5142, %v5148
      %vm5150 = vcmp.eq.f32.partialorder %v5142, inf
      %v5151 = vsel %vm5150, %v5142, %v5149
      %vm5152 = vcmp.eq.f32.partialorder %v5142, 0.0
      %v5153 = vand.u32 %v5142, 2147483648
      %v5154 = vsel %vm5152, %v5153, %v5151
      %v5155 = vrsqrt.pop %v5143
      %v5156 = vmul.f32 %v5143, %v5155
      %vm5157 = vcmp.eq.f32.partialorder %v5143, inf
      %v5158 = vsel %vm5157, %v5143, %v5156
      %vm5159 = vcmp.eq.f32.partialorder %v5143, 0.0
      %v5160 = vand.u32 %v5143, 2147483648
      %v5161 = vsel %vm5159, %v5160, %v5158
      %v5162 = vrsqrt.pop %v5144
      %v5163 = vmul.f32 %v5144, %v5162
      %vm5164 = vcmp.eq.f32.partialorder %v5144, inf
      %v5165 = vsel %vm5164, %v5144, %v5163
      %vm5166 = vcmp.eq.f32.partialorder %v5144, 0.0
      %v5167 = vand.u32 %v5144, 2147483648
      %v5168 = vsel %vm5166, %v5167, %v5165
      %v5169 = vrsqrt.pop %v5145
      %v5170 = vmul.f32 %v5145, %v5169
      %vm5171 = vcmp.eq.f32.partialorder %v5145, inf
      %v5172 = vsel %vm5171, %v5145, %v5170
      %vm5173 = vcmp.eq.f32.partialorder %v5145, 0.0
      %v5174 = vand.u32 %v5145, 2147483648
      %v5175 = vsel %vm5173, %v5174, %v5172
      %v5176 = vrsqrt.pop %v5146
      %v5177 = vmul.f32 %v5146, %v5176
      %vm5178 = vcmp.eq.f32.partialorder %v5146, inf
      %v5179 = vsel %vm5178, %v5146, %v5177
      %vm5180 = vcmp.eq.f32.partialorder %v5146, 0.0
      %v5181 = vand.u32 %v5146, 2147483648
      %v5182 = vsel %vm5180, %v5181, %v5179
      %v5183 = vrsqrt.pop %v5147
      %v5184 = vmul.f32 %v5147, %v5183
      %vm5185 = vcmp.eq.f32.partialorder %v5147, inf
      %v5186 = vsel %vm5185, %v5147, %v5184
      %vm5187 = vcmp.eq.f32.partialorder %v5147, 0.0
      %v5188 = vand.u32 %v5147, 2147483648
      %v5189 = vsel %vm5187, %v5188, %v5186
      %v5190 = vld [vmem:[%s1 + $0x130] sm:$0xff]
      %v5191 = vld [vmem:[%s1 + $0x138] sm:$0xff]
      %v5192 = vld [vmem:[%s1 + $0x140] sm:$0xff]
      %v5193 = vld [vmem:[%s1 + $0x148] sm:$0xff]
      %vm5194 = vcmask 785408
      %v5196 = vsel %vm5194, %v5192, 0
      %v5199 = vsel %vm5194, %v5193, 0
      %5201 = vmatprep.subr.mxu0 0.0
      %5202 = vmatpush1.msra.mxu0 %v4910
      %5203 = vmatprep.subr.mxu0 0.0
      %5204 = vmatpush1.msra.mxu0 %v4911
      %5205 = vmatprep.subr.mxu0 0.0
      %5206 = vmatpush1.msra.mxu0 %v4912
      %5207 = vmatprep.subr.mxu0 0.0
      %5208 = vmatpush1.msra.mxu0 %v4913
      %5209 = vmatprep.subr.mxu0 0.0
      %5210 = vmatpush1.msra.mxu0 %v4914
      %5211 = vmatprep.subr.mxu0 0.0
      %5212 = vmatpush1.msra.mxu0 %v4915
      %5213 = vmatprep.subr.mxu0 0.0
      %5214 = vmatpush1.msra.mxu0 %v5154
      %5215 = vmatprep.subr.mxu0 0.0
      %5216 = vmatpush1.msra.mxu0 %v5161
      %5217 = vmatprep.subr.mxu0 0.0
      %5218 = vmatpush1.msra.mxu0 %v5168
      %5219 = vmatprep.subr.mxu0 0.0
      %5220 = vmatpush1.msra.mxu0 %v5175
      %5221 = vmatprep.subr.mxu0 0.0
      %5222 = vmatpush1.msra.mxu0 %v5182
      %5223 = vmatprep.subr.mxu0 0.0
      %5224 = vmatpush1.msra.mxu0 %v5189
      %5225 = vmatprep.subr.mxu0 0.0
      %5226 = vmatpush1.msra.mxu0 0.0
      %5227 = vmatprep.subr.mxu0 0.0
      %5228 = vmatpush1.msra.mxu0 0.0
      %5229 = vmatprep.subr.mxu0 0.0
      %5230 = vmatpush1.msra.mxu0 0.0
      %5231 = vmatprep.subr.mxu0 0.0
      %5232 = vmatpush1.msra.mxu0 0.0
      %5233 = vmatprep.subr.mxu0 0.0
      %5234 = vmatpush1.msra.mxu0 0.0
      %5235 = vmatprep.subr.mxu0 0.0
      %5236 = vmatpush1.msra.mxu0 0.0
      %5237 = vmatprep.subr.mxu0 0.0
      %5238 = vmatpush1.msra.mxu0 0.0
      %5239 = vmatprep.subr.mxu0 0.0
      %5240 = vmatpush1.msra.mxu0 0.0
      %5241 = vmatprep.subr.mxu0 0.0
      %5242 = vmatpush1.msra.mxu0 0.0
      %5243 = vmatprep.subr.mxu0 0.0
      %5244 = vmatpush1.msra.mxu0 0.0
      %5245 = vmatprep.subr.mxu0 0.0
      %5246 = vmatpush1.msra.mxu0 0.0
      %5247 = vmatprep.subr.mxu0 0.0
      %5248 = vmatpush1.msra.mxu0 0.0
      %5249 = vmatprep.subr.mxu0 0.0
      %5250 = vmatpush1.msra.mxu0 0.0
      %5251 = vmatprep.subr.mxu0 0.0
      %5252 = vmatpush1.msra.mxu0 0.0
      %5253 = vmatprep.subr.mxu0 0.0
      %5254 = vmatpush1.msra.mxu0 0.0
      %5255 = vmatprep.subr.mxu0 0.0
      %5256 = vmatpush1.msra.mxu0 0.0
      %5257 = vmatprep.subr.mxu0 0.0
      %5258 = vmatpush1.msra.mxu0 0.0
      %5259 = vmatprep.subr.mxu0 0.0
      %5260 = vmatpush1.msra.mxu0 0.0
      %5261 = vmatprep.subr.mxu0 0.0
      %5262 = vmatpush1.msra.mxu0 0.0
      %5263 = vmatprep.subr.mxu0 0.0
      %5264 = vmatpush1.msra.mxu0 0.0
      %5265 = vmatprep.mubr.f32.mxu0 0.0
      %5266 = vmatmul.mubr.f32.gmra.mrb[0].mxu0 %v5196
      %v5267 = vpop.f32.mrb[0].mxu0
      %v5268 = vadd.f32 0.0, %v5267
      %v5269 = vpop.f32.mrb[0].mxu0
      %5270 = vmatprep.mubr.f32.mxu0 0.0
      %5271 = vmatmul.mubr.f32.gmra.mrb[0].mxu0 %v5199
      %v5272 = vpop.f32.mrb[0].mxu0
      %v5273 = vadd.f32 0.0, %v5272
      %v5274 = vpop.f32.mrb[0].mxu0
      %5275 = vdwg.mxu0
      %v5277 = vsel %vm1606, %v5268, 0
      %v5280 = vsel %vm1606, %v5273, 0
      %5282 = vmatprep.subr.mxu0 0.0
      %5283 = vmatpush1.msra.mxu0 %v264
      %5284 = vmatprep.subr.mxu0 0.0
      %5285 = vmatpush1.msra.mxu0 0.0
      %5286 = vmatprep.subr.mxu0 0.0
      %5287 = vmatpush1.msra.mxu0 0.0
      %5288 = vmatprep.subr.mxu0 0.0
      %5289 = vmatpush1.msra.mxu0 0.0
      %5290 = vmatprep.subr.mxu0 0.0
      %5291 = vmatpush1.msra.mxu0 0.0
      %5292 = vmatprep.subr.mxu0 0.0
      %5293 = vmatpush1.msra.mxu0 0.0
      %5294 = vmatprep.subr.mxu0 0.0
      %5295 = vmatpush1.msra.mxu0 0.0
      %5296 = vmatprep.subr.mxu0 0.0
      %5297 = vmatpush1.msra.mxu0 0.0
      %5298 = vmatprep.subr.mxu0 0.0
      %5299 = vmatpush1.msra.mxu0 0.0
      %5300 = vmatprep.subr.mxu0 0.0
      %5301 = vmatpush1.msra.mxu0 0.0
      %5302 = vmatprep.subr.mxu0 0.0
      %5303 = vmatpush1.msra.mxu0 0.0
      %5304 = vmatprep.subr.mxu0 0.0
      %5305 = vmatpush1.msra.mxu0 0.0
      %5306 = vmatprep.subr.mxu0 0.0
      %5307 = vmatpush1.msra.mxu0 0.0
      %5308 = vmatprep.subr.mxu0 0.0
      %5309 = vmatpush1.msra.mxu0 0.0
      %5310 = vmatprep.subr.mxu0 0.0
      %5311 = vmatpush1.msra.mxu0 0.0
      %5312 = vmatprep.subr.mxu0 0.0
      %5313 = vmatpush1.msra.mxu0 0.0
      %5314 = vmatprep.subr.mxu0 0.0
      %5315 = vmatpush1.msra.mxu0 0.0
      %5316 = vmatprep.subr.mxu0 0.0
      %5317 = vmatpush1.msra.mxu0 0.0
      %5318 = vmatprep.subr.mxu0 0.0
      %5319 = vmatpush1.msra.mxu0 0.0
      %5320 = vmatprep.subr.mxu0 0.0
      %5321 = vmatpush1.msra.mxu0 0.0
      %5322 = vmatprep.subr.mxu0 0.0
      %5323 = vmatpush1.msra.mxu0 0.0
      %5324 = vmatprep.subr.mxu0 0.0
      %5325 = vmatpush1.msra.mxu0 0.0
      %5326 = vmatprep.subr.mxu0 0.0
      %5327 = vmatpush1.msra.mxu0 0.0
      %5328 = vmatprep.subr.mxu0 0.0
      %5329 = vmatpush1.msra.mxu0 0.0
      %5330 = vmatprep.subr.mxu0 0.0
      %5331 = vmatpush1.msra.mxu0 0.0
      %5332 = vmatprep.subr.mxu0 0.0
      %5333 = vmatpush1.msra.mxu0 0.0
      %5334 = vmatprep.subr.mxu0 0.0
      %5335 = vmatpush1.msra.mxu0 0.0
      %5336 = vmatprep.subr.mxu0 0.0
      %5337 = vmatpush1.msra.mxu0 0.0
      %5338 = vmatprep.subr.mxu0 0.0
      %5339 = vmatpush1.msra.mxu0 0.0
      %5340 = vmatprep.subr.mxu0 0.0
      %5341 = vmatpush1.msra.mxu0 0.0
      %5342 = vmatprep.subr.mxu0 0.0
      %5343 = vmatpush1.msra.mxu0 0.0
      %5344 = vmatprep.subr.mxu0 0.0
      %5345 = vmatpush1.msra.mxu0 0.0
      %5346 = vmatprep.mubr.f32.mxu0 0.0
      %5347 = vmatmul.mubr.f32.gmra.mrb[0].mxu0 %v5277
      %v5348 = vpop.f32.mrb[0].mxu0
      %v5349 = vadd.f32 0.0, %v5348
      %v5350 = vpop.f32.mrb[0].mxu0
      %5351 = vmatprep.mubr.f32.mxu0 0.0
      %5352 = vmatmul.mubr.f32.gmra.mrb[0].mxu0 %v5280
      %v5353 = vpop.f32.mrb[0].mxu0
      %v5354 = vadd.f32 0.0, %v5353
      %v5355 = vpop.f32.mrb[0].mxu0
      %5356 = vdwg.mxu0
      %v5358 = vsel %vm4635, %v5190, 0
      %v5361 = vsel %vm4635, %v5191, 0
      %5363 = vmatprep.subr.mxu0 0.0
      %5364 = vmatpush1.msra.mxu0 %v4809
      %5365 = vmatprep.subr.mxu0 0.0
      %5366 = vmatpush1.msra.mxu0 %v4810
      %5367 = vmatprep.subr.mxu0 0.0
      %5368 = vmatpush1.msra.mxu0 %v4811
      %5369 = vmatprep.subr.mxu0 0.0
      %5370 = vmatpush1.msra.mxu0 %v4812
      %5371 = vmatprep.subr.mxu0 0.0
      %5372 = vmatpush1.msra.mxu0 %v4813
      %5373 = vmatprep.subr.mxu0 0.0
      %5374 = vmatpush1.msra.mxu0 %v4814
      %5375 = vmatprep.subr.mxu0 0.0
      %5376 = vmatpush1.msra.mxu0 0.0
      %5377 = vmatprep.subr.mxu0 0.0
      %5378 = vmatpush1.msra.mxu0 0.0
      %5379 = vmatprep.subr.mxu0 0.0
      %5380 = vmatpush1.msra.mxu0 0.0
      %5381 = vmatprep.subr.mxu0 0.0
      %5382 = vmatpush1.msra.mxu0 0.0
      %5383 = vmatprep.subr.mxu0 0.0
      %5384 = vmatpush1.msra.mxu0 0.0
      %5385 = vmatprep.subr.mxu0 0.0
      %5386 = vmatpush1.msra.mxu0 0.0
      %5387 = vmatprep.subr.mxu0 0.0
      %5388 = vmatpush1.msra.mxu0 0.0
      %5389 = vmatprep.subr.mxu0 0.0
      %5390 = vmatpush1.msra.mxu0 0.0
      %5391 = vmatprep.subr.mxu0 0.0
      %5392 = vmatpush1.msra.mxu0 0.0
      %5393 = vmatprep.subr.mxu0 0.0
      %5394 = vmatpush1.msra.mxu0 0.0
      %5395 = vmatprep.subr.mxu0 0.0
      %5396 = vmatpush1.msra.mxu0 0.0
      %5397 = vmatprep.subr.mxu0 0.0
      %5398 = vmatpush1.msra.mxu0 0.0
      %5399 = vmatprep.subr.mxu0 0.0
      %5400 = vmatpush1.msra.mxu0 0.0
      %5401 = vmatprep.subr.mxu0 0.0
      %5402 = vmatpush1.msra.mxu0 0.0
      %5403 = vmatprep.subr.mxu0 0.0
      %5404 = vmatpush1.msra.mxu0 0.0
      %5405 = vmatprep.subr.mxu0 0.0
      %5406 = vmatpush1.msra.mxu0 0.0
      %5407 = vmatprep.subr.mxu0 0.0
      %5408 = vmatpush1.msra.mxu0 0.0
      %5409 = vmatprep.subr.mxu0 0.0
      %5410 = vmatpush1.msra.mxu0 0.0
      %5411 = vmatprep.subr.mxu0 0.0
      %5412 = vmatpush1.msra.mxu0 0.0
      %5413 = vmatprep.subr.mxu0 0.0
      %5414 = vmatpush1.msra.mxu0 0.0
      %5415 = vmatprep.subr.mxu0 0.0
      %5416 = vmatpush1.msra.mxu0 0.0
      %5417 = vmatprep.subr.mxu0 0.0
      %5418 = vmatpush1.msra.mxu0 0.0
      %5419 = vmatprep.subr.mxu0 0.0
      %5420 = vmatpush1.msra.mxu0 0.0
      %5421 = vmatprep.subr.mxu0 0.0
      %5422 = vmatpush1.msra.mxu0 0.0
      %5423 = vmatprep.subr.mxu0 0.0
      %5424 = vmatpush1.msra.mxu0 0.0
      %5425 = vmatprep.subr.mxu0 0.0
      %5426 = vmatpush1.msra.mxu0 0.0
      %5427 = vmatprep.mubr.f32.mxu0 0.0
      %5428 = vmatmul.mubr.f32.gmra.mrb[0].mxu0 %v5358
      %v5429 = vpop.f32.mrb[0].mxu0
      %v5430 = vadd.f32 %v5349, %v5429
      %v5431 = vpop.f32.mrb[0].mxu0
      %5432 = vmatprep.mubr.f32.mxu0 0.0
      %5433 = vmatmul.mubr.f32.gmra.mrb[0].mxu0 %v5361
      %v5434 = vpop.f32.mrb[0].mxu0
      %v5435 = vadd.f32 %v5354, %v5434
      %v5436 = vpop.f32.mrb[0].mxu0
      %5437 = vdwg.mxu0
      %5438 = vset.pattern.permute.xlu0 57
      %5439 = vperm.xlu0 %5438, %v4132
      %v5440 = vpop.permute.xlu0 %5439
      %5442 = vset.pattern.permute.xlu0 57
      %5443 = vperm.xlu0 %5442, %v4133
      %v5444 = vpop.permute.xlu0 %5443
      %v5446 = vadd.f32 %v5430, %v5440
      %v5447 = vadd.f32 %v5435, %v5444
      %v5448 = vmax.f32 %v5446, 0.0
      %v5449 = vmax.f32 %v5447, 0.0
      %5450 = vset.pattern.permute.xlu0 58
      %5451 = vperm.xlu0 %5450, %v4132
      %v5452 = vpop.permute.xlu0 %5451
      %5454 = vset.pattern.permute.xlu0 58
      %5455 = vperm.xlu0 %5454, %v4133
      %v5456 = vpop.permute.xlu0 %5455
      %v5458 = vmul.f32 %v5448, %v5452
      %v5459 = vmul.f32 %v5449, %v5456
      %5460 = vset.pattern.permute.xlu0 59
      %5461 = vperm.xlu0 %5460, %v4132
      %v5462 = vpop.permute.xlu0 %5461
      %5464 = vset.pattern.permute.xlu0 59
      %5465 = vperm.xlu0 %5464, %v4133
      %v5466 = vpop.permute.xlu0 %5465
      %v5468 = vadd.f32 %v5458, %v5462
      %v5469 = vadd.f32 %v5459, %v5466
      %v5470 = vtanh.pop %v5468
      %v5471 = vtanh.pop %v5469
      %v5472 = vld [vmem:[%s1 + $0x150] sm:$0xff]
      %v5473 = vld [vmem:[%s1 + $0x158] sm:$0xff]
      %v5474 = vld [vmem:[%s1 + $0x160] sm:$0xff]
      %v5475 = vld [vmem:[%s1 + $0x168] sm:$0xff]
      %v5476 = vld [vmem:[%s1 + $0x170] sm:$0xff]
      %v5477 = vld [vmem:[%s1 + $0x178] sm:$0xff]
      %5478 = vset.pattern.permute.xlu0 60
      %5479 = vperm.xlu0 %5478, %v4599
      %v5480 = vpop.permute.xlu0 %5479
      %5482 = vset.pattern.permute.xlu0 60
      %5483 = vperm.xlu0 %5482, %v4600
      %v5484 = vpop.permute.xlu0 %5483
      %5486 = vset.pattern.permute.xlu0 60
      %5487 = vperm.xlu0 %5486, %v4601
      %v5488 = vpop.permute.xlu0 %5487
      %5490 = vset.pattern.permute.xlu0 60
      %5491 = vperm.xlu0 %5490, %v4602
      %v5492 = vpop.permute.xlu0 %5491
      %5494 = vset.pattern.permute.xlu0 60
      %5495 = vperm.xlu0 %5494, %v4603
      %v5496 = vpop.permute.xlu0 %5495
      %5498 = vset.pattern.permute.xlu0 60
      %5499 = vperm.xlu0 %5498, %v4604
      %v5500 = vpop.permute.xlu0 %5499
      %v5503 = vsel %vm402, %v5472, 0
      %v5506 = vsel %vm402, %v5473, 0
      %v5509 = vsel %vm402, %v5474, 0
      %v5512 = vsel %vm402, %v5475, 0
      %v5515 = vsel %vm402, %v5476, 0
      %v5518 = vsel %vm402, %v5477, 0
      %5520 = vmatprep.subr.mxu0 0.0
      %5521 = vmatpush1.msra.mxu0 %v5470
      %5522 = vmatprep.subr.mxu0 0.0
      %5523 = vmatpush1.msra.mxu0 %v5471
      %5524 = vmatprep.subr.mxu0 0.0
      %5525 = vmatpush1.msra.mxu0 0.0
      %5526 = vmatprep.subr.mxu0 0.0
      %5527 = vmatpush1.msra.mxu0 0.0
      %5528 = vmatprep.subr.mxu0 0.0
      %5529 = vmatpush1.msra.mxu0 0.0
      %5530 = vmatprep.subr.mxu0 0.0
      %5531 = vmatpush1.msra.mxu0 0.0
      %5532 = vmatprep.subr.mxu0 0.0
      %5533 = vmatpush1.msra.mxu0 0.0
      %5534 = vmatprep.subr.mxu0 0.0
      %5535 = vmatpush1.msra.mxu0 0.0
      %5536 = vmatprep.subr.mxu0 0.0
      %5537 = vmatpush1.msra.mxu0 0.0
      %5538 = vmatprep.subr.mxu0 0.0
      %5539 = vmatpush1.msra.mxu0 0.0
      %5540 = vmatprep.subr.mxu0 0.0
      %5541 = vmatpush1.msra.mxu0 0.0
      %5542 = vmatprep.subr.mxu0 0.0
      %5543 = vmatpush1.msra.mxu0 0.0
      %5544 = vmatprep.subr.mxu0 0.0
      %5545 = vmatpush1.msra.mxu0 0.0
      %5546 = vmatprep.subr.mxu0 0.0
      %5547 = vmatpush1.msra.mxu0 0.0
      %5548 = vmatprep.subr.mxu0 0.0
      %5549 = vmatpush1.msra.mxu0 0.0
      %5550 = vmatprep.subr.mxu0 0.0
      %5551 = vmatpush1.msra.mxu0 0.0
      %5552 = vmatprep.subr.mxu0 0.0
      %5553 = vmatpush1.msra.mxu0 0.0
      %5554 = vmatprep.subr.mxu0 0.0
      %5555 = vmatpush1.msra.mxu0 0.0
      %5556 = vmatprep.subr.mxu0 0.0
      %5557 = vmatpush1.msra.mxu0 0.0
      %5558 = vmatprep.subr.mxu0 0.0
      %5559 = vmatpush1.msra.mxu0 0.0
      %5560 = vmatprep.subr.mxu0 0.0
      %5561 = vmatpush1.msra.mxu0 0.0
      %5562 = vmatprep.subr.mxu0 0.0
      %5563 = vmatpush1.msra.mxu0 0.0
      %5564 = vmatprep.subr.mxu0 0.0
      %5565 = vmatpush1.msra.mxu0 0.0
      %5566 = vmatprep.subr.mxu0 0.0
      %5567 = vmatpush1.msra.mxu0 0.0
      %5568 = vmatprep.subr.mxu0 0.0
      %5569 = vmatpush1.msra.mxu0 0.0
      %5570 = vmatprep.subr.mxu0 0.0
      %5571 = vmatpush1.msra.mxu0 0.0
      %5572 = vmatprep.subr.mxu0 0.0
      %5573 = vmatpush1.msra.mxu0 0.0
      %5574 = vmatprep.subr.mxu0 0.0
      %5575 = vmatpush1.msra.mxu0 0.0
      %5576 = vmatprep.subr.mxu0 0.0
      %5577 = vmatpush1.msra.mxu0 0.0
      %5578 = vmatprep.subr.mxu0 0.0
      %5579 = vmatpush1.msra.mxu0 0.0
      %5580 = vmatprep.subr.mxu0 0.0
      %5581 = vmatpush1.msra.mxu0 0.0
      %5582 = vmatprep.subr.mxu0 0.0
      %5583 = vmatpush1.msra.mxu0 0.0
      %5584 = vmatprep.mubr.f32.mxu0 0.0
      %5585 = vmatmul.mubr.f32.gmra.mrb[0].mxu0 %v5503
      %v5586 = vpop.f32.mrb[0].mxu0
      %v5587 = vadd.f32 %v5480, %v5586
      %v5588 = vpop.f32.mrb[0].mxu0
      %5589 = vmatprep.mubr.f32.mxu0 0.0
      %5590 = vmatmul.mubr.f32.gmra.mrb[0].mxu0 %v5506
      %v5591 = vpop.f32.mrb[0].mxu0
      %v5592 = vadd.f32 %v5484, %v5591
      %v5593 = vpop.f32.mrb[0].mxu0
      %5594 = vmatprep.mubr.f32.mxu0 0.0
      %5595 = vmatmul.mubr.f32.gmra.mrb[0].mxu0 %v5509
      %v5596 = vpop.f32.mrb[0].mxu0
      %v5597 = vadd.f32 %v5488, %v5596
      %v5598 = vpop.f32.mrb[0].mxu0
      %5599 = vmatprep.mubr.f32.mxu0 0.0
      %5600 = vmatmul.mubr.f32.gmra.mrb[0].mxu0 %v5512
      %v5601 = vpop.f32.mrb[0].mxu0
      %v5602 = vadd.f32 %v5492, %v5601
      %v5603 = vpop.f32.mrb[0].mxu0
      %5604 = vmatprep.mubr.f32.mxu0 0.0
      %5605 = vmatmul.mubr.f32.gmra.mrb[0].mxu0 %v5515
      %v5606 = vpop.f32.mrb[0].mxu0
      %v5607 = vadd.f32 %v5496, %v5606
      %v5608 = vpop.f32.mrb[0].mxu0
      %5609 = vmatprep.mubr.f32.mxu0 0.0
      %5610 = vmatmul.mubr.f32.gmra.mrb[0].mxu0 %v5518
      %v5611 = vpop.f32.mrb[0].mxu0
      %v5612 = vadd.f32 %v5500, %v5611
      %v5613 = vpop.f32.mrb[0].mxu0
      %5614 = vdwg.mxu0
      %5615 = vmax.xlane.f32.xlu0 %v5587
      %v5616 = vpop.xlane.xlu0 %5615
      %5617 = vmax.xlane.f32.xlu0 %v5592
      %v5618 = vpop.xlane.xlu0 %5617
      %5619 = vmax.xlane.f32.xlu0 %v5597
      %v5620 = vpop.xlane.xlu0 %5619
      %5621 = vmax.xlane.f32.xlu0 %v5602
      %v5622 = vpop.xlane.xlu0 %5621
      %5623 = vmax.xlane.f32.xlu0 %v5607
      %v5624 = vpop.xlane.xlu0 %5623
      %5625 = vmax.xlane.f32.xlu0 %v5612
      %v5626 = vpop.xlane.xlu0 %5625
      %v5627 = vsub.f32 %v5587, %v5616
      %v5628 = vsub.f32 %v5592, %v5618
      %v5629 = vsub.f32 %v5597, %v5620
      %v5630 = vsub.f32 %v5602, %v5622
      %v5631 = vsub.f32 %v5607, %v5624
      %v5632 = vsub.f32 %v5612, %v5626
      %v5633 = vmul.f32 %v5627, 1.442695
      %v5634 = vpow.pop %v5633
      %v5635 = vmul.f32 %v5628, 1.442695
      %v5636 = vpow.pop %v5635
      %v5637 = vmul.f32 %v5629, 1.442695
      %v5638 = vpow.pop %v5637
      %v5639 = vmul.f32 %v5630, 1.442695
      %v5640 = vpow.pop %v5639
      %v5641 = vmul.f32 %v5631, 1.442695
      %v5642 = vpow.pop %v5641
      %v5643 = vmul.f32 %v5632, 1.442695
      %v5644 = vpow.pop %v5643
      %5645 = vmatprep.subr.mxu0 0.0
      %5646 = vmatpush1.msra.mxu0 %v242
      %5647 = vmatprep.subr.mxu0 0.0
      %5648 = vmatpush1.msra.mxu0 %v243
      %5649 = vmatprep.subr.mxu0 0.0
      %5650 = vmatpush1.msra.mxu0 %v244
      %5651 = vmatprep.subr.mxu0 0.0
      %5652 = vmatpush1.msra.mxu0 %v245
      %5653 = vmatprep.subr.mxu0 0.0
      %5654 = vmatpush1.msra.mxu0 %v246
      %5655 = vmatprep.subr.mxu0 0.0
      %5656 = vmatpush1.msra.mxu0 %v247
      %5657 = vmatprep.subr.mxu0 0.0
      %5658 = vmatpush1.msra.mxu0 %v248
      %5659 = vmatprep.subr.mxu0 0.0
      %5660 = vmatpush1.msra.mxu0 %v249
      %5661 = vmatprep.subr.mxu0 0.0
      %5662 = vmatpush1.msra.mxu0 %v250
      %5663 = vmatprep.subr.mxu0 0.0
      %5664 = vmatpush1.msra.mxu0 %v251
      %5665 = vmatprep.subr.mxu0 0.0
      %5666 = vmatpush1.msra.mxu0 %v252
      %5667 = vmatprep.subr.mxu0 0.0
      %5668 = vmatpush1.msra.mxu0 %v253
      %5669 = vmatprep.subr.mxu0 0.0
      %5670 = vmatpush1.msra.mxu0 %v254
      %5671 = vmatprep.subr.mxu0 0.0
      %5672 = vmatpush1.msra.mxu0 %v255
      %5673 = vmatprep.subr.mxu0 0.0
      %5674 = vmatpush1.msra.mxu0 %v256
      %5675 = vmatprep.subr.mxu0 0.0
      %5676 = vmatpush1.msra.mxu0 %v257
      %5677 = vmatprep.subr.mxu0 0.0
      %5678 = vmatpush1.msra.mxu0 0.0
      %5679 = vmatprep.subr.mxu0 0.0
      %5680 = vmatpush1.msra.mxu0 0.0
      %5681 = vmatprep.subr.mxu0 0.0
      %5682 = vmatpush1.msra.mxu0 0.0
      %5683 = vmatprep.subr.mxu0 0.0
      %5684 = vmatpush1.msra.mxu0 0.0
      %5685 = vmatprep.subr.mxu0 0.0
      %5686 = vmatpush1.msra.mxu0 0.0
      %5687 = vmatprep.subr.mxu0 0.0
      %5688 = vmatpush1.msra.mxu0 0.0
      %5689 = vmatprep.subr.mxu0 0.0
      %5690 = vmatpush1.msra.mxu0 0.0
      %5691 = vmatprep.subr.mxu0 0.0
      %5692 = vmatpush1.msra.mxu0 0.0
      %5693 = vmatprep.subr.mxu0 0.0
      %5694 = vmatpush1.msra.mxu0 0.0
      %5695 = vmatprep.subr.mxu0 0.0
      %5696 = vmatpush1.msra.mxu0 0.0
      %5697 = vmatprep.subr.mxu0 0.0
      %5698 = vmatpush1.msra.mxu0 0.0
      %5699 = vmatprep.subr.mxu0 0.0
      %5700 = vmatpush1.msra.mxu0 0.0
      %5701 = vmatprep.subr.mxu0 0.0
      %5702 = vmatpush1.msra.mxu0 0.0
      %5703 = vmatprep.subr.mxu0 0.0
      %5704 = vmatpush1.msra.mxu0 0.0
      %5705 = vmatprep.subr.mxu0 0.0
      %5706 = vmatpush1.msra.mxu0 0.0
      %5707 = vmatprep.subr.mxu0 0.0
      %5708 = vmatpush1.msra.mxu0 0.0
      %5709 = vmatprep.mubr.f32.mxu0 0.0
      %5710 = vmatmul.mubr.f32.gmra.mrb[0].mxu0 %v5634
      %v5711 = vpop.f32.mrb[0].mxu0
      %v5712 = vadd.f32 0.0, %v5711
      %v5713 = vpop.f32.mrb[0].mxu0
      %5714 = vmatprep.mubr.f32.mxu0 0.0
      %5715 = vmatmul.mubr.f32.gmra.mrb[0].mxu0 %v5636
      %v5716 = vpop.f32.mrb[0].mxu0
      %v5717 = vadd.f32 0.0, %v5716
      %v5718 = vpop.f32.mrb[0].mxu0
      %5719 = vmatprep.mubr.f32.mxu0 0.0
      %5720 = vmatmul.mubr.f32.gmra.mrb[0].mxu0 %v5638
      %v5721 = vpop.f32.mrb[0].mxu0
      %v5722 = vadd.f32 0.0, %v5721
      %v5723 = vpop.f32.mrb[0].mxu0
      %5724 = vmatprep.mubr.f32.mxu0 0.0
      %5725 = vmatmul.mubr.f32.gmra.mrb[0].mxu0 %v5640
      %v5726 = vpop.f32.mrb[0].mxu0
      %v5727 = vadd.f32 0.0, %v5726
      %v5728 = vpop.f32.mrb[0].mxu0
      %5729 = vmatprep.mubr.f32.mxu0 0.0
      %5730 = vmatmul.mubr.f32.gmra.mrb[0].mxu0 %v5642
      %v5731 = vpop.f32.mrb[0].mxu0
      %v5732 = vadd.f32 0.0, %v5731
      %v5733 = vpop.f32.mrb[0].mxu0
      %5734 = vmatprep.mubr.f32.mxu0 0.0
      %5735 = vmatmul.mubr.f32.gmra.mrb[0].mxu0 %v5644
      %v5736 = vpop.f32.mrb[0].mxu0
      %v5737 = vadd.f32 0.0, %v5736
      %v5738 = vpop.f32.mrb[0].mxu0
      %5739 = vdwg.mxu0
      %v5740 = vrcp.pop %v5712
      %v5741 = vrcp.pop %v5717
      %v5742 = vrcp.pop %v5722
      %v5743 = vrcp.pop %v5727
      %v5744 = vrcp.pop %v5732
      %v5745 = vrcp.pop %v5737
      %v5746 = vmul.f32 %v5634, %v4809
      %v5747 = vmul.f32 %v5636, %v4810
      %v5748 = vmul.f32 %v5638, %v4811
      %v5749 = vmul.f32 %v5640, %v4812
      %v5750 = vmul.f32 %v5642, %v4813
      %v5751 = vmul.f32 %v5644, %v4814
      %5752 = vmatprep.subr.mxu0 0.0
      %5753 = vmatpush1.msra.mxu0 %v242
      %5754 = vmatprep.subr.mxu0 0.0
      %5755 = vmatpush1.msra.mxu0 %v243
      %5756 = vmatprep.subr.mxu0 0.0
      %5757 = vmatpush1.msra.mxu0 %v244
      %5758 = vmatprep.subr.mxu0 0.0
      %5759 = vmatpush1.msra.mxu0 %v245
      %5760 = vmatprep.subr.mxu0 0.0
      %5761 = vmatpush1.msra.mxu0 %v246
      %5762 = vmatprep.subr.mxu0 0.0
      %5763 = vmatpush1.msra.mxu0 %v247
      %5764 = vmatprep.subr.mxu0 0.0
      %5765 = vmatpush1.msra.mxu0 %v248
      %5766 = vmatprep.subr.mxu0 0.0
      %5767 = vmatpush1.msra.mxu0 %v249
      %5768 = vmatprep.subr.mxu0 0.0
      %5769 = vmatpush1.msra.mxu0 %v250
      %5770 = vmatprep.subr.mxu0 0.0
      %5771 = vmatpush1.msra.mxu0 %v251
      %5772 = vmatprep.subr.mxu0 0.0
      %5773 = vmatpush1.msra.mxu0 %v252
      %5774 = vmatprep.subr.mxu0 0.0
      %5775 = vmatpush1.msra.mxu0 %v253
      %5776 = vmatprep.subr.mxu0 0.0
      %5777 = vmatpush1.msra.mxu0 %v254
      %5778 = vmatprep.subr.mxu0 0.0
      %5779 = vmatpush1.msra.mxu0 %v255
      %5780 = vmatprep.subr.mxu0 0.0
      %5781 = vmatpush1.msra.mxu0 %v256
      %5782 = vmatprep.subr.mxu0 0.0
      %5783 = vmatpush1.msra.mxu0 %v257
      %5784 = vmatprep.subr.mxu0 0.0
      %5785 = vmatpush1.msra.mxu0 0.0
      %5786 = vmatprep.subr.mxu0 0.0
      %5787 = vmatpush1.msra.mxu0 0.0
      %5788 = vmatprep.subr.mxu0 0.0
      %5789 = vmatpush1.msra.mxu0 0.0
      %5790 = vmatprep.subr.mxu0 0.0
      %5791 = vmatpush1.msra.mxu0 0.0
      %5792 = vmatprep.subr.mxu0 0.0
      %5793 = vmatpush1.msra.mxu0 0.0
      %5794 = vmatprep.subr.mxu0 0.0
      %5795 = vmatpush1.msra.mxu0 0.0
      %5796 = vmatprep.subr.mxu0 0.0
      %5797 = vmatpush1.msra.mxu0 0.0
      %5798 = vmatprep.subr.mxu0 0.0
      %5799 = vmatpush1.msra.mxu0 0.0
      %5800 = vmatprep.subr.mxu0 0.0
      %5801 = vmatpush1.msra.mxu0 0.0
      %5802 = vmatprep.subr.mxu0 0.0
      %5803 = vmatpush1.msra.mxu0 0.0
      %5804 = vmatprep.subr.mxu0 0.0
      %5805 = vmatpush1.msra.mxu0 0.0
      %5806 = vmatprep.subr.mxu0 0.0
      %5807 = vmatpush1.msra.mxu0 0.0
      %5808 = vmatprep.subr.mxu0 0.0
      %5809 = vmatpush1.msra.mxu0 0.0
      %5810 = vmatprep.subr.mxu0 0.0
      %5811 = vmatpush1.msra.mxu0 0.0
      %5812 = vmatprep.subr.mxu0 0.0
      %5813 = vmatpush1.msra.mxu0 0.0
      %5814 = vmatprep.subr.mxu0 0.0
      %5815 = vmatpush1.msra.mxu0 0.0
      %5816 = vmatprep.mubr.f32.mxu0 0.0
      %5817 = vmatmul.mubr.f32.gmra.mrb[0].mxu0 %v5746
      %v5818 = vpop.f32.mrb[0].mxu0
      %v5819 = vadd.f32 0.0, %v5818
      %v5820 = vpop.f32.mrb[0].mxu0
      %5821 = vmatprep.mubr.f32.mxu0 0.0
      %5822 = vmatmul.mubr.f32.gmra.mrb[0].mxu0 %v5747
      %v5823 = vpop.f32.mrb[0].mxu0
      %v5824 = vadd.f32 0.0, %v5823
      %v5825 = vpop.f32.mrb[0].mxu0
      %5826 = vmatprep.mubr.f32.mxu0 0.0
      %5827 = vmatmul.mubr.f32.gmra.mrb[0].mxu0 %v5748
      %v5828 = vpop.f32.mrb[0].mxu0
      %v5829 = vadd.f32 0.0, %v5828
      %v5830 = vpop.f32.mrb[0].mxu0
      %5831 = vmatprep.mubr.f32.mxu0 0.0
      %5832 = vmatmul.mubr.f32.gmra.mrb[0].mxu0 %v5749
      %v5833 = vpop.f32.mrb[0].mxu0
      %v5834 = vadd.f32 0.0, %v5833
      %v5835 = vpop.f32.mrb[0].mxu0
      %5836 = vmatprep.mubr.f32.mxu0 0.0
      %5837 = vmatmul.mubr.f32.gmra.mrb[0].mxu0 %v5750
      %v5838 = vpop.f32.mrb[0].mxu0
      %v5839 = vadd.f32 0.0, %v5838
      %v5840 = vpop.f32.mrb[0].mxu0
      %5841 = vmatprep.mubr.f32.mxu0 0.0
      %5842 = vmatmul.mubr.f32.gmra.mrb[0].mxu0 %v5751
      %v5843 = vpop.f32.mrb[0].mxu0
      %v5844 = vadd.f32 0.0, %v5843
      %v5845 = vpop.f32.mrb[0].mxu0
      %5846 = vdwg.mxu0
      %v5847 = vmul.f32 %v5819, %v5740
      %v5848 = vmul.f32 %v5824, %v5741
      %v5849 = vmul.f32 %v5829, %v5742
      %v5850 = vmul.f32 %v5834, %v5743
      %v5851 = vmul.f32 %v5839, %v5744
      %v5852 = vmul.f32 %v5844, %v5745
      %v5854 = vsel %vm1606, %v5847, 0
      %v5857 = vsel %vm1606, %v5848, 0
      %v5860 = vsel %vm1606, %v5849, 0
      %v5863 = vsel %vm1606, %v5850, 0
      %v5866 = vsel %vm1606, %v5851, 0
      %v5869 = vsel %vm1606, %v5852, 0
      %5871 = vmatprep.subr.mxu0 0.0
      %5872 = vmatpush1.msra.mxu0 %v264
      %5873 = vmatprep.subr.mxu0 0.0
      %5874 = vmatpush1.msra.mxu0 0.0
      %5875 = vmatprep.subr.mxu0 0.0
      %5876 = vmatpush1.msra.mxu0 0.0
      %5877 = vmatprep.subr.mxu0 0.0
      %5878 = vmatpush1.msra.mxu0 0.0
      %5879 = vmatprep.subr.mxu0 0.0
      %5880 = vmatpush1.msra.mxu0 0.0
      %5881 = vmatprep.subr.mxu0 0.0
      %5882 = vmatpush1.msra.mxu0 0.0
      %5883 = vmatprep.subr.mxu0 0.0
      %5884 = vmatpush1.msra.mxu0 0.0
      %5885 = vmatprep.subr.mxu0 0.0
      %5886 = vmatpush1.msra.mxu0 0.0
      %5887 = vmatprep.subr.mxu0 0.0
      %5888 = vmatpush1.msra.mxu0 0.0
      %5889 = vmatprep.subr.mxu0 0.0
      %5890 = vmatpush1.msra.mxu0 0.0
      %5891 = vmatprep.subr.mxu0 0.0
      %5892 = vmatpush1.msra.mxu0 0.0
      %5893 = vmatprep.subr.mxu0 0.0
      %5894 = vmatpush1.msra.mxu0 0.0
      %5895 = vmatprep.subr.mxu0 0.0
      %5896 = vmatpush1.msra.mxu0 0.0
      %5897 = vmatprep.subr.mxu0 0.0
      %5898 = vmatpush1.msra.mxu0 0.0
      %5899 = vmatprep.subr.mxu0 0.0
      %5900 = vmatpush1.msra.mxu0 0.0
      %5901 = vmatprep.subr.mxu0 0.0
      %5902 = vmatpush1.msra.mxu0 0.0
      %5903 = vmatprep.subr.mxu0 0.0
      %5904 = vmatpush1.msra.mxu0 0.0
      %5905 = vmatprep.subr.mxu0 0.0
      %5906 = vmatpush1.msra.mxu0 0.0
      %5907 = vmatprep.subr.mxu0 0.0
      %5908 = vmatpush1.msra.mxu0 0.0
      %5909 = vmatprep.subr.mxu0 0.0
      %5910 = vmatpush1.msra.mxu0 0.0
      %5911 = vmatprep.subr.mxu0 0.0
      %5912 = vmatpush1.msra.mxu0 0.0
      %5913 = vmatprep.subr.mxu0 0.0
      %5914 = vmatpush1.msra.mxu0 0.0
      %5915 = vmatprep.subr.mxu0 0.0
      %5916 = vmatpush1.msra.mxu0 0.0
      %5917 = vmatprep.subr.mxu0 0.0
      %5918 = vmatpush1.msra.mxu0 0.0
      %5919 = vmatprep.subr.mxu0 0.0
      %5920 = vmatpush1.msra.mxu0 0.0
      %5921 = vmatprep.subr.mxu0 0.0
      %5922 = vmatpush1.msra.mxu0 0.0
      %5923 = vmatprep.subr.mxu0 0.0
      %5924 = vmatpush1.msra.mxu0 0.0
      %5925 = vmatprep.subr.mxu0 0.0
      %5926 = vmatpush1.msra.mxu0 0.0
      %5927 = vmatprep.subr.mxu0 0.0
      %5928 = vmatpush1.msra.mxu0 0.0
      %5929 = vmatprep.subr.mxu0 0.0
      %5930 = vmatpush1.msra.mxu0 0.0
      %5931 = vmatprep.subr.mxu0 0.0
      %5932 = vmatpush1.msra.mxu0 0.0
      %5933 = vmatprep.subr.mxu0 0.0
      %5934 = vmatpush1.msra.mxu0 0.0
      %5935 = vmatprep.mubr.f32.mxu0 0.0
      %5936 = vmatmul.mubr.f32.gmra.mrb[0].mxu0 %v5854
      %v5937 = vpop.f32.mrb[0].mxu0
      %v5938 = vadd.f32 0.0, %v5937
      %v5939 = vpop.f32.mrb[0].mxu0
      %5940 = vmatprep.mubr.f32.mxu0 0.0
      %5941 = vmatmul.mubr.f32.gmra.mrb[0].mxu0 %v5857
      %v5942 = vpop.f32.mrb[0].mxu0
      %v5943 = vadd.f32 0.0, %v5942
      %v5944 = vpop.f32.mrb[0].mxu0
      %5945 = vmatprep.mubr.f32.mxu0 0.0
      %5946 = vmatmul.mubr.f32.gmra.mrb[0].mxu0 %v5860
      %v5947 = vpop.f32.mrb[0].mxu0
      %v5948 = vadd.f32 0.0, %v5947
      %v5949 = vpop.f32.mrb[0].mxu0
      %5950 = vmatprep.mubr.f32.mxu0 0.0
      %5951 = vmatmul.mubr.f32.gmra.mrb[0].mxu0 %v5863
      %v5952 = vpop.f32.mrb[0].mxu0
      %v5953 = vadd.f32 0.0, %v5952
      %v5954 = vpop.f32.mrb[0].mxu0
      %5955 = vmatprep.mubr.f32.mxu0 0.0
      %5956 = vmatmul.mubr.f32.gmra.mrb[0].mxu0 %v5866
      %v5957 = vpop.f32.mrb[0].mxu0
      %v5958 = vadd.f32 0.0, %v5957
      %v5959 = vpop.f32.mrb[0].mxu0
      %5960 = vmatprep.mubr.f32.mxu0 0.0
      %5961 = vmatmul.mubr.f32.gmra.mrb[0].mxu0 %v5869
      %v5962 = vpop.f32.mrb[0].mxu0
      %v5963 = vadd.f32 0.0, %v5962
      %v5964 = vpop.f32.mrb[0].mxu0
      %5965 = vdwg.mxu0
      %v5966 = vsub.f32 %v4809, %v5938
      %v5967 = vsub.f32 %v4810, %v5943
      %v5968 = vsub.f32 %v4811, %v5948
      %v5969 = vsub.f32 %v4812, %v5953
      %v5970 = vsub.f32 %v4813, %v5958
      %v5971 = vsub.f32 %v4814, %v5963
      %v5972 = vmul.f32 %v5634, %v5966
      %v5973 = vmul.f32 %v5636, %v5967
      %v5974 = vmul.f32 %v5638, %v5968
      %v5975 = vmul.f32 %v5640, %v5969
      %v5976 = vmul.f32 %v5642, %v5970
      %v5977 = vmul.f32 %v5644, %v5971
      %v5978 = vmul.f32 %v5972, %v5966
      %v5979 = vmul.f32 %v5973, %v5967
      %v5980 = vmul.f32 %v5974, %v5968
      %v5981 = vmul.f32 %v5975, %v5969
      %v5982 = vmul.f32 %v5976, %v5970
      %v5983 = vmul.f32 %v5977, %v5971
      %5984 = vmatprep.subr.mxu0 0.0
      %5985 = vmatpush1.msra.mxu0 %v242
      %5986 = vmatprep.subr.mxu0 0.0
      %5987 = vmatpush1.msra.mxu0 %v243
      %5988 = vmatprep.subr.mxu0 0.0
      %5989 = vmatpush1.msra.mxu0 %v244
      %5990 = vmatprep.subr.mxu0 0.0
      %5991 = vmatpush1.msra.mxu0 %v245
      %5992 = vmatprep.subr.mxu0 0.0
      %5993 = vmatpush1.msra.mxu0 %v246
      %5994 = vmatprep.subr.mxu0 0.0
      %5995 = vmatpush1.msra.mxu0 %v247
      %5996 = vmatprep.subr.mxu0 0.0
      %5997 = vmatpush1.msra.mxu0 %v248
      %5998 = vmatprep.subr.mxu0 0.0
      %5999 = vmatpush1.msra.mxu0 %v249
      %6000 = vmatprep.subr.mxu0 0.0
      %6001 = vmatpush1.msra.mxu0 %v250
      %6002 = vmatprep.subr.mxu0 0.0
      %6003 = vmatpush1.msra.mxu0 %v251
      %6004 = vmatprep.subr.mxu0 0.0
      %6005 = vmatpush1.msra.mxu0 %v252
      %6006 = vmatprep.subr.mxu0 0.0
      %6007 = vmatpush1.msra.mxu0 %v253
      %6008 = vmatprep.subr.mxu0 0.0
      %6009 = vmatpush1.msra.mxu0 %v254
      %6010 = vmatprep.subr.mxu0 0.0
      %6011 = vmatpush1.msra.mxu0 %v255
      %6012 = vmatprep.subr.mxu0 0.0
      %6013 = vmatpush1.msra.mxu0 %v256
      %6014 = vmatprep.subr.mxu0 0.0
      %6015 = vmatpush1.msra.mxu0 %v257
      %6016 = vmatprep.subr.mxu0 0.0
      %6017 = vmatpush1.msra.mxu0 0.0
      %6018 = vmatprep.subr.mxu0 0.0
      %6019 = vmatpush1.msra.mxu0 0.0
      %6020 = vmatprep.subr.mxu0 0.0
      %6021 = vmatpush1.msra.mxu0 0.0
      %6022 = vmatprep.subr.mxu0 0.0
      %6023 = vmatpush1.msra.mxu0 0.0
      %6024 = vmatprep.subr.mxu0 0.0
      %6025 = vmatpush1.msra.mxu0 0.0
      %6026 = vmatprep.subr.mxu0 0.0
      %6027 = vmatpush1.msra.mxu0 0.0
      %6028 = vmatprep.subr.mxu0 0.0
      %6029 = vmatpush1.msra.mxu0 0.0
      %6030 = vmatprep.subr.mxu0 0.0
      %6031 = vmatpush1.msra.mxu0 0.0
      %6032 = vmatprep.subr.mxu0 0.0
      %6033 = vmatpush1.msra.mxu0 0.0
      %6034 = vmatprep.subr.mxu0 0.0
      %6035 = vmatpush1.msra.mxu0 0.0
      %6036 = vmatprep.subr.mxu0 0.0
      %6037 = vmatpush1.msra.mxu0 0.0
      %6038 = vmatprep.subr.mxu0 0.0
      %6039 = vmatpush1.msra.mxu0 0.0
      %6040 = vmatprep.subr.mxu0 0.0
      %6041 = vmatpush1.msra.mxu0 0.0
      %6042 = vmatprep.subr.mxu0 0.0
      %6043 = vmatpush1.msra.mxu0 0.0
      %6044 = vmatprep.subr.mxu0 0.0
      %6045 = vmatpush1.msra.mxu0 0.0
      %6046 = vmatprep.subr.mxu0 0.0
      %6047 = vmatpush1.msra.mxu0 0.0
      %6048 = vmatprep.mubr.f32.mxu0 0.0
      %6049 = vmatmul.mubr.f32.gmra.mrb[0].mxu0 %v5978
      %v6050 = vpop.f32.mrb[0].mxu0
      %v6051 = vadd.f32 0.0, %v6050
      %v6052 = vpop.f32.mrb[0].mxu0
      %6053 = vmatprep.mubr.f32.mxu0 0.0
      %6054 = vmatmul.mubr.f32.gmra.mrb[0].mxu0 %v5979
      %v6055 = vpop.f32.mrb[0].mxu0
      %v6056 = vadd.f32 0.0, %v6055
      %v6057 = vpop.f32.mrb[0].mxu0
      %6058 = vmatprep.mubr.f32.mxu0 0.0
      %6059 = vmatmul.mubr.f32.gmra.mrb[0].mxu0 %v5980
      %v6060 = vpop.f32.mrb[0].mxu0
      %v6061 = vadd.f32 0.0, %v6060
      %v6062 = vpop.f32.mrb[0].mxu0
      %6063 = vmatprep.mubr.f32.mxu0 0.0
      %6064 = vmatmul.mubr.f32.gmra.mrb[0].mxu0 %v5981
      %v6065 = vpop.f32.mrb[0].mxu0
      %v6066 = vadd.f32 0.0, %v6065
      %v6067 = vpop.f32.mrb[0].mxu0
      %6068 = vmatprep.mubr.f32.mxu0 0.0
      %6069 = vmatmul.mubr.f32.gmra.mrb[0].mxu0 %v5982
      %v6070 = vpop.f32.mrb[0].mxu0
      %v6071 = vadd.f32 0.0, %v6070
      %v6072 = vpop.f32.mrb[0].mxu0
      %6073 = vmatprep.mubr.f32.mxu0 0.0
      %6074 = vmatmul.mubr.f32.gmra.mrb[0].mxu0 %v5983
      %v6075 = vpop.f32.mrb[0].mxu0
      %v6076 = vadd.f32 0.0, %v6075
      %v6077 = vpop.f32.mrb[0].mxu0
      %6078 = vdwg.mxu0
      %v6079 = vmul.f32 %v6051, %v5740
      %v6080 = vmul.f32 %v6056, %v5741
      %v6081 = vmul.f32 %v6061, %v5742
      %v6082 = vmul.f32 %v6066, %v5743
      %v6083 = vmul.f32 %v6071, %v5744
      %v6084 = vmul.f32 %v6076, %v5745
      %v6085 = vmax.f32 %v6079, 1e-12
      %v6086 = vmax.f32 %v6080, 1e-12
      %v6087 = vmax.f32 %v6081, 1e-12
      %v6088 = vmax.f32 %v6082, 1e-12
      %v6089 = vmax.f32 %v6083, 1e-12
      %v6090 = vmax.f32 %v6084, 1e-12
      %v6091 = vrsqrt.pop %v6085
      %v6092 = vmul.f32 %v6085, %v6091
      %vm6093 = vcmp.eq.f32.partialorder %v6085, inf
      %v6094 = vsel %vm6093, %v6085, %v6092
      %vm6095 = vcmp.eq.f32.partialorder %v6085, 0.0
      %v6096 = vand.u32 %v6085, 2147483648
      %v6097 = vsel %vm6095, %v6096, %v6094
      %v6098 = vrsqrt.pop %v6086
      %v6099 = vmul.f32 %v6086, %v6098
      %vm6100 = vcmp.eq.f32.partialorder %v6086, inf
      %v6101 = vsel %vm6100, %v6086, %v6099
      %vm6102 = vcmp.eq.f32.partialorder %v6086, 0.0
      %v6103 = vand.u32 %v6086, 2147483648
      %v6104 = vsel %vm6102, %v6103, %v6101
      %v6105 = vrsqrt.pop %v6087
      %v6106 = vmul.f32 %v6087, %v6105
      %vm6107 = vcmp.eq.f32.partialorder %v6087, inf
      %v6108 = vsel %vm6107, %v6087, %v6106
      %vm6109 = vcmp.eq.f32.partialorder %v6087, 0.0
      %v6110 = vand.u32 %v6087, 2147483648
      %v6111 = vsel %vm6109, %v6110, %v6108
      %v6112 = vrsqrt.pop %v6088
      %v6113 = vmul.f32 %v6088, %v6112
      %vm6114 = vcmp.eq.f32.partialorder %v6088, inf
      %v6115 = vsel %vm6114, %v6088, %v6113
      %vm6116 = vcmp.eq.f32.partialorder %v6088, 0.0
      %v6117 = vand.u32 %v6088, 2147483648
      %v6118 = vsel %vm6116, %v6117, %v6115
      %v6119 = vrsqrt.pop %v6089
      %v6120 = vmul.f32 %v6089, %v6119
      %vm6121 = vcmp.eq.f32.partialorder %v6089, inf
      %v6122 = vsel %vm6121, %v6089, %v6120
      %vm6123 = vcmp.eq.f32.partialorder %v6089, 0.0
      %v6124 = vand.u32 %v6089, 2147483648
      %v6125 = vsel %vm6123, %v6124, %v6122
      %v6126 = vrsqrt.pop %v6090
      %v6127 = vmul.f32 %v6090, %v6126
      %vm6128 = vcmp.eq.f32.partialorder %v6090, inf
      %v6129 = vsel %vm6128, %v6090, %v6127
      %vm6130 = vcmp.eq.f32.partialorder %v6090, 0.0
      %v6131 = vand.u32 %v6090, 2147483648
      %v6132 = vsel %vm6130, %v6131, %v6129
      %6133 = vset.pattern.permute.xlu0 61
      %6134 = vperm.xlu0 %6133, %v4599
      %v6135 = vpop.permute.xlu0 %6134
      %6137 = vset.pattern.permute.xlu0 61
      %6138 = vperm.xlu0 %6137, %v4600
      %v6139 = vpop.permute.xlu0 %6138
      %6141 = vset.pattern.permute.xlu0 61
      %6142 = vperm.xlu0 %6141, %v4601
      %v6143 = vpop.permute.xlu0 %6142
      %6145 = vset.pattern.permute.xlu0 61
      %6146 = vperm.xlu0 %6145, %v4602
      %v6147 = vpop.permute.xlu0 %6146
      %6149 = vset.pattern.permute.xlu0 61
      %6150 = vperm.xlu0 %6149, %v4603
      %v6151 = vpop.permute.xlu0 %6150
      %6153 = vset.pattern.permute.xlu0 61
      %6154 = vperm.xlu0 %6153, %v4604
      %v6155 = vpop.permute.xlu0 %6154
      %v6157 = vmul.f32 %v5847, %v6135
      %v6158 = vmul.f32 %v5848, %v6139
      %v6159 = vmul.f32 %v5849, %v6143
      %v6160 = vmul.f32 %v5850, %v6147
      %v6161 = vmul.f32 %v5851, %v6151
      %v6162 = vmul.f32 %v5852, %v6155
      %6163 = vset.pattern.permute.xlu0 62
      %6164 = vperm.xlu0 %6163, %v4599
      %v6165 = vpop.permute.xlu0 %6164
      %6167 = vset.pattern.permute.xlu0 62
      %6168 = vperm.xlu0 %6167, %v4600
      %v6169 = vpop.permute.xlu0 %6168
      %6171 = vset.pattern.permute.xlu0 62
      %6172 = vperm.xlu0 %6171, %v4601
      %v6173 = vpop.permute.xlu0 %6172
      %6175 = vset.pattern.permute.xlu0 62
      %6176 = vperm.xlu0 %6175, %v4602
      %v6177 = vpop.permute.xlu0 %6176
      %6179 = vset.pattern.permute.xlu0 62
      %6180 = vperm.xlu0 %6179, %v4603
      %v6181 = vpop.permute.xlu0 %6180
      %6183 = vset.pattern.permute.xlu0 62
      %6184 = vperm.xlu0 %6183, %v4604
      %v6185 = vpop.permute.xlu0 %6184
      %v6187 = vadd.f32 %v6157, %v6165
      %v6188 = vadd.f32 %v6158, %v6169
      %v6189 = vadd.f32 %v6159, %v6173
      %v6190 = vadd.f32 %v6160, %v6177
      %v6191 = vadd.f32 %v6161, %v6181
      %v6192 = vadd.f32 %v6162, %v6185
      %6193 = vset.pattern.permute.xlu0 63
      %6194 = vperm.xlu0 %6193, %v4599
      %v6195 = vpop.permute.xlu0 %6194
      %6197 = vset.pattern.permute.xlu0 63
      %6198 = vperm.xlu0 %6197, %v4600
      %v6199 = vpop.permute.xlu0 %6198
      %6201 = vset.pattern.permute.xlu0 63
      %6202 = vperm.xlu0 %6201, %v4601
      %v6203 = vpop.permute.xlu0 %6202
      %6205 = vset.pattern.permute.xlu0 63
      %6206 = vperm.xlu0 %6205, %v4602
      %v6207 = vpop.permute.xlu0 %6206
      %6209 = vset.pattern.permute.xlu0 63
      %6210 = vperm.xlu0 %6209, %v4603
      %v6211 = vpop.permute.xlu0 %6210
      %6213 = vset.pattern.permute.xlu0 63
      %6214 = vperm.xlu0 %6213, %v4604
      %v6215 = vpop.permute.xlu0 %6214
      %v6217 = vmul.f32 %v6097, %v6195
      %v6218 = vmul.f32 %v6104, %v6199
      %v6219 = vmul.f32 %v6111, %v6203
      %v6220 = vmul.f32 %v6118, %v6207
      %v6221 = vmul.f32 %v6125, %v6211
      %v6222 = vmul.f32 %v6132, %v6215
      %6223 = vset.pattern.permute.xlu0 64
      %6224 = vperm.xlu0 %6223, %v4599
      %v6225 = vpop.permute.xlu0 %6224
      %6227 = vset.pattern.permute.xlu0 64
      %6228 = vperm.xlu0 %6227, %v4600
      %v6229 = vpop.permute.xlu0 %6228
      %6231 = vset.pattern.permute.xlu0 64
      %6232 = vperm.xlu0 %6231, %v4601
      %v6233 = vpop.permute.xlu0 %6232
      %6235 = vset.pattern.permute.xlu0 64
      %6236 = vperm.xlu0 %6235, %v4602
      %v6237 = vpop.permute.xlu0 %6236
      %6239 = vset.pattern.permute.xlu0 64
      %6240 = vperm.xlu0 %6239, %v4603
      %v6241 = vpop.permute.xlu0 %6240
      %6243 = vset.pattern.permute.xlu0 64
      %6244 = vperm.xlu0 %6243, %v4604
      %v6245 = vpop.permute.xlu0 %6244
      %v6247 = vadd.f32 %v6217, %v6225
      %v6248 = vadd.f32 %v6218, %v6229
      %v6249 = vadd.f32 %v6219, %v6233
      %v6250 = vadd.f32 %v6220, %v6237
      %v6251 = vadd.f32 %v6221, %v6241
      %v6252 = vadd.f32 %v6222, %v6245
      %v6253 = vld [vmem:[%s1 + $0x180] sm:$0xff]
      %v6254 = vld [vmem:[%s1 + $0x188] sm:$0xf]
      %v6255 = vld [vmem:[%s2] sm:$0xff]
      %v6256 = vld [vmem:[%s2 + $0x8] sm:$0xf]
      %6258 = vset.pattern.permute.xlu0 65
      %6259 = vperm.xlu0 %6258, %v6255
      %v6260 = vpop.permute.xlu0 %6259
      %6263 = vset.pattern.permute.xlu0 65
      %6264 = vperm.xlu0 %6263, %v6256
      %v6265 = vpop.permute.xlu0 %6264
      %v6268 = vsel %vm5194, %v6253, 0
      %v6271 = vsel %vm5194, %v6254, 0
      %6273 = vmatprep.subr.mxu0 0.0
      %6274 = vmatpush1.msra.mxu0 %v6187
      %6275 = vmatprep.subr.mxu0 0.0
      %6276 = vmatpush1.msra.mxu0 %v6188
      %6277 = vmatprep.subr.mxu0 0.0
      %6278 = vmatpush1.msra.mxu0 %v6189
      %6279 = vmatprep.subr.mxu0 0.0
      %6280 = vmatpush1.msra.mxu0 %v6190
      %6281 = vmatprep.subr.mxu0 0.0
      %6282 = vmatpush1.msra.mxu0 %v6191
      %6283 = vmatprep.subr.mxu0 0.0
      %6284 = vmatpush1.msra.mxu0 %v6192
      %6285 = vmatprep.subr.mxu0 0.0
      %6286 = vmatpush1.msra.mxu0 %v6247
      %6287 = vmatprep.subr.mxu0 0.0
      %6288 = vmatpush1.msra.mxu0 %v6248
      %6289 = vmatprep.subr.mxu0 0.0
      %6290 = vmatpush1.msra.mxu0 %v6249
      %6291 = vmatprep.subr.mxu0 0.0
      %6292 = vmatpush1.msra.mxu0 %v6250
      %6293 = vmatprep.subr.mxu0 0.0
      %6294 = vmatpush1.msra.mxu0 %v6251
      %6295 = vmatprep.subr.mxu0 0.0
      %6296 = vmatpush1.msra.mxu0 %v6252
      %6297 = vmatprep.subr.mxu0 0.0
      %6298 = vmatpush1.msra.mxu0 0.0
      %6299 = vmatprep.subr.mxu0 0.0
      %6300 = vmatpush1.msra.mxu0 0.0
      %6301 = vmatprep.subr.mxu0 0.0
      %6302 = vmatpush1.msra.mxu0 0.0
      %6303 = vmatprep.subr.mxu0 0.0
      %6304 = vmatpush1.msra.mxu0 0.0
      %6305 = vmatprep.subr.mxu0 0.0
      %6306 = vmatpush1.msra.mxu0 0.0
      %6307 = vmatprep.subr.mxu0 0.0
      %6308 = vmatpush1.msra.mxu0 0.0
      %6309 = vmatprep.subr.mxu0 0.0
      %6310 = vmatpush1.msra.mxu0 0.0
      %6311 = vmatprep.subr.mxu0 0.0
      %6312 = vmatpush1.msra.mxu0 0.0
      %6313 = vmatprep.subr.mxu0 0.0
      %6314 = vmatpush1.msra.mxu0 0.0
      %6315 = vmatprep.subr.mxu0 0.0
      %6316 = vmatpush1.msra.mxu0 0.0
      %6317 = vmatprep.subr.mxu0 0.0
      %6318 = vmatpush1.msra.mxu0 0.0
      %6319 = vmatprep.subr.mxu0 0.0
      %6320 = vmatpush1.msra.mxu0 0.0
      %6321 = vmatprep.subr.mxu0 0.0
      %6322 = vmatpush1.msra.mxu0 0.0
      %6323 = vmatprep.subr.mxu0 0.0
      %6324 = vmatpush1.msra.mxu0 0.0
      %6325 = vmatprep.subr.mxu0 0.0
      %6326 = vmatpush1.msra.mxu0 0.0
      %6327 = vmatprep.subr.mxu0 0.0
      %6328 = vmatpush1.msra.mxu0 0.0
      %6329 = vmatprep.subr.mxu0 0.0
      %6330 = vmatpush1.msra.mxu0 0.0
      %6331 = vmatprep.subr.mxu0 0.0
      %6332 = vmatpush1.msra.mxu0 0.0
      %6333 = vmatprep.subr.mxu0 0.0
      %6334 = vmatpush1.msra.mxu0 0.0
      %6335 = vmatprep.subr.mxu0 0.0
      %6336 = vmatpush1.msra.mxu0 0.0
      %6337 = vmatprep.mubr.f32.mxu0 0.0
      %6338 = vmatmul.mubr.f32.gmra.mrb[0].mxu0 %v6268
      %v6339 = vpop.f32.mrb[0].mxu0
      %v6340 = vadd.f32 %v6260, %v6339
      %v6341 = vpop.f32.mrb[0].mxu0
      %6342 = vmatprep.mubr.f32.mxu0 0.0
      %6343 = vmatmul.mubr.f32.gmra.mrb[0].mxu0 %v6271
      %v6344 = vpop.f32.mrb[0].mxu0
      %v6345 = vadd.f32 %v6265, %v6344
      %v6346 = vpop.f32.mrb[0].mxu0
      %6347 = vdwg.mxu0
      %6348 = vst.msk [vmem:[%s170] sm:$0xff] %vm1606, %v6340
      %vm6349 = vcmask 60416
      %6350 = vst.msk [vmem:[%s170 + $0x8] sm:$0xf] %vm6349, %v6345
      %p6351 = scmp.lt.s32.totalorder %s14, 1
      %s6352 = scalar_select %p6351, %s14, 1
      %s6353 = smul.addr %s6352, 2
      %s6354 = smul.addr %s6353, 8
      %s6355 = scalar_lea.vmem %s3, %s6354
      // Predicated region
      $region33: #{ecapa_forward.1} parent=31 // pred_check
        %p6356 = pneg %p100
      $region34: #{ecapa_forward.1} parent=31 // pred_check_branch
        %6358 = sbr.rel (%p6356) target = $region36
      $region35: #{ecapa_forward.1} parent=31 // pred_region
        _
      $region36: #{ecapa_forward.1} parent=31 // pred_fallthru
        _
    $region32: #{ecapa_forward.1} parent=5 // pred_fallthru
      _
    %p6359 = scmp.le.s32.totalorder 2, %s9
    // Predicated region
    $region37: #{ecapa_forward.1} parent=5 // pred_check
      %p6360 = pneg %p6359
    $region38: #{ecapa_forward.1} parent=5 // pred_check_branch
      %6362 = sbr.rel (%p6360) target = $region40
    $region39: #{ecapa_forward.1} parent=5 // pred_region
      %s6363 = ssub.s32 %s9, 2
      // Predicated region
      $region41: #{ecapa_forward.1} parent=39 // pred_check
        %p6364 = pneg %p106
      $region42: #{ecapa_forward.1} parent=39 // pred_check_branch
        %6366 = sbr.rel (%p6364) target = $region44
      $region43: #{ecapa_forward.1} parent=39 // pred_region
        %p6367 = scmp.lt.s32.totalorder %s15, 1
        %s6368 = scalar_select %p6367, %s15, 1
        %s6369 = smul.addr %s6368, 2
        %s6370 = smul.addr %s6369, 8
        %s6371 = scalar_lea.vmem %s3, %s6370
      $region44: #{ecapa_forward.1} parent=39 // pred_fallthru
        _
    $region40: #{ecapa_forward.1} parent=5 // pred_fallthru
      _
  $region6: #{ecapa_forward.1} parent=0 // loop_footer
    %s13 = sadd.s32 1, %s9
  $region7: #{ecapa_forward.1} parent=0 // loop_footer_branch
    %8 = sbr.rel target = $region3
  $region8: #{ecapa_forward.1} parent=0 // loop_exit
    _

</llo_original>
